<compile_context>
chip_gen: v6e
topology: v6e:2x2x1
jax: 0.10.0
libtpu: 0.0.40
codegen_flags: <defaults>
</compile_context>

<pallas_src>
import functools

import jax
import jax.numpy as jnp
import numpy as np
from jax.experimental import pallas as pl
from jax.experimental.pallas import tpu as pltpu

EPS = 1e-5
C_HID = 32
K1, S1 = 133, 5
NSHIFT = 27          # ceil(133 / 5): stride-5 tap groups covering the k=133 window


# ----------------------------- in-kernel helpers -----------------------------

def _bn_stats(zs):
    """Training-mode BatchNorm1d stats over batch+length for channel-major
    per-batch tiles zs[b]: (C, L).  Single pass: sum and sum-of-squares."""
    n = float(len(zs) * zs[0].shape[1])
    s1 = jnp.sum(zs[0], axis=1, keepdims=True)
    s2 = jnp.sum(zs[0] * zs[0], axis=1, keepdims=True)
    for z in zs[1:]:
        s1 = s1 + jnp.sum(z, axis=1, keepdims=True)
        s2 = s2 + jnp.sum(z * z, axis=1, keepdims=True)
    mean = s1 * (1.0 / n)
    var = s2 * (1.0 / n) - mean * mean          # biased variance (PyTorch train)
    return mean, jax.lax.rsqrt(var + EPS)


def _pool_selectors(L):
    """0/1 selection matrices (L, L//2) picking even / odd positions along L."""
    Lo = L // 2
    li = jax.lax.broadcasted_iota(jnp.int32, (L, Lo), 0)
    ci = jax.lax.broadcasted_iota(jnp.int32, (L, Lo), 1)
    se = (li == 2 * ci).astype(jnp.float32)
    so = (li == 2 * ci + 1).astype(jnp.float32)
    return se, so


def _maxpool2(z, se, so):
    """MaxPool1d(2) along the lane axis of channel-major z: (C, L) ->
    ((C, L//2) pooled, (C, L//2) int32 indices into L; first index wins ties).
    Even/odd de-interleave done as 0/1 selection matmuls on the (otherwise
    idle) MXU instead of XLU lane gathers; values copy through exactly."""
    C, L = z.shape
    Cp = max(C, 8)                                # keep M >= one sublane tile
    zp = z if C == Cp else jnp.broadcast_to(z, (Cp, L))
    x0 = jnp.dot(zp, se, preferred_element_type=jnp.float32)[:C]
    x1 = jnp.dot(zp, so, preferred_element_type=jnp.float32)[:C]
    pooled = jnp.maximum(x0, x1)
    base = 2 * jax.lax.broadcasted_iota(jnp.int32, x0.shape, 1)
    idx = base + (x1 > x0).astype(jnp.int32)      # ties -> first index (PyTorch)
    return pooled, idx


def _neighbors3(h):
    """(C, L) -> (3C, L) with rows [0:C]=x(t-1), [C:2C]=x(t), [2C:3C]=x(t+1)
    and zero edges.  The sublane concat offsets (0, C, 2C) are 8-aligned."""
    C, L = h.shape
    zcol = jnp.zeros((C, 1), h.dtype)
    prev = jnp.concatenate([zcol, h[:, :L - 1]], axis=1)
    nxt = jnp.concatenate([h[:, 1:], zcol], axis=1)
    return jnp.concatenate([prev, h, nxt], axis=0)


# --------------------------------- kernel ------------------------------------

def encoder_kernel(L1, seg,
                   xph_ref, w1_ref, w2_ref, w3_ref, w4_ref, gam_ref, bet_ref,
                   out_ref, i1_ref, i2_ref, i3_ref, i4_ref):
    B = out_ref.shape[0]
    gam = gam_ref[...]            # (32, 4): per-stage BatchNorm gamma (columns)
    bet = bet_ref[...]            # (32, 4): per-stage BatchNorm beta

    def bn_pool_relu(zs, g, b_, idx_ref):
        # zs: per-batch channel-major conv outputs (C, L).
        mean, inv = _bn_stats(zs)
        se, so = _pool_selectors(zs[0].shape[1])
        outs = []
        for bi, z in enumerate(zs):
            zn = (z - mean) * inv * g + b_
            pooled, idx = _maxpool2(zn, se, so)
            idx_ref[bi] = idx                      # NCL (C, Lp) written directly
            outs.append(jnp.maximum(pooled, 0.0))
        return outs

    # ---- stage 1: Conv1d(1,32,k=133,s=5) as 27 tap-group (32,5)x(5,W) dots over
    #      lane slices of the phase-folded signal (no im2col materialisation).
    X = xph_ref[...]                               # (5, B*seg) lane-dense
    W1v = w1_ref[...]                              # (32, 135), taps 133/134 zero
    wacc = X.shape[1] - NSHIFT + 1
    acc = jnp.zeros((C_HID, wacc), jnp.float32)
    for j in range(NSHIFT):
        acc = acc + jnp.dot(W1v[:, S1 * j:S1 * j + S1], X[:, j:j + wacc],
                            preferred_element_type=jnp.float32)
    zs = [acc[:, b * seg:b * seg + L1] for b in range(B)]     # (32, L1) per batch
    hs = bn_pool_relu(zs, gam[:, 0:1], bet[:, 0:1], i1_ref)

    # ---- stages 2 & 3: Conv1d(32,32,k=3,p=1) as one fused (32,96)x(96,L) dot
    def conv3(hs, w_ref):
        W = w_ref[...]
        return [jnp.dot(W, _neighbors3(h), preferred_element_type=jnp.float32)
                for h in hs]

    hs = bn_pool_relu(conv3(hs, w2_ref), gam[:, 1:2], bet[:, 1:2], i2_ref)
    hs = bn_pool_relu(conv3(hs, w3_ref), gam[:, 2:3], bet[:, 2:3], i3_ref)

    # ---- stage 4: Conv1d(32,1,k=3,p=1) (weights zero-padded to 8 output rows,
    #      row 0 is the real channel), BN(1), pool, relu.
    z4 = [z[0:1, :] for z in conv3(hs, w4_ref)]               # (1, L4) per batch
    outs = bn_pool_relu(z4, gam[0:1, 3:4], bet[0:1, 3:4], i4_ref)
    for bi, o in enumerate(outs):
        out_ref[bi] = o


# ------------------------------- parameters ----------------------------------

def init_raw_params(key):
    """PyTorch-layout parameters of a freshly constructed `encoder` module."""
    ks = jax.random.split(key, 8)

    def u(k, shape, fan_in):
        bound = 1.0 / float(np.sqrt(fan_in))
        return jax.random.uniform(k, shape, jnp.float32, -bound, bound)

    return dict(
        W1=u(ks[0], (C_HID, 1, K1), 1 * K1), cb1=u(ks[4], (C_HID,), 1 * K1),
        W2=u(ks[1], (C_HID, C_HID, 3), 3 * C_HID), cb2=u(ks[5], (C_HID,), 3 * C_HID),
        W3=u(ks[2], (C_HID, C_HID, 3), 3 * C_HID), cb3=u(ks[6], (C_HID,), 3 * C_HID),
        W4=u(ks[3], (1, C_HID, 3), 3 * C_HID), cb4=u(ks[7], (1,), 3 * C_HID),
        bg1=jnp.ones((C_HID,), jnp.float32), bb1=jnp.zeros((C_HID,), jnp.float32),
        bg2=jnp.ones((C_HID,), jnp.float32), bb2=jnp.zeros((C_HID,), jnp.float32),
        bg3=jnp.ones((C_HID,), jnp.float32), bb3=jnp.zeros((C_HID,), jnp.float32),
        bg4=jnp.ones((1,), jnp.float32), bb4=jnp.zeros((1,), jnp.float32),
    )


def pack_params(raw):
    """Rearrange PyTorch-layout weights into the kernel's fused layouts."""
    def fuse_k3(W):   # (Co, Ci, 3) -> (Co, 3*Ci): column index = k*Ci + ci
        return jnp.transpose(W, (0, 2, 1)).reshape(W.shape[0], 3 * W.shape[1])

    w1f = jnp.pad(raw['W1'][:, 0, :], ((0, 0), (0, NSHIFT * S1 - K1)))  # (32, 135)
    w4f = jnp.pad(fuse_k3(raw['W4']), ((0, 7), (0, 0)))                 # (8, 96)
    gam = jnp.stack([raw['bg1'], raw['bg2'], raw['bg3'],
                     jnp.broadcast_to(raw['bg4'], (C_HID,))], axis=1)   # (32, 4)
    bet = jnp.stack([raw['bb1'], raw['bb2'], raw['bb3'],
                     jnp.broadcast_to(raw['bb4'], (C_HID,))], axis=1)   # (32, 4)
    # Conv biases intentionally dropped: bias followed by training-mode BN
    # cancels exactly (per-channel mean subtraction removes the constant).
    return dict(w1f=w1f, w2f=fuse_k3(raw['W2']), w3f=fuse_k3(raw['W3']),
                w4f=w4f, gam=gam, bet=bet)


# --------------------------------- wrapper -----------------------------------

@jax.jit
def encoder_forward(x, params):
    """x: (B, 1, L) float32, PyTorch NCL.  Returns (out, [idx1..idx4]), all NCL."""
    B, _, L = x.shape
    L1 = (L - K1) // S1 + 1
    q = L1 + NSHIFT                       # phase-folded columns needed per batch
    seg = ((q + 127) // 128) * 128        # lane-tile aligned per-batch segment

    # Phase-major fold: xph[r, b*seg + t] = x[b, 0, 5*t + r] (zeros past t >= q).
    # Lane-dense (B*seg lanes), so the HBM->VMEM DMA is a few contiguous rows;
    # the stride-5 window expansion happens in-kernel as 27 cheap lane slices.
    xs = jnp.pad(x[:, 0, :], ((0, 0), (0, S1 * q - L)))
    xph = jnp.pad(jnp.transpose(xs.reshape(B, q, S1), (2, 0, 1)),
                  ((0, 0), (0, 0), (0, seg - q))).reshape(S1, B * seg)

    Lp1 = L1 // 2
    Lp2 = Lp1 // 2
    Lp3 = Lp2 // 2
    Lp4 = Lp3 // 2

    out_shapes = (
        jax.ShapeDtypeStruct((B, 1, Lp4), jnp.float32),
        jax.ShapeDtypeStruct((B, C_HID, Lp1), jnp.int32),
        jax.ShapeDtypeStruct((B, C_HID, Lp2), jnp.int32),
        jax.ShapeDtypeStruct((B, C_HID, Lp3), jnp.int32),
        jax.ShapeDtypeStruct((B, 1, Lp4), jnp.int32),
    )

    args = (xph, params['w1f'], params['w2f'], params['w3f'], params['w4f'],
            params['gam'], params['bet'])
    vmem = pl.BlockSpec(memory_space=pltpu.MemorySpace.VMEM)

    out, i1, i2, i3, i4 = pl.pallas_call(
        functools.partial(encoder_kernel, L1, seg),
        out_shape=out_shapes,
        in_specs=[vmem] * len(args),
        out_specs=(vmem,) * len(out_shapes),
        compiler_params=pltpu.CompilerParams(vmem_limit_bytes=32 * 1024 * 1024),
    )(*args)
    return out, [i1, i2, i3, i4]


# -------------------------- pure NumPy reference ------------------------------

def reference_forward(x, raw):
    """Float64 NumPy implementation of the PyTorch module (with conv biases)."""
    x = np.asarray(x, np.float64)

    def conv1d(h, W, b, stride=1, padding=0):
        W = np.asarray(W, np.float64)
        b = np.asarray(b, np.float64)
        if padding:
            h = np.pad(h, ((0, 0), (0, 0), (padding, padding)))
        Lo = (h.shape[2] - W.shape[2]) // stride + 1
        y = np.zeros((h.shape[0], W.shape[0], Lo))
        for i in range(Lo):
            seg = h[:, :, i * stride:i * stride + W.shape[2]]
            y[:, :, i] = np.einsum('bck,ock->bo', seg, W) + b[None, :]
        return y

    def bn(y, g, b):
        g = np.asarray(g, np.float64)
        b = np.asarray(b, np.float64)
        m = y.mean(axis=(0, 2), keepdims=True)
        v = y.var(axis=(0, 2), keepdims=True)      # biased, training mode
        return (y - m) / np.sqrt(v + EPS) * g[None, :, None] + b[None, :, None]

    def pool(y):
        Lo = y.shape[2] // 2
        x0, x1 = y[:, :, 0:2 * Lo:2], y[:, :, 1:2 * Lo:2]
        idx = 2 * np.arange(Lo)[None, None, :] + (x1 > x0)
        return np.maximum(x0, x1), idx.astype(np.int64), np.abs(x1 - x0)

    specs = [(raw['W1'], raw['cb1'], raw['bg1'], raw['bb1'], 5, 0),
             (raw['W2'], raw['cb2'], raw['bg2'], raw['bb2'], 1, 1),
             (raw['W3'], raw['cb3'], raw['bg3'], raw['bb3'], 1, 1),
             (raw['W4'], raw['cb4'], raw['bg4'], raw['bb4'], 1, 1)]
    h, idxs, gaps = x, [], []
    for W, cb, g, b, s, p in specs:
        h = bn(conv1d(h, W, cb, stride=s, padding=p), g, b)
        h, idx, gap = pool(h)
        idxs.append(idx)
        gaps.append(gap)
        h = np.maximum(h, 0.0)
    return h, idxs, gaps


if __name__ == "__main__":
    key = jax.random.PRNGKey(0)
    kx, kp = jax.random.split(key)

    B, L = 2, 512          # (B, 1, L) signal; lengths 76 -> 38 -> 19 -> 9 -> 4
    x = jax.random.normal(kx, (B, 1, L), jnp.float32)
    raw = init_raw_params(kp)
    params = pack_params(raw)

    out, idxs = encoder_forward(x, params)
    out = jax.block_until_ready(out)
    idxs = [jax.block_until_ready(i) for i in idxs]

    assert out.shape == (B, 1, 4), out.shape
    assert [tuple(i.shape) for i in idxs] == [
        (B, 32, 38), (B, 32, 19), (B, 32, 9), (B, 1, 4)], [i.shape for i in idxs]
    assert all(i.dtype == jnp.int32 for i in idxs)
    assert bool(jnp.all(out >= 0.0))

    ref_out, ref_idxs, ref_gaps = reference_forward(np.asarray(x), raw)
    np.testing.assert_allclose(np.asarray(out), ref_out, rtol=2e-2, atol=2e-2)
    for ki, ri, gap in zip(idxs, ref_idxs, ref_gaps):
        ok = (np.asarray(ki, np.int64) == ri) | (gap < 2e-2)   # tolerate near-ties
        assert bool(ok.all()), "pool index mismatch"

    print("KERNEL_OK")
</pallas_src>

<mosaic_0001>
module attributes {stable_mosaic.version = 11 : i64} {
  func.func @encoder_kernel(%arg0: memref<5x256xf32, #tpu.memory_space<vmem>>, %arg1: memref<32x135xf32, #tpu.memory_space<vmem>>, %arg2: memref<32x96xf32, #tpu.memory_space<vmem>>, %arg3: memref<32x96xf32, #tpu.memory_space<vmem>>, %arg4: memref<8x96xf32, #tpu.memory_space<vmem>>, %arg5: memref<32x4xf32, #tpu.memory_space<vmem>>, %arg6: memref<32x4xf32, #tpu.memory_space<vmem>>, %arg7: memref<2x1x4xf32, #tpu.memory_space<vmem>>, %arg8: memref<2x32x38xi32, #tpu.memory_space<vmem>>, %arg9: memref<2x32x19xi32, #tpu.memory_space<vmem>>, %arg10: memref<2x32x9xi32, #tpu.memory_space<vmem>>, %arg11: memref<2x1x4xi32, #tpu.memory_space<vmem>>) attributes {dimension_semantics = [], scalar_prefetch = 0 : i64, scratch_operands = 0 : i64, tpu.core_type = #tpu.core_type<tc>} {
    %c0 = arith.constant 0 : index
    %c0_0 = arith.constant 0 : index
    %0 = vector.load %arg5[%c0, %c0_0] : memref<32x4xf32, #tpu.memory_space<vmem>>, vector<32x4xf32>
    %c0_1 = arith.constant 0 : index
    %c0_2 = arith.constant 0 : index
    %1 = vector.load %arg6[%c0_1, %c0_2] : memref<32x4xf32, #tpu.memory_space<vmem>>, vector<32x4xf32>
    %c0_3 = arith.constant 0 : index
    %c0_4 = arith.constant 0 : index
    %2 = vector.load %arg0[%c0_3, %c0_4] : memref<5x256xf32, #tpu.memory_space<vmem>>, vector<5x256xf32>
    %c0_5 = arith.constant 0 : index
    %c0_6 = arith.constant 0 : index
    %3 = vector.load %arg1[%c0_5, %c0_6] : memref<32x135xf32, #tpu.memory_space<vmem>>, vector<32x135xf32>
    %cst = arith.constant 0.000000e+00 : f32
    %4 = vector.broadcast %cst : f32 to vector<32x230xf32>
    %5 = vector.extract_strided_slice %3 {offsets = [0, 0], sizes = [32, 5], strides = [1, 1]} : vector<32x135xf32> to vector<32x5xf32>
    %6 = vector.extract_strided_slice %2 {offsets = [0, 0], sizes = [5, 230], strides = [1, 1]} : vector<5x256xf32> to vector<5x230xf32>
    %cst_7 = arith.constant dense<0.000000e+00> : vector<32x230xf32>
    %7 = tpu.matmul %5, %6, %cst_7 {dimension_numbers = #tpu.dot_dimension_numbers<[1], [0], [0], [1], [0, 0, 1, 1], [], []>} : vector<32x5xf32>, vector<5x230xf32>, vector<32x230xf32> -> vector<32x230xf32>
    %8 = arith.addf %4, %7 : vector<32x230xf32>
    %9 = vector.extract_strided_slice %3 {offsets = [0, 5], sizes = [32, 5], strides = [1, 1]} : vector<32x135xf32> to vector<32x5xf32>
    %10 = vector.extract_strided_slice %2 {offsets = [0, 1], sizes = [5, 230], strides = [1, 1]} : vector<5x256xf32> to vector<5x230xf32>
    %cst_8 = arith.constant dense<0.000000e+00> : vector<32x230xf32>
    %11 = tpu.matmul %9, %10, %cst_8 {dimension_numbers = #tpu.dot_dimension_numbers<[1], [0], [0], [1], [0, 0, 1, 1], [], []>} : vector<32x5xf32>, vector<5x230xf32>, vector<32x230xf32> -> vector<32x230xf32>
    %12 = arith.addf %8, %11 : vector<32x230xf32>
    %13 = vector.extract_strided_slice %3 {offsets = [0, 10], sizes = [32, 5], strides = [1, 1]} : vector<32x135xf32> to vector<32x5xf32>
    %14 = vector.extract_strided_slice %2 {offsets = [0, 2], sizes = [5, 230], strides = [1, 1]} : vector<5x256xf32> to vector<5x230xf32>
    %cst_9 = arith.constant dense<0.000000e+00> : vector<32x230xf32>
    %15 = tpu.matmul %13, %14, %cst_9 {dimension_numbers = #tpu.dot_dimension_numbers<[1], [0], [0], [1], [0, 0, 1, 1], [], []>} : vector<32x5xf32>, vector<5x230xf32>, vector<32x230xf32> -> vector<32x230xf32>
    %16 = arith.addf %12, %15 : vector<32x230xf32>
    %17 = vector.extract_strided_slice %3 {offsets = [0, 15], sizes = [32, 5], strides = [1, 1]} : vector<32x135xf32> to vector<32x5xf32>
    %18 = vector.extract_strided_slice %2 {offsets = [0, 3], sizes = [5, 230], strides = [1, 1]} : vector<5x256xf32> to vector<5x230xf32>
    %cst_10 = arith.constant dense<0.000000e+00> : vector<32x230xf32>
    %19 = tpu.matmul %17, %18, %cst_10 {dimension_numbers = #tpu.dot_dimension_numbers<[1], [0], [0], [1], [0, 0, 1, 1], [], []>} : vector<32x5xf32>, vector<5x230xf32>, vector<32x230xf32> -> vector<32x230xf32>
    %20 = arith.addf %16, %19 : vector<32x230xf32>
    %21 = vector.extract_strided_slice %3 {offsets = [0, 20], sizes = [32, 5], strides = [1, 1]} : vector<32x135xf32> to vector<32x5xf32>
    %22 = vector.extract_strided_slice %2 {offsets = [0, 4], sizes = [5, 230], strides = [1, 1]} : vector<5x256xf32> to vector<5x230xf32>
    %cst_11 = arith.constant dense<0.000000e+00> : vector<32x230xf32>
    %23 = tpu.matmul %21, %22, %cst_11 {dimension_numbers = #tpu.dot_dimension_numbers<[1], [0], [0], [1], [0, 0, 1, 1], [], []>} : vector<32x5xf32>, vector<5x230xf32>, vector<32x230xf32> -> vector<32x230xf32>
    %24 = arith.addf %20, %23 : vector<32x230xf32>
    %25 = vector.extract_strided_slice %3 {offsets = [0, 25], sizes = [32, 5], strides = [1, 1]} : vector<32x135xf32> to vector<32x5xf32>
    %26 = vector.extract_strided_slice %2 {offsets = [0, 5], sizes = [5, 230], strides = [1, 1]} : vector<5x256xf32> to vector<5x230xf32>
    %cst_12 = arith.constant dense<0.000000e+00> : vector<32x230xf32>
    %27 = tpu.matmul %25, %26, %cst_12 {dimension_numbers = #tpu.dot_dimension_numbers<[1], [0], [0], [1], [0, 0, 1, 1], [], []>} : vector<32x5xf32>, vector<5x230xf32>, vector<32x230xf32> -> vector<32x230xf32>
    %28 = arith.addf %24, %27 : vector<32x230xf32>
    %29 = vector.extract_strided_slice %3 {offsets = [0, 30], sizes = [32, 5], strides = [1, 1]} : vector<32x135xf32> to vector<32x5xf32>
    %30 = vector.extract_strided_slice %2 {offsets = [0, 6], sizes = [5, 230], strides = [1, 1]} : vector<5x256xf32> to vector<5x230xf32>
    %cst_13 = arith.constant dense<0.000000e+00> : vector<32x230xf32>
    %31 = tpu.matmul %29, %30, %cst_13 {dimension_numbers = #tpu.dot_dimension_numbers<[1], [0], [0], [1], [0, 0, 1, 1], [], []>} : vector<32x5xf32>, vector<5x230xf32>, vector<32x230xf32> -> vector<32x230xf32>
    %32 = arith.addf %28, %31 : vector<32x230xf32>
    %33 = vector.extract_strided_slice %3 {offsets = [0, 35], sizes = [32, 5], strides = [1, 1]} : vector<32x135xf32> to vector<32x5xf32>
    %34 = vector.extract_strided_slice %2 {offsets = [0, 7], sizes = [5, 230], strides = [1, 1]} : vector<5x256xf32> to vector<5x230xf32>
    %cst_14 = arith.constant dense<0.000000e+00> : vector<32x230xf32>
    %35 = tpu.matmul %33, %34, %cst_14 {dimension_numbers = #tpu.dot_dimension_numbers<[1], [0], [0], [1], [0, 0, 1, 1], [], []>} : vector<32x5xf32>, vector<5x230xf32>, vector<32x230xf32> -> vector<32x230xf32>
    %36 = arith.addf %32, %35 : vector<32x230xf32>
    %37 = vector.extract_strided_slice %3 {offsets = [0, 40], sizes = [32, 5], strides = [1, 1]} : vector<32x135xf32> to vector<32x5xf32>
    %38 = vector.extract_strided_slice %2 {offsets = [0, 8], sizes = [5, 230], strides = [1, 1]} : vector<5x256xf32> to vector<5x230xf32>
    %cst_15 = arith.constant dense<0.000000e+00> : vector<32x230xf32>
    %39 = tpu.matmul %37, %38, %cst_15 {dimension_numbers = #tpu.dot_dimension_numbers<[1], [0], [0], [1], [0, 0, 1, 1], [], []>} : vector<32x5xf32>, vector<5x230xf32>, vector<32x230xf32> -> vector<32x230xf32>
    %40 = arith.addf %36, %39 : vector<32x230xf32>
    %41 = vector.extract_strided_slice %3 {offsets = [0, 45], sizes = [32, 5], strides = [1, 1]} : vector<32x135xf32> to vector<32x5xf32>
    %42 = vector.extract_strided_slice %2 {offsets = [0, 9], sizes = [5, 230], strides = [1, 1]} : vector<5x256xf32> to vector<5x230xf32>
    %cst_16 = arith.constant dense<0.000000e+00> : vector<32x230xf32>
    %43 = tpu.matmul %41, %42, %cst_16 {dimension_numbers = #tpu.dot_dimension_numbers<[1], [0], [0], [1], [0, 0, 1, 1], [], []>} : vector<32x5xf32>, vector<5x230xf32>, vector<32x230xf32> -> vector<32x230xf32>
    %44 = arith.addf %40, %43 : vector<32x230xf32>
    %45 = vector.extract_strided_slice %3 {offsets = [0, 50], sizes = [32, 5], strides = [1, 1]} : vector<32x135xf32> to vector<32x5xf32>
    %46 = vector.extract_strided_slice %2 {offsets = [0, 10], sizes = [5, 230], strides = [1, 1]} : vector<5x256xf32> to vector<5x230xf32>
    %cst_17 = arith.constant dense<0.000000e+00> : vector<32x230xf32>
    %47 = tpu.matmul %45, %46, %cst_17 {dimension_numbers = #tpu.dot_dimension_numbers<[1], [0], [0], [1], [0, 0, 1, 1], [], []>} : vector<32x5xf32>, vector<5x230xf32>, vector<32x230xf32> -> vector<32x230xf32>
    %48 = arith.addf %44, %47 : vector<32x230xf32>
    %49 = vector.extract_strided_slice %3 {offsets = [0, 55], sizes = [32, 5], strides = [1, 1]} : vector<32x135xf32> to vector<32x5xf32>
    %50 = vector.extract_strided_slice %2 {offsets = [0, 11], sizes = [5, 230], strides = [1, 1]} : vector<5x256xf32> to vector<5x230xf32>
    %cst_18 = arith.constant dense<0.000000e+00> : vector<32x230xf32>
    %51 = tpu.matmul %49, %50, %cst_18 {dimension_numbers = #tpu.dot_dimension_numbers<[1], [0], [0], [1], [0, 0, 1, 1], [], []>} : vector<32x5xf32>, vector<5x230xf32>, vector<32x230xf32> -> vector<32x230xf32>
    %52 = arith.addf %48, %51 : vector<32x230xf32>
    %53 = vector.extract_strided_slice %3 {offsets = [0, 60], sizes = [32, 5], strides = [1, 1]} : vector<32x135xf32> to vector<32x5xf32>
    %54 = vector.extract_strided_slice %2 {offsets = [0, 12], sizes = [5, 230], strides = [1, 1]} : vector<5x256xf32> to vector<5x230xf32>
    %cst_19 = arith.constant dense<0.000000e+00> : vector<32x230xf32>
    %55 = tpu.matmul %53, %54, %cst_19 {dimension_numbers = #tpu.dot_dimension_numbers<[1], [0], [0], [1], [0, 0, 1, 1], [], []>} : vector<32x5xf32>, vector<5x230xf32>, vector<32x230xf32> -> vector<32x230xf32>
    %56 = arith.addf %52, %55 : vector<32x230xf32>
    %57 = vector.extract_strided_slice %3 {offsets = [0, 65], sizes = [32, 5], strides = [1, 1]} : vector<32x135xf32> to vector<32x5xf32>
    %58 = vector.extract_strided_slice %2 {offsets = [0, 13], sizes = [5, 230], strides = [1, 1]} : vector<5x256xf32> to vector<5x230xf32>
    %cst_20 = arith.constant dense<0.000000e+00> : vector<32x230xf32>
    %59 = tpu.matmul %57, %58, %cst_20 {dimension_numbers = #tpu.dot_dimension_numbers<[1], [0], [0], [1], [0, 0, 1, 1], [], []>} : vector<32x5xf32>, vector<5x230xf32>, vector<32x230xf32> -> vector<32x230xf32>
    %60 = arith.addf %56, %59 : vector<32x230xf32>
    %61 = vector.extract_strided_slice %3 {offsets = [0, 70], sizes = [32, 5], strides = [1, 1]} : vector<32x135xf32> to vector<32x5xf32>
    %62 = vector.extract_strided_slice %2 {offsets = [0, 14], sizes = [5, 230], strides = [1, 1]} : vector<5x256xf32> to vector<5x230xf32>
    %cst_21 = arith.constant dense<0.000000e+00> : vector<32x230xf32>
    %63 = tpu.matmul %61, %62, %cst_21 {dimension_numbers = #tpu.dot_dimension_numbers<[1], [0], [0], [1], [0, 0, 1, 1], [], []>} : vector<32x5xf32>, vector<5x230xf32>, vector<32x230xf32> -> vector<32x230xf32>
    %64 = arith.addf %60, %63 : vector<32x230xf32>
    %65 = vector.extract_strided_slice %3 {offsets = [0, 75], sizes = [32, 5], strides = [1, 1]} : vector<32x135xf32> to vector<32x5xf32>
    %66 = vector.extract_strided_slice %2 {offsets = [0, 15], sizes = [5, 230], strides = [1, 1]} : vector<5x256xf32> to vector<5x230xf32>
    %cst_22 = arith.constant dense<0.000000e+00> : vector<32x230xf32>
    %67 = tpu.matmul %65, %66, %cst_22 {dimension_numbers = #tpu.dot_dimension_numbers<[1], [0], [0], [1], [0, 0, 1, 1], [], []>} : vector<32x5xf32>, vector<5x230xf32>, vector<32x230xf32> -> vector<32x230xf32>
    %68 = arith.addf %64, %67 : vector<32x230xf32>
    %69 = vector.extract_strided_slice %3 {offsets = [0, 80], sizes = [32, 5], strides = [1, 1]} : vector<32x135xf32> to vector<32x5xf32>
    %70 = vector.extract_strided_slice %2 {offsets = [0, 16], sizes = [5, 230], strides = [1, 1]} : vector<5x256xf32> to vector<5x230xf32>
    %cst_23 = arith.constant dense<0.000000e+00> : vector<32x230xf32>
    %71 = tpu.matmul %69, %70, %cst_23 {dimension_numbers = #tpu.dot_dimension_numbers<[1], [0], [0], [1], [0, 0, 1, 1], [], []>} : vector<32x5xf32>, vector<5x230xf32>, vector<32x230xf32> -> vector<32x230xf32>
    %72 = arith.addf %68, %71 : vector<32x230xf32>
    %73 = vector.extract_strided_slice %3 {offsets = [0, 85], sizes = [32, 5], strides = [1, 1]} : vector<32x135xf32> to vector<32x5xf32>
    %74 = vector.extract_strided_slice %2 {offsets = [0, 17], sizes = [5, 230], strides = [1, 1]} : vector<5x256xf32> to vector<5x230xf32>
    %cst_24 = arith.constant dense<0.000000e+00> : vector<32x230xf32>
    %75 = tpu.matmul %73, %74, %cst_24 {dimension_numbers = #tpu.dot_dimension_numbers<[1], [0], [0], [1], [0, 0, 1, 1], [], []>} : vector<32x5xf32>, vector<5x230xf32>, vector<32x230xf32> -> vector<32x230xf32>
    %76 = arith.addf %72, %75 : vector<32x230xf32>
    %77 = vector.extract_strided_slice %3 {offsets = [0, 90], sizes = [32, 5], strides = [1, 1]} : vector<32x135xf32> to vector<32x5xf32>
    %78 = vector.extract_strided_slice %2 {offsets = [0, 18], sizes = [5, 230], strides = [1, 1]} : vector<5x256xf32> to vector<5x230xf32>
    %cst_25 = arith.constant dense<0.000000e+00> : vector<32x230xf32>
    %79 = tpu.matmul %77, %78, %cst_25 {dimension_numbers = #tpu.dot_dimension_numbers<[1], [0], [0], [1], [0, 0, 1, 1], [], []>} : vector<32x5xf32>, vector<5x230xf32>, vector<32x230xf32> -> vector<32x230xf32>
    %80 = arith.addf %76, %79 : vector<32x230xf32>
    %81 = vector.extract_strided_slice %3 {offsets = [0, 95], sizes = [32, 5], strides = [1, 1]} : vector<32x135xf32> to vector<32x5xf32>
    %82 = vector.extract_strided_slice %2 {offsets = [0, 19], sizes = [5, 230], strides = [1, 1]} : vector<5x256xf32> to vector<5x230xf32>
    %cst_26 = arith.constant dense<0.000000e+00> : vector<32x230xf32>
    %83 = tpu.matmul %81, %82, %cst_26 {dimension_numbers = #tpu.dot_dimension_numbers<[1], [0], [0], [1], [0, 0, 1, 1], [], []>} : vector<32x5xf32>, vector<5x230xf32>, vector<32x230xf32> -> vector<32x230xf32>
    %84 = arith.addf %80, %83 : vector<32x230xf32>
    %85 = vector.extract_strided_slice %3 {offsets = [0, 100], sizes = [32, 5], strides = [1, 1]} : vector<32x135xf32> to vector<32x5xf32>
    %86 = vector.extract_strided_slice %2 {offsets = [0, 20], sizes = [5, 230], strides = [1, 1]} : vector<5x256xf32> to vector<5x230xf32>
    %cst_27 = arith.constant dense<0.000000e+00> : vector<32x230xf32>
    %87 = tpu.matmul %85, %86, %cst_27 {dimension_numbers = #tpu.dot_dimension_numbers<[1], [0], [0], [1], [0, 0, 1, 1], [], []>} : vector<32x5xf32>, vector<5x230xf32>, vector<32x230xf32> -> vector<32x230xf32>
    %88 = arith.addf %84, %87 : vector<32x230xf32>
    %89 = vector.extract_strided_slice %3 {offsets = [0, 105], sizes = [32, 5], strides = [1, 1]} : vector<32x135xf32> to vector<32x5xf32>
    %90 = vector.extract_strided_slice %2 {offsets = [0, 21], sizes = [5, 230], strides = [1, 1]} : vector<5x256xf32> to vector<5x230xf32>
    %cst_28 = arith.constant dense<0.000000e+00> : vector<32x230xf32>
    %91 = tpu.matmul %89, %90, %cst_28 {dimension_numbers = #tpu.dot_dimension_numbers<[1], [0], [0], [1], [0, 0, 1, 1], [], []>} : vector<32x5xf32>, vector<5x230xf32>, vector<32x230xf32> -> vector<32x230xf32>
    %92 = arith.addf %88, %91 : vector<32x230xf32>
    %93 = vector.extract_strided_slice %3 {offsets = [0, 110], sizes = [32, 5], strides = [1, 1]} : vector<32x135xf32> to vector<32x5xf32>
    %94 = vector.extract_strided_slice %2 {offsets = [0, 22], sizes = [5, 230], strides = [1, 1]} : vector<5x256xf32> to vector<5x230xf32>
    %cst_29 = arith.constant dense<0.000000e+00> : vector<32x230xf32>
    %95 = tpu.matmul %93, %94, %cst_29 {dimension_numbers = #tpu.dot_dimension_numbers<[1], [0], [0], [1], [0, 0, 1, 1], [], []>} : vector<32x5xf32>, vector<5x230xf32>, vector<32x230xf32> -> vector<32x230xf32>
    %96 = arith.addf %92, %95 : vector<32x230xf32>
    %97 = vector.extract_strided_slice %3 {offsets = [0, 115], sizes = [32, 5], strides = [1, 1]} : vector<32x135xf32> to vector<32x5xf32>
    %98 = vector.extract_strided_slice %2 {offsets = [0, 23], sizes = [5, 230], strides = [1, 1]} : vector<5x256xf32> to vector<5x230xf32>
    %cst_30 = arith.constant dense<0.000000e+00> : vector<32x230xf32>
    %99 = tpu.matmul %97, %98, %cst_30 {dimension_numbers = #tpu.dot_dimension_numbers<[1], [0], [0], [1], [0, 0, 1, 1], [], []>} : vector<32x5xf32>, vector<5x230xf32>, vector<32x230xf32> -> vector<32x230xf32>
    %100 = arith.addf %96, %99 : vector<32x230xf32>
    %101 = vector.extract_strided_slice %3 {offsets = [0, 120], sizes = [32, 5], strides = [1, 1]} : vector<32x135xf32> to vector<32x5xf32>
    %102 = vector.extract_strided_slice %2 {offsets = [0, 24], sizes = [5, 230], strides = [1, 1]} : vector<5x256xf32> to vector<5x230xf32>
    %cst_31 = arith.constant dense<0.000000e+00> : vector<32x230xf32>
    %103 = tpu.matmul %101, %102, %cst_31 {dimension_numbers = #tpu.dot_dimension_numbers<[1], [0], [0], [1], [0, 0, 1, 1], [], []>} : vector<32x5xf32>, vector<5x230xf32>, vector<32x230xf32> -> vector<32x230xf32>
    %104 = arith.addf %100, %103 : vector<32x230xf32>
    %105 = vector.extract_strided_slice %3 {offsets = [0, 125], sizes = [32, 5], strides = [1, 1]} : vector<32x135xf32> to vector<32x5xf32>
    %106 = vector.extract_strided_slice %2 {offsets = [0, 25], sizes = [5, 230], strides = [1, 1]} : vector<5x256xf32> to vector<5x230xf32>
    %cst_32 = arith.constant dense<0.000000e+00> : vector<32x230xf32>
    %107 = tpu.matmul %105, %106, %cst_32 {dimension_numbers = #tpu.dot_dimension_numbers<[1], [0], [0], [1], [0, 0, 1, 1], [], []>} : vector<32x5xf32>, vector<5x230xf32>, vector<32x230xf32> -> vector<32x230xf32>
    %108 = arith.addf %104, %107 : vector<32x230xf32>
    %109 = vector.extract_strided_slice %3 {offsets = [0, 130], sizes = [32, 5], strides = [1, 1]} : vector<32x135xf32> to vector<32x5xf32>
    %110 = vector.extract_strided_slice %2 {offsets = [0, 26], sizes = [5, 230], strides = [1, 1]} : vector<5x256xf32> to vector<5x230xf32>
    %cst_33 = arith.constant dense<0.000000e+00> : vector<32x230xf32>
    %111 = tpu.matmul %109, %110, %cst_33 {dimension_numbers = #tpu.dot_dimension_numbers<[1], [0], [0], [1], [0, 0, 1, 1], [], []>} : vector<32x5xf32>, vector<5x230xf32>, vector<32x230xf32> -> vector<32x230xf32>
    %112 = arith.addf %108, %111 : vector<32x230xf32>
    %113 = vector.extract_strided_slice %112 {offsets = [0, 0], sizes = [32, 76], strides = [1, 1]} : vector<32x230xf32> to vector<32x76xf32>
    %114 = vector.extract_strided_slice %112 {offsets = [0, 128], sizes = [32, 76], strides = [1, 1]} : vector<32x230xf32> to vector<32x76xf32>
    %115 = vector.extract_strided_slice %0 {offsets = [0, 0], sizes = [32, 1], strides = [1, 1]} : vector<32x4xf32> to vector<32x1xf32>
    %116 = vector.extract_strided_slice %1 {offsets = [0, 0], sizes = [32, 1], strides = [1, 1]} : vector<32x4xf32> to vector<32x1xf32>
    %cst_34 = arith.constant dense<0.000000e+00> : vector<32xf32>
    %117 = vector.multi_reduction <add>, %113, %cst_34 [1] : vector<32x76xf32> to vector<32xf32>
    %118 = vector.shape_cast %117 : vector<32xf32> to vector<32x1xf32>
    %119 = arith.mulf %113, %113 : vector<32x76xf32>
    %cst_35 = arith.constant dense<0.000000e+00> : vector<32xf32>
    %120 = vector.multi_reduction <add>, %119, %cst_35 [1] : vector<32x76xf32> to vector<32xf32>
    %121 = vector.shape_cast %120 : vector<32xf32> to vector<32x1xf32>
    %cst_36 = arith.constant dense<0.000000e+00> : vector<32xf32>
    %122 = vector.multi_reduction <add>, %114, %cst_36 [1] : vector<32x76xf32> to vector<32xf32>
    %123 = vector.shape_cast %122 : vector<32xf32> to vector<32x1xf32>
    %124 = arith.addf %118, %123 : vector<32x1xf32>
    %125 = arith.mulf %114, %114 : vector<32x76xf32>
    %cst_37 = arith.constant dense<0.000000e+00> : vector<32xf32>
    %126 = vector.multi_reduction <add>, %125, %cst_37 [1] : vector<32x76xf32> to vector<32xf32>
    %127 = vector.shape_cast %126 : vector<32xf32> to vector<32x1xf32>
    %128 = arith.addf %121, %127 : vector<32x1xf32>
    %cst_38 = arith.constant 0.00657894742 : f32
    %129 = vector.broadcast %cst_38 : f32 to vector<32x1xf32>
    %130 = arith.mulf %124, %129 : vector<32x1xf32>
    %cst_39 = arith.constant 0.00657894742 : f32
    %131 = vector.broadcast %cst_39 : f32 to vector<32x1xf32>
    %132 = arith.mulf %128, %131 : vector<32x1xf32>
    %133 = arith.mulf %130, %130 : vector<32x1xf32>
    %134 = arith.subf %132, %133 : vector<32x1xf32>
    %cst_40 = arith.constant 9.99999974E-6 : f32
    %135 = vector.broadcast %cst_40 : f32 to vector<32x1xf32>
    %136 = arith.addf %134, %135 : vector<32x1xf32>
    %137 = math.rsqrt %136 : vector<32x1xf32>
    %138 = tpu.iota {dimensions = array<i32: 0>} : vector<76x38xi32>
    %139 = tpu.iota {dimensions = array<i32: 1>} : vector<76x38xi32>
    %c2_i32 = arith.constant 2 : i32
    %140 = vector.broadcast %c2_i32 : i32 to vector<76x38xi32>
    %141 = arith.muli %140, %139 : vector<76x38xi32>
    %142 = arith.cmpi eq, %138, %141 : vector<76x38xi32>
    %143 = arith.extui %142 : vector<76x38xi1> to vector<76x38xi32>
    %144 = arith.sitofp %143 : vector<76x38xi32> to vector<76x38xf32>
    %c2_i32_41 = arith.constant 2 : i32
    %145 = vector.broadcast %c2_i32_41 : i32 to vector<76x38xi32>
    %146 = arith.muli %145, %139 : vector<76x38xi32>
    %c1_i32 = arith.constant 1 : i32
    %147 = vector.broadcast %c1_i32 : i32 to vector<76x38xi32>
    %148 = arith.addi %146, %147 : vector<76x38xi32>
    %149 = arith.cmpi eq, %138, %148 : vector<76x38xi32>
    %150 = arith.extui %149 : vector<76x38xi1> to vector<76x38xi32>
    %151 = arith.sitofp %150 : vector<76x38xi32> to vector<76x38xf32>
    %152 = vector.broadcast %130 : vector<32x1xf32> to vector<32x76xf32>
    %153 = arith.subf %113, %152 : vector<32x76xf32>
    %154 = vector.broadcast %137 : vector<32x1xf32> to vector<32x76xf32>
    %155 = arith.mulf %153, %154 : vector<32x76xf32>
    %156 = vector.broadcast %115 : vector<32x1xf32> to vector<32x76xf32>
    %157 = arith.mulf %155, %156 : vector<32x76xf32>
    %158 = vector.broadcast %116 : vector<32x1xf32> to vector<32x76xf32>
    %159 = arith.addf %157, %158 : vector<32x76xf32>
    %cst_42 = arith.constant dense<0.000000e+00> : vector<32x38xf32>
    %160 = tpu.matmul %159, %144, %cst_42 {dimension_numbers = #tpu.dot_dimension_numbers<[1], [0], [0], [1], [0, 0, 1, 1], [], []>} : vector<32x76xf32>, vector<76x38xf32>, vector<32x38xf32> -> vector<32x38xf32>
    %cst_43 = arith.constant dense<0.000000e+00> : vector<32x38xf32>
    %161 = tpu.matmul %159, %151, %cst_43 {dimension_numbers = #tpu.dot_dimension_numbers<[1], [0], [0], [1], [0, 0, 1, 1], [], []>} : vector<32x76xf32>, vector<76x38xf32>, vector<32x38xf32> -> vector<32x38xf32>
    %162 = arith.maximumf %160, %161 : vector<32x38xf32>
    %163 = tpu.iota {dimensions = array<i32: 1>} : vector<32x38xi32>
    %c2_i32_44 = arith.constant 2 : i32
    %164 = vector.broadcast %c2_i32_44 : i32 to vector<32x38xi32>
    %165 = arith.muli %164, %163 : vector<32x38xi32>
    %166 = arith.cmpf ogt, %161, %160 : vector<32x38xf32>
    %167 = arith.extui %166 : vector<32x38xi1> to vector<32x38xi32>
    %168 = arith.addi %165, %167 : vector<32x38xi32>
    %c0_45 = arith.constant 0 : index
    %c0_46 = arith.constant 0 : index
    %c0_47 = arith.constant 0 : index
    %169 = vector.load %arg8[%c0_45, %c0_46, %c0_47] : memref<2x32x38xi32, #tpu.memory_space<vmem>>, vector<1x32x38xi32>
    %170 = vector.shape_cast %169 : vector<1x32x38xi32> to vector<32x38xi32>
    %171 = vector.shape_cast %168 : vector<32x38xi32> to vector<1x32x38xi32>
    tpu.vector_store %arg8[%c0_45, %c0_46, %c0_47], %171 {strides = array<i32>} : memref<2x32x38xi32, #tpu.memory_space<vmem>>, vector<1x32x38xi32>,
    %cst_48 = arith.constant 0.000000e+00 : f32
    %172 = vector.broadcast %cst_48 : f32 to vector<32x38xf32>
    %173 = arith.maximumf %162, %172 : vector<32x38xf32>
    %174 = vector.broadcast %130 : vector<32x1xf32> to vector<32x76xf32>
    %175 = arith.subf %114, %174 : vector<32x76xf32>
    %176 = vector.broadcast %137 : vector<32x1xf32> to vector<32x76xf32>
    %177 = arith.mulf %175, %176 : vector<32x76xf32>
    %178 = vector.broadcast %115 : vector<32x1xf32> to vector<32x76xf32>
    %179 = arith.mulf %177, %178 : vector<32x76xf32>
    %180 = vector.broadcast %116 : vector<32x1xf32> to vector<32x76xf32>
    %181 = arith.addf %179, %180 : vector<32x76xf32>
    %cst_49 = arith.constant dense<0.000000e+00> : vector<32x38xf32>
    %182 = tpu.matmul %181, %144, %cst_49 {dimension_numbers = #tpu.dot_dimension_numbers<[1], [0], [0], [1], [0, 0, 1, 1], [], []>} : vector<32x76xf32>, vector<76x38xf32>, vector<32x38xf32> -> vector<32x38xf32>
    %cst_50 = arith.constant dense<0.000000e+00> : vector<32x38xf32>
    %183 = tpu.matmul %181, %151, %cst_50 {dimension_numbers = #tpu.dot_dimension_numbers<[1], [0], [0], [1], [0, 0, 1, 1], [], []>} : vector<32x76xf32>, vector<76x38xf32>, vector<32x38xf32> -> vector<32x38xf32>
    %184 = arith.maximumf %182, %183 : vector<32x38xf32>
    %185 = tpu.iota {dimensions = array<i32: 1>} : vector<32x38xi32>
    %c2_i32_51 = arith.constant 2 : i32
    %186 = vector.broadcast %c2_i32_51 : i32 to vector<32x38xi32>
    %187 = arith.muli %186, %185 : vector<32x38xi32>
    %188 = arith.cmpf ogt, %183, %182 : vector<32x38xf32>
    %189 = arith.extui %188 : vector<32x38xi1> to vector<32x38xi32>
    %190 = arith.addi %187, %189 : vector<32x38xi32>
    %c1 = arith.constant 1 : index
    %c0_52 = arith.constant 0 : index
    %c0_53 = arith.constant 0 : index
    %191 = vector.load %arg8[%c1, %c0_52, %c0_53] : memref<2x32x38xi32, #tpu.memory_space<vmem>>, vector<1x32x38xi32>
    %192 = vector.shape_cast %191 : vector<1x32x38xi32> to vector<32x38xi32>
    %193 = vector.shape_cast %190 : vector<32x38xi32> to vector<1x32x38xi32>
    tpu.vector_store %arg8[%c1, %c0_52, %c0_53], %193 {strides = array<i32>} : memref<2x32x38xi32, #tpu.memory_space<vmem>>, vector<1x32x38xi32>,
    %cst_54 = arith.constant 0.000000e+00 : f32
    %194 = vector.broadcast %cst_54 : f32 to vector<32x38xf32>
    %195 = arith.maximumf %184, %194 : vector<32x38xf32>
    %c0_55 = arith.constant 0 : index
    %c0_56 = arith.constant 0 : index
    %196 = vector.load %arg2[%c0_55, %c0_56] : memref<32x96xf32, #tpu.memory_space<vmem>>, vector<32x96xf32>
    %cst_57 = arith.constant 0.000000e+00 : f32
    %197 = vector.broadcast %cst_57 : f32 to vector<32x1xf32>
    %198 = vector.extract_strided_slice %173 {offsets = [0, 0], sizes = [32, 37], strides = [1, 1]} : vector<32x38xf32> to vector<32x37xf32>
    %199 = tpu.concatenate %197, %198 in 1 : vector<32x1xf32>, vector<32x37xf32> -> vector<32x38xf32>
    %200 = vector.extract_strided_slice %173 {offsets = [0, 1], sizes = [32, 37], strides = [1, 1]} : vector<32x38xf32> to vector<32x37xf32>
    %201 = tpu.concatenate %200, %197 in 1 : vector<32x37xf32>, vector<32x1xf32> -> vector<32x38xf32>
    %202 = tpu.concatenate %199, %173, %201 in 0 : vector<32x38xf32>, vector<32x38xf32>, vector<32x38xf32> -> vector<96x38xf32>
    %cst_58 = arith.constant dense<0.000000e+00> : vector<32x38xf32>
    %203 = tpu.matmul %196, %202, %cst_58 {dimension_numbers = #tpu.dot_dimension_numbers<[1], [0], [0], [1], [0, 0, 1, 1], [], []>} : vector<32x96xf32>, vector<96x38xf32>, vector<32x38xf32> -> vector<32x38xf32>
    %cst_59 = arith.constant 0.000000e+00 : f32
    %204 = vector.broadcast %cst_59 : f32 to vector<32x1xf32>
    %205 = vector.extract_strided_slice %195 {offsets = [0, 0], sizes = [32, 37], strides = [1, 1]} : vector<32x38xf32> to vector<32x37xf32>
    %206 = tpu.concatenate %204, %205 in 1 : vector<32x1xf32>, vector<32x37xf32> -> vector<32x38xf32>
    %207 = vector.extract_strided_slice %195 {offsets = [0, 1], sizes = [32, 37], strides = [1, 1]} : vector<32x38xf32> to vector<32x37xf32>
    %208 = tpu.concatenate %207, %204 in 1 : vector<32x37xf32>, vector<32x1xf32> -> vector<32x38xf32>
    %209 = tpu.concatenate %206, %195, %208 in 0 : vector<32x38xf32>, vector<32x38xf32>, vector<32x38xf32> -> vector<96x38xf32>
    %cst_60 = arith.constant dense<0.000000e+00> : vector<32x38xf32>
    %210 = tpu.matmul %196, %209, %cst_60 {dimension_numbers = #tpu.dot_dimension_numbers<[1], [0], [0], [1], [0, 0, 1, 1], [], []>} : vector<32x96xf32>, vector<96x38xf32>, vector<32x38xf32> -> vector<32x38xf32>
    %211 = vector.extract_strided_slice %0 {offsets = [0, 1], sizes = [32, 1], strides = [1, 1]} : vector<32x4xf32> to vector<32x1xf32>
    %212 = vector.extract_strided_slice %1 {offsets = [0, 1], sizes = [32, 1], strides = [1, 1]} : vector<32x4xf32> to vector<32x1xf32>
    %cst_61 = arith.constant dense<0.000000e+00> : vector<32xf32>
    %213 = vector.multi_reduction <add>, %203, %cst_61 [1] : vector<32x38xf32> to vector<32xf32>
    %214 = vector.shape_cast %213 : vector<32xf32> to vector<32x1xf32>
    %215 = arith.mulf %203, %203 : vector<32x38xf32>
    %cst_62 = arith.constant dense<0.000000e+00> : vector<32xf32>
    %216 = vector.multi_reduction <add>, %215, %cst_62 [1] : vector<32x38xf32> to vector<32xf32>
    %217 = vector.shape_cast %216 : vector<32xf32> to vector<32x1xf32>
    %cst_63 = arith.constant dense<0.000000e+00> : vector<32xf32>
    %218 = vector.multi_reduction <add>, %210, %cst_63 [1] : vector<32x38xf32> to vector<32xf32>
    %219 = vector.shape_cast %218 : vector<32xf32> to vector<32x1xf32>
    %220 = arith.addf %214, %219 : vector<32x1xf32>
    %221 = arith.mulf %210, %210 : vector<32x38xf32>
    %cst_64 = arith.constant dense<0.000000e+00> : vector<32xf32>
    %222 = vector.multi_reduction <add>, %221, %cst_64 [1] : vector<32x38xf32> to vector<32xf32>
    %223 = vector.shape_cast %222 : vector<32xf32> to vector<32x1xf32>
    %224 = arith.addf %217, %223 : vector<32x1xf32>
    %cst_65 = arith.constant 0.0131578948 : f32
    %225 = vector.broadcast %cst_65 : f32 to vector<32x1xf32>
    %226 = arith.mulf %220, %225 : vector<32x1xf32>
    %cst_66 = arith.constant 0.0131578948 : f32
    %227 = vector.broadcast %cst_66 : f32 to vector<32x1xf32>
    %228 = arith.mulf %224, %227 : vector<32x1xf32>
    %229 = arith.mulf %226, %226 : vector<32x1xf32>
    %230 = arith.subf %228, %229 : vector<32x1xf32>
    %cst_67 = arith.constant 9.99999974E-6 : f32
    %231 = vector.broadcast %cst_67 : f32 to vector<32x1xf32>
    %232 = arith.addf %230, %231 : vector<32x1xf32>
    %233 = math.rsqrt %232 : vector<32x1xf32>
    %234 = tpu.iota {dimensions = array<i32: 0>} : vector<38x19xi32>
    %235 = tpu.iota {dimensions = array<i32: 1>} : vector<38x19xi32>
    %c2_i32_68 = arith.constant 2 : i32
    %236 = vector.broadcast %c2_i32_68 : i32 to vector<38x19xi32>
    %237 = arith.muli %236, %235 : vector<38x19xi32>
    %238 = arith.cmpi eq, %234, %237 : vector<38x19xi32>
    %239 = arith.extui %238 : vector<38x19xi1> to vector<38x19xi32>
    %240 = arith.sitofp %239 : vector<38x19xi32> to vector<38x19xf32>
    %c2_i32_69 = arith.constant 2 : i32
    %241 = vector.broadcast %c2_i32_69 : i32 to vector<38x19xi32>
    %242 = arith.muli %241, %235 : vector<38x19xi32>
    %c1_i32_70 = arith.constant 1 : i32
    %243 = vector.broadcast %c1_i32_70 : i32 to vector<38x19xi32>
    %244 = arith.addi %242, %243 : vector<38x19xi32>
    %245 = arith.cmpi eq, %234, %244 : vector<38x19xi32>
    %246 = arith.extui %245 : vector<38x19xi1> to vector<38x19xi32>
    %247 = arith.sitofp %246 : vector<38x19xi32> to vector<38x19xf32>
    %248 = vector.broadcast %226 : vector<32x1xf32> to vector<32x38xf32>
    %249 = arith.subf %203, %248 : vector<32x38xf32>
    %250 = vector.broadcast %233 : vector<32x1xf32> to vector<32x38xf32>
    %251 = arith.mulf %249, %250 : vector<32x38xf32>
    %252 = vector.broadcast %211 : vector<32x1xf32> to vector<32x38xf32>
    %253 = arith.mulf %251, %252 : vector<32x38xf32>
    %254 = vector.broadcast %212 : vector<32x1xf32> to vector<32x38xf32>
    %255 = arith.addf %253, %254 : vector<32x38xf32>
    %cst_71 = arith.constant dense<0.000000e+00> : vector<32x19xf32>
    %256 = tpu.matmul %255, %240, %cst_71 {dimension_numbers = #tpu.dot_dimension_numbers<[1], [0], [0], [1], [0, 0, 1, 1], [], []>} : vector<32x38xf32>, vector<38x19xf32>, vector<32x19xf32> -> vector<32x19xf32>
    %cst_72 = arith.constant dense<0.000000e+00> : vector<32x19xf32>
    %257 = tpu.matmul %255, %247, %cst_72 {dimension_numbers = #tpu.dot_dimension_numbers<[1], [0], [0], [1], [0, 0, 1, 1], [], []>} : vector<32x38xf32>, vector<38x19xf32>, vector<32x19xf32> -> vector<32x19xf32>
    %258 = arith.maximumf %256, %257 : vector<32x19xf32>
    %259 = tpu.iota {dimensions = array<i32: 1>} : vector<32x19xi32>
    %c2_i32_73 = arith.constant 2 : i32
    %260 = vector.broadcast %c2_i32_73 : i32 to vector<32x19xi32>
    %261 = arith.muli %260, %259 : vector<32x19xi32>
    %262 = arith.cmpf ogt, %257, %256 : vector<32x19xf32>
    %263 = arith.extui %262 : vector<32x19xi1> to vector<32x19xi32>
    %264 = arith.addi %261, %263 : vector<32x19xi32>
    %c0_74 = arith.constant 0 : index
    %c0_75 = arith.constant 0 : index
    %c0_76 = arith.constant 0 : index
    %265 = vector.load %arg9[%c0_74, %c0_75, %c0_76] : memref<2x32x19xi32, #tpu.memory_space<vmem>>, vector<1x32x19xi32>
    %266 = vector.shape_cast %265 : vector<1x32x19xi32> to vector<32x19xi32>
    %267 = vector.shape_cast %264 : vector<32x19xi32> to vector<1x32x19xi32>
    tpu.vector_store %arg9[%c0_74, %c0_75, %c0_76], %267 {strides = array<i32>} : memref<2x32x19xi32, #tpu.memory_space<vmem>>, vector<1x32x19xi32>,
    %cst_77 = arith.constant 0.000000e+00 : f32
    %268 = vector.broadcast %cst_77 : f32 to vector<32x19xf32>
    %269 = arith.maximumf %258, %268 : vector<32x19xf32>
    %270 = vector.broadcast %226 : vector<32x1xf32> to vector<32x38xf32>
    %271 = arith.subf %210, %270 : vector<32x38xf32>
    %272 = vector.broadcast %233 : vector<32x1xf32> to vector<32x38xf32>
    %273 = arith.mulf %271, %272 : vector<32x38xf32>
    %274 = vector.broadcast %211 : vector<32x1xf32> to vector<32x38xf32>
    %275 = arith.mulf %273, %274 : vector<32x38xf32>
    %276 = vector.broadcast %212 : vector<32x1xf32> to vector<32x38xf32>
    %277 = arith.addf %275, %276 : vector<32x38xf32>
    %cst_78 = arith.constant dense<0.000000e+00> : vector<32x19xf32>
    %278 = tpu.matmul %277, %240, %cst_78 {dimension_numbers = #tpu.dot_dimension_numbers<[1], [0], [0], [1], [0, 0, 1, 1], [], []>} : vector<32x38xf32>, vector<38x19xf32>, vector<32x19xf32> -> vector<32x19xf32>
    %cst_79 = arith.constant dense<0.000000e+00> : vector<32x19xf32>
    %279 = tpu.matmul %277, %247, %cst_79 {dimension_numbers = #tpu.dot_dimension_numbers<[1], [0], [0], [1], [0, 0, 1, 1], [], []>} : vector<32x38xf32>, vector<38x19xf32>, vector<32x19xf32> -> vector<32x19xf32>
    %280 = arith.maximumf %278, %279 : vector<32x19xf32>
    %281 = tpu.iota {dimensions = array<i32: 1>} : vector<32x19xi32>
    %c2_i32_80 = arith.constant 2 : i32
    %282 = vector.broadcast %c2_i32_80 : i32 to vector<32x19xi32>
    %283 = arith.muli %282, %281 : vector<32x19xi32>
    %284 = arith.cmpf ogt, %279, %278 : vector<32x19xf32>
    %285 = arith.extui %284 : vector<32x19xi1> to vector<32x19xi32>
    %286 = arith.addi %283, %285 : vector<32x19xi32>
    %c1_81 = arith.constant 1 : index
    %c0_82 = arith.constant 0 : index
    %c0_83 = arith.constant 0 : index
    %287 = vector.load %arg9[%c1_81, %c0_82, %c0_83] : memref<2x32x19xi32, #tpu.memory_space<vmem>>, vector<1x32x19xi32>
    %288 = vector.shape_cast %287 : vector<1x32x19xi32> to vector<32x19xi32>
    %289 = vector.shape_cast %286 : vector<32x19xi32> to vector<1x32x19xi32>
    tpu.vector_store %arg9[%c1_81, %c0_82, %c0_83], %289 {strides = array<i32>} : memref<2x32x19xi32, #tpu.memory_space<vmem>>, vector<1x32x19xi32>,
    %cst_84 = arith.constant 0.000000e+00 : f32
    %290 = vector.broadcast %cst_84 : f32 to vector<32x19xf32>
    %291 = arith.maximumf %280, %290 : vector<32x19xf32>
    %c0_85 = arith.constant 0 : index
    %c0_86 = arith.constant 0 : index
    %292 = vector.load %arg3[%c0_85, %c0_86] : memref<32x96xf32, #tpu.memory_space<vmem>>, vector<32x96xf32>
    %cst_87 = arith.constant 0.000000e+00 : f32
    %293 = vector.broadcast %cst_87 : f32 to vector<32x1xf32>
    %294 = vector.extract_strided_slice %269 {offsets = [0, 0], sizes = [32, 18], strides = [1, 1]} : vector<32x19xf32> to vector<32x18xf32>
    %295 = tpu.concatenate %293, %294 in 1 : vector<32x1xf32>, vector<32x18xf32> -> vector<32x19xf32>
    %296 = vector.extract_strided_slice %269 {offsets = [0, 1], sizes = [32, 18], strides = [1, 1]} : vector<32x19xf32> to vector<32x18xf32>
    %297 = tpu.concatenate %296, %293 in 1 : vector<32x18xf32>, vector<32x1xf32> -> vector<32x19xf32>
    %298 = tpu.concatenate %295, %269, %297 in 0 : vector<32x19xf32>, vector<32x19xf32>, vector<32x19xf32> -> vector<96x19xf32>
    %cst_88 = arith.constant dense<0.000000e+00> : vector<32x19xf32>
    %299 = tpu.matmul %292, %298, %cst_88 {dimension_numbers = #tpu.dot_dimension_numbers<[1], [0], [0], [1], [0, 0, 1, 1], [], []>} : vector<32x96xf32>, vector<96x19xf32>, vector<32x19xf32> -> vector<32x19xf32>
    %cst_89 = arith.constant 0.000000e+00 : f32
    %300 = vector.broadcast %cst_89 : f32 to vector<32x1xf32>
    %301 = vector.extract_strided_slice %291 {offsets = [0, 0], sizes = [32, 18], strides = [1, 1]} : vector<32x19xf32> to vector<32x18xf32>
    %302 = tpu.concatenate %300, %301 in 1 : vector<32x1xf32>, vector<32x18xf32> -> vector<32x19xf32>
    %303 = vector.extract_strided_slice %291 {offsets = [0, 1], sizes = [32, 18], strides = [1, 1]} : vector<32x19xf32> to vector<32x18xf32>
    %304 = tpu.concatenate %303, %300 in 1 : vector<32x18xf32>, vector<32x1xf32> -> vector<32x19xf32>
    %305 = tpu.concatenate %302, %291, %304 in 0 : vector<32x19xf32>, vector<32x19xf32>, vector<32x19xf32> -> vector<96x19xf32>
    %cst_90 = arith.constant dense<0.000000e+00> : vector<32x19xf32>
    %306 = tpu.matmul %292, %305, %cst_90 {dimension_numbers = #tpu.dot_dimension_numbers<[1], [0], [0], [1], [0, 0, 1, 1], [], []>} : vector<32x96xf32>, vector<96x19xf32>, vector<32x19xf32> -> vector<32x19xf32>
    %307 = vector.extract_strided_slice %0 {offsets = [0, 2], sizes = [32, 1], strides = [1, 1]} : vector<32x4xf32> to vector<32x1xf32>
    %308 = vector.extract_strided_slice %1 {offsets = [0, 2], sizes = [32, 1], strides = [1, 1]} : vector<32x4xf32> to vector<32x1xf32>
    %cst_91 = arith.constant dense<0.000000e+00> : vector<32xf32>
    %309 = vector.multi_reduction <add>, %299, %cst_91 [1] : vector<32x19xf32> to vector<32xf32>
    %310 = vector.shape_cast %309 : vector<32xf32> to vector<32x1xf32>
    %311 = arith.mulf %299, %299 : vector<32x19xf32>
    %cst_92 = arith.constant dense<0.000000e+00> : vector<32xf32>
    %312 = vector.multi_reduction <add>, %311, %cst_92 [1] : vector<32x19xf32> to vector<32xf32>
    %313 = vector.shape_cast %312 : vector<32xf32> to vector<32x1xf32>
    %cst_93 = arith.constant dense<0.000000e+00> : vector<32xf32>
    %314 = vector.multi_reduction <add>, %306, %cst_93 [1] : vector<32x19xf32> to vector<32xf32>
    %315 = vector.shape_cast %314 : vector<32xf32> to vector<32x1xf32>
    %316 = arith.addf %310, %315 : vector<32x1xf32>
    %317 = arith.mulf %306, %306 : vector<32x19xf32>
    %cst_94 = arith.constant dense<0.000000e+00> : vector<32xf32>
    %318 = vector.multi_reduction <add>, %317, %cst_94 [1] : vector<32x19xf32> to vector<32xf32>
    %319 = vector.shape_cast %318 : vector<32xf32> to vector<32x1xf32>
    %320 = arith.addf %313, %319 : vector<32x1xf32>
    %cst_95 = arith.constant 0.0263157897 : f32
    %321 = vector.broadcast %cst_95 : f32 to vector<32x1xf32>
    %322 = arith.mulf %316, %321 : vector<32x1xf32>
    %cst_96 = arith.constant 0.0263157897 : f32
    %323 = vector.broadcast %cst_96 : f32 to vector<32x1xf32>
    %324 = arith.mulf %320, %323 : vector<32x1xf32>
    %325 = arith.mulf %322, %322 : vector<32x1xf32>
    %326 = arith.subf %324, %325 : vector<32x1xf32>
    %cst_97 = arith.constant 9.99999974E-6 : f32
    %327 = vector.broadcast %cst_97 : f32 to vector<32x1xf32>
    %328 = arith.addf %326, %327 : vector<32x1xf32>
    %329 = math.rsqrt %328 : vector<32x1xf32>
    %330 = tpu.iota {dimensions = array<i32: 0>} : vector<19x9xi32>
    %331 = tpu.iota {dimensions = array<i32: 1>} : vector<19x9xi32>
    %c2_i32_98 = arith.constant 2 : i32
    %332 = vector.broadcast %c2_i32_98 : i32 to vector<19x9xi32>
    %333 = arith.muli %332, %331 : vector<19x9xi32>
    %334 = arith.cmpi eq, %330, %333 : vector<19x9xi32>
    %335 = arith.extui %334 : vector<19x9xi1> to vector<19x9xi32>
    %336 = arith.sitofp %335 : vector<19x9xi32> to vector<19x9xf32>
    %c2_i32_99 = arith.constant 2 : i32
    %337 = vector.broadcast %c2_i32_99 : i32 to vector<19x9xi32>
    %338 = arith.muli %337, %331 : vector<19x9xi32>
    %c1_i32_100 = arith.constant 1 : i32
    %339 = vector.broadcast %c1_i32_100 : i32 to vector<19x9xi32>
    %340 = arith.addi %338, %339 : vector<19x9xi32>
    %341 = arith.cmpi eq, %330, %340 : vector<19x9xi32>
    %342 = arith.extui %341 : vector<19x9xi1> to vector<19x9xi32>
    %343 = arith.sitofp %342 : vector<19x9xi32> to vector<19x9xf32>
    %344 = vector.broadcast %322 : vector<32x1xf32> to vector<32x19xf32>
    %345 = arith.subf %299, %344 : vector<32x19xf32>
    %346 = vector.broadcast %329 : vector<32x1xf32> to vector<32x19xf32>
    %347 = arith.mulf %345, %346 : vector<32x19xf32>
    %348 = vector.broadcast %307 : vector<32x1xf32> to vector<32x19xf32>
    %349 = arith.mulf %347, %348 : vector<32x19xf32>
    %350 = vector.broadcast %308 : vector<32x1xf32> to vector<32x19xf32>
    %351 = arith.addf %349, %350 : vector<32x19xf32>
    %cst_101 = arith.constant dense<0.000000e+00> : vector<32x9xf32>
    %352 = tpu.matmul %351, %336, %cst_101 {dimension_numbers = #tpu.dot_dimension_numbers<[1], [0], [0], [1], [0, 0, 1, 1], [], []>} : vector<32x19xf32>, vector<19x9xf32>, vector<32x9xf32> -> vector<32x9xf32>
    %cst_102 = arith.constant dense<0.000000e+00> : vector<32x9xf32>
    %353 = tpu.matmul %351, %343, %cst_102 {dimension_numbers = #tpu.dot_dimension_numbers<[1], [0], [0], [1], [0, 0, 1, 1], [], []>} : vector<32x19xf32>, vector<19x9xf32>, vector<32x9xf32> -> vector<32x9xf32>
    %354 = arith.maximumf %352, %353 : vector<32x9xf32>
    %355 = tpu.iota {dimensions = array<i32: 1>} : vector<32x9xi32>
    %c2_i32_103 = arith.constant 2 : i32
    %356 = vector.broadcast %c2_i32_103 : i32 to vector<32x9xi32>
    %357 = arith.muli %356, %355 : vector<32x9xi32>
    %358 = arith.cmpf ogt, %353, %352 : vector<32x9xf32>
    %359 = arith.extui %358 : vector<32x9xi1> to vector<32x9xi32>
    %360 = arith.addi %357, %359 : vector<32x9xi32>
    %c0_104 = arith.constant 0 : index
    %c0_105 = arith.constant 0 : index
    %c0_106 = arith.constant 0 : index
    %361 = vector.load %arg10[%c0_104, %c0_105, %c0_106] : memref<2x32x9xi32, #tpu.memory_space<vmem>>, vector<1x32x9xi32>
    %362 = vector.shape_cast %361 : vector<1x32x9xi32> to vector<32x9xi32>
    %363 = vector.shape_cast %360 : vector<32x9xi32> to vector<1x32x9xi32>
    tpu.vector_store %arg10[%c0_104, %c0_105, %c0_106], %363 {strides = array<i32>} : memref<2x32x9xi32, #tpu.memory_space<vmem>>, vector<1x32x9xi32>,
    %cst_107 = arith.constant 0.000000e+00 : f32
    %364 = vector.broadcast %cst_107 : f32 to vector<32x9xf32>
    %365 = arith.maximumf %354, %364 : vector<32x9xf32>
    %366 = vector.broadcast %322 : vector<32x1xf32> to vector<32x19xf32>
    %367 = arith.subf %306, %366 : vector<32x19xf32>
    %368 = vector.broadcast %329 : vector<32x1xf32> to vector<32x19xf32>
    %369 = arith.mulf %367, %368 : vector<32x19xf32>
    %370 = vector.broadcast %307 : vector<32x1xf32> to vector<32x19xf32>
    %371 = arith.mulf %369, %370 : vector<32x19xf32>
    %372 = vector.broadcast %308 : vector<32x1xf32> to vector<32x19xf32>
    %373 = arith.addf %371, %372 : vector<32x19xf32>
    %cst_108 = arith.constant dense<0.000000e+00> : vector<32x9xf32>
    %374 = tpu.matmul %373, %336, %cst_108 {dimension_numbers = #tpu.dot_dimension_numbers<[1], [0], [0], [1], [0, 0, 1, 1], [], []>} : vector<32x19xf32>, vector<19x9xf32>, vector<32x9xf32> -> vector<32x9xf32>
    %cst_109 = arith.constant dense<0.000000e+00> : vector<32x9xf32>
    %375 = tpu.matmul %373, %343, %cst_109 {dimension_numbers = #tpu.dot_dimension_numbers<[1], [0], [0], [1], [0, 0, 1, 1], [], []>} : vector<32x19xf32>, vector<19x9xf32>, vector<32x9xf32> -> vector<32x9xf32>
    %376 = arith.maximumf %374, %375 : vector<32x9xf32>
    %377 = tpu.iota {dimensions = array<i32: 1>} : vector<32x9xi32>
    %c2_i32_110 = arith.constant 2 : i32
    %378 = vector.broadcast %c2_i32_110 : i32 to vector<32x9xi32>
    %379 = arith.muli %378, %377 : vector<32x9xi32>
    %380 = arith.cmpf ogt, %375, %374 : vector<32x9xf32>
    %381 = arith.extui %380 : vector<32x9xi1> to vector<32x9xi32>
    %382 = arith.addi %379, %381 : vector<32x9xi32>
    %c1_111 = arith.constant 1 : index
    %c0_112 = arith.constant 0 : index
    %c0_113 = arith.constant 0 : index
    %383 = vector.load %arg10[%c1_111, %c0_112, %c0_113] : memref<2x32x9xi32, #tpu.memory_space<vmem>>, vector<1x32x9xi32>
    %384 = vector.shape_cast %383 : vector<1x32x9xi32> to vector<32x9xi32>
    %385 = vector.shape_cast %382 : vector<32x9xi32> to vector<1x32x9xi32>
    tpu.vector_store %arg10[%c1_111, %c0_112, %c0_113], %385 {strides = array<i32>} : memref<2x32x9xi32, #tpu.memory_space<vmem>>, vector<1x32x9xi32>,
    %cst_114 = arith.constant 0.000000e+00 : f32
    %386 = vector.broadcast %cst_114 : f32 to vector<32x9xf32>
    %387 = arith.maximumf %376, %386 : vector<32x9xf32>
    %c0_115 = arith.constant 0 : index
    %c0_116 = arith.constant 0 : index
    %388 = vector.load %arg4[%c0_115, %c0_116] : memref<8x96xf32, #tpu.memory_space<vmem>>, vector<8x96xf32>
    %cst_117 = arith.constant 0.000000e+00 : f32
    %389 = vector.broadcast %cst_117 : f32 to vector<32x1xf32>
    %390 = vector.extract_strided_slice %365 {offsets = [0, 0], sizes = [32, 8], strides = [1, 1]} : vector<32x9xf32> to vector<32x8xf32>
    %391 = tpu.concatenate %389, %390 in 1 : vector<32x1xf32>, vector<32x8xf32> -> vector<32x9xf32>
    %392 = vector.extract_strided_slice %365 {offsets = [0, 1], sizes = [32, 8], strides = [1, 1]} : vector<32x9xf32> to vector<32x8xf32>
    %393 = tpu.concatenate %392, %389 in 1 : vector<32x8xf32>, vector<32x1xf32> -> vector<32x9xf32>
    %394 = tpu.concatenate %391, %365, %393 in 0 : vector<32x9xf32>, vector<32x9xf32>, vector<32x9xf32> -> vector<96x9xf32>
    %cst_118 = arith.constant dense<0.000000e+00> : vector<8x9xf32>
    %395 = tpu.matmul %388, %394, %cst_118 {dimension_numbers = #tpu.dot_dimension_numbers<[1], [0], [0], [1], [0, 0, 1, 1], [], []>} : vector<8x96xf32>, vector<96x9xf32>, vector<8x9xf32> -> vector<8x9xf32>
    %cst_119 = arith.constant 0.000000e+00 : f32
    %396 = vector.broadcast %cst_119 : f32 to vector<32x1xf32>
    %397 = vector.extract_strided_slice %387 {offsets = [0, 0], sizes = [32, 8], strides = [1, 1]} : vector<32x9xf32> to vector<32x8xf32>
    %398 = tpu.concatenate %396, %397 in 1 : vector<32x1xf32>, vector<32x8xf32> -> vector<32x9xf32>
    %399 = vector.extract_strided_slice %387 {offsets = [0, 1], sizes = [32, 8], strides = [1, 1]} : vector<32x9xf32> to vector<32x8xf32>
    %400 = tpu.concatenate %399, %396 in 1 : vector<32x8xf32>, vector<32x1xf32> -> vector<32x9xf32>
    %401 = tpu.concatenate %398, %387, %400 in 0 : vector<32x9xf32>, vector<32x9xf32>, vector<32x9xf32> -> vector<96x9xf32>
    %cst_120 = arith.constant dense<0.000000e+00> : vector<8x9xf32>
    %402 = tpu.matmul %388, %401, %cst_120 {dimension_numbers = #tpu.dot_dimension_numbers<[1], [0], [0], [1], [0, 0, 1, 1], [], []>} : vector<8x96xf32>, vector<96x9xf32>, vector<8x9xf32> -> vector<8x9xf32>
    %403 = vector.extract_strided_slice %395 {offsets = [0, 0], sizes = [1, 9], strides = [1, 1]} : vector<8x9xf32> to vector<1x9xf32>
    %404 = vector.extract_strided_slice %402 {offsets = [0, 0], sizes = [1, 9], strides = [1, 1]} : vector<8x9xf32> to vector<1x9xf32>
    %405 = vector.extract_strided_slice %0 {offsets = [0, 3], sizes = [1, 1], strides = [1, 1]} : vector<32x4xf32> to vector<1x1xf32>
    %406 = vector.extract_strided_slice %1 {offsets = [0, 3], sizes = [1, 1], strides = [1, 1]} : vector<32x4xf32> to vector<1x1xf32>
    %cst_121 = arith.constant dense<0.000000e+00> : vector<1xf32>
    %407 = vector.multi_reduction <add>, %403, %cst_121 [1] : vector<1x9xf32> to vector<1xf32>
    %408 = vector.shape_cast %407 : vector<1xf32> to vector<1x1xf32>
    %409 = arith.mulf %403, %403 : vector<1x9xf32>
    %cst_122 = arith.constant dense<0.000000e+00> : vector<1xf32>
    %410 = vector.multi_reduction <add>, %409, %cst_122 [1] : vector<1x9xf32> to vector<1xf32>
    %411 = vector.shape_cast %410 : vector<1xf32> to vector<1x1xf32>
    %cst_123 = arith.constant dense<0.000000e+00> : vector<1xf32>
    %412 = vector.multi_reduction <add>, %404, %cst_123 [1] : vector<1x9xf32> to vector<1xf32>
    %413 = vector.shape_cast %412 : vector<1xf32> to vector<1x1xf32>
    %414 = arith.addf %408, %413 : vector<1x1xf32>
    %415 = arith.mulf %404, %404 : vector<1x9xf32>
    %cst_124 = arith.constant dense<0.000000e+00> : vector<1xf32>
    %416 = vector.multi_reduction <add>, %415, %cst_124 [1] : vector<1x9xf32> to vector<1xf32>
    %417 = vector.shape_cast %416 : vector<1xf32> to vector<1x1xf32>
    %418 = arith.addf %411, %417 : vector<1x1xf32>
    %cst_125 = arith.constant 0.055555556 : f32
    %419 = vector.broadcast %cst_125 : f32 to vector<1x1xf32>
    %420 = arith.mulf %414, %419 : vector<1x1xf32>
    %cst_126 = arith.constant 0.055555556 : f32
    %421 = vector.broadcast %cst_126 : f32 to vector<1x1xf32>
    %422 = arith.mulf %418, %421 : vector<1x1xf32>
    %423 = arith.mulf %420, %420 : vector<1x1xf32>
    %424 = arith.subf %422, %423 : vector<1x1xf32>
    %cst_127 = arith.constant 9.99999974E-6 : f32
    %425 = vector.broadcast %cst_127 : f32 to vector<1x1xf32>
    %426 = arith.addf %424, %425 : vector<1x1xf32>
    %427 = math.rsqrt %426 : vector<1x1xf32>
    %428 = tpu.iota {dimensions = array<i32: 0>} : vector<9x4xi32>
    %429 = tpu.iota {dimensions = array<i32: 1>} : vector<9x4xi32>
    %c2_i32_128 = arith.constant 2 : i32
    %430 = vector.broadcast %c2_i32_128 : i32 to vector<9x4xi32>
    %431 = arith.muli %430, %429 : vector<9x4xi32>
    %432 = arith.cmpi eq, %428, %431 : vector<9x4xi32>
    %433 = arith.extui %432 : vector<9x4xi1> to vector<9x4xi32>
    %434 = arith.sitofp %433 : vector<9x4xi32> to vector<9x4xf32>
    %c2_i32_129 = arith.constant 2 : i32
    %435 = vector.broadcast %c2_i32_129 : i32 to vector<9x4xi32>
    %436 = arith.muli %435, %429 : vector<9x4xi32>
    %c1_i32_130 = arith.constant 1 : i32
    %437 = vector.broadcast %c1_i32_130 : i32 to vector<9x4xi32>
    %438 = arith.addi %436, %437 : vector<9x4xi32>
    %439 = arith.cmpi eq, %428, %438 : vector<9x4xi32>
    %440 = arith.extui %439 : vector<9x4xi1> to vector<9x4xi32>
    %441 = arith.sitofp %440 : vector<9x4xi32> to vector<9x4xf32>
    %442 = vector.broadcast %420 : vector<1x1xf32> to vector<1x9xf32>
    %443 = arith.subf %403, %442 : vector<1x9xf32>
    %444 = vector.broadcast %427 : vector<1x1xf32> to vector<1x9xf32>
    %445 = arith.mulf %443, %444 : vector<1x9xf32>
    %446 = vector.broadcast %405 : vector<1x1xf32> to vector<1x9xf32>
    %447 = arith.mulf %445, %446 : vector<1x9xf32>
    %448 = vector.broadcast %406 : vector<1x1xf32> to vector<1x9xf32>
    %449 = arith.addf %447, %448 : vector<1x9xf32>
    %450 = vector.shape_cast %449 : vector<1x9xf32> to vector<1x9xf32>
    %451 = vector.broadcast %450 : vector<1x9xf32> to vector<8x9xf32>
    %cst_131 = arith.constant dense<0.000000e+00> : vector<8x4xf32>
    %452 = tpu.matmul %451, %434, %cst_131 {dimension_numbers = #tpu.dot_dimension_numbers<[1], [0], [0], [1], [0, 0, 1, 1], [], []>} : vector<8x9xf32>, vector<9x4xf32>, vector<8x4xf32> -> vector<8x4xf32>
    %453 = vector.extract_strided_slice %452 {offsets = [0, 0], sizes = [1, 4], strides = [1, 1]} : vector<8x4xf32> to vector<1x4xf32>
    %cst_132 = arith.constant dense<0.000000e+00> : vector<8x4xf32>
    %454 = tpu.matmul %451, %441, %cst_132 {dimension_numbers = #tpu.dot_dimension_numbers<[1], [0], [0], [1], [0, 0, 1, 1], [], []>} : vector<8x9xf32>, vector<9x4xf32>, vector<8x4xf32> -> vector<8x4xf32>
    %455 = vector.extract_strided_slice %454 {offsets = [0, 0], sizes = [1, 4], strides = [1, 1]} : vector<8x4xf32> to vector<1x4xf32>
    %456 = arith.maximumf %453, %455 : vector<1x4xf32>
    %457 = tpu.iota {dimensions = array<i32: 1>} : vector<1x4xi32>
    %c2_i32_133 = arith.constant 2 : i32
    %458 = vector.broadcast %c2_i32_133 : i32 to vector<1x4xi32>
    %459 = arith.muli %458, %457 : vector<1x4xi32>
    %460 = arith.cmpf ogt, %455, %453 : vector<1x4xf32>
    %461 = arith.extui %460 : vector<1x4xi1> to vector<1x4xi32>
    %462 = arith.addi %459, %461 : vector<1x4xi32>
    %c0_134 = arith.constant 0 : index
    %c0_135 = arith.constant 0 : index
    %c0_136 = arith.constant 0 : index
    %463 = vector.load %arg11[%c0_134, %c0_135, %c0_136] : memref<2x1x4xi32, #tpu.memory_space<vmem>>, vector<1x1x4xi32>
    %464 = vector.shape_cast %463 : vector<1x1x4xi32> to vector<1x4xi32>
    %465 = vector.shape_cast %462 : vector<1x4xi32> to vector<1x1x4xi32>
    tpu.vector_store %arg11[%c0_134, %c0_135, %c0_136], %465 {strides = array<i32>} : memref<2x1x4xi32, #tpu.memory_space<vmem>>, vector<1x1x4xi32>,
    %cst_137 = arith.constant 0.000000e+00 : f32
    %466 = vector.broadcast %cst_137 : f32 to vector<1x4xf32>
    %467 = arith.maximumf %456, %466 : vector<1x4xf32>
    %468 = vector.broadcast %420 : vector<1x1xf32> to vector<1x9xf32>
    %469 = arith.subf %404, %468 : vector<1x9xf32>
    %470 = vector.broadcast %427 : vector<1x1xf32> to vector<1x9xf32>
    %471 = arith.mulf %469, %470 : vector<1x9xf32>
    %472 = vector.broadcast %405 : vector<1x1xf32> to vector<1x9xf32>
    %473 = arith.mulf %471, %472 : vector<1x9xf32>
    %474 = vector.broadcast %406 : vector<1x1xf32> to vector<1x9xf32>
    %475 = arith.addf %473, %474 : vector<1x9xf32>
    %476 = vector.shape_cast %475 : vector<1x9xf32> to vector<1x9xf32>
    %477 = vector.broadcast %476 : vector<1x9xf32> to vector<8x9xf32>
    %cst_138 = arith.constant dense<0.000000e+00> : vector<8x4xf32>
    %478 = tpu.matmul %477, %434, %cst_138 {dimension_numbers = #tpu.dot_dimension_numbers<[1], [0], [0], [1], [0, 0, 1, 1], [], []>} : vector<8x9xf32>, vector<9x4xf32>, vector<8x4xf32> -> vector<8x4xf32>
    %479 = vector.extract_strided_slice %478 {offsets = [0, 0], sizes = [1, 4], strides = [1, 1]} : vector<8x4xf32> to vector<1x4xf32>
    %cst_139 = arith.constant dense<0.000000e+00> : vector<8x4xf32>
    %480 = tpu.matmul %477, %441, %cst_139 {dimension_numbers = #tpu.dot_dimension_numbers<[1], [0], [0], [1], [0, 0, 1, 1], [], []>} : vector<8x9xf32>, vector<9x4xf32>, vector<8x4xf32> -> vector<8x4xf32>
    %481 = vector.extract_strided_slice %480 {offsets = [0, 0], sizes = [1, 4], strides = [1, 1]} : vector<8x4xf32> to vector<1x4xf32>
    %482 = arith.maximumf %479, %481 : vector<1x4xf32>
    %483 = tpu.iota {dimensions = array<i32: 1>} : vector<1x4xi32>
    %c2_i32_140 = arith.constant 2 : i32
    %484 = vector.broadcast %c2_i32_140 : i32 to vector<1x4xi32>
    %485 = arith.muli %484, %483 : vector<1x4xi32>
    %486 = arith.cmpf ogt, %481, %479 : vector<1x4xf32>
    %487 = arith.extui %486 : vector<1x4xi1> to vector<1x4xi32>
    %488 = arith.addi %485, %487 : vector<1x4xi32>
    %c1_141 = arith.constant 1 : index
    %c0_142 = arith.constant 0 : index
    %c0_143 = arith.constant 0 : index
    %489 = vector.load %arg11[%c1_141, %c0_142, %c0_143] : memref<2x1x4xi32, #tpu.memory_space<vmem>>, vector<1x1x4xi32>
    %490 = vector.shape_cast %489 : vector<1x1x4xi32> to vector<1x4xi32>
    %491 = vector.shape_cast %488 : vector<1x4xi32> to vector<1x1x4xi32>
    tpu.vector_store %arg11[%c1_141, %c0_142, %c0_143], %491 {strides = array<i32>} : memref<2x1x4xi32, #tpu.memory_space<vmem>>, vector<1x1x4xi32>,
    %cst_144 = arith.constant 0.000000e+00 : f32
    %492 = vector.broadcast %cst_144 : f32 to vector<1x4xf32>
    %493 = arith.maximumf %482, %492 : vector<1x4xf32>
    %c0_145 = arith.constant 0 : index
    %c0_146 = arith.constant 0 : index
    %c0_147 = arith.constant 0 : index
    %494 = vector.load %arg7[%c0_145, %c0_146, %c0_147] : memref<2x1x4xf32, #tpu.memory_space<vmem>>, vector<1x1x4xf32>
    %495 = vector.shape_cast %494 : vector<1x1x4xf32> to vector<1x4xf32>
    %496 = vector.shape_cast %467 : vector<1x4xf32> to vector<1x1x4xf32>
    tpu.vector_store %arg7[%c0_145, %c0_146, %c0_147], %496 {strides = array<i32>} : memref<2x1x4xf32, #tpu.memory_space<vmem>>, vector<1x1x4xf32>,
    %c1_148 = arith.constant 1 : index
    %c0_149 = arith.constant 0 : index
    %c0_150 = arith.constant 0 : index
    %497 = vector.load %arg7[%c1_148, %c0_149, %c0_150] : memref<2x1x4xf32, #tpu.memory_space<vmem>>, vector<1x1x4xf32>
    %498 = vector.shape_cast %497 : vector<1x1x4xf32> to vector<1x4xf32>
    %499 = vector.shape_cast %493 : vector<1x4xf32> to vector<1x1x4xf32>
    tpu.vector_store %arg7[%c1_148, %c0_149, %c0_150], %499 {strides = array<i32>} : memref<2x1x4xf32, #tpu.memory_space<vmem>>, vector<1x1x4xf32>,
    return
  }
}

</mosaic_0001>

<llo_original>
// kernel: encoder_forward.1
$region0: #{encoder_forward.1}
  #allocation0 [shape = 'u32[]', space=smem, size = 0x4, offset = 0x4, fixed_abs, tag = 'smem constant byte address 0x4 - core index']
  #allocation1 [shape = 'u32[144,128]{1,0:T(1,128)}', space=vmem, size = 0x12000, scoped, tag = 'internal scratch']
  %s0 = inlined_call_operand.vmem [shape: f32[5,256], index: 0, kind: input, shape index: {}]
  %s1 = inlined_call_operand.vmem [shape: f32[32,135], index: 1, kind: input, shape index: {}]
  %s2 = inlined_call_operand.vmem [shape: f32[32,96], index: 2, kind: input, shape index: {}]
  %s3 = inlined_call_operand.vmem [shape: f32[32,96], index: 3, kind: input, shape index: {}]
  %s4 = inlined_call_operand.vmem [shape: f32[8,96], index: 4, kind: input, shape index: {}]
  %s5 = inlined_call_operand.vmem [shape: f32[32,4], index: 5, kind: input, shape index: {}]
  %s6 = inlined_call_operand.vmem [shape: f32[32,4], index: 6, kind: input, shape index: {}]
  %s7 = inlined_call_operand.hbm [shape: f32[2,1,4], index: 7, kind: output, shape index: {0}]
  %s8 = inlined_call_operand.hbm [shape: s32[2,32,38], index: 8, kind: output, shape index: {1}]
  %s9 = inlined_call_operand.vmem [shape: s32[2,32,19], index: 9, kind: output, shape index: {2}]
  %s10 = inlined_call_operand.vmem [shape: s32[2,32,9], index: 10, kind: output, shape index: {3}]
  %s11 = inlined_call_operand.hbm [shape: s32[2,1,4], index: 11, kind: output, shape index: {4}]
  %12 = xla_tuple %s7, %s8, %s9, %s10, %s11
  %s13 = sld [smem:[#allocation0]]
  $region70: #{encoder_forward.1} parent=0
    _
  %s15 = ssub.s32 1, %s13
  %s16 = scalar_select 0, %s15, %s13
  $region1: #{encoder_forward.1} parent=0
    #allocation2 [shape = 'u8[1024]{0}', space=vmem, size = 0x400, scoped, tag = 'output window, operand 0, single buffered']
    #allocation3 [shape = 's32[1]{0}', space=sflag, size = 0x4, scoped, tag = 'scoped memory for encoder_forward.1']
    #allocation4 [shape = 'u8[32768]{0}', space=vmem, size = 0x8000, scoped, tag = 'output window, operand 1, single buffered']
    #allocation5 [shape = 's32[1]{0}', space=sflag, size = 0x4, scoped, tag = 'scoped memory for encoder_forward.1']
    #allocation6 [shape = 'u8[1024]{0}', space=vmem, size = 0x400, scoped, tag = 'output window, operand 4, single buffered']
    %17 = vsyncpa [#allocation3], 0
    %18 = vsyncpa [#allocation5], 0
    // Predicated region
    $region2: #{encoder_forward.1} parent=1 // pred_check
      _
    $region3: #{encoder_forward.1} parent=1 // pred_check_branch
      %20 = sbr.rel (0) target = $region5
    $region4: #{encoder_forward.1} parent=1 // pred_region
      _
    $region5: #{encoder_forward.1} parent=1 // pred_fallthru
      _
    // Predicated region
    $region6: #{encoder_forward.1} parent=1 // pred_check
      _
    $region7: #{encoder_forward.1} parent=1 // pred_check_branch
      %22 = sbr.rel (0) target = $region9
    $region8: #{encoder_forward.1} parent=1 // pred_region
      _
    $region9: #{encoder_forward.1} parent=1 // pred_fallthru
      _
    // Predicated region
    $region10: #{encoder_forward.1} parent=1 // pred_check
      _
    $region11: #{encoder_forward.1} parent=1 // pred_check_branch
      %24 = sbr.rel (0) target = $region13
    $region12: #{encoder_forward.1} parent=1 // pred_region
      _
    $region13: #{encoder_forward.1} parent=1 // pred_fallthru
      _
    // Predicated region
    $region14: #{encoder_forward.1} parent=1 // pred_check
      _
    $region15: #{encoder_forward.1} parent=1 // pred_check_branch
      %26 = sbr.rel (0) target = $region17
    $region16: #{encoder_forward.1} parent=1 // pred_region
      _
    $region17: #{encoder_forward.1} parent=1 // pred_fallthru
      _
    // Predicated region
    $region18: #{encoder_forward.1} parent=1 // pred_check
      _
    $region19: #{encoder_forward.1} parent=1 // pred_check_branch
      %28 = sbr.rel (0) target = $region21
    $region20: #{encoder_forward.1} parent=1 // pred_region
      _
    $region21: #{encoder_forward.1} parent=1 // pred_fallthru
      _
    // Predicated region
    $region22: #{encoder_forward.1} parent=1 // pred_check
      _
    $region23: #{encoder_forward.1} parent=1 // pred_check_branch
      %30 = sbr.rel (0) target = $region25
    $region24: #{encoder_forward.1} parent=1 // pred_region
      _
    $region25: #{encoder_forward.1} parent=1 // pred_fallthru
      _
    // Predicated region
    $region26: #{encoder_forward.1} parent=1 // pred_check
      _
    $region27: #{encoder_forward.1} parent=1 // pred_check_branch
      %32 = sbr.rel (0) target = $region29
    $region28: #{encoder_forward.1} parent=1 // pred_region
      _
    $region29: #{encoder_forward.1} parent=1 // pred_fallthru
      _
    %v33 = vld [vmem:[%s5] sm:$0xff]
    %v34 = vld [vmem:[%s5 + $0x8] sm:$0xff]
    %v35 = vld [vmem:[%s5 + $0x10] sm:$0xff]
    %v36 = vld [vmem:[%s5 + $0x18] sm:$0xff]
    %v37 = vld [vmem:[%s6] sm:$0xff]
    %v38 = vld [vmem:[%s6 + $0x8] sm:$0xff]
    %v39 = vld [vmem:[%s6 + $0x10] sm:$0xff]
    %v40 = vld [vmem:[%s6 + $0x18] sm:$0xff]
    %v41 = vld [vmem:[%s0] sm:$0x1f]
    %v42 = vld [vmem:[%s0 + $0x8] sm:$0x1f]
    %v43 = vld [vmem:[%s1] sm:$0xff]
    %v44 = vld [vmem:[%s1 + $0x8] sm:$0xff]
    %v45 = vld [vmem:[%s1 + $0x10] sm:$0xff]
    %v46 = vld [vmem:[%s1 + $0x18] sm:$0xff]
    %v47 = vld [vmem:[%s1 + $0x20] sm:$0xff]
    %v48 = vld [vmem:[%s1 + $0x28] sm:$0xff]
    %v49 = vld [vmem:[%s1 + $0x30] sm:$0xff]
    %v50 = vld [vmem:[%s1 + $0x38] sm:$0xff]
    %55 = vrot.lane.b32.xlu0 %v43, 123
    %v56 = vpop.permute.xlu0 %55
    %57 = vrot.lane.b32.xlu0 %v45, 123
    %v58 = vpop.permute.xlu0 %57
    %59 = vrot.lane.b32.xlu0 %v47, 123
    %v60 = vpop.permute.xlu0 %59
    %61 = vrot.lane.b32.xlu0 %v49, 123
    %v62 = vpop.permute.xlu0 %61
    %65 = vrot.lane.b32.xlu0 %v41, 127
    %v66 = vpop.permute.xlu0 %65
    %67 = vrot.lane.b32.xlu0 %v42, 127
    %v68 = vpop.permute.xlu0 %67
    %vm69 = vcmask 1039360
    %v70 = vsel %vm69, %v66, %v68
    %vm71 = vcmask 39936
    %v72 = vsel %vm71, %v56, 0
    %v74 = vsel %vm71, %v58, 0
    %v76 = vsel %vm71, %v60, 0
    %v78 = vsel %vm71, %v62, 0
    %vm80 = vcmask 1044480
    %v81 = vsel %vm80, %v70, 0
    %v83 = vsel %vm80, %v68, 0
    %85 = vmatprep.subr.mxu0 0.0
    %86 = vmatpush1.msra.mxu0 0.0
    %87 = vmatprep.subr.mxu0 0.0
    %88 = vmatpush1.msra.mxu0 0.0
    %89 = vmatprep.subr.mxu0 0.0
    %90 = vmatpush1.msra.mxu0 0.0
    %91 = vmatprep.subr.mxu0 0.0
    %92 = vmatpush1.msra.mxu0 0.0
    %93 = vmatprep.subr.mxu0 0.0
    %94 = vmatpush1.msra.mxu0 0.0
    %95 = vmatprep.subr.mxu0 0.0
    %96 = vmatpush1.msra.mxu0 0.0
    %97 = vmatprep.subr.mxu0 0.0
    %98 = vmatpush1.msra.mxu0 0.0
    %99 = vmatprep.subr.mxu0 0.0
    %100 = vmatpush1.msra.mxu0 0.0
    %101 = vmatprep.subr.mxu0 0.0
    %102 = vmatpush1.msra.mxu0 0.0
    %103 = vmatprep.subr.mxu0 0.0
    %104 = vmatpush1.msra.mxu0 0.0
    %105 = vmatprep.subr.mxu0 0.0
    %106 = vmatpush1.msra.mxu0 0.0
    %107 = vmatprep.subr.mxu0 0.0
    %108 = vmatpush1.msra.mxu0 0.0
    %109 = vmatprep.subr.mxu0 0.0
    %110 = vmatpush1.msra.mxu0 0.0
    %111 = vmatprep.subr.mxu0 0.0
    %112 = vmatpush1.msra.mxu0 0.0
    %113 = vmatprep.subr.mxu0 0.0
    %114 = vmatpush1.msra.mxu0 0.0
    %115 = vmatprep.subr.mxu0 %v83
    %116 = vmatpush1.msra.mxu0 %v81
    %117 = vmatprep.subr.mxu0 0.0
    %118 = vmatpush2.msra.mxu0 0.0
    %119 = vmatprep.subr.mxu0 0.0
    %120 = vmatpush2.msra.mxu0 0.0
    %121 = vmatprep.subr.mxu0 0.0
    %122 = vmatpush2.msra.mxu0 0.0
    %123 = vmatprep.subr.mxu0 0.0
    %124 = vmatpush2.msra.mxu0 0.0
    %125 = vmatprep.subr.mxu0 0.0
    %126 = vmatpush2.msra.mxu0 0.0
    %127 = vmatprep.subr.mxu0 0.0
    %128 = vmatpush2.msra.mxu0 0.0
    %129 = vmatprep.subr.mxu0 0.0
    %130 = vmatpush2.msra.mxu0 0.0
    %131 = vmatprep.subr.mxu0 0.0
    %132 = vmatpush2.msra.mxu0 0.0
    %133 = vmatprep.subr.mxu0 0.0
    %134 = vmatpush2.msra.mxu0 0.0
    %135 = vmatprep.subr.mxu0 0.0
    %136 = vmatpush2.msra.mxu0 0.0
    %137 = vmatprep.subr.mxu0 0.0
    %138 = vmatpush2.msra.mxu0 0.0
    %139 = vmatprep.subr.mxu0 0.0
    %140 = vmatpush2.msra.mxu0 0.0
    %141 = vmatprep.subr.mxu0 0.0
    %142 = vmatpush2.msra.mxu0 0.0
    %143 = vmatprep.subr.mxu0 0.0
    %144 = vmatpush2.msra.mxu0 0.0
    %145 = vmatprep.subr.mxu0 0.0
    %146 = vmatpush2.msra.mxu0 0.0
    %147 = vmatprep.subr.mxu0 0.0
    %148 = vmatpush2.msra.mxu0 0.0
    %149 = vmatprep.mubr.f32.mxu0 0.0
    %150 = vmatmul.mubr.f32.gmra.mxu0 %v72
    %v151 = vpop.f32.mrf.mxu0
    %v152 = vadd.f32 0.0, %v151
    %v153 = vpop.f32.mrf.mxu0
    %v154 = vadd.f32 0.0, %v153
    %155 = vmatprep.mubr.f32.mxu0 0.0
    %156 = vmatmul.mubr.f32.gmra.mxu0 %v74
    %v157 = vpop.f32.mrf.mxu0
    %v158 = vadd.f32 0.0, %v157
    %v159 = vpop.f32.mrf.mxu0
    %v160 = vadd.f32 0.0, %v159
    %161 = vmatprep.mubr.f32.mxu0 0.0
    %162 = vmatmul.mubr.f32.gmra.mxu0 %v76
    %v163 = vpop.f32.mrf.mxu0
    %v164 = vadd.f32 0.0, %v163
    %v165 = vpop.f32.mrf.mxu0
    %v166 = vadd.f32 0.0, %v165
    %167 = vmatprep.mubr.f32.mxu0 0.0
    %168 = vmatmul.mubr.f32.gmra.mxu0 %v78
    %v169 = vpop.f32.mrf.mxu0
    %v170 = vadd.f32 0.0, %v169
    %v171 = vpop.f32.mrf.mxu0
    %v172 = vadd.f32 0.0, %v171
    %173 = vdwg.mxu0
    %v174 = vsel %vm71, %v43, 0
    %v176 = vsel %vm71, %v45, 0
    %v178 = vsel %vm71, %v47, 0
    %v180 = vsel %vm71, %v49, 0
    %v182 = vsel %vm80, %v41, 0
    %v184 = vsel %vm80, %v42, 0
    %186 = vmatprep.subr.mxu0 0.0
    %187 = vmatpush1.msra.mxu0 0.0
    %188 = vmatprep.subr.mxu0 0.0
    %189 = vmatpush1.msra.mxu0 0.0
    %190 = vmatprep.subr.mxu0 0.0
    %191 = vmatpush1.msra.mxu0 0.0
    %192 = vmatprep.subr.mxu0 0.0
    %193 = vmatpush1.msra.mxu0 0.0
    %194 = vmatprep.subr.mxu0 0.0
    %195 = vmatpush1.msra.mxu0 0.0
    %196 = vmatprep.subr.mxu0 0.0
    %197 = vmatpush1.msra.mxu0 0.0
    %198 = vmatprep.subr.mxu0 0.0
    %199 = vmatpush1.msra.mxu0 0.0
    %200 = vmatprep.subr.mxu0 0.0
    %201 = vmatpush1.msra.mxu0 0.0
    %202 = vmatprep.subr.mxu0 0.0
    %203 = vmatpush1.msra.mxu0 0.0
    %204 = vmatprep.subr.mxu0 0.0
    %205 = vmatpush1.msra.mxu0 0.0
    %206 = vmatprep.subr.mxu0 0.0
    %207 = vmatpush1.msra.mxu0 0.0
    %208 = vmatprep.subr.mxu0 0.0
    %209 = vmatpush1.msra.mxu0 0.0
    %210 = vmatprep.subr.mxu0 0.0
    %211 = vmatpush1.msra.mxu0 0.0
    %212 = vmatprep.subr.mxu0 0.0
    %213 = vmatpush1.msra.mxu0 0.0
    %214 = vmatprep.subr.mxu0 0.0
    %215 = vmatpush1.msra.mxu0 0.0
    %216 = vmatprep.subr.mxu0 %v184
    %217 = vmatpush1.msra.mxu0 %v182
    %218 = vmatprep.subr.mxu0 0.0
    %219 = vmatpush2.msra.mxu0 0.0
    %220 = vmatprep.subr.mxu0 0.0
    %221 = vmatpush2.msra.mxu0 0.0
    %222 = vmatprep.subr.mxu0 0.0
    %223 = vmatpush2.msra.mxu0 0.0
    %224 = vmatprep.subr.mxu0 0.0
    %225 = vmatpush2.msra.mxu0 0.0
    %226 = vmatprep.subr.mxu0 0.0
    %227 = vmatpush2.msra.mxu0 0.0
    %228 = vmatprep.subr.mxu0 0.0
    %229 = vmatpush2.msra.mxu0 0.0
    %230 = vmatprep.subr.mxu0 0.0
    %231 = vmatpush2.msra.mxu0 0.0
    %232 = vmatprep.subr.mxu0 0.0
    %233 = vmatpush2.msra.mxu0 0.0
    %234 = vmatprep.subr.mxu0 0.0
    %235 = vmatpush2.msra.mxu0 0.0
    %236 = vmatprep.subr.mxu0 0.0
    %237 = vmatpush2.msra.mxu0 0.0
    %238 = vmatprep.subr.mxu0 0.0
    %239 = vmatpush2.msra.mxu0 0.0
    %240 = vmatprep.subr.mxu0 0.0
    %241 = vmatpush2.msra.mxu0 0.0
    %242 = vmatprep.subr.mxu0 0.0
    %243 = vmatpush2.msra.mxu0 0.0
    %244 = vmatprep.subr.mxu0 0.0
    %245 = vmatpush2.msra.mxu0 0.0
    %246 = vmatprep.subr.mxu0 0.0
    %247 = vmatpush2.msra.mxu0 0.0
    %248 = vmatprep.subr.mxu0 0.0
    %249 = vmatpush2.msra.mxu0 0.0
    %250 = vmatprep.mubr.f32.mxu0 0.0
    %251 = vmatmul.mubr.f32.gmra.mxu0 %v174
    %v252 = vpop.f32.mrf.mxu0
    %v253 = vadd.f32 %v152, %v252
    %v254 = vpop.f32.mrf.mxu0
    %v255 = vadd.f32 %v154, %v254
    %256 = vmatprep.mubr.f32.mxu0 0.0
    %257 = vmatmul.mubr.f32.gmra.mxu0 %v176
    %v258 = vpop.f32.mrf.mxu0
    %v259 = vadd.f32 %v158, %v258
    %v260 = vpop.f32.mrf.mxu0
    %v261 = vadd.f32 %v160, %v260
    %262 = vmatprep.mubr.f32.mxu0 0.0
    %263 = vmatmul.mubr.f32.gmra.mxu0 %v178
    %v264 = vpop.f32.mrf.mxu0
    %v265 = vadd.f32 %v164, %v264
    %v266 = vpop.f32.mrf.mxu0
    %v267 = vadd.f32 %v166, %v266
    %268 = vmatprep.mubr.f32.mxu0 0.0
    %269 = vmatmul.mubr.f32.gmra.mxu0 %v180
    %v270 = vpop.f32.mrf.mxu0
    %v271 = vadd.f32 %v170, %v270
    %v272 = vpop.f32.mrf.mxu0
    %v273 = vadd.f32 %v172, %v272
    %274 = vdwg.mxu0
    %275 = vrot.lane.b32.xlu0 %v43, 118
    %v276 = vpop.permute.xlu0 %275
    %277 = vrot.lane.b32.xlu0 %v45, 118
    %v278 = vpop.permute.xlu0 %277
    %279 = vrot.lane.b32.xlu0 %v47, 118
    %v280 = vpop.permute.xlu0 %279
    %281 = vrot.lane.b32.xlu0 %v49, 118
    %v282 = vpop.permute.xlu0 %281
    %283 = vrot.lane.b32.xlu0 %v41, 126
    %v284 = vpop.permute.xlu0 %283
    %285 = vrot.lane.b32.xlu0 %v42, 126
    %v286 = vpop.permute.xlu0 %285
    %vm287 = vcmask 1031168
    %v288 = vsel %vm287, %v284, %v286
    %v289 = vsel %vm71, %v276, 0
    %v291 = vsel %vm71, %v278, 0
    %v293 = vsel %vm71, %v280, 0
    %v295 = vsel %vm71, %v282, 0
    %v297 = vsel %vm80, %v288, 0
    %v299 = vsel %vm80, %v286, 0
    %301 = vmatprep.subr.mxu0 0.0
    %302 = vmatpush1.msra.mxu0 0.0
    %303 = vmatprep.subr.mxu0 0.0
    %304 = vmatpush1.msra.mxu0 0.0
    %305 = vmatprep.subr.mxu0 0.0
    %306 = vmatpush1.msra.mxu0 0.0
    %307 = vmatprep.subr.mxu0 0.0
    %308 = vmatpush1.msra.mxu0 0.0
    %309 = vmatprep.subr.mxu0 0.0
    %310 = vmatpush1.msra.mxu0 0.0
    %311 = vmatprep.subr.mxu0 0.0
    %312 = vmatpush1.msra.mxu0 0.0
    %313 = vmatprep.subr.mxu0 0.0
    %314 = vmatpush1.msra.mxu0 0.0
    %315 = vmatprep.subr.mxu0 0.0
    %316 = vmatpush1.msra.mxu0 0.0
    %317 = vmatprep.subr.mxu0 0.0
    %318 = vmatpush1.msra.mxu0 0.0
    %319 = vmatprep.subr.mxu0 0.0
    %320 = vmatpush1.msra.mxu0 0.0
    %321 = vmatprep.subr.mxu0 0.0
    %322 = vmatpush1.msra.mxu0 0.0
    %323 = vmatprep.subr.mxu0 0.0
    %324 = vmatpush1.msra.mxu0 0.0
    %325 = vmatprep.subr.mxu0 0.0
    %326 = vmatpush1.msra.mxu0 0.0
    %327 = vmatprep.subr.mxu0 0.0
    %328 = vmatpush1.msra.mxu0 0.0
    %329 = vmatprep.subr.mxu0 0.0
    %330 = vmatpush1.msra.mxu0 0.0
    %331 = vmatprep.subr.mxu0 %v299
    %332 = vmatpush1.msra.mxu0 %v297
    %333 = vmatprep.subr.mxu0 0.0
    %334 = vmatpush2.msra.mxu0 0.0
    %335 = vmatprep.subr.mxu0 0.0
    %336 = vmatpush2.msra.mxu0 0.0
    %337 = vmatprep.subr.mxu0 0.0
    %338 = vmatpush2.msra.mxu0 0.0
    %339 = vmatprep.subr.mxu0 0.0
    %340 = vmatpush2.msra.mxu0 0.0
    %341 = vmatprep.subr.mxu0 0.0
    %342 = vmatpush2.msra.mxu0 0.0
    %343 = vmatprep.subr.mxu0 0.0
    %344 = vmatpush2.msra.mxu0 0.0
    %345 = vmatprep.subr.mxu0 0.0
    %346 = vmatpush2.msra.mxu0 0.0
    %347 = vmatprep.subr.mxu0 0.0
    %348 = vmatpush2.msra.mxu0 0.0
    %349 = vmatprep.subr.mxu0 0.0
    %350 = vmatpush2.msra.mxu0 0.0
    %351 = vmatprep.subr.mxu0 0.0
    %352 = vmatpush2.msra.mxu0 0.0
    %353 = vmatprep.subr.mxu0 0.0
    %354 = vmatpush2.msra.mxu0 0.0
    %355 = vmatprep.subr.mxu0 0.0
    %356 = vmatpush2.msra.mxu0 0.0
    %357 = vmatprep.subr.mxu0 0.0
    %358 = vmatpush2.msra.mxu0 0.0
    %359 = vmatprep.subr.mxu0 0.0
    %360 = vmatpush2.msra.mxu0 0.0
    %361 = vmatprep.subr.mxu0 0.0
    %362 = vmatpush2.msra.mxu0 0.0
    %363 = vmatprep.subr.mxu0 0.0
    %364 = vmatpush2.msra.mxu0 0.0
    %365 = vmatprep.mubr.f32.mxu0 0.0
    %366 = vmatmul.mubr.f32.gmra.mxu0 %v289
    %v367 = vpop.f32.mrf.mxu0
    %v368 = vadd.f32 0.0, %v367
    %v369 = vpop.f32.mrf.mxu0
    %v370 = vadd.f32 0.0, %v369
    %371 = vmatprep.mubr.f32.mxu0 0.0
    %372 = vmatmul.mubr.f32.gmra.mxu0 %v291
    %v373 = vpop.f32.mrf.mxu0
    %v374 = vadd.f32 0.0, %v373
    %v375 = vpop.f32.mrf.mxu0
    %v376 = vadd.f32 0.0, %v375
    %377 = vmatprep.mubr.f32.mxu0 0.0
    %378 = vmatmul.mubr.f32.gmra.mxu0 %v293
    %v379 = vpop.f32.mrf.mxu0
    %v380 = vadd.f32 0.0, %v379
    %v381 = vpop.f32.mrf.mxu0
    %v382 = vadd.f32 0.0, %v381
    %383 = vmatprep.mubr.f32.mxu0 0.0
    %384 = vmatmul.mubr.f32.gmra.mxu0 %v295
    %v385 = vpop.f32.mrf.mxu0
    %v386 = vadd.f32 0.0, %v385
    %v387 = vpop.f32.mrf.mxu0
    %v388 = vadd.f32 0.0, %v387
    %389 = vdwg.mxu0
    %v390 = vadd.f32 %v253, %v368
    %v391 = vadd.f32 %v255, %v370
    %v392 = vadd.f32 %v259, %v374
    %v393 = vadd.f32 %v261, %v376
    %v394 = vadd.f32 %v265, %v380
    %v395 = vadd.f32 %v267, %v382
    %v396 = vadd.f32 %v271, %v386
    %v397 = vadd.f32 %v273, %v388
    %398 = vrot.lane.b32.xlu0 %v43, 113
    %v399 = vpop.permute.xlu0 %398
    %400 = vrot.lane.b32.xlu0 %v45, 113
    %v401 = vpop.permute.xlu0 %400
    %402 = vrot.lane.b32.xlu0 %v47, 113
    %v403 = vpop.permute.xlu0 %402
    %404 = vrot.lane.b32.xlu0 %v49, 113
    %v405 = vpop.permute.xlu0 %404
    %406 = vrot.lane.b32.xlu0 %v41, 125
    %v407 = vpop.permute.xlu0 %406
    %408 = vrot.lane.b32.xlu0 %v42, 125
    %v409 = vpop.permute.xlu0 %408
    %vm410 = vcmask 1022976
    %v411 = vsel %vm410, %v407, %v409
    %v412 = vsel %vm71, %v399, 0
    %v414 = vsel %vm71, %v401, 0
    %v416 = vsel %vm71, %v403, 0
    %v418 = vsel %vm71, %v405, 0
    %v420 = vsel %vm80, %v411, 0
    %v422 = vsel %vm80, %v409, 0
    %424 = vmatprep.subr.mxu0 0.0
    %425 = vmatpush1.msra.mxu0 0.0
    %426 = vmatprep.subr.mxu0 0.0
    %427 = vmatpush1.msra.mxu0 0.0
    %428 = vmatprep.subr.mxu0 0.0
    %429 = vmatpush1.msra.mxu0 0.0
    %430 = vmatprep.subr.mxu0 0.0
    %431 = vmatpush1.msra.mxu0 0.0
    %432 = vmatprep.subr.mxu0 0.0
    %433 = vmatpush1.msra.mxu0 0.0
    %434 = vmatprep.subr.mxu0 0.0
    %435 = vmatpush1.msra.mxu0 0.0
    %436 = vmatprep.subr.mxu0 0.0
    %437 = vmatpush1.msra.mxu0 0.0
    %438 = vmatprep.subr.mxu0 0.0
    %439 = vmatpush1.msra.mxu0 0.0
    %440 = vmatprep.subr.mxu0 0.0
    %441 = vmatpush1.msra.mxu0 0.0
    %442 = vmatprep.subr.mxu0 0.0
    %443 = vmatpush1.msra.mxu0 0.0
    %444 = vmatprep.subr.mxu0 0.0
    %445 = vmatpush1.msra.mxu0 0.0
    %446 = vmatprep.subr.mxu0 0.0
    %447 = vmatpush1.msra.mxu0 0.0
    %448 = vmatprep.subr.mxu0 0.0
    %449 = vmatpush1.msra.mxu0 0.0
    %450 = vmatprep.subr.mxu0 0.0
    %451 = vmatpush1.msra.mxu0 0.0
    %452 = vmatprep.subr.mxu0 0.0
    %453 = vmatpush1.msra.mxu0 0.0
    %454 = vmatprep.subr.mxu0 %v422
    %455 = vmatpush1.msra.mxu0 %v420
    %456 = vmatprep.subr.mxu0 0.0
    %457 = vmatpush2.msra.mxu0 0.0
    %458 = vmatprep.subr.mxu0 0.0
    %459 = vmatpush2.msra.mxu0 0.0
    %460 = vmatprep.subr.mxu0 0.0
    %461 = vmatpush2.msra.mxu0 0.0
    %462 = vmatprep.subr.mxu0 0.0
    %463 = vmatpush2.msra.mxu0 0.0
    %464 = vmatprep.subr.mxu0 0.0
    %465 = vmatpush2.msra.mxu0 0.0
    %466 = vmatprep.subr.mxu0 0.0
    %467 = vmatpush2.msra.mxu0 0.0
    %468 = vmatprep.subr.mxu0 0.0
    %469 = vmatpush2.msra.mxu0 0.0
    %470 = vmatprep.subr.mxu0 0.0
    %471 = vmatpush2.msra.mxu0 0.0
    %472 = vmatprep.subr.mxu0 0.0
    %473 = vmatpush2.msra.mxu0 0.0
    %474 = vmatprep.subr.mxu0 0.0
    %475 = vmatpush2.msra.mxu0 0.0
    %476 = vmatprep.subr.mxu0 0.0
    %477 = vmatpush2.msra.mxu0 0.0
    %478 = vmatprep.subr.mxu0 0.0
    %479 = vmatpush2.msra.mxu0 0.0
    %480 = vmatprep.subr.mxu0 0.0
    %481 = vmatpush2.msra.mxu0 0.0
    %482 = vmatprep.subr.mxu0 0.0
    %483 = vmatpush2.msra.mxu0 0.0
    %484 = vmatprep.subr.mxu0 0.0
    %485 = vmatpush2.msra.mxu0 0.0
    %486 = vmatprep.subr.mxu0 0.0
    %487 = vmatpush2.msra.mxu0 0.0
    %488 = vmatprep.mubr.f32.mxu0 0.0
    %489 = vmatmul.mubr.f32.gmra.mxu0 %v412
    %v490 = vpop.f32.mrf.mxu0
    %v491 = vadd.f32 0.0, %v490
    %v492 = vpop.f32.mrf.mxu0
    %v493 = vadd.f32 0.0, %v492
    %494 = vmatprep.mubr.f32.mxu0 0.0
    %495 = vmatmul.mubr.f32.gmra.mxu0 %v414
    %v496 = vpop.f32.mrf.mxu0
    %v497 = vadd.f32 0.0, %v496
    %v498 = vpop.f32.mrf.mxu0
    %v499 = vadd.f32 0.0, %v498
    %500 = vmatprep.mubr.f32.mxu0 0.0
    %501 = vmatmul.mubr.f32.gmra.mxu0 %v416
    %v502 = vpop.f32.mrf.mxu0
    %v503 = vadd.f32 0.0, %v502
    %v504 = vpop.f32.mrf.mxu0
    %v505 = vadd.f32 0.0, %v504
    %506 = vmatprep.mubr.f32.mxu0 0.0
    %507 = vmatmul.mubr.f32.gmra.mxu0 %v418
    %v508 = vpop.f32.mrf.mxu0
    %v509 = vadd.f32 0.0, %v508
    %v510 = vpop.f32.mrf.mxu0
    %v511 = vadd.f32 0.0, %v510
    %512 = vdwg.mxu0
    %v513 = vadd.f32 %v390, %v491
    %v514 = vadd.f32 %v391, %v493
    %v515 = vadd.f32 %v392, %v497
    %v516 = vadd.f32 %v393, %v499
    %v517 = vadd.f32 %v394, %v503
    %v518 = vadd.f32 %v395, %v505
    %v519 = vadd.f32 %v396, %v509
    %v520 = vadd.f32 %v397, %v511
    %521 = vrot.lane.b32.xlu0 %v43, 108
    %v522 = vpop.permute.xlu0 %521
    %523 = vrot.lane.b32.xlu0 %v45, 108
    %v524 = vpop.permute.xlu0 %523
    %525 = vrot.lane.b32.xlu0 %v47, 108
    %v526 = vpop.permute.xlu0 %525
    %527 = vrot.lane.b32.xlu0 %v49, 108
    %v528 = vpop.permute.xlu0 %527
    %529 = vrot.lane.b32.xlu0 %v41, 124
    %v530 = vpop.permute.xlu0 %529
    %531 = vrot.lane.b32.xlu0 %v42, 124
    %v532 = vpop.permute.xlu0 %531
    %vm533 = vcmask 1014784
    %v534 = vsel %vm533, %v530, %v532
    %v535 = vsel %vm71, %v522, 0
    %v537 = vsel %vm71, %v524, 0
    %v539 = vsel %vm71, %v526, 0
    %v541 = vsel %vm71, %v528, 0
    %v543 = vsel %vm80, %v534, 0
    %v545 = vsel %vm80, %v532, 0
    %547 = vmatprep.subr.mxu0 0.0
    %548 = vmatpush1.msra.mxu0 0.0
    %549 = vmatprep.subr.mxu0 0.0
    %550 = vmatpush1.msra.mxu0 0.0
    %551 = vmatprep.subr.mxu0 0.0
    %552 = vmatpush1.msra.mxu0 0.0
    %553 = vmatprep.subr.mxu0 0.0
    %554 = vmatpush1.msra.mxu0 0.0
    %555 = vmatprep.subr.mxu0 0.0
    %556 = vmatpush1.msra.mxu0 0.0
    %557 = vmatprep.subr.mxu0 0.0
    %558 = vmatpush1.msra.mxu0 0.0
    %559 = vmatprep.subr.mxu0 0.0
    %560 = vmatpush1.msra.mxu0 0.0
    %561 = vmatprep.subr.mxu0 0.0
    %562 = vmatpush1.msra.mxu0 0.0
    %563 = vmatprep.subr.mxu0 0.0
    %564 = vmatpush1.msra.mxu0 0.0
    %565 = vmatprep.subr.mxu0 0.0
    %566 = vmatpush1.msra.mxu0 0.0
    %567 = vmatprep.subr.mxu0 0.0
    %568 = vmatpush1.msra.mxu0 0.0
    %569 = vmatprep.subr.mxu0 0.0
    %570 = vmatpush1.msra.mxu0 0.0
    %571 = vmatprep.subr.mxu0 0.0
    %572 = vmatpush1.msra.mxu0 0.0
    %573 = vmatprep.subr.mxu0 0.0
    %574 = vmatpush1.msra.mxu0 0.0
    %575 = vmatprep.subr.mxu0 0.0
    %576 = vmatpush1.msra.mxu0 0.0
    %577 = vmatprep.subr.mxu0 %v545
    %578 = vmatpush1.msra.mxu0 %v543
    %579 = vmatprep.subr.mxu0 0.0
    %580 = vmatpush2.msra.mxu0 0.0
    %581 = vmatprep.subr.mxu0 0.0
    %582 = vmatpush2.msra.mxu0 0.0
    %583 = vmatprep.subr.mxu0 0.0
    %584 = vmatpush2.msra.mxu0 0.0
    %585 = vmatprep.subr.mxu0 0.0
    %586 = vmatpush2.msra.mxu0 0.0
    %587 = vmatprep.subr.mxu0 0.0
    %588 = vmatpush2.msra.mxu0 0.0
    %589 = vmatprep.subr.mxu0 0.0
    %590 = vmatpush2.msra.mxu0 0.0
    %591 = vmatprep.subr.mxu0 0.0
    %592 = vmatpush2.msra.mxu0 0.0
    %593 = vmatprep.subr.mxu0 0.0
    %594 = vmatpush2.msra.mxu0 0.0
    %595 = vmatprep.subr.mxu0 0.0
    %596 = vmatpush2.msra.mxu0 0.0
    %597 = vmatprep.subr.mxu0 0.0
    %598 = vmatpush2.msra.mxu0 0.0
    %599 = vmatprep.subr.mxu0 0.0
    %600 = vmatpush2.msra.mxu0 0.0
    %601 = vmatprep.subr.mxu0 0.0
    %602 = vmatpush2.msra.mxu0 0.0
    %603 = vmatprep.subr.mxu0 0.0
    %604 = vmatpush2.msra.mxu0 0.0
    %605 = vmatprep.subr.mxu0 0.0
    %606 = vmatpush2.msra.mxu0 0.0
    %607 = vmatprep.subr.mxu0 0.0
    %608 = vmatpush2.msra.mxu0 0.0
    %609 = vmatprep.subr.mxu0 0.0
    %610 = vmatpush2.msra.mxu0 0.0
    %611 = vmatprep.mubr.f32.mxu0 0.0
    %612 = vmatmul.mubr.f32.gmra.mxu0 %v535
    %v613 = vpop.f32.mrf.mxu0
    %v614 = vadd.f32 0.0, %v613
    %v615 = vpop.f32.mrf.mxu0
    %v616 = vadd.f32 0.0, %v615
    %617 = vmatprep.mubr.f32.mxu0 0.0
    %618 = vmatmul.mubr.f32.gmra.mxu0 %v537
    %v619 = vpop.f32.mrf.mxu0
    %v620 = vadd.f32 0.0, %v619
    %v621 = vpop.f32.mrf.mxu0
    %v622 = vadd.f32 0.0, %v621
    %623 = vmatprep.mubr.f32.mxu0 0.0
    %624 = vmatmul.mubr.f32.gmra.mxu0 %v539
    %v625 = vpop.f32.mrf.mxu0
    %v626 = vadd.f32 0.0, %v625
    %v627 = vpop.f32.mrf.mxu0
    %v628 = vadd.f32 0.0, %v627
    %629 = vmatprep.mubr.f32.mxu0 0.0
    %630 = vmatmul.mubr.f32.gmra.mxu0 %v541
    %v631 = vpop.f32.mrf.mxu0
    %v632 = vadd.f32 0.0, %v631
    %v633 = vpop.f32.mrf.mxu0
    %v634 = vadd.f32 0.0, %v633
    %635 = vdwg.mxu0
    %v636 = vadd.f32 %v513, %v614
    %v637 = vadd.f32 %v514, %v616
    %v638 = vadd.f32 %v515, %v620
    %v639 = vadd.f32 %v516, %v622
    %v640 = vadd.f32 %v517, %v626
    %v641 = vadd.f32 %v518, %v628
    %v642 = vadd.f32 %v519, %v632
    %v643 = vadd.f32 %v520, %v634
    %644 = vrot.lane.b32.xlu0 %v43, 103
    %v645 = vpop.permute.xlu0 %644
    %646 = vrot.lane.b32.xlu0 %v45, 103
    %v647 = vpop.permute.xlu0 %646
    %648 = vrot.lane.b32.xlu0 %v47, 103
    %v649 = vpop.permute.xlu0 %648
    %650 = vrot.lane.b32.xlu0 %v49, 103
    %v651 = vpop.permute.xlu0 %650
    %652 = vrot.lane.b32.xlu0 %v41, 123
    %v653 = vpop.permute.xlu0 %652
    %654 = vrot.lane.b32.xlu0 %v42, 123
    %v655 = vpop.permute.xlu0 %654
    %vm656 = vcmask 1006592
    %v657 = vsel %vm656, %v653, %v655
    %v658 = vsel %vm71, %v645, 0
    %v660 = vsel %vm71, %v647, 0
    %v662 = vsel %vm71, %v649, 0
    %v664 = vsel %vm71, %v651, 0
    %v666 = vsel %vm80, %v657, 0
    %v668 = vsel %vm80, %v655, 0
    %670 = vmatprep.subr.mxu0 0.0
    %671 = vmatpush1.msra.mxu0 0.0
    %672 = vmatprep.subr.mxu0 0.0
    %673 = vmatpush1.msra.mxu0 0.0
    %674 = vmatprep.subr.mxu0 0.0
    %675 = vmatpush1.msra.mxu0 0.0
    %676 = vmatprep.subr.mxu0 0.0
    %677 = vmatpush1.msra.mxu0 0.0
    %678 = vmatprep.subr.mxu0 0.0
    %679 = vmatpush1.msra.mxu0 0.0
    %680 = vmatprep.subr.mxu0 0.0
    %681 = vmatpush1.msra.mxu0 0.0
    %682 = vmatprep.subr.mxu0 0.0
    %683 = vmatpush1.msra.mxu0 0.0
    %684 = vmatprep.subr.mxu0 0.0
    %685 = vmatpush1.msra.mxu0 0.0
    %686 = vmatprep.subr.mxu0 0.0
    %687 = vmatpush1.msra.mxu0 0.0
    %688 = vmatprep.subr.mxu0 0.0
    %689 = vmatpush1.msra.mxu0 0.0
    %690 = vmatprep.subr.mxu0 0.0
    %691 = vmatpush1.msra.mxu0 0.0
    %692 = vmatprep.subr.mxu0 0.0
    %693 = vmatpush1.msra.mxu0 0.0
    %694 = vmatprep.subr.mxu0 0.0
    %695 = vmatpush1.msra.mxu0 0.0
    %696 = vmatprep.subr.mxu0 0.0
    %697 = vmatpush1.msra.mxu0 0.0
    %698 = vmatprep.subr.mxu0 0.0
    %699 = vmatpush1.msra.mxu0 0.0
    %700 = vmatprep.subr.mxu0 %v668
    %701 = vmatpush1.msra.mxu0 %v666
    %702 = vmatprep.subr.mxu0 0.0
    %703 = vmatpush2.msra.mxu0 0.0
    %704 = vmatprep.subr.mxu0 0.0
    %705 = vmatpush2.msra.mxu0 0.0
    %706 = vmatprep.subr.mxu0 0.0
    %707 = vmatpush2.msra.mxu0 0.0
    %708 = vmatprep.subr.mxu0 0.0
    %709 = vmatpush2.msra.mxu0 0.0
    %710 = vmatprep.subr.mxu0 0.0
    %711 = vmatpush2.msra.mxu0 0.0
    %712 = vmatprep.subr.mxu0 0.0
    %713 = vmatpush2.msra.mxu0 0.0
    %714 = vmatprep.subr.mxu0 0.0
    %715 = vmatpush2.msra.mxu0 0.0
    %716 = vmatprep.subr.mxu0 0.0
    %717 = vmatpush2.msra.mxu0 0.0
    %718 = vmatprep.subr.mxu0 0.0
    %719 = vmatpush2.msra.mxu0 0.0
    %720 = vmatprep.subr.mxu0 0.0
    %721 = vmatpush2.msra.mxu0 0.0
    %722 = vmatprep.subr.mxu0 0.0
    %723 = vmatpush2.msra.mxu0 0.0
    %724 = vmatprep.subr.mxu0 0.0
    %725 = vmatpush2.msra.mxu0 0.0
    %726 = vmatprep.subr.mxu0 0.0
    %727 = vmatpush2.msra.mxu0 0.0
    %728 = vmatprep.subr.mxu0 0.0
    %729 = vmatpush2.msra.mxu0 0.0
    %730 = vmatprep.subr.mxu0 0.0
    %731 = vmatpush2.msra.mxu0 0.0
    %732 = vmatprep.subr.mxu0 0.0
    %733 = vmatpush2.msra.mxu0 0.0
    %734 = vmatprep.mubr.f32.mxu0 0.0
    %735 = vmatmul.mubr.f32.gmra.mxu0 %v658
    %v736 = vpop.f32.mrf.mxu0
    %v737 = vadd.f32 0.0, %v736
    %v738 = vpop.f32.mrf.mxu0
    %v739 = vadd.f32 0.0, %v738
    %740 = vmatprep.mubr.f32.mxu0 0.0
    %741 = vmatmul.mubr.f32.gmra.mxu0 %v660
    %v742 = vpop.f32.mrf.mxu0
    %v743 = vadd.f32 0.0, %v742
    %v744 = vpop.f32.mrf.mxu0
    %v745 = vadd.f32 0.0, %v744
    %746 = vmatprep.mubr.f32.mxu0 0.0
    %747 = vmatmul.mubr.f32.gmra.mxu0 %v662
    %v748 = vpop.f32.mrf.mxu0
    %v749 = vadd.f32 0.0, %v748
    %v750 = vpop.f32.mrf.mxu0
    %v751 = vadd.f32 0.0, %v750
    %752 = vmatprep.mubr.f32.mxu0 0.0
    %753 = vmatmul.mubr.f32.gmra.mxu0 %v664
    %v754 = vpop.f32.mrf.mxu0
    %v755 = vadd.f32 0.0, %v754
    %v756 = vpop.f32.mrf.mxu0
    %v757 = vadd.f32 0.0, %v756
    %758 = vdwg.mxu0
    %v759 = vadd.f32 %v636, %v737
    %v760 = vadd.f32 %v637, %v739
    %v761 = vadd.f32 %v638, %v743
    %v762 = vadd.f32 %v639, %v745
    %v763 = vadd.f32 %v640, %v749
    %v764 = vadd.f32 %v641, %v751
    %v765 = vadd.f32 %v642, %v755
    %v766 = vadd.f32 %v643, %v757
    %767 = vrot.lane.b32.xlu0 %v43, 98
    %v768 = vpop.permute.xlu0 %767
    %769 = vrot.lane.b32.xlu0 %v45, 98
    %v770 = vpop.permute.xlu0 %769
    %771 = vrot.lane.b32.xlu0 %v47, 98
    %v772 = vpop.permute.xlu0 %771
    %773 = vrot.lane.b32.xlu0 %v49, 98
    %v774 = vpop.permute.xlu0 %773
    %775 = vrot.lane.b32.xlu0 %v41, 122
    %v776 = vpop.permute.xlu0 %775
    %777 = vrot.lane.b32.xlu0 %v42, 122
    %v778 = vpop.permute.xlu0 %777
    %vm779 = vcmask 998400
    %v780 = vsel %vm779, %v776, %v778
    %v781 = vsel %vm71, %v768, 0
    %v783 = vsel %vm71, %v770, 0
    %v785 = vsel %vm71, %v772, 0
    %v787 = vsel %vm71, %v774, 0
    %v789 = vsel %vm80, %v780, 0
    %v791 = vsel %vm80, %v778, 0
    %793 = vmatprep.subr.mxu0 0.0
    %794 = vmatpush1.msra.mxu0 0.0
    %795 = vmatprep.subr.mxu0 0.0
    %796 = vmatpush1.msra.mxu0 0.0
    %797 = vmatprep.subr.mxu0 0.0
    %798 = vmatpush1.msra.mxu0 0.0
    %799 = vmatprep.subr.mxu0 0.0
    %800 = vmatpush1.msra.mxu0 0.0
    %801 = vmatprep.subr.mxu0 0.0
    %802 = vmatpush1.msra.mxu0 0.0
    %803 = vmatprep.subr.mxu0 0.0
    %804 = vmatpush1.msra.mxu0 0.0
    %805 = vmatprep.subr.mxu0 0.0
    %806 = vmatpush1.msra.mxu0 0.0
    %807 = vmatprep.subr.mxu0 0.0
    %808 = vmatpush1.msra.mxu0 0.0
    %809 = vmatprep.subr.mxu0 0.0
    %810 = vmatpush1.msra.mxu0 0.0
    %811 = vmatprep.subr.mxu0 0.0
    %812 = vmatpush1.msra.mxu0 0.0
    %813 = vmatprep.subr.mxu0 0.0
    %814 = vmatpush1.msra.mxu0 0.0
    %815 = vmatprep.subr.mxu0 0.0
    %816 = vmatpush1.msra.mxu0 0.0
    %817 = vmatprep.subr.mxu0 0.0
    %818 = vmatpush1.msra.mxu0 0.0
    %819 = vmatprep.subr.mxu0 0.0
    %820 = vmatpush1.msra.mxu0 0.0
    %821 = vmatprep.subr.mxu0 0.0
    %822 = vmatpush1.msra.mxu0 0.0
    %823 = vmatprep.subr.mxu0 %v791
    %824 = vmatpush1.msra.mxu0 %v789
    %825 = vmatprep.subr.mxu0 0.0
    %826 = vmatpush2.msra.mxu0 0.0
    %827 = vmatprep.subr.mxu0 0.0
    %828 = vmatpush2.msra.mxu0 0.0
    %829 = vmatprep.subr.mxu0 0.0
    %830 = vmatpush2.msra.mxu0 0.0
    %831 = vmatprep.subr.mxu0 0.0
    %832 = vmatpush2.msra.mxu0 0.0
    %833 = vmatprep.subr.mxu0 0.0
    %834 = vmatpush2.msra.mxu0 0.0
    %835 = vmatprep.subr.mxu0 0.0
    %836 = vmatpush2.msra.mxu0 0.0
    %837 = vmatprep.subr.mxu0 0.0
    %838 = vmatpush2.msra.mxu0 0.0
    %839 = vmatprep.subr.mxu0 0.0
    %840 = vmatpush2.msra.mxu0 0.0
    %841 = vmatprep.subr.mxu0 0.0
    %842 = vmatpush2.msra.mxu0 0.0
    %843 = vmatprep.subr.mxu0 0.0
    %844 = vmatpush2.msra.mxu0 0.0
    %845 = vmatprep.subr.mxu0 0.0
    %846 = vmatpush2.msra.mxu0 0.0
    %847 = vmatprep.subr.mxu0 0.0
    %848 = vmatpush2.msra.mxu0 0.0
    %849 = vmatprep.subr.mxu0 0.0
    %850 = vmatpush2.msra.mxu0 0.0
    %851 = vmatprep.subr.mxu0 0.0
    %852 = vmatpush2.msra.mxu0 0.0
    %853 = vmatprep.subr.mxu0 0.0
    %854 = vmatpush2.msra.mxu0 0.0
    %855 = vmatprep.subr.mxu0 0.0
    %856 = vmatpush2.msra.mxu0 0.0
    %857 = vmatprep.mubr.f32.mxu0 0.0
    %858 = vmatmul.mubr.f32.gmra.mxu0 %v781
    %v859 = vpop.f32.mrf.mxu0
    %v860 = vadd.f32 0.0, %v859
    %v861 = vpop.f32.mrf.mxu0
    %v862 = vadd.f32 0.0, %v861
    %863 = vmatprep.mubr.f32.mxu0 0.0
    %864 = vmatmul.mubr.f32.gmra.mxu0 %v783
    %v865 = vpop.f32.mrf.mxu0
    %v866 = vadd.f32 0.0, %v865
    %v867 = vpop.f32.mrf.mxu0
    %v868 = vadd.f32 0.0, %v867
    %869 = vmatprep.mubr.f32.mxu0 0.0
    %870 = vmatmul.mubr.f32.gmra.mxu0 %v785
    %v871 = vpop.f32.mrf.mxu0
    %v872 = vadd.f32 0.0, %v871
    %v873 = vpop.f32.mrf.mxu0
    %v874 = vadd.f32 0.0, %v873
    %875 = vmatprep.mubr.f32.mxu0 0.0
    %876 = vmatmul.mubr.f32.gmra.mxu0 %v787
    %v877 = vpop.f32.mrf.mxu0
    %v878 = vadd.f32 0.0, %v877
    %v879 = vpop.f32.mrf.mxu0
    %v880 = vadd.f32 0.0, %v879
    %881 = vdwg.mxu0
    %v882 = vadd.f32 %v759, %v860
    %v883 = vadd.f32 %v760, %v862
    %v884 = vadd.f32 %v761, %v866
    %v885 = vadd.f32 %v762, %v868
    %v886 = vadd.f32 %v763, %v872
    %v887 = vadd.f32 %v764, %v874
    %v888 = vadd.f32 %v765, %v878
    %v889 = vadd.f32 %v766, %v880
    %890 = vrot.lane.b32.xlu0 %v43, 93
    %v891 = vpop.permute.xlu0 %890
    %892 = vrot.lane.b32.xlu0 %v45, 93
    %v893 = vpop.permute.xlu0 %892
    %894 = vrot.lane.b32.xlu0 %v47, 93
    %v895 = vpop.permute.xlu0 %894
    %896 = vrot.lane.b32.xlu0 %v49, 93
    %v897 = vpop.permute.xlu0 %896
    %898 = vrot.lane.b32.xlu0 %v41, 121
    %v899 = vpop.permute.xlu0 %898
    %900 = vrot.lane.b32.xlu0 %v42, 121
    %v901 = vpop.permute.xlu0 %900
    %vm902 = vcmask 990208
    %v903 = vsel %vm902, %v899, %v901
    %v904 = vsel %vm71, %v891, 0
    %v906 = vsel %vm71, %v893, 0
    %v908 = vsel %vm71, %v895, 0
    %v910 = vsel %vm71, %v897, 0
    %v912 = vsel %vm80, %v903, 0
    %v914 = vsel %vm80, %v901, 0
    %916 = vmatprep.subr.mxu0 0.0
    %917 = vmatpush1.msra.mxu0 0.0
    %918 = vmatprep.subr.mxu0 0.0
    %919 = vmatpush1.msra.mxu0 0.0
    %920 = vmatprep.subr.mxu0 0.0
    %921 = vmatpush1.msra.mxu0 0.0
    %922 = vmatprep.subr.mxu0 0.0
    %923 = vmatpush1.msra.mxu0 0.0
    %924 = vmatprep.subr.mxu0 0.0
    %925 = vmatpush1.msra.mxu0 0.0
    %926 = vmatprep.subr.mxu0 0.0
    %927 = vmatpush1.msra.mxu0 0.0
    %928 = vmatprep.subr.mxu0 0.0
    %929 = vmatpush1.msra.mxu0 0.0
    %930 = vmatprep.subr.mxu0 0.0
    %931 = vmatpush1.msra.mxu0 0.0
    %932 = vmatprep.subr.mxu0 0.0
    %933 = vmatpush1.msra.mxu0 0.0
    %934 = vmatprep.subr.mxu0 0.0
    %935 = vmatpush1.msra.mxu0 0.0
    %936 = vmatprep.subr.mxu0 0.0
    %937 = vmatpush1.msra.mxu0 0.0
    %938 = vmatprep.subr.mxu0 0.0
    %939 = vmatpush1.msra.mxu0 0.0
    %940 = vmatprep.subr.mxu0 0.0
    %941 = vmatpush1.msra.mxu0 0.0
    %942 = vmatprep.subr.mxu0 0.0
    %943 = vmatpush1.msra.mxu0 0.0
    %944 = vmatprep.subr.mxu0 0.0
    %945 = vmatpush1.msra.mxu0 0.0
    %946 = vmatprep.subr.mxu0 %v914
    %947 = vmatpush1.msra.mxu0 %v912
    %948 = vmatprep.subr.mxu0 0.0
    %949 = vmatpush2.msra.mxu0 0.0
    %950 = vmatprep.subr.mxu0 0.0
    %951 = vmatpush2.msra.mxu0 0.0
    %952 = vmatprep.subr.mxu0 0.0
    %953 = vmatpush2.msra.mxu0 0.0
    %954 = vmatprep.subr.mxu0 0.0
    %955 = vmatpush2.msra.mxu0 0.0
    %956 = vmatprep.subr.mxu0 0.0
    %957 = vmatpush2.msra.mxu0 0.0
    %958 = vmatprep.subr.mxu0 0.0
    %959 = vmatpush2.msra.mxu0 0.0
    %960 = vmatprep.subr.mxu0 0.0
    %961 = vmatpush2.msra.mxu0 0.0
    %962 = vmatprep.subr.mxu0 0.0
    %963 = vmatpush2.msra.mxu0 0.0
    %964 = vmatprep.subr.mxu0 0.0
    %965 = vmatpush2.msra.mxu0 0.0
    %966 = vmatprep.subr.mxu0 0.0
    %967 = vmatpush2.msra.mxu0 0.0
    %968 = vmatprep.subr.mxu0 0.0
    %969 = vmatpush2.msra.mxu0 0.0
    %970 = vmatprep.subr.mxu0 0.0
    %971 = vmatpush2.msra.mxu0 0.0
    %972 = vmatprep.subr.mxu0 0.0
    %973 = vmatpush2.msra.mxu0 0.0
    %974 = vmatprep.subr.mxu0 0.0
    %975 = vmatpush2.msra.mxu0 0.0
    %976 = vmatprep.subr.mxu0 0.0
    %977 = vmatpush2.msra.mxu0 0.0
    %978 = vmatprep.subr.mxu0 0.0
    %979 = vmatpush2.msra.mxu0 0.0
    %980 = vmatprep.mubr.f32.mxu0 0.0
    %981 = vmatmul.mubr.f32.gmra.mxu0 %v904
    %v982 = vpop.f32.mrf.mxu0
    %v983 = vadd.f32 0.0, %v982
    %v984 = vpop.f32.mrf.mxu0
    %v985 = vadd.f32 0.0, %v984
    %986 = vmatprep.mubr.f32.mxu0 0.0
    %987 = vmatmul.mubr.f32.gmra.mxu0 %v906
    %v988 = vpop.f32.mrf.mxu0
    %v989 = vadd.f32 0.0, %v988
    %v990 = vpop.f32.mrf.mxu0
    %v991 = vadd.f32 0.0, %v990
    %992 = vmatprep.mubr.f32.mxu0 0.0
    %993 = vmatmul.mubr.f32.gmra.mxu0 %v908
    %v994 = vpop.f32.mrf.mxu0
    %v995 = vadd.f32 0.0, %v994
    %v996 = vpop.f32.mrf.mxu0
    %v997 = vadd.f32 0.0, %v996
    %998 = vmatprep.mubr.f32.mxu0 0.0
    %999 = vmatmul.mubr.f32.gmra.mxu0 %v910
    %v1000 = vpop.f32.mrf.mxu0
    %v1001 = vadd.f32 0.0, %v1000
    %v1002 = vpop.f32.mrf.mxu0
    %v1003 = vadd.f32 0.0, %v1002
    %1004 = vdwg.mxu0
    %v1005 = vadd.f32 %v882, %v983
    %v1006 = vadd.f32 %v883, %v985
    %v1007 = vadd.f32 %v884, %v989
    %v1008 = vadd.f32 %v885, %v991
    %v1009 = vadd.f32 %v886, %v995
    %v1010 = vadd.f32 %v887, %v997
    %v1011 = vadd.f32 %v888, %v1001
    %v1012 = vadd.f32 %v889, %v1003
    %1013 = vrot.lane.b32.xlu0 %v43, 88
    %v1014 = vpop.permute.xlu0 %1013
    %1015 = vrot.lane.b32.xlu0 %v45, 88
    %v1016 = vpop.permute.xlu0 %1015
    %1017 = vrot.lane.b32.xlu0 %v47, 88
    %v1018 = vpop.permute.xlu0 %1017
    %1019 = vrot.lane.b32.xlu0 %v49, 88
    %v1020 = vpop.permute.xlu0 %1019
    %1021 = vrot.lane.b32.xlu0 %v41, 120
    %v1022 = vpop.permute.xlu0 %1021
    %1023 = vrot.lane.b32.xlu0 %v42, 120
    %v1024 = vpop.permute.xlu0 %1023
    %vm1025 = vcmask 982016
    %v1026 = vsel %vm1025, %v1022, %v1024
    %v1027 = vsel %vm71, %v1014, 0
    %v1029 = vsel %vm71, %v1016, 0
    %v1031 = vsel %vm71, %v1018, 0
    %v1033 = vsel %vm71, %v1020, 0
    %v1035 = vsel %vm80, %v1026, 0
    %v1037 = vsel %vm80, %v1024, 0
    %1039 = vmatprep.subr.mxu0 0.0
    %1040 = vmatpush1.msra.mxu0 0.0
    %1041 = vmatprep.subr.mxu0 0.0
    %1042 = vmatpush1.msra.mxu0 0.0
    %1043 = vmatprep.subr.mxu0 0.0
    %1044 = vmatpush1.msra.mxu0 0.0
    %1045 = vmatprep.subr.mxu0 0.0
    %1046 = vmatpush1.msra.mxu0 0.0
    %1047 = vmatprep.subr.mxu0 0.0
    %1048 = vmatpush1.msra.mxu0 0.0
    %1049 = vmatprep.subr.mxu0 0.0
    %1050 = vmatpush1.msra.mxu0 0.0
    %1051 = vmatprep.subr.mxu0 0.0
    %1052 = vmatpush1.msra.mxu0 0.0
    %1053 = vmatprep.subr.mxu0 0.0
    %1054 = vmatpush1.msra.mxu0 0.0
    %1055 = vmatprep.subr.mxu0 0.0
    %1056 = vmatpush1.msra.mxu0 0.0
    %1057 = vmatprep.subr.mxu0 0.0
    %1058 = vmatpush1.msra.mxu0 0.0
    %1059 = vmatprep.subr.mxu0 0.0
    %1060 = vmatpush1.msra.mxu0 0.0
    %1061 = vmatprep.subr.mxu0 0.0
    %1062 = vmatpush1.msra.mxu0 0.0
    %1063 = vmatprep.subr.mxu0 0.0
    %1064 = vmatpush1.msra.mxu0 0.0
    %1065 = vmatprep.subr.mxu0 0.0
    %1066 = vmatpush1.msra.mxu0 0.0
    %1067 = vmatprep.subr.mxu0 0.0
    %1068 = vmatpush1.msra.mxu0 0.0
    %1069 = vmatprep.subr.mxu0 %v1037
    %1070 = vmatpush1.msra.mxu0 %v1035
    %1071 = vmatprep.subr.mxu0 0.0
    %1072 = vmatpush2.msra.mxu0 0.0
    %1073 = vmatprep.subr.mxu0 0.0
    %1074 = vmatpush2.msra.mxu0 0.0
    %1075 = vmatprep.subr.mxu0 0.0
    %1076 = vmatpush2.msra.mxu0 0.0
    %1077 = vmatprep.subr.mxu0 0.0
    %1078 = vmatpush2.msra.mxu0 0.0
    %1079 = vmatprep.subr.mxu0 0.0
    %1080 = vmatpush2.msra.mxu0 0.0
    %1081 = vmatprep.subr.mxu0 0.0
    %1082 = vmatpush2.msra.mxu0 0.0
    %1083 = vmatprep.subr.mxu0 0.0
    %1084 = vmatpush2.msra.mxu0 0.0
    %1085 = vmatprep.subr.mxu0 0.0
    %1086 = vmatpush2.msra.mxu0 0.0
    %1087 = vmatprep.subr.mxu0 0.0
    %1088 = vmatpush2.msra.mxu0 0.0
    %1089 = vmatprep.subr.mxu0 0.0
    %1090 = vmatpush2.msra.mxu0 0.0
    %1091 = vmatprep.subr.mxu0 0.0
    %1092 = vmatpush2.msra.mxu0 0.0
    %1093 = vmatprep.subr.mxu0 0.0
    %1094 = vmatpush2.msra.mxu0 0.0
    %1095 = vmatprep.subr.mxu0 0.0
    %1096 = vmatpush2.msra.mxu0 0.0
    %1097 = vmatprep.subr.mxu0 0.0
    %1098 = vmatpush2.msra.mxu0 0.0
    %1099 = vmatprep.subr.mxu0 0.0
    %1100 = vmatpush2.msra.mxu0 0.0
    %1101 = vmatprep.subr.mxu0 0.0
    %1102 = vmatpush2.msra.mxu0 0.0
    %1103 = vmatprep.mubr.f32.mxu0 0.0
    %1104 = vmatmul.mubr.f32.gmra.mxu0 %v1027
    %v1105 = vpop.f32.mrf.mxu0
    %v1106 = vadd.f32 0.0, %v1105
    %v1107 = vpop.f32.mrf.mxu0
    %v1108 = vadd.f32 0.0, %v1107
    %1109 = vmatprep.mubr.f32.mxu0 0.0
    %1110 = vmatmul.mubr.f32.gmra.mxu0 %v1029
    %v1111 = vpop.f32.mrf.mxu0
    %v1112 = vadd.f32 0.0, %v1111
    %v1113 = vpop.f32.mrf.mxu0
    %v1114 = vadd.f32 0.0, %v1113
    %1115 = vmatprep.mubr.f32.mxu0 0.0
    %1116 = vmatmul.mubr.f32.gmra.mxu0 %v1031
    %v1117 = vpop.f32.mrf.mxu0
    %v1118 = vadd.f32 0.0, %v1117
    %v1119 = vpop.f32.mrf.mxu0
    %v1120 = vadd.f32 0.0, %v1119
    %1121 = vmatprep.mubr.f32.mxu0 0.0
    %1122 = vmatmul.mubr.f32.gmra.mxu0 %v1033
    %v1123 = vpop.f32.mrf.mxu0
    %v1124 = vadd.f32 0.0, %v1123
    %v1125 = vpop.f32.mrf.mxu0
    %v1126 = vadd.f32 0.0, %v1125
    %1127 = vdwg.mxu0
    %v1128 = vadd.f32 %v1005, %v1106
    %v1129 = vadd.f32 %v1006, %v1108
    %v1130 = vadd.f32 %v1007, %v1112
    %v1131 = vadd.f32 %v1008, %v1114
    %v1132 = vadd.f32 %v1009, %v1118
    %v1133 = vadd.f32 %v1010, %v1120
    %v1134 = vadd.f32 %v1011, %v1124
    %v1135 = vadd.f32 %v1012, %v1126
    %1136 = vrot.lane.b32.xlu0 %v43, 83
    %v1137 = vpop.permute.xlu0 %1136
    %1138 = vrot.lane.b32.xlu0 %v45, 83
    %v1139 = vpop.permute.xlu0 %1138
    %1140 = vrot.lane.b32.xlu0 %v47, 83
    %v1141 = vpop.permute.xlu0 %1140
    %1142 = vrot.lane.b32.xlu0 %v49, 83
    %v1143 = vpop.permute.xlu0 %1142
    %1144 = vrot.lane.b32.xlu0 %v41, 119
    %v1145 = vpop.permute.xlu0 %1144
    %1146 = vrot.lane.b32.xlu0 %v42, 119
    %v1147 = vpop.permute.xlu0 %1146
    %vm1148 = vcmask 973824
    %v1149 = vsel %vm1148, %v1145, %v1147
    %v1150 = vsel %vm71, %v1137, 0
    %v1152 = vsel %vm71, %v1139, 0
    %v1154 = vsel %vm71, %v1141, 0
    %v1156 = vsel %vm71, %v1143, 0
    %v1158 = vsel %vm80, %v1149, 0
    %v1160 = vsel %vm80, %v1147, 0
    %1162 = vmatprep.subr.mxu0 0.0
    %1163 = vmatpush1.msra.mxu0 0.0
    %1164 = vmatprep.subr.mxu0 0.0
    %1165 = vmatpush1.msra.mxu0 0.0
    %1166 = vmatprep.subr.mxu0 0.0
    %1167 = vmatpush1.msra.mxu0 0.0
    %1168 = vmatprep.subr.mxu0 0.0
    %1169 = vmatpush1.msra.mxu0 0.0
    %1170 = vmatprep.subr.mxu0 0.0
    %1171 = vmatpush1.msra.mxu0 0.0
    %1172 = vmatprep.subr.mxu0 0.0
    %1173 = vmatpush1.msra.mxu0 0.0
    %1174 = vmatprep.subr.mxu0 0.0
    %1175 = vmatpush1.msra.mxu0 0.0
    %1176 = vmatprep.subr.mxu0 0.0
    %1177 = vmatpush1.msra.mxu0 0.0
    %1178 = vmatprep.subr.mxu0 0.0
    %1179 = vmatpush1.msra.mxu0 0.0
    %1180 = vmatprep.subr.mxu0 0.0
    %1181 = vmatpush1.msra.mxu0 0.0
    %1182 = vmatprep.subr.mxu0 0.0
    %1183 = vmatpush1.msra.mxu0 0.0
    %1184 = vmatprep.subr.mxu0 0.0
    %1185 = vmatpush1.msra.mxu0 0.0
    %1186 = vmatprep.subr.mxu0 0.0
    %1187 = vmatpush1.msra.mxu0 0.0
    %1188 = vmatprep.subr.mxu0 0.0
    %1189 = vmatpush1.msra.mxu0 0.0
    %1190 = vmatprep.subr.mxu0 0.0
    %1191 = vmatpush1.msra.mxu0 0.0
    %1192 = vmatprep.subr.mxu0 %v1160
    %1193 = vmatpush1.msra.mxu0 %v1158
    %1194 = vmatprep.subr.mxu0 0.0
    %1195 = vmatpush2.msra.mxu0 0.0
    %1196 = vmatprep.subr.mxu0 0.0
    %1197 = vmatpush2.msra.mxu0 0.0
    %1198 = vmatprep.subr.mxu0 0.0
    %1199 = vmatpush2.msra.mxu0 0.0
    %1200 = vmatprep.subr.mxu0 0.0
    %1201 = vmatpush2.msra.mxu0 0.0
    %1202 = vmatprep.subr.mxu0 0.0
    %1203 = vmatpush2.msra.mxu0 0.0
    %1204 = vmatprep.subr.mxu0 0.0
    %1205 = vmatpush2.msra.mxu0 0.0
    %1206 = vmatprep.subr.mxu0 0.0
    %1207 = vmatpush2.msra.mxu0 0.0
    %1208 = vmatprep.subr.mxu0 0.0
    %1209 = vmatpush2.msra.mxu0 0.0
    %1210 = vmatprep.subr.mxu0 0.0
    %1211 = vmatpush2.msra.mxu0 0.0
    %1212 = vmatprep.subr.mxu0 0.0
    %1213 = vmatpush2.msra.mxu0 0.0
    %1214 = vmatprep.subr.mxu0 0.0
    %1215 = vmatpush2.msra.mxu0 0.0
    %1216 = vmatprep.subr.mxu0 0.0
    %1217 = vmatpush2.msra.mxu0 0.0
    %1218 = vmatprep.subr.mxu0 0.0
    %1219 = vmatpush2.msra.mxu0 0.0
    %1220 = vmatprep.subr.mxu0 0.0
    %1221 = vmatpush2.msra.mxu0 0.0
    %1222 = vmatprep.subr.mxu0 0.0
    %1223 = vmatpush2.msra.mxu0 0.0
    %1224 = vmatprep.subr.mxu0 0.0
    %1225 = vmatpush2.msra.mxu0 0.0
    %1226 = vmatprep.mubr.f32.mxu0 0.0
    %1227 = vmatmul.mubr.f32.gmra.mxu0 %v1150
    %v1228 = vpop.f32.mrf.mxu0
    %v1229 = vadd.f32 0.0, %v1228
    %v1230 = vpop.f32.mrf.mxu0
    %v1231 = vadd.f32 0.0, %v1230
    %1232 = vmatprep.mubr.f32.mxu0 0.0
    %1233 = vmatmul.mubr.f32.gmra.mxu0 %v1152
    %v1234 = vpop.f32.mrf.mxu0
    %v1235 = vadd.f32 0.0, %v1234
    %v1236 = vpop.f32.mrf.mxu0
    %v1237 = vadd.f32 0.0, %v1236
    %1238 = vmatprep.mubr.f32.mxu0 0.0
    %1239 = vmatmul.mubr.f32.gmra.mxu0 %v1154
    %v1240 = vpop.f32.mrf.mxu0
    %v1241 = vadd.f32 0.0, %v1240
    %v1242 = vpop.f32.mrf.mxu0
    %v1243 = vadd.f32 0.0, %v1242
    %1244 = vmatprep.mubr.f32.mxu0 0.0
    %1245 = vmatmul.mubr.f32.gmra.mxu0 %v1156
    %v1246 = vpop.f32.mrf.mxu0
    %v1247 = vadd.f32 0.0, %v1246
    %v1248 = vpop.f32.mrf.mxu0
    %v1249 = vadd.f32 0.0, %v1248
    %1250 = vdwg.mxu0
    %v1251 = vadd.f32 %v1128, %v1229
    %v1252 = vadd.f32 %v1129, %v1231
    %v1253 = vadd.f32 %v1130, %v1235
    %v1254 = vadd.f32 %v1131, %v1237
    %v1255 = vadd.f32 %v1132, %v1241
    %v1256 = vadd.f32 %v1133, %v1243
    %v1257 = vadd.f32 %v1134, %v1247
    %v1258 = vadd.f32 %v1135, %v1249
    %1259 = vrot.lane.b32.xlu0 %v43, 78
    %v1260 = vpop.permute.xlu0 %1259
    %1261 = vrot.lane.b32.xlu0 %v45, 78
    %v1262 = vpop.permute.xlu0 %1261
    %1263 = vrot.lane.b32.xlu0 %v47, 78
    %v1264 = vpop.permute.xlu0 %1263
    %1265 = vrot.lane.b32.xlu0 %v49, 78
    %v1266 = vpop.permute.xlu0 %1265
    %1267 = vrot.lane.b32.xlu0 %v41, 118
    %v1268 = vpop.permute.xlu0 %1267
    %1269 = vrot.lane.b32.xlu0 %v42, 118
    %v1270 = vpop.permute.xlu0 %1269
    %vm1271 = vcmask 965632
    %v1272 = vsel %vm1271, %v1268, %v1270
    %v1273 = vsel %vm71, %v1260, 0
    %v1275 = vsel %vm71, %v1262, 0
    %v1277 = vsel %vm71, %v1264, 0
    %v1279 = vsel %vm71, %v1266, 0
    %v1281 = vsel %vm80, %v1272, 0
    %v1283 = vsel %vm80, %v1270, 0
    %1285 = vmatprep.subr.mxu0 0.0
    %1286 = vmatpush1.msra.mxu0 0.0
    %1287 = vmatprep.subr.mxu0 0.0
    %1288 = vmatpush1.msra.mxu0 0.0
    %1289 = vmatprep.subr.mxu0 0.0
    %1290 = vmatpush1.msra.mxu0 0.0
    %1291 = vmatprep.subr.mxu0 0.0
    %1292 = vmatpush1.msra.mxu0 0.0
    %1293 = vmatprep.subr.mxu0 0.0
    %1294 = vmatpush1.msra.mxu0 0.0
    %1295 = vmatprep.subr.mxu0 0.0
    %1296 = vmatpush1.msra.mxu0 0.0
    %1297 = vmatprep.subr.mxu0 0.0
    %1298 = vmatpush1.msra.mxu0 0.0
    %1299 = vmatprep.subr.mxu0 0.0
    %1300 = vmatpush1.msra.mxu0 0.0
    %1301 = vmatprep.subr.mxu0 0.0
    %1302 = vmatpush1.msra.mxu0 0.0
    %1303 = vmatprep.subr.mxu0 0.0
    %1304 = vmatpush1.msra.mxu0 0.0
    %1305 = vmatprep.subr.mxu0 0.0
    %1306 = vmatpush1.msra.mxu0 0.0
    %1307 = vmatprep.subr.mxu0 0.0
    %1308 = vmatpush1.msra.mxu0 0.0
    %1309 = vmatprep.subr.mxu0 0.0
    %1310 = vmatpush1.msra.mxu0 0.0
    %1311 = vmatprep.subr.mxu0 0.0
    %1312 = vmatpush1.msra.mxu0 0.0
    %1313 = vmatprep.subr.mxu0 0.0
    %1314 = vmatpush1.msra.mxu0 0.0
    %1315 = vmatprep.subr.mxu0 %v1283
    %1316 = vmatpush1.msra.mxu0 %v1281
    %1317 = vmatprep.subr.mxu0 0.0
    %1318 = vmatpush2.msra.mxu0 0.0
    %1319 = vmatprep.subr.mxu0 0.0
    %1320 = vmatpush2.msra.mxu0 0.0
    %1321 = vmatprep.subr.mxu0 0.0
    %1322 = vmatpush2.msra.mxu0 0.0
    %1323 = vmatprep.subr.mxu0 0.0
    %1324 = vmatpush2.msra.mxu0 0.0
    %1325 = vmatprep.subr.mxu0 0.0
    %1326 = vmatpush2.msra.mxu0 0.0
    %1327 = vmatprep.subr.mxu0 0.0
    %1328 = vmatpush2.msra.mxu0 0.0
    %1329 = vmatprep.subr.mxu0 0.0
    %1330 = vmatpush2.msra.mxu0 0.0
    %1331 = vmatprep.subr.mxu0 0.0
    %1332 = vmatpush2.msra.mxu0 0.0
    %1333 = vmatprep.subr.mxu0 0.0
    %1334 = vmatpush2.msra.mxu0 0.0
    %1335 = vmatprep.subr.mxu0 0.0
    %1336 = vmatpush2.msra.mxu0 0.0
    %1337 = vmatprep.subr.mxu0 0.0
    %1338 = vmatpush2.msra.mxu0 0.0
    %1339 = vmatprep.subr.mxu0 0.0
    %1340 = vmatpush2.msra.mxu0 0.0
    %1341 = vmatprep.subr.mxu0 0.0
    %1342 = vmatpush2.msra.mxu0 0.0
    %1343 = vmatprep.subr.mxu0 0.0
    %1344 = vmatpush2.msra.mxu0 0.0
    %1345 = vmatprep.subr.mxu0 0.0
    %1346 = vmatpush2.msra.mxu0 0.0
    %1347 = vmatprep.subr.mxu0 0.0
    %1348 = vmatpush2.msra.mxu0 0.0
    %1349 = vmatprep.mubr.f32.mxu0 0.0
    %1350 = vmatmul.mubr.f32.gmra.mxu0 %v1273
    %v1351 = vpop.f32.mrf.mxu0
    %v1352 = vadd.f32 0.0, %v1351
    %v1353 = vpop.f32.mrf.mxu0
    %v1354 = vadd.f32 0.0, %v1353
    %1355 = vmatprep.mubr.f32.mxu0 0.0
    %1356 = vmatmul.mubr.f32.gmra.mxu0 %v1275
    %v1357 = vpop.f32.mrf.mxu0
    %v1358 = vadd.f32 0.0, %v1357
    %v1359 = vpop.f32.mrf.mxu0
    %v1360 = vadd.f32 0.0, %v1359
    %1361 = vmatprep.mubr.f32.mxu0 0.0
    %1362 = vmatmul.mubr.f32.gmra.mxu0 %v1277
    %v1363 = vpop.f32.mrf.mxu0
    %v1364 = vadd.f32 0.0, %v1363
    %v1365 = vpop.f32.mrf.mxu0
    %v1366 = vadd.f32 0.0, %v1365
    %1367 = vmatprep.mubr.f32.mxu0 0.0
    %1368 = vmatmul.mubr.f32.gmra.mxu0 %v1279
    %v1369 = vpop.f32.mrf.mxu0
    %v1370 = vadd.f32 0.0, %v1369
    %v1371 = vpop.f32.mrf.mxu0
    %v1372 = vadd.f32 0.0, %v1371
    %1373 = vdwg.mxu0
    %v1374 = vadd.f32 %v1251, %v1352
    %v1375 = vadd.f32 %v1252, %v1354
    %v1376 = vadd.f32 %v1253, %v1358
    %v1377 = vadd.f32 %v1254, %v1360
    %v1378 = vadd.f32 %v1255, %v1364
    %v1379 = vadd.f32 %v1256, %v1366
    %v1380 = vadd.f32 %v1257, %v1370
    %v1381 = vadd.f32 %v1258, %v1372
    %1382 = vrot.lane.b32.xlu0 %v43, 73
    %v1383 = vpop.permute.xlu0 %1382
    %1384 = vrot.lane.b32.xlu0 %v45, 73
    %v1385 = vpop.permute.xlu0 %1384
    %1386 = vrot.lane.b32.xlu0 %v47, 73
    %v1387 = vpop.permute.xlu0 %1386
    %1388 = vrot.lane.b32.xlu0 %v49, 73
    %v1389 = vpop.permute.xlu0 %1388
    %1390 = vrot.lane.b32.xlu0 %v41, 117
    %v1391 = vpop.permute.xlu0 %1390
    %1392 = vrot.lane.b32.xlu0 %v42, 117
    %v1393 = vpop.permute.xlu0 %1392
    %vm1394 = vcmask 957440
    %v1395 = vsel %vm1394, %v1391, %v1393
    %v1396 = vsel %vm71, %v1383, 0
    %v1398 = vsel %vm71, %v1385, 0
    %v1400 = vsel %vm71, %v1387, 0
    %v1402 = vsel %vm71, %v1389, 0
    %v1404 = vsel %vm80, %v1395, 0
    %v1406 = vsel %vm80, %v1393, 0
    %1408 = vmatprep.subr.mxu0 0.0
    %1409 = vmatpush1.msra.mxu0 0.0
    %1410 = vmatprep.subr.mxu0 0.0
    %1411 = vmatpush1.msra.mxu0 0.0
    %1412 = vmatprep.subr.mxu0 0.0
    %1413 = vmatpush1.msra.mxu0 0.0
    %1414 = vmatprep.subr.mxu0 0.0
    %1415 = vmatpush1.msra.mxu0 0.0
    %1416 = vmatprep.subr.mxu0 0.0
    %1417 = vmatpush1.msra.mxu0 0.0
    %1418 = vmatprep.subr.mxu0 0.0
    %1419 = vmatpush1.msra.mxu0 0.0
    %1420 = vmatprep.subr.mxu0 0.0
    %1421 = vmatpush1.msra.mxu0 0.0
    %1422 = vmatprep.subr.mxu0 0.0
    %1423 = vmatpush1.msra.mxu0 0.0
    %1424 = vmatprep.subr.mxu0 0.0
    %1425 = vmatpush1.msra.mxu0 0.0
    %1426 = vmatprep.subr.mxu0 0.0
    %1427 = vmatpush1.msra.mxu0 0.0
    %1428 = vmatprep.subr.mxu0 0.0
    %1429 = vmatpush1.msra.mxu0 0.0
    %1430 = vmatprep.subr.mxu0 0.0
    %1431 = vmatpush1.msra.mxu0 0.0
    %1432 = vmatprep.subr.mxu0 0.0
    %1433 = vmatpush1.msra.mxu0 0.0
    %1434 = vmatprep.subr.mxu0 0.0
    %1435 = vmatpush1.msra.mxu0 0.0
    %1436 = vmatprep.subr.mxu0 0.0
    %1437 = vmatpush1.msra.mxu0 0.0
    %1438 = vmatprep.subr.mxu0 %v1406
    %1439 = vmatpush1.msra.mxu0 %v1404
    %1440 = vmatprep.subr.mxu0 0.0
    %1441 = vmatpush2.msra.mxu0 0.0
    %1442 = vmatprep.subr.mxu0 0.0
    %1443 = vmatpush2.msra.mxu0 0.0
    %1444 = vmatprep.subr.mxu0 0.0
    %1445 = vmatpush2.msra.mxu0 0.0
    %1446 = vmatprep.subr.mxu0 0.0
    %1447 = vmatpush2.msra.mxu0 0.0
    %1448 = vmatprep.subr.mxu0 0.0
    %1449 = vmatpush2.msra.mxu0 0.0
    %1450 = vmatprep.subr.mxu0 0.0
    %1451 = vmatpush2.msra.mxu0 0.0
    %1452 = vmatprep.subr.mxu0 0.0
    %1453 = vmatpush2.msra.mxu0 0.0
    %1454 = vmatprep.subr.mxu0 0.0
    %1455 = vmatpush2.msra.mxu0 0.0
    %1456 = vmatprep.subr.mxu0 0.0
    %1457 = vmatpush2.msra.mxu0 0.0
    %1458 = vmatprep.subr.mxu0 0.0
    %1459 = vmatpush2.msra.mxu0 0.0
    %1460 = vmatprep.subr.mxu0 0.0
    %1461 = vmatpush2.msra.mxu0 0.0
    %1462 = vmatprep.subr.mxu0 0.0
    %1463 = vmatpush2.msra.mxu0 0.0
    %1464 = vmatprep.subr.mxu0 0.0
    %1465 = vmatpush2.msra.mxu0 0.0
    %1466 = vmatprep.subr.mxu0 0.0
    %1467 = vmatpush2.msra.mxu0 0.0
    %1468 = vmatprep.subr.mxu0 0.0
    %1469 = vmatpush2.msra.mxu0 0.0
    %1470 = vmatprep.subr.mxu0 0.0
    %1471 = vmatpush2.msra.mxu0 0.0
    %1472 = vmatprep.mubr.f32.mxu0 0.0
    %1473 = vmatmul.mubr.f32.gmra.mxu0 %v1396
    %v1474 = vpop.f32.mrf.mxu0
    %v1475 = vadd.f32 0.0, %v1474
    %v1476 = vpop.f32.mrf.mxu0
    %v1477 = vadd.f32 0.0, %v1476
    %1478 = vmatprep.mubr.f32.mxu0 0.0
    %1479 = vmatmul.mubr.f32.gmra.mxu0 %v1398
    %v1480 = vpop.f32.mrf.mxu0
    %v1481 = vadd.f32 0.0, %v1480
    %v1482 = vpop.f32.mrf.mxu0
    %v1483 = vadd.f32 0.0, %v1482
    %1484 = vmatprep.mubr.f32.mxu0 0.0
    %1485 = vmatmul.mubr.f32.gmra.mxu0 %v1400
    %v1486 = vpop.f32.mrf.mxu0
    %v1487 = vadd.f32 0.0, %v1486
    %v1488 = vpop.f32.mrf.mxu0
    %v1489 = vadd.f32 0.0, %v1488
    %1490 = vmatprep.mubr.f32.mxu0 0.0
    %1491 = vmatmul.mubr.f32.gmra.mxu0 %v1402
    %v1492 = vpop.f32.mrf.mxu0
    %v1493 = vadd.f32 0.0, %v1492
    %v1494 = vpop.f32.mrf.mxu0
    %v1495 = vadd.f32 0.0, %v1494
    %1496 = vdwg.mxu0
    %v1497 = vadd.f32 %v1374, %v1475
    %v1498 = vadd.f32 %v1375, %v1477
    %v1499 = vadd.f32 %v1376, %v1481
    %v1500 = vadd.f32 %v1377, %v1483
    %v1501 = vadd.f32 %v1378, %v1487
    %v1502 = vadd.f32 %v1379, %v1489
    %v1503 = vadd.f32 %v1380, %v1493
    %v1504 = vadd.f32 %v1381, %v1495
    %1505 = vrot.lane.b32.xlu0 %v43, 68
    %v1506 = vpop.permute.xlu0 %1505
    %1507 = vrot.lane.b32.xlu0 %v45, 68
    %v1508 = vpop.permute.xlu0 %1507
    %1509 = vrot.lane.b32.xlu0 %v47, 68
    %v1510 = vpop.permute.xlu0 %1509
    %1511 = vrot.lane.b32.xlu0 %v49, 68
    %v1512 = vpop.permute.xlu0 %1511
    %1513 = vrot.lane.b32.xlu0 %v41, 116
    %v1514 = vpop.permute.xlu0 %1513
    %1515 = vrot.lane.b32.xlu0 %v42, 116
    %v1516 = vpop.permute.xlu0 %1515
    %vm1517 = vcmask 949248
    %v1518 = vsel %vm1517, %v1514, %v1516
    %v1519 = vsel %vm71, %v1506, 0
    %v1521 = vsel %vm71, %v1508, 0
    %v1523 = vsel %vm71, %v1510, 0
    %v1525 = vsel %vm71, %v1512, 0
    %v1527 = vsel %vm80, %v1518, 0
    %v1529 = vsel %vm80, %v1516, 0
    %1531 = vmatprep.subr.mxu0 0.0
    %1532 = vmatpush1.msra.mxu0 0.0
    %1533 = vmatprep.subr.mxu0 0.0
    %1534 = vmatpush1.msra.mxu0 0.0
    %1535 = vmatprep.subr.mxu0 0.0
    %1536 = vmatpush1.msra.mxu0 0.0
    %1537 = vmatprep.subr.mxu0 0.0
    %1538 = vmatpush1.msra.mxu0 0.0
    %1539 = vmatprep.subr.mxu0 0.0
    %1540 = vmatpush1.msra.mxu0 0.0
    %1541 = vmatprep.subr.mxu0 0.0
    %1542 = vmatpush1.msra.mxu0 0.0
    %1543 = vmatprep.subr.mxu0 0.0
    %1544 = vmatpush1.msra.mxu0 0.0
    %1545 = vmatprep.subr.mxu0 0.0
    %1546 = vmatpush1.msra.mxu0 0.0
    %1547 = vmatprep.subr.mxu0 0.0
    %1548 = vmatpush1.msra.mxu0 0.0
    %1549 = vmatprep.subr.mxu0 0.0
    %1550 = vmatpush1.msra.mxu0 0.0
    %1551 = vmatprep.subr.mxu0 0.0
    %1552 = vmatpush1.msra.mxu0 0.0
    %1553 = vmatprep.subr.mxu0 0.0
    %1554 = vmatpush1.msra.mxu0 0.0
    %1555 = vmatprep.subr.mxu0 0.0
    %1556 = vmatpush1.msra.mxu0 0.0
    %1557 = vmatprep.subr.mxu0 0.0
    %1558 = vmatpush1.msra.mxu0 0.0
    %1559 = vmatprep.subr.mxu0 0.0
    %1560 = vmatpush1.msra.mxu0 0.0
    %1561 = vmatprep.subr.mxu0 %v1529
    %1562 = vmatpush1.msra.mxu0 %v1527
    %1563 = vmatprep.subr.mxu0 0.0
    %1564 = vmatpush2.msra.mxu0 0.0
    %1565 = vmatprep.subr.mxu0 0.0
    %1566 = vmatpush2.msra.mxu0 0.0
    %1567 = vmatprep.subr.mxu0 0.0
    %1568 = vmatpush2.msra.mxu0 0.0
    %1569 = vmatprep.subr.mxu0 0.0
    %1570 = vmatpush2.msra.mxu0 0.0
    %1571 = vmatprep.subr.mxu0 0.0
    %1572 = vmatpush2.msra.mxu0 0.0
    %1573 = vmatprep.subr.mxu0 0.0
    %1574 = vmatpush2.msra.mxu0 0.0
    %1575 = vmatprep.subr.mxu0 0.0
    %1576 = vmatpush2.msra.mxu0 0.0
    %1577 = vmatprep.subr.mxu0 0.0
    %1578 = vmatpush2.msra.mxu0 0.0
    %1579 = vmatprep.subr.mxu0 0.0
    %1580 = vmatpush2.msra.mxu0 0.0
    %1581 = vmatprep.subr.mxu0 0.0
    %1582 = vmatpush2.msra.mxu0 0.0
    %1583 = vmatprep.subr.mxu0 0.0
    %1584 = vmatpush2.msra.mxu0 0.0
    %1585 = vmatprep.subr.mxu0 0.0
    %1586 = vmatpush2.msra.mxu0 0.0
    %1587 = vmatprep.subr.mxu0 0.0
    %1588 = vmatpush2.msra.mxu0 0.0
    %1589 = vmatprep.subr.mxu0 0.0
    %1590 = vmatpush2.msra.mxu0 0.0
    %1591 = vmatprep.subr.mxu0 0.0
    %1592 = vmatpush2.msra.mxu0 0.0
    %1593 = vmatprep.subr.mxu0 0.0
    %1594 = vmatpush2.msra.mxu0 0.0
    %1595 = vmatprep.mubr.f32.mxu0 0.0
    %1596 = vmatmul.mubr.f32.gmra.mxu0 %v1519
    %v1597 = vpop.f32.mrf.mxu0
    %v1598 = vadd.f32 0.0, %v1597
    %v1599 = vpop.f32.mrf.mxu0
    %v1600 = vadd.f32 0.0, %v1599
    %1601 = vmatprep.mubr.f32.mxu0 0.0
    %1602 = vmatmul.mubr.f32.gmra.mxu0 %v1521
    %v1603 = vpop.f32.mrf.mxu0
    %v1604 = vadd.f32 0.0, %v1603
    %v1605 = vpop.f32.mrf.mxu0
    %v1606 = vadd.f32 0.0, %v1605
    %1607 = vmatprep.mubr.f32.mxu0 0.0
    %1608 = vmatmul.mubr.f32.gmra.mxu0 %v1523
    %v1609 = vpop.f32.mrf.mxu0
    %v1610 = vadd.f32 0.0, %v1609
    %v1611 = vpop.f32.mrf.mxu0
    %v1612 = vadd.f32 0.0, %v1611
    %1613 = vmatprep.mubr.f32.mxu0 0.0
    %1614 = vmatmul.mubr.f32.gmra.mxu0 %v1525
    %v1615 = vpop.f32.mrf.mxu0
    %v1616 = vadd.f32 0.0, %v1615
    %v1617 = vpop.f32.mrf.mxu0
    %v1618 = vadd.f32 0.0, %v1617
    %1619 = vdwg.mxu0
    %v1620 = vadd.f32 %v1497, %v1598
    %v1621 = vadd.f32 %v1498, %v1600
    %v1622 = vadd.f32 %v1499, %v1604
    %v1623 = vadd.f32 %v1500, %v1606
    %v1624 = vadd.f32 %v1501, %v1610
    %v1625 = vadd.f32 %v1502, %v1612
    %v1626 = vadd.f32 %v1503, %v1616
    %v1627 = vadd.f32 %v1504, %v1618
    %1628 = vrot.lane.b32.xlu0 %v43, 63
    %v1629 = vpop.permute.xlu0 %1628
    %1630 = vrot.lane.b32.xlu0 %v45, 63
    %v1631 = vpop.permute.xlu0 %1630
    %1632 = vrot.lane.b32.xlu0 %v47, 63
    %v1633 = vpop.permute.xlu0 %1632
    %1634 = vrot.lane.b32.xlu0 %v49, 63
    %v1635 = vpop.permute.xlu0 %1634
    %1636 = vrot.lane.b32.xlu0 %v41, 115
    %v1637 = vpop.permute.xlu0 %1636
    %1638 = vrot.lane.b32.xlu0 %v42, 115
    %v1639 = vpop.permute.xlu0 %1638
    %vm1640 = vcmask 941056
    %v1641 = vsel %vm1640, %v1637, %v1639
    %v1642 = vsel %vm71, %v1629, 0
    %v1644 = vsel %vm71, %v1631, 0
    %v1646 = vsel %vm71, %v1633, 0
    %v1648 = vsel %vm71, %v1635, 0
    %v1650 = vsel %vm80, %v1641, 0
    %v1652 = vsel %vm80, %v1639, 0
    %1654 = vmatprep.subr.mxu0 0.0
    %1655 = vmatpush1.msra.mxu0 0.0
    %1656 = vmatprep.subr.mxu0 0.0
    %1657 = vmatpush1.msra.mxu0 0.0
    %1658 = vmatprep.subr.mxu0 0.0
    %1659 = vmatpush1.msra.mxu0 0.0
    %1660 = vmatprep.subr.mxu0 0.0
    %1661 = vmatpush1.msra.mxu0 0.0
    %1662 = vmatprep.subr.mxu0 0.0
    %1663 = vmatpush1.msra.mxu0 0.0
    %1664 = vmatprep.subr.mxu0 0.0
    %1665 = vmatpush1.msra.mxu0 0.0
    %1666 = vmatprep.subr.mxu0 0.0
    %1667 = vmatpush1.msra.mxu0 0.0
    %1668 = vmatprep.subr.mxu0 0.0
    %1669 = vmatpush1.msra.mxu0 0.0
    %1670 = vmatprep.subr.mxu0 0.0
    %1671 = vmatpush1.msra.mxu0 0.0
    %1672 = vmatprep.subr.mxu0 0.0
    %1673 = vmatpush1.msra.mxu0 0.0
    %1674 = vmatprep.subr.mxu0 0.0
    %1675 = vmatpush1.msra.mxu0 0.0
    %1676 = vmatprep.subr.mxu0 0.0
    %1677 = vmatpush1.msra.mxu0 0.0
    %1678 = vmatprep.subr.mxu0 0.0
    %1679 = vmatpush1.msra.mxu0 0.0
    %1680 = vmatprep.subr.mxu0 0.0
    %1681 = vmatpush1.msra.mxu0 0.0
    %1682 = vmatprep.subr.mxu0 0.0
    %1683 = vmatpush1.msra.mxu0 0.0
    %1684 = vmatprep.subr.mxu0 %v1652
    %1685 = vmatpush1.msra.mxu0 %v1650
    %1686 = vmatprep.subr.mxu0 0.0
    %1687 = vmatpush2.msra.mxu0 0.0
    %1688 = vmatprep.subr.mxu0 0.0
    %1689 = vmatpush2.msra.mxu0 0.0
    %1690 = vmatprep.subr.mxu0 0.0
    %1691 = vmatpush2.msra.mxu0 0.0
    %1692 = vmatprep.subr.mxu0 0.0
    %1693 = vmatpush2.msra.mxu0 0.0
    %1694 = vmatprep.subr.mxu0 0.0
    %1695 = vmatpush2.msra.mxu0 0.0
    %1696 = vmatprep.subr.mxu0 0.0
    %1697 = vmatpush2.msra.mxu0 0.0
    %1698 = vmatprep.subr.mxu0 0.0
    %1699 = vmatpush2.msra.mxu0 0.0
    %1700 = vmatprep.subr.mxu0 0.0
    %1701 = vmatpush2.msra.mxu0 0.0
    %1702 = vmatprep.subr.mxu0 0.0
    %1703 = vmatpush2.msra.mxu0 0.0
    %1704 = vmatprep.subr.mxu0 0.0
    %1705 = vmatpush2.msra.mxu0 0.0
    %1706 = vmatprep.subr.mxu0 0.0
    %1707 = vmatpush2.msra.mxu0 0.0
    %1708 = vmatprep.subr.mxu0 0.0
    %1709 = vmatpush2.msra.mxu0 0.0
    %1710 = vmatprep.subr.mxu0 0.0
    %1711 = vmatpush2.msra.mxu0 0.0
    %1712 = vmatprep.subr.mxu0 0.0
    %1713 = vmatpush2.msra.mxu0 0.0
    %1714 = vmatprep.subr.mxu0 0.0
    %1715 = vmatpush2.msra.mxu0 0.0
    %1716 = vmatprep.subr.mxu0 0.0
    %1717 = vmatpush2.msra.mxu0 0.0
    %1718 = vmatprep.mubr.f32.mxu0 0.0
    %1719 = vmatmul.mubr.f32.gmra.mxu0 %v1642
    %v1720 = vpop.f32.mrf.mxu0
    %v1721 = vadd.f32 0.0, %v1720
    %v1722 = vpop.f32.mrf.mxu0
    %v1723 = vadd.f32 0.0, %v1722
    %1724 = vmatprep.mubr.f32.mxu0 0.0
    %1725 = vmatmul.mubr.f32.gmra.mxu0 %v1644
    %v1726 = vpop.f32.mrf.mxu0
    %v1727 = vadd.f32 0.0, %v1726
    %v1728 = vpop.f32.mrf.mxu0
    %v1729 = vadd.f32 0.0, %v1728
    %1730 = vmatprep.mubr.f32.mxu0 0.0
    %1731 = vmatmul.mubr.f32.gmra.mxu0 %v1646
    %v1732 = vpop.f32.mrf.mxu0
    %v1733 = vadd.f32 0.0, %v1732
    %v1734 = vpop.f32.mrf.mxu0
    %v1735 = vadd.f32 0.0, %v1734
    %1736 = vmatprep.mubr.f32.mxu0 0.0
    %1737 = vmatmul.mubr.f32.gmra.mxu0 %v1648
    %v1738 = vpop.f32.mrf.mxu0
    %v1739 = vadd.f32 0.0, %v1738
    %v1740 = vpop.f32.mrf.mxu0
    %v1741 = vadd.f32 0.0, %v1740
    %1742 = vdwg.mxu0
    %v1743 = vadd.f32 %v1620, %v1721
    %v1744 = vadd.f32 %v1621, %v1723
    %v1745 = vadd.f32 %v1622, %v1727
    %v1746 = vadd.f32 %v1623, %v1729
    %v1747 = vadd.f32 %v1624, %v1733
    %v1748 = vadd.f32 %v1625, %v1735
    %v1749 = vadd.f32 %v1626, %v1739
    %v1750 = vadd.f32 %v1627, %v1741
    %1751 = vrot.lane.b32.xlu0 %v43, 58
    %v1752 = vpop.permute.xlu0 %1751
    %1753 = vrot.lane.b32.xlu0 %v45, 58
    %v1754 = vpop.permute.xlu0 %1753
    %1755 = vrot.lane.b32.xlu0 %v47, 58
    %v1756 = vpop.permute.xlu0 %1755
    %1757 = vrot.lane.b32.xlu0 %v49, 58
    %v1758 = vpop.permute.xlu0 %1757
    %1759 = vrot.lane.b32.xlu0 %v41, 114
    %v1760 = vpop.permute.xlu0 %1759
    %1761 = vrot.lane.b32.xlu0 %v42, 114
    %v1762 = vpop.permute.xlu0 %1761
    %vm1763 = vcmask 932864
    %v1764 = vsel %vm1763, %v1760, %v1762
    %v1765 = vsel %vm71, %v1752, 0
    %v1767 = vsel %vm71, %v1754, 0
    %v1769 = vsel %vm71, %v1756, 0
    %v1771 = vsel %vm71, %v1758, 0
    %v1773 = vsel %vm80, %v1764, 0
    %v1775 = vsel %vm80, %v1762, 0
    %1777 = vmatprep.subr.mxu0 0.0
    %1778 = vmatpush1.msra.mxu0 0.0
    %1779 = vmatprep.subr.mxu0 0.0
    %1780 = vmatpush1.msra.mxu0 0.0
    %1781 = vmatprep.subr.mxu0 0.0
    %1782 = vmatpush1.msra.mxu0 0.0
    %1783 = vmatprep.subr.mxu0 0.0
    %1784 = vmatpush1.msra.mxu0 0.0
    %1785 = vmatprep.subr.mxu0 0.0
    %1786 = vmatpush1.msra.mxu0 0.0
    %1787 = vmatprep.subr.mxu0 0.0
    %1788 = vmatpush1.msra.mxu0 0.0
    %1789 = vmatprep.subr.mxu0 0.0
    %1790 = vmatpush1.msra.mxu0 0.0
    %1791 = vmatprep.subr.mxu0 0.0
    %1792 = vmatpush1.msra.mxu0 0.0
    %1793 = vmatprep.subr.mxu0 0.0
    %1794 = vmatpush1.msra.mxu0 0.0
    %1795 = vmatprep.subr.mxu0 0.0
    %1796 = vmatpush1.msra.mxu0 0.0
    %1797 = vmatprep.subr.mxu0 0.0
    %1798 = vmatpush1.msra.mxu0 0.0
    %1799 = vmatprep.subr.mxu0 0.0
    %1800 = vmatpush1.msra.mxu0 0.0
    %1801 = vmatprep.subr.mxu0 0.0
    %1802 = vmatpush1.msra.mxu0 0.0
    %1803 = vmatprep.subr.mxu0 0.0
    %1804 = vmatpush1.msra.mxu0 0.0
    %1805 = vmatprep.subr.mxu0 0.0
    %1806 = vmatpush1.msra.mxu0 0.0
    %1807 = vmatprep.subr.mxu0 %v1775
    %1808 = vmatpush1.msra.mxu0 %v1773
    %1809 = vmatprep.subr.mxu0 0.0
    %1810 = vmatpush2.msra.mxu0 0.0
    %1811 = vmatprep.subr.mxu0 0.0
    %1812 = vmatpush2.msra.mxu0 0.0
    %1813 = vmatprep.subr.mxu0 0.0
    %1814 = vmatpush2.msra.mxu0 0.0
    %1815 = vmatprep.subr.mxu0 0.0
    %1816 = vmatpush2.msra.mxu0 0.0
    %1817 = vmatprep.subr.mxu0 0.0
    %1818 = vmatpush2.msra.mxu0 0.0
    %1819 = vmatprep.subr.mxu0 0.0
    %1820 = vmatpush2.msra.mxu0 0.0
    %1821 = vmatprep.subr.mxu0 0.0
    %1822 = vmatpush2.msra.mxu0 0.0
    %1823 = vmatprep.subr.mxu0 0.0
    %1824 = vmatpush2.msra.mxu0 0.0
    %1825 = vmatprep.subr.mxu0 0.0
    %1826 = vmatpush2.msra.mxu0 0.0
    %1827 = vmatprep.subr.mxu0 0.0
    %1828 = vmatpush2.msra.mxu0 0.0
    %1829 = vmatprep.subr.mxu0 0.0
    %1830 = vmatpush2.msra.mxu0 0.0
    %1831 = vmatprep.subr.mxu0 0.0
    %1832 = vmatpush2.msra.mxu0 0.0
    %1833 = vmatprep.subr.mxu0 0.0
    %1834 = vmatpush2.msra.mxu0 0.0
    %1835 = vmatprep.subr.mxu0 0.0
    %1836 = vmatpush2.msra.mxu0 0.0
    %1837 = vmatprep.subr.mxu0 0.0
    %1838 = vmatpush2.msra.mxu0 0.0
    %1839 = vmatprep.subr.mxu0 0.0
    %1840 = vmatpush2.msra.mxu0 0.0
    %1841 = vmatprep.mubr.f32.mxu0 0.0
    %1842 = vmatmul.mubr.f32.gmra.mxu0 %v1765
    %v1843 = vpop.f32.mrf.mxu0
    %v1844 = vadd.f32 0.0, %v1843
    %v1845 = vpop.f32.mrf.mxu0
    %v1846 = vadd.f32 0.0, %v1845
    %1847 = vmatprep.mubr.f32.mxu0 0.0
    %1848 = vmatmul.mubr.f32.gmra.mxu0 %v1767
    %v1849 = vpop.f32.mrf.mxu0
    %v1850 = vadd.f32 0.0, %v1849
    %v1851 = vpop.f32.mrf.mxu0
    %v1852 = vadd.f32 0.0, %v1851
    %1853 = vmatprep.mubr.f32.mxu0 0.0
    %1854 = vmatmul.mubr.f32.gmra.mxu0 %v1769
    %v1855 = vpop.f32.mrf.mxu0
    %v1856 = vadd.f32 0.0, %v1855
    %v1857 = vpop.f32.mrf.mxu0
    %v1858 = vadd.f32 0.0, %v1857
    %1859 = vmatprep.mubr.f32.mxu0 0.0
    %1860 = vmatmul.mubr.f32.gmra.mxu0 %v1771
    %v1861 = vpop.f32.mrf.mxu0
    %v1862 = vadd.f32 0.0, %v1861
    %v1863 = vpop.f32.mrf.mxu0
    %v1864 = vadd.f32 0.0, %v1863
    %1865 = vdwg.mxu0
    %v1866 = vadd.f32 %v1743, %v1844
    %v1867 = vadd.f32 %v1744, %v1846
    %v1868 = vadd.f32 %v1745, %v1850
    %v1869 = vadd.f32 %v1746, %v1852
    %v1870 = vadd.f32 %v1747, %v1856
    %v1871 = vadd.f32 %v1748, %v1858
    %v1872 = vadd.f32 %v1749, %v1862
    %v1873 = vadd.f32 %v1750, %v1864
    %1874 = vrot.lane.b32.xlu0 %v43, 53
    %v1875 = vpop.permute.xlu0 %1874
    %1876 = vrot.lane.b32.xlu0 %v45, 53
    %v1877 = vpop.permute.xlu0 %1876
    %1878 = vrot.lane.b32.xlu0 %v47, 53
    %v1879 = vpop.permute.xlu0 %1878
    %1880 = vrot.lane.b32.xlu0 %v49, 53
    %v1881 = vpop.permute.xlu0 %1880
    %1882 = vrot.lane.b32.xlu0 %v41, 113
    %v1883 = vpop.permute.xlu0 %1882
    %1884 = vrot.lane.b32.xlu0 %v42, 113
    %v1885 = vpop.permute.xlu0 %1884
    %vm1886 = vcmask 924672
    %v1887 = vsel %vm1886, %v1883, %v1885
    %v1888 = vsel %vm71, %v1875, 0
    %v1890 = vsel %vm71, %v1877, 0
    %v1892 = vsel %vm71, %v1879, 0
    %v1894 = vsel %vm71, %v1881, 0
    %v1896 = vsel %vm80, %v1887, 0
    %v1898 = vsel %vm80, %v1885, 0
    %1900 = vmatprep.subr.mxu0 0.0
    %1901 = vmatpush1.msra.mxu0 0.0
    %1902 = vmatprep.subr.mxu0 0.0
    %1903 = vmatpush1.msra.mxu0 0.0
    %1904 = vmatprep.subr.mxu0 0.0
    %1905 = vmatpush1.msra.mxu0 0.0
    %1906 = vmatprep.subr.mxu0 0.0
    %1907 = vmatpush1.msra.mxu0 0.0
    %1908 = vmatprep.subr.mxu0 0.0
    %1909 = vmatpush1.msra.mxu0 0.0
    %1910 = vmatprep.subr.mxu0 0.0
    %1911 = vmatpush1.msra.mxu0 0.0
    %1912 = vmatprep.subr.mxu0 0.0
    %1913 = vmatpush1.msra.mxu0 0.0
    %1914 = vmatprep.subr.mxu0 0.0
    %1915 = vmatpush1.msra.mxu0 0.0
    %1916 = vmatprep.subr.mxu0 0.0
    %1917 = vmatpush1.msra.mxu0 0.0
    %1918 = vmatprep.subr.mxu0 0.0
    %1919 = vmatpush1.msra.mxu0 0.0
    %1920 = vmatprep.subr.mxu0 0.0
    %1921 = vmatpush1.msra.mxu0 0.0
    %1922 = vmatprep.subr.mxu0 0.0
    %1923 = vmatpush1.msra.mxu0 0.0
    %1924 = vmatprep.subr.mxu0 0.0
    %1925 = vmatpush1.msra.mxu0 0.0
    %1926 = vmatprep.subr.mxu0 0.0
    %1927 = vmatpush1.msra.mxu0 0.0
    %1928 = vmatprep.subr.mxu0 0.0
    %1929 = vmatpush1.msra.mxu0 0.0
    %1930 = vmatprep.subr.mxu0 %v1898
    %1931 = vmatpush1.msra.mxu0 %v1896
    %1932 = vmatprep.subr.mxu0 0.0
    %1933 = vmatpush2.msra.mxu0 0.0
    %1934 = vmatprep.subr.mxu0 0.0
    %1935 = vmatpush2.msra.mxu0 0.0
    %1936 = vmatprep.subr.mxu0 0.0
    %1937 = vmatpush2.msra.mxu0 0.0
    %1938 = vmatprep.subr.mxu0 0.0
    %1939 = vmatpush2.msra.mxu0 0.0
    %1940 = vmatprep.subr.mxu0 0.0
    %1941 = vmatpush2.msra.mxu0 0.0
    %1942 = vmatprep.subr.mxu0 0.0
    %1943 = vmatpush2.msra.mxu0 0.0
    %1944 = vmatprep.subr.mxu0 0.0
    %1945 = vmatpush2.msra.mxu0 0.0
    %1946 = vmatprep.subr.mxu0 0.0
    %1947 = vmatpush2.msra.mxu0 0.0
    %1948 = vmatprep.subr.mxu0 0.0
    %1949 = vmatpush2.msra.mxu0 0.0
    %1950 = vmatprep.subr.mxu0 0.0
    %1951 = vmatpush2.msra.mxu0 0.0
    %1952 = vmatprep.subr.mxu0 0.0
    %1953 = vmatpush2.msra.mxu0 0.0
    %1954 = vmatprep.subr.mxu0 0.0
    %1955 = vmatpush2.msra.mxu0 0.0
    %1956 = vmatprep.subr.mxu0 0.0
    %1957 = vmatpush2.msra.mxu0 0.0
    %1958 = vmatprep.subr.mxu0 0.0
    %1959 = vmatpush2.msra.mxu0 0.0
    %1960 = vmatprep.subr.mxu0 0.0
    %1961 = vmatpush2.msra.mxu0 0.0
    %1962 = vmatprep.subr.mxu0 0.0
    %1963 = vmatpush2.msra.mxu0 0.0
    %1964 = vmatprep.mubr.f32.mxu0 0.0
    %1965 = vmatmul.mubr.f32.gmra.mxu0 %v1888
    %v1966 = vpop.f32.mrf.mxu0
    %v1967 = vadd.f32 0.0, %v1966
    %v1968 = vpop.f32.mrf.mxu0
    %v1969 = vadd.f32 0.0, %v1968
    %1970 = vmatprep.mubr.f32.mxu0 0.0
    %1971 = vmatmul.mubr.f32.gmra.mxu0 %v1890
    %v1972 = vpop.f32.mrf.mxu0
    %v1973 = vadd.f32 0.0, %v1972
    %v1974 = vpop.f32.mrf.mxu0
    %v1975 = vadd.f32 0.0, %v1974
    %1976 = vmatprep.mubr.f32.mxu0 0.0
    %1977 = vmatmul.mubr.f32.gmra.mxu0 %v1892
    %v1978 = vpop.f32.mrf.mxu0
    %v1979 = vadd.f32 0.0, %v1978
    %v1980 = vpop.f32.mrf.mxu0
    %v1981 = vadd.f32 0.0, %v1980
    %1982 = vmatprep.mubr.f32.mxu0 0.0
    %1983 = vmatmul.mubr.f32.gmra.mxu0 %v1894
    %v1984 = vpop.f32.mrf.mxu0
    %v1985 = vadd.f32 0.0, %v1984
    %v1986 = vpop.f32.mrf.mxu0
    %v1987 = vadd.f32 0.0, %v1986
    %1988 = vdwg.mxu0
    %v1989 = vadd.f32 %v1866, %v1967
    %v1990 = vadd.f32 %v1867, %v1969
    %v1991 = vadd.f32 %v1868, %v1973
    %v1992 = vadd.f32 %v1869, %v1975
    %v1993 = vadd.f32 %v1870, %v1979
    %v1994 = vadd.f32 %v1871, %v1981
    %v1995 = vadd.f32 %v1872, %v1985
    %v1996 = vadd.f32 %v1873, %v1987
    %1997 = vrot.lane.b32.xlu0 %v43, 48
    %v1998 = vpop.permute.xlu0 %1997
    %1999 = vrot.lane.b32.xlu0 %v45, 48
    %v2000 = vpop.permute.xlu0 %1999
    %2001 = vrot.lane.b32.xlu0 %v47, 48
    %v2002 = vpop.permute.xlu0 %2001
    %2003 = vrot.lane.b32.xlu0 %v49, 48
    %v2004 = vpop.permute.xlu0 %2003
    %2005 = vrot.lane.b32.xlu0 %v41, 112
    %v2006 = vpop.permute.xlu0 %2005
    %2007 = vrot.lane.b32.xlu0 %v42, 112
    %v2008 = vpop.permute.xlu0 %2007
    %vm2009 = vcmask 916480
    %v2010 = vsel %vm2009, %v2006, %v2008
    %v2011 = vsel %vm71, %v1998, 0
    %v2013 = vsel %vm71, %v2000, 0
    %v2015 = vsel %vm71, %v2002, 0
    %v2017 = vsel %vm71, %v2004, 0
    %v2019 = vsel %vm80, %v2010, 0
    %v2021 = vsel %vm80, %v2008, 0
    %2023 = vmatprep.subr.mxu0 0.0
    %2024 = vmatpush1.msra.mxu0 0.0
    %2025 = vmatprep.subr.mxu0 0.0
    %2026 = vmatpush1.msra.mxu0 0.0
    %2027 = vmatprep.subr.mxu0 0.0
    %2028 = vmatpush1.msra.mxu0 0.0
    %2029 = vmatprep.subr.mxu0 0.0
    %2030 = vmatpush1.msra.mxu0 0.0
    %2031 = vmatprep.subr.mxu0 0.0
    %2032 = vmatpush1.msra.mxu0 0.0
    %2033 = vmatprep.subr.mxu0 0.0
    %2034 = vmatpush1.msra.mxu0 0.0
    %2035 = vmatprep.subr.mxu0 0.0
    %2036 = vmatpush1.msra.mxu0 0.0
    %2037 = vmatprep.subr.mxu0 0.0
    %2038 = vmatpush1.msra.mxu0 0.0
    %2039 = vmatprep.subr.mxu0 0.0
    %2040 = vmatpush1.msra.mxu0 0.0
    %2041 = vmatprep.subr.mxu0 0.0
    %2042 = vmatpush1.msra.mxu0 0.0
    %2043 = vmatprep.subr.mxu0 0.0
    %2044 = vmatpush1.msra.mxu0 0.0
    %2045 = vmatprep.subr.mxu0 0.0
    %2046 = vmatpush1.msra.mxu0 0.0
    %2047 = vmatprep.subr.mxu0 0.0
    %2048 = vmatpush1.msra.mxu0 0.0
    %2049 = vmatprep.subr.mxu0 0.0
    %2050 = vmatpush1.msra.mxu0 0.0
    %2051 = vmatprep.subr.mxu0 0.0
    %2052 = vmatpush1.msra.mxu0 0.0
    %2053 = vmatprep.subr.mxu0 %v2021
    %2054 = vmatpush1.msra.mxu0 %v2019
    %2055 = vmatprep.subr.mxu0 0.0
    %2056 = vmatpush2.msra.mxu0 0.0
    %2057 = vmatprep.subr.mxu0 0.0
    %2058 = vmatpush2.msra.mxu0 0.0
    %2059 = vmatprep.subr.mxu0 0.0
    %2060 = vmatpush2.msra.mxu0 0.0
    %2061 = vmatprep.subr.mxu0 0.0
    %2062 = vmatpush2.msra.mxu0 0.0
    %2063 = vmatprep.subr.mxu0 0.0
    %2064 = vmatpush2.msra.mxu0 0.0
    %2065 = vmatprep.subr.mxu0 0.0
    %2066 = vmatpush2.msra.mxu0 0.0
    %2067 = vmatprep.subr.mxu0 0.0
    %2068 = vmatpush2.msra.mxu0 0.0
    %2069 = vmatprep.subr.mxu0 0.0
    %2070 = vmatpush2.msra.mxu0 0.0
    %2071 = vmatprep.subr.mxu0 0.0
    %2072 = vmatpush2.msra.mxu0 0.0
    %2073 = vmatprep.subr.mxu0 0.0
    %2074 = vmatpush2.msra.mxu0 0.0
    %2075 = vmatprep.subr.mxu0 0.0
    %2076 = vmatpush2.msra.mxu0 0.0
    %2077 = vmatprep.subr.mxu0 0.0
    %2078 = vmatpush2.msra.mxu0 0.0
    %2079 = vmatprep.subr.mxu0 0.0
    %2080 = vmatpush2.msra.mxu0 0.0
    %2081 = vmatprep.subr.mxu0 0.0
    %2082 = vmatpush2.msra.mxu0 0.0
    %2083 = vmatprep.subr.mxu0 0.0
    %2084 = vmatpush2.msra.mxu0 0.0
    %2085 = vmatprep.subr.mxu0 0.0
    %2086 = vmatpush2.msra.mxu0 0.0
    %2087 = vmatprep.mubr.f32.mxu0 0.0
    %2088 = vmatmul.mubr.f32.gmra.mxu0 %v2011
    %v2089 = vpop.f32.mrf.mxu0
    %v2090 = vadd.f32 0.0, %v2089
    %v2091 = vpop.f32.mrf.mxu0
    %v2092 = vadd.f32 0.0, %v2091
    %2093 = vmatprep.mubr.f32.mxu0 0.0
    %2094 = vmatmul.mubr.f32.gmra.mxu0 %v2013
    %v2095 = vpop.f32.mrf.mxu0
    %v2096 = vadd.f32 0.0, %v2095
    %v2097 = vpop.f32.mrf.mxu0
    %v2098 = vadd.f32 0.0, %v2097
    %2099 = vmatprep.mubr.f32.mxu0 0.0
    %2100 = vmatmul.mubr.f32.gmra.mxu0 %v2015
    %v2101 = vpop.f32.mrf.mxu0
    %v2102 = vadd.f32 0.0, %v2101
    %v2103 = vpop.f32.mrf.mxu0
    %v2104 = vadd.f32 0.0, %v2103
    %2105 = vmatprep.mubr.f32.mxu0 0.0
    %2106 = vmatmul.mubr.f32.gmra.mxu0 %v2017
    %v2107 = vpop.f32.mrf.mxu0
    %v2108 = vadd.f32 0.0, %v2107
    %v2109 = vpop.f32.mrf.mxu0
    %v2110 = vadd.f32 0.0, %v2109
    %2111 = vdwg.mxu0
    %v2112 = vadd.f32 %v1989, %v2090
    %v2113 = vadd.f32 %v1990, %v2092
    %v2114 = vadd.f32 %v1991, %v2096
    %v2115 = vadd.f32 %v1992, %v2098
    %v2116 = vadd.f32 %v1993, %v2102
    %v2117 = vadd.f32 %v1994, %v2104
    %v2118 = vadd.f32 %v1995, %v2108
    %v2119 = vadd.f32 %v1996, %v2110
    %2120 = vrot.lane.b32.xlu0 %v43, 43
    %v2121 = vpop.permute.xlu0 %2120
    %2122 = vrot.lane.b32.xlu0 %v45, 43
    %v2123 = vpop.permute.xlu0 %2122
    %2124 = vrot.lane.b32.xlu0 %v47, 43
    %v2125 = vpop.permute.xlu0 %2124
    %2126 = vrot.lane.b32.xlu0 %v49, 43
    %v2127 = vpop.permute.xlu0 %2126
    %2128 = vrot.lane.b32.xlu0 %v41, 111
    %v2129 = vpop.permute.xlu0 %2128
    %2130 = vrot.lane.b32.xlu0 %v42, 111
    %v2131 = vpop.permute.xlu0 %2130
    %vm2132 = vcmask 908288
    %v2133 = vsel %vm2132, %v2129, %v2131
    %v2134 = vsel %vm71, %v2121, 0
    %v2136 = vsel %vm71, %v2123, 0
    %v2138 = vsel %vm71, %v2125, 0
    %v2140 = vsel %vm71, %v2127, 0
    %v2142 = vsel %vm80, %v2133, 0
    %v2144 = vsel %vm80, %v2131, 0
    %2146 = vmatprep.subr.mxu0 0.0
    %2147 = vmatpush1.msra.mxu0 0.0
    %2148 = vmatprep.subr.mxu0 0.0
    %2149 = vmatpush1.msra.mxu0 0.0
    %2150 = vmatprep.subr.mxu0 0.0
    %2151 = vmatpush1.msra.mxu0 0.0
    %2152 = vmatprep.subr.mxu0 0.0
    %2153 = vmatpush1.msra.mxu0 0.0
    %2154 = vmatprep.subr.mxu0 0.0
    %2155 = vmatpush1.msra.mxu0 0.0
    %2156 = vmatprep.subr.mxu0 0.0
    %2157 = vmatpush1.msra.mxu0 0.0
    %2158 = vmatprep.subr.mxu0 0.0
    %2159 = vmatpush1.msra.mxu0 0.0
    %2160 = vmatprep.subr.mxu0 0.0
    %2161 = vmatpush1.msra.mxu0 0.0
    %2162 = vmatprep.subr.mxu0 0.0
    %2163 = vmatpush1.msra.mxu0 0.0
    %2164 = vmatprep.subr.mxu0 0.0
    %2165 = vmatpush1.msra.mxu0 0.0
    %2166 = vmatprep.subr.mxu0 0.0
    %2167 = vmatpush1.msra.mxu0 0.0
    %2168 = vmatprep.subr.mxu0 0.0
    %2169 = vmatpush1.msra.mxu0 0.0
    %2170 = vmatprep.subr.mxu0 0.0
    %2171 = vmatpush1.msra.mxu0 0.0
    %2172 = vmatprep.subr.mxu0 0.0
    %2173 = vmatpush1.msra.mxu0 0.0
    %2174 = vmatprep.subr.mxu0 0.0
    %2175 = vmatpush1.msra.mxu0 0.0
    %2176 = vmatprep.subr.mxu0 %v2144
    %2177 = vmatpush1.msra.mxu0 %v2142
    %2178 = vmatprep.subr.mxu0 0.0
    %2179 = vmatpush2.msra.mxu0 0.0
    %2180 = vmatprep.subr.mxu0 0.0
    %2181 = vmatpush2.msra.mxu0 0.0
    %2182 = vmatprep.subr.mxu0 0.0
    %2183 = vmatpush2.msra.mxu0 0.0
    %2184 = vmatprep.subr.mxu0 0.0
    %2185 = vmatpush2.msra.mxu0 0.0
    %2186 = vmatprep.subr.mxu0 0.0
    %2187 = vmatpush2.msra.mxu0 0.0
    %2188 = vmatprep.subr.mxu0 0.0
    %2189 = vmatpush2.msra.mxu0 0.0
    %2190 = vmatprep.subr.mxu0 0.0
    %2191 = vmatpush2.msra.mxu0 0.0
    %2192 = vmatprep.subr.mxu0 0.0
    %2193 = vmatpush2.msra.mxu0 0.0
    %2194 = vmatprep.subr.mxu0 0.0
    %2195 = vmatpush2.msra.mxu0 0.0
    %2196 = vmatprep.subr.mxu0 0.0
    %2197 = vmatpush2.msra.mxu0 0.0
    %2198 = vmatprep.subr.mxu0 0.0
    %2199 = vmatpush2.msra.mxu0 0.0
    %2200 = vmatprep.subr.mxu0 0.0
    %2201 = vmatpush2.msra.mxu0 0.0
    %2202 = vmatprep.subr.mxu0 0.0
    %2203 = vmatpush2.msra.mxu0 0.0
    %2204 = vmatprep.subr.mxu0 0.0
    %2205 = vmatpush2.msra.mxu0 0.0
    %2206 = vmatprep.subr.mxu0 0.0
    %2207 = vmatpush2.msra.mxu0 0.0
    %2208 = vmatprep.subr.mxu0 0.0
    %2209 = vmatpush2.msra.mxu0 0.0
    %2210 = vmatprep.mubr.f32.mxu0 0.0
    %2211 = vmatmul.mubr.f32.gmra.mxu0 %v2134
    %v2212 = vpop.f32.mrf.mxu0
    %v2213 = vadd.f32 0.0, %v2212
    %v2214 = vpop.f32.mrf.mxu0
    %v2215 = vadd.f32 0.0, %v2214
    %2216 = vmatprep.mubr.f32.mxu0 0.0
    %2217 = vmatmul.mubr.f32.gmra.mxu0 %v2136
    %v2218 = vpop.f32.mrf.mxu0
    %v2219 = vadd.f32 0.0, %v2218
    %v2220 = vpop.f32.mrf.mxu0
    %v2221 = vadd.f32 0.0, %v2220
    %2222 = vmatprep.mubr.f32.mxu0 0.0
    %2223 = vmatmul.mubr.f32.gmra.mxu0 %v2138
    %v2224 = vpop.f32.mrf.mxu0
    %v2225 = vadd.f32 0.0, %v2224
    %v2226 = vpop.f32.mrf.mxu0
    %v2227 = vadd.f32 0.0, %v2226
    %2228 = vmatprep.mubr.f32.mxu0 0.0
    %2229 = vmatmul.mubr.f32.gmra.mxu0 %v2140
    %v2230 = vpop.f32.mrf.mxu0
    %v2231 = vadd.f32 0.0, %v2230
    %v2232 = vpop.f32.mrf.mxu0
    %v2233 = vadd.f32 0.0, %v2232
    %2234 = vdwg.mxu0
    %v2235 = vadd.f32 %v2112, %v2213
    %v2236 = vadd.f32 %v2113, %v2215
    %v2237 = vadd.f32 %v2114, %v2219
    %v2238 = vadd.f32 %v2115, %v2221
    %v2239 = vadd.f32 %v2116, %v2225
    %v2240 = vadd.f32 %v2117, %v2227
    %v2241 = vadd.f32 %v2118, %v2231
    %v2242 = vadd.f32 %v2119, %v2233
    %2243 = vrot.lane.b32.xlu0 %v43, 38
    %v2244 = vpop.permute.xlu0 %2243
    %2245 = vrot.lane.b32.xlu0 %v45, 38
    %v2246 = vpop.permute.xlu0 %2245
    %2247 = vrot.lane.b32.xlu0 %v47, 38
    %v2248 = vpop.permute.xlu0 %2247
    %2249 = vrot.lane.b32.xlu0 %v49, 38
    %v2250 = vpop.permute.xlu0 %2249
    %2251 = vrot.lane.b32.xlu0 %v41, 110
    %v2252 = vpop.permute.xlu0 %2251
    %2253 = vrot.lane.b32.xlu0 %v42, 110
    %v2254 = vpop.permute.xlu0 %2253
    %vm2255 = vcmask 900096
    %v2256 = vsel %vm2255, %v2252, %v2254
    %v2257 = vsel %vm71, %v2244, 0
    %v2259 = vsel %vm71, %v2246, 0
    %v2261 = vsel %vm71, %v2248, 0
    %v2263 = vsel %vm71, %v2250, 0
    %v2265 = vsel %vm80, %v2256, 0
    %v2267 = vsel %vm80, %v2254, 0
    %2269 = vmatprep.subr.mxu0 0.0
    %2270 = vmatpush1.msra.mxu0 0.0
    %2271 = vmatprep.subr.mxu0 0.0
    %2272 = vmatpush1.msra.mxu0 0.0
    %2273 = vmatprep.subr.mxu0 0.0
    %2274 = vmatpush1.msra.mxu0 0.0
    %2275 = vmatprep.subr.mxu0 0.0
    %2276 = vmatpush1.msra.mxu0 0.0
    %2277 = vmatprep.subr.mxu0 0.0
    %2278 = vmatpush1.msra.mxu0 0.0
    %2279 = vmatprep.subr.mxu0 0.0
    %2280 = vmatpush1.msra.mxu0 0.0
    %2281 = vmatprep.subr.mxu0 0.0
    %2282 = vmatpush1.msra.mxu0 0.0
    %2283 = vmatprep.subr.mxu0 0.0
    %2284 = vmatpush1.msra.mxu0 0.0
    %2285 = vmatprep.subr.mxu0 0.0
    %2286 = vmatpush1.msra.mxu0 0.0
    %2287 = vmatprep.subr.mxu0 0.0
    %2288 = vmatpush1.msra.mxu0 0.0
    %2289 = vmatprep.subr.mxu0 0.0
    %2290 = vmatpush1.msra.mxu0 0.0
    %2291 = vmatprep.subr.mxu0 0.0
    %2292 = vmatpush1.msra.mxu0 0.0
    %2293 = vmatprep.subr.mxu0 0.0
    %2294 = vmatpush1.msra.mxu0 0.0
    %2295 = vmatprep.subr.mxu0 0.0
    %2296 = vmatpush1.msra.mxu0 0.0
    %2297 = vmatprep.subr.mxu0 0.0
    %2298 = vmatpush1.msra.mxu0 0.0
    %2299 = vmatprep.subr.mxu0 %v2267
    %2300 = vmatpush1.msra.mxu0 %v2265
    %2301 = vmatprep.subr.mxu0 0.0
    %2302 = vmatpush2.msra.mxu0 0.0
    %2303 = vmatprep.subr.mxu0 0.0
    %2304 = vmatpush2.msra.mxu0 0.0
    %2305 = vmatprep.subr.mxu0 0.0
    %2306 = vmatpush2.msra.mxu0 0.0
    %2307 = vmatprep.subr.mxu0 0.0
    %2308 = vmatpush2.msra.mxu0 0.0
    %2309 = vmatprep.subr.mxu0 0.0
    %2310 = vmatpush2.msra.mxu0 0.0
    %2311 = vmatprep.subr.mxu0 0.0
    %2312 = vmatpush2.msra.mxu0 0.0
    %2313 = vmatprep.subr.mxu0 0.0
    %2314 = vmatpush2.msra.mxu0 0.0
    %2315 = vmatprep.subr.mxu0 0.0
    %2316 = vmatpush2.msra.mxu0 0.0
    %2317 = vmatprep.subr.mxu0 0.0
    %2318 = vmatpush2.msra.mxu0 0.0
    %2319 = vmatprep.subr.mxu0 0.0
    %2320 = vmatpush2.msra.mxu0 0.0
    %2321 = vmatprep.subr.mxu0 0.0
    %2322 = vmatpush2.msra.mxu0 0.0
    %2323 = vmatprep.subr.mxu0 0.0
    %2324 = vmatpush2.msra.mxu0 0.0
    %2325 = vmatprep.subr.mxu0 0.0
    %2326 = vmatpush2.msra.mxu0 0.0
    %2327 = vmatprep.subr.mxu0 0.0
    %2328 = vmatpush2.msra.mxu0 0.0
    %2329 = vmatprep.subr.mxu0 0.0
    %2330 = vmatpush2.msra.mxu0 0.0
    %2331 = vmatprep.subr.mxu0 0.0
    %2332 = vmatpush2.msra.mxu0 0.0
    %2333 = vmatprep.mubr.f32.mxu0 0.0
    %2334 = vmatmul.mubr.f32.gmra.mxu0 %v2257
    %v2335 = vpop.f32.mrf.mxu0
    %v2336 = vadd.f32 0.0, %v2335
    %v2337 = vpop.f32.mrf.mxu0
    %v2338 = vadd.f32 0.0, %v2337
    %2339 = vmatprep.mubr.f32.mxu0 0.0
    %2340 = vmatmul.mubr.f32.gmra.mxu0 %v2259
    %v2341 = vpop.f32.mrf.mxu0
    %v2342 = vadd.f32 0.0, %v2341
    %v2343 = vpop.f32.mrf.mxu0
    %v2344 = vadd.f32 0.0, %v2343
    %2345 = vmatprep.mubr.f32.mxu0 0.0
    %2346 = vmatmul.mubr.f32.gmra.mxu0 %v2261
    %v2347 = vpop.f32.mrf.mxu0
    %v2348 = vadd.f32 0.0, %v2347
    %v2349 = vpop.f32.mrf.mxu0
    %v2350 = vadd.f32 0.0, %v2349
    %2351 = vmatprep.mubr.f32.mxu0 0.0
    %2352 = vmatmul.mubr.f32.gmra.mxu0 %v2263
    %v2353 = vpop.f32.mrf.mxu0
    %v2354 = vadd.f32 0.0, %v2353
    %v2355 = vpop.f32.mrf.mxu0
    %v2356 = vadd.f32 0.0, %v2355
    %2357 = vdwg.mxu0
    %v2358 = vadd.f32 %v2235, %v2336
    %v2359 = vadd.f32 %v2236, %v2338
    %v2360 = vadd.f32 %v2237, %v2342
    %v2361 = vadd.f32 %v2238, %v2344
    %v2362 = vadd.f32 %v2239, %v2348
    %v2363 = vadd.f32 %v2240, %v2350
    %v2364 = vadd.f32 %v2241, %v2354
    %v2365 = vadd.f32 %v2242, %v2356
    %2366 = vrot.lane.b32.xlu0 %v43, 33
    %v2367 = vpop.permute.xlu0 %2366
    %2368 = vrot.lane.b32.xlu0 %v45, 33
    %v2369 = vpop.permute.xlu0 %2368
    %2370 = vrot.lane.b32.xlu0 %v47, 33
    %v2371 = vpop.permute.xlu0 %2370
    %2372 = vrot.lane.b32.xlu0 %v49, 33
    %v2373 = vpop.permute.xlu0 %2372
    %2374 = vrot.lane.b32.xlu0 %v41, 109
    %v2375 = vpop.permute.xlu0 %2374
    %2376 = vrot.lane.b32.xlu0 %v42, 109
    %v2377 = vpop.permute.xlu0 %2376
    %vm2378 = vcmask 891904
    %v2379 = vsel %vm2378, %v2375, %v2377
    %v2380 = vsel %vm71, %v2367, 0
    %v2382 = vsel %vm71, %v2369, 0
    %v2384 = vsel %vm71, %v2371, 0
    %v2386 = vsel %vm71, %v2373, 0
    %v2388 = vsel %vm80, %v2379, 0
    %v2390 = vsel %vm80, %v2377, 0
    %2392 = vmatprep.subr.mxu0 0.0
    %2393 = vmatpush1.msra.mxu0 0.0
    %2394 = vmatprep.subr.mxu0 0.0
    %2395 = vmatpush1.msra.mxu0 0.0
    %2396 = vmatprep.subr.mxu0 0.0
    %2397 = vmatpush1.msra.mxu0 0.0
    %2398 = vmatprep.subr.mxu0 0.0
    %2399 = vmatpush1.msra.mxu0 0.0
    %2400 = vmatprep.subr.mxu0 0.0
    %2401 = vmatpush1.msra.mxu0 0.0
    %2402 = vmatprep.subr.mxu0 0.0
    %2403 = vmatpush1.msra.mxu0 0.0
    %2404 = vmatprep.subr.mxu0 0.0
    %2405 = vmatpush1.msra.mxu0 0.0
    %2406 = vmatprep.subr.mxu0 0.0
    %2407 = vmatpush1.msra.mxu0 0.0
    %2408 = vmatprep.subr.mxu0 0.0
    %2409 = vmatpush1.msra.mxu0 0.0
    %2410 = vmatprep.subr.mxu0 0.0
    %2411 = vmatpush1.msra.mxu0 0.0
    %2412 = vmatprep.subr.mxu0 0.0
    %2413 = vmatpush1.msra.mxu0 0.0
    %2414 = vmatprep.subr.mxu0 0.0
    %2415 = vmatpush1.msra.mxu0 0.0
    %2416 = vmatprep.subr.mxu0 0.0
    %2417 = vmatpush1.msra.mxu0 0.0
    %2418 = vmatprep.subr.mxu0 0.0
    %2419 = vmatpush1.msra.mxu0 0.0
    %2420 = vmatprep.subr.mxu0 0.0
    %2421 = vmatpush1.msra.mxu0 0.0
    %2422 = vmatprep.subr.mxu0 %v2390
    %2423 = vmatpush1.msra.mxu0 %v2388
    %2424 = vmatprep.subr.mxu0 0.0
    %2425 = vmatpush2.msra.mxu0 0.0
    %2426 = vmatprep.subr.mxu0 0.0
    %2427 = vmatpush2.msra.mxu0 0.0
    %2428 = vmatprep.subr.mxu0 0.0
    %2429 = vmatpush2.msra.mxu0 0.0
    %2430 = vmatprep.subr.mxu0 0.0
    %2431 = vmatpush2.msra.mxu0 0.0
    %2432 = vmatprep.subr.mxu0 0.0
    %2433 = vmatpush2.msra.mxu0 0.0
    %2434 = vmatprep.subr.mxu0 0.0
    %2435 = vmatpush2.msra.mxu0 0.0
    %2436 = vmatprep.subr.mxu0 0.0
    %2437 = vmatpush2.msra.mxu0 0.0
    %2438 = vmatprep.subr.mxu0 0.0
    %2439 = vmatpush2.msra.mxu0 0.0
    %2440 = vmatprep.subr.mxu0 0.0
    %2441 = vmatpush2.msra.mxu0 0.0
    %2442 = vmatprep.subr.mxu0 0.0
    %2443 = vmatpush2.msra.mxu0 0.0
    %2444 = vmatprep.subr.mxu0 0.0
    %2445 = vmatpush2.msra.mxu0 0.0
    %2446 = vmatprep.subr.mxu0 0.0
    %2447 = vmatpush2.msra.mxu0 0.0
    %2448 = vmatprep.subr.mxu0 0.0
    %2449 = vmatpush2.msra.mxu0 0.0
    %2450 = vmatprep.subr.mxu0 0.0
    %2451 = vmatpush2.msra.mxu0 0.0
    %2452 = vmatprep.subr.mxu0 0.0
    %2453 = vmatpush2.msra.mxu0 0.0
    %2454 = vmatprep.subr.mxu0 0.0
    %2455 = vmatpush2.msra.mxu0 0.0
    %2456 = vmatprep.mubr.f32.mxu0 0.0
    %2457 = vmatmul.mubr.f32.gmra.mxu0 %v2380
    %v2458 = vpop.f32.mrf.mxu0
    %v2459 = vadd.f32 0.0, %v2458
    %v2460 = vpop.f32.mrf.mxu0
    %v2461 = vadd.f32 0.0, %v2460
    %2462 = vmatprep.mubr.f32.mxu0 0.0
    %2463 = vmatmul.mubr.f32.gmra.mxu0 %v2382
    %v2464 = vpop.f32.mrf.mxu0
    %v2465 = vadd.f32 0.0, %v2464
    %v2466 = vpop.f32.mrf.mxu0
    %v2467 = vadd.f32 0.0, %v2466
    %2468 = vmatprep.mubr.f32.mxu0 0.0
    %2469 = vmatmul.mubr.f32.gmra.mxu0 %v2384
    %v2470 = vpop.f32.mrf.mxu0
    %v2471 = vadd.f32 0.0, %v2470
    %v2472 = vpop.f32.mrf.mxu0
    %v2473 = vadd.f32 0.0, %v2472
    %2474 = vmatprep.mubr.f32.mxu0 0.0
    %2475 = vmatmul.mubr.f32.gmra.mxu0 %v2386
    %v2476 = vpop.f32.mrf.mxu0
    %v2477 = vadd.f32 0.0, %v2476
    %v2478 = vpop.f32.mrf.mxu0
    %v2479 = vadd.f32 0.0, %v2478
    %2480 = vdwg.mxu0
    %v2481 = vadd.f32 %v2358, %v2459
    %v2482 = vadd.f32 %v2359, %v2461
    %v2483 = vadd.f32 %v2360, %v2465
    %v2484 = vadd.f32 %v2361, %v2467
    %v2485 = vadd.f32 %v2362, %v2471
    %v2486 = vadd.f32 %v2363, %v2473
    %v2487 = vadd.f32 %v2364, %v2477
    %v2488 = vadd.f32 %v2365, %v2479
    %2489 = vrot.lane.b32.xlu0 %v43, 28
    %v2490 = vpop.permute.xlu0 %2489
    %2491 = vrot.lane.b32.xlu0 %v45, 28
    %v2492 = vpop.permute.xlu0 %2491
    %2493 = vrot.lane.b32.xlu0 %v47, 28
    %v2494 = vpop.permute.xlu0 %2493
    %2495 = vrot.lane.b32.xlu0 %v49, 28
    %v2496 = vpop.permute.xlu0 %2495
    %2497 = vrot.lane.b32.xlu0 %v41, 108
    %v2498 = vpop.permute.xlu0 %2497
    %2499 = vrot.lane.b32.xlu0 %v42, 108
    %v2500 = vpop.permute.xlu0 %2499
    %vm2501 = vcmask 883712
    %v2502 = vsel %vm2501, %v2498, %v2500
    %v2503 = vsel %vm71, %v2490, 0
    %v2505 = vsel %vm71, %v2492, 0
    %v2507 = vsel %vm71, %v2494, 0
    %v2509 = vsel %vm71, %v2496, 0
    %v2511 = vsel %vm80, %v2502, 0
    %v2513 = vsel %vm80, %v2500, 0
    %2515 = vmatprep.subr.mxu0 0.0
    %2516 = vmatpush1.msra.mxu0 0.0
    %2517 = vmatprep.subr.mxu0 0.0
    %2518 = vmatpush1.msra.mxu0 0.0
    %2519 = vmatprep.subr.mxu0 0.0
    %2520 = vmatpush1.msra.mxu0 0.0
    %2521 = vmatprep.subr.mxu0 0.0
    %2522 = vmatpush1.msra.mxu0 0.0
    %2523 = vmatprep.subr.mxu0 0.0
    %2524 = vmatpush1.msra.mxu0 0.0
    %2525 = vmatprep.subr.mxu0 0.0
    %2526 = vmatpush1.msra.mxu0 0.0
    %2527 = vmatprep.subr.mxu0 0.0
    %2528 = vmatpush1.msra.mxu0 0.0
    %2529 = vmatprep.subr.mxu0 0.0
    %2530 = vmatpush1.msra.mxu0 0.0
    %2531 = vmatprep.subr.mxu0 0.0
    %2532 = vmatpush1.msra.mxu0 0.0
    %2533 = vmatprep.subr.mxu0 0.0
    %2534 = vmatpush1.msra.mxu0 0.0
    %2535 = vmatprep.subr.mxu0 0.0
    %2536 = vmatpush1.msra.mxu0 0.0
    %2537 = vmatprep.subr.mxu0 0.0
    %2538 = vmatpush1.msra.mxu0 0.0
    %2539 = vmatprep.subr.mxu0 0.0
    %2540 = vmatpush1.msra.mxu0 0.0
    %2541 = vmatprep.subr.mxu0 0.0
    %2542 = vmatpush1.msra.mxu0 0.0
    %2543 = vmatprep.subr.mxu0 0.0
    %2544 = vmatpush1.msra.mxu0 0.0
    %2545 = vmatprep.subr.mxu0 %v2513
    %2546 = vmatpush1.msra.mxu0 %v2511
    %2547 = vmatprep.subr.mxu0 0.0
    %2548 = vmatpush2.msra.mxu0 0.0
    %2549 = vmatprep.subr.mxu0 0.0
    %2550 = vmatpush2.msra.mxu0 0.0
    %2551 = vmatprep.subr.mxu0 0.0
    %2552 = vmatpush2.msra.mxu0 0.0
    %2553 = vmatprep.subr.mxu0 0.0
    %2554 = vmatpush2.msra.mxu0 0.0
    %2555 = vmatprep.subr.mxu0 0.0
    %2556 = vmatpush2.msra.mxu0 0.0
    %2557 = vmatprep.subr.mxu0 0.0
    %2558 = vmatpush2.msra.mxu0 0.0
    %2559 = vmatprep.subr.mxu0 0.0
    %2560 = vmatpush2.msra.mxu0 0.0
    %2561 = vmatprep.subr.mxu0 0.0
    %2562 = vmatpush2.msra.mxu0 0.0
    %2563 = vmatprep.subr.mxu0 0.0
    %2564 = vmatpush2.msra.mxu0 0.0
    %2565 = vmatprep.subr.mxu0 0.0
    %2566 = vmatpush2.msra.mxu0 0.0
    %2567 = vmatprep.subr.mxu0 0.0
    %2568 = vmatpush2.msra.mxu0 0.0
    %2569 = vmatprep.subr.mxu0 0.0
    %2570 = vmatpush2.msra.mxu0 0.0
    %2571 = vmatprep.subr.mxu0 0.0
    %2572 = vmatpush2.msra.mxu0 0.0
    %2573 = vmatprep.subr.mxu0 0.0
    %2574 = vmatpush2.msra.mxu0 0.0
    %2575 = vmatprep.subr.mxu0 0.0
    %2576 = vmatpush2.msra.mxu0 0.0
    %2577 = vmatprep.subr.mxu0 0.0
    %2578 = vmatpush2.msra.mxu0 0.0
    %2579 = vmatprep.mubr.f32.mxu0 0.0
    %2580 = vmatmul.mubr.f32.gmra.mxu0 %v2503
    %v2581 = vpop.f32.mrf.mxu0
    %v2582 = vadd.f32 0.0, %v2581
    %v2583 = vpop.f32.mrf.mxu0
    %v2584 = vadd.f32 0.0, %v2583
    %2585 = vmatprep.mubr.f32.mxu0 0.0
    %2586 = vmatmul.mubr.f32.gmra.mxu0 %v2505
    %v2587 = vpop.f32.mrf.mxu0
    %v2588 = vadd.f32 0.0, %v2587
    %v2589 = vpop.f32.mrf.mxu0
    %v2590 = vadd.f32 0.0, %v2589
    %2591 = vmatprep.mubr.f32.mxu0 0.0
    %2592 = vmatmul.mubr.f32.gmra.mxu0 %v2507
    %v2593 = vpop.f32.mrf.mxu0
    %v2594 = vadd.f32 0.0, %v2593
    %v2595 = vpop.f32.mrf.mxu0
    %v2596 = vadd.f32 0.0, %v2595
    %2597 = vmatprep.mubr.f32.mxu0 0.0
    %2598 = vmatmul.mubr.f32.gmra.mxu0 %v2509
    %v2599 = vpop.f32.mrf.mxu0
    %v2600 = vadd.f32 0.0, %v2599
    %v2601 = vpop.f32.mrf.mxu0
    %v2602 = vadd.f32 0.0, %v2601
    %2603 = vdwg.mxu0
    %v2604 = vadd.f32 %v2481, %v2582
    %v2605 = vadd.f32 %v2482, %v2584
    %v2606 = vadd.f32 %v2483, %v2588
    %v2607 = vadd.f32 %v2484, %v2590
    %v2608 = vadd.f32 %v2485, %v2594
    %v2609 = vadd.f32 %v2486, %v2596
    %v2610 = vadd.f32 %v2487, %v2600
    %v2611 = vadd.f32 %v2488, %v2602
    %2612 = vrot.lane.b32.xlu0 %v43, 23
    %v2613 = vpop.permute.xlu0 %2612
    %2614 = vrot.lane.b32.xlu0 %v45, 23
    %v2615 = vpop.permute.xlu0 %2614
    %2616 = vrot.lane.b32.xlu0 %v47, 23
    %v2617 = vpop.permute.xlu0 %2616
    %2618 = vrot.lane.b32.xlu0 %v49, 23
    %v2619 = vpop.permute.xlu0 %2618
    %2620 = vrot.lane.b32.xlu0 %v41, 107
    %v2621 = vpop.permute.xlu0 %2620
    %2622 = vrot.lane.b32.xlu0 %v42, 107
    %v2623 = vpop.permute.xlu0 %2622
    %vm2624 = vcmask 875520
    %v2625 = vsel %vm2624, %v2621, %v2623
    %v2626 = vsel %vm71, %v2613, 0
    %v2628 = vsel %vm71, %v2615, 0
    %v2630 = vsel %vm71, %v2617, 0
    %v2632 = vsel %vm71, %v2619, 0
    %v2634 = vsel %vm80, %v2625, 0
    %v2636 = vsel %vm80, %v2623, 0
    %2638 = vmatprep.subr.mxu0 0.0
    %2639 = vmatpush1.msra.mxu0 0.0
    %2640 = vmatprep.subr.mxu0 0.0
    %2641 = vmatpush1.msra.mxu0 0.0
    %2642 = vmatprep.subr.mxu0 0.0
    %2643 = vmatpush1.msra.mxu0 0.0
    %2644 = vmatprep.subr.mxu0 0.0
    %2645 = vmatpush1.msra.mxu0 0.0
    %2646 = vmatprep.subr.mxu0 0.0
    %2647 = vmatpush1.msra.mxu0 0.0
    %2648 = vmatprep.subr.mxu0 0.0
    %2649 = vmatpush1.msra.mxu0 0.0
    %2650 = vmatprep.subr.mxu0 0.0
    %2651 = vmatpush1.msra.mxu0 0.0
    %2652 = vmatprep.subr.mxu0 0.0
    %2653 = vmatpush1.msra.mxu0 0.0
    %2654 = vmatprep.subr.mxu0 0.0
    %2655 = vmatpush1.msra.mxu0 0.0
    %2656 = vmatprep.subr.mxu0 0.0
    %2657 = vmatpush1.msra.mxu0 0.0
    %2658 = vmatprep.subr.mxu0 0.0
    %2659 = vmatpush1.msra.mxu0 0.0
    %2660 = vmatprep.subr.mxu0 0.0
    %2661 = vmatpush1.msra.mxu0 0.0
    %2662 = vmatprep.subr.mxu0 0.0
    %2663 = vmatpush1.msra.mxu0 0.0
    %2664 = vmatprep.subr.mxu0 0.0
    %2665 = vmatpush1.msra.mxu0 0.0
    %2666 = vmatprep.subr.mxu0 0.0
    %2667 = vmatpush1.msra.mxu0 0.0
    %2668 = vmatprep.subr.mxu0 %v2636
    %2669 = vmatpush1.msra.mxu0 %v2634
    %2670 = vmatprep.subr.mxu0 0.0
    %2671 = vmatpush2.msra.mxu0 0.0
    %2672 = vmatprep.subr.mxu0 0.0
    %2673 = vmatpush2.msra.mxu0 0.0
    %2674 = vmatprep.subr.mxu0 0.0
    %2675 = vmatpush2.msra.mxu0 0.0
    %2676 = vmatprep.subr.mxu0 0.0
    %2677 = vmatpush2.msra.mxu0 0.0
    %2678 = vmatprep.subr.mxu0 0.0
    %2679 = vmatpush2.msra.mxu0 0.0
    %2680 = vmatprep.subr.mxu0 0.0
    %2681 = vmatpush2.msra.mxu0 0.0
    %2682 = vmatprep.subr.mxu0 0.0
    %2683 = vmatpush2.msra.mxu0 0.0
    %2684 = vmatprep.subr.mxu0 0.0
    %2685 = vmatpush2.msra.mxu0 0.0
    %2686 = vmatprep.subr.mxu0 0.0
    %2687 = vmatpush2.msra.mxu0 0.0
    %2688 = vmatprep.subr.mxu0 0.0
    %2689 = vmatpush2.msra.mxu0 0.0
    %2690 = vmatprep.subr.mxu0 0.0
    %2691 = vmatpush2.msra.mxu0 0.0
    %2692 = vmatprep.subr.mxu0 0.0
    %2693 = vmatpush2.msra.mxu0 0.0
    %2694 = vmatprep.subr.mxu0 0.0
    %2695 = vmatpush2.msra.mxu0 0.0
    %2696 = vmatprep.subr.mxu0 0.0
    %2697 = vmatpush2.msra.mxu0 0.0
    %2698 = vmatprep.subr.mxu0 0.0
    %2699 = vmatpush2.msra.mxu0 0.0
    %2700 = vmatprep.subr.mxu0 0.0
    %2701 = vmatpush2.msra.mxu0 0.0
    %2702 = vmatprep.mubr.f32.mxu0 0.0
    %2703 = vmatmul.mubr.f32.gmra.mxu0 %v2626
    %v2704 = vpop.f32.mrf.mxu0
    %v2705 = vadd.f32 0.0, %v2704
    %v2706 = vpop.f32.mrf.mxu0
    %v2707 = vadd.f32 0.0, %v2706
    %2708 = vmatprep.mubr.f32.mxu0 0.0
    %2709 = vmatmul.mubr.f32.gmra.mxu0 %v2628
    %v2710 = vpop.f32.mrf.mxu0
    %v2711 = vadd.f32 0.0, %v2710
    %v2712 = vpop.f32.mrf.mxu0
    %v2713 = vadd.f32 0.0, %v2712
    %2714 = vmatprep.mubr.f32.mxu0 0.0
    %2715 = vmatmul.mubr.f32.gmra.mxu0 %v2630
    %v2716 = vpop.f32.mrf.mxu0
    %v2717 = vadd.f32 0.0, %v2716
    %v2718 = vpop.f32.mrf.mxu0
    %v2719 = vadd.f32 0.0, %v2718
    %2720 = vmatprep.mubr.f32.mxu0 0.0
    %2721 = vmatmul.mubr.f32.gmra.mxu0 %v2632
    %v2722 = vpop.f32.mrf.mxu0
    %v2723 = vadd.f32 0.0, %v2722
    %v2724 = vpop.f32.mrf.mxu0
    %v2725 = vadd.f32 0.0, %v2724
    %2726 = vdwg.mxu0
    %v2727 = vadd.f32 %v2604, %v2705
    %v2728 = vadd.f32 %v2605, %v2707
    %v2729 = vadd.f32 %v2606, %v2711
    %v2730 = vadd.f32 %v2607, %v2713
    %v2731 = vadd.f32 %v2608, %v2717
    %v2732 = vadd.f32 %v2609, %v2719
    %v2733 = vadd.f32 %v2610, %v2723
    %v2734 = vadd.f32 %v2611, %v2725
    %2735 = vrot.lane.b32.xlu0 %v43, 18
    %v2736 = vpop.permute.xlu0 %2735
    %2737 = vrot.lane.b32.xlu0 %v45, 18
    %v2738 = vpop.permute.xlu0 %2737
    %2739 = vrot.lane.b32.xlu0 %v47, 18
    %v2740 = vpop.permute.xlu0 %2739
    %2741 = vrot.lane.b32.xlu0 %v49, 18
    %v2742 = vpop.permute.xlu0 %2741
    %2743 = vrot.lane.b32.xlu0 %v41, 106
    %v2744 = vpop.permute.xlu0 %2743
    %2745 = vrot.lane.b32.xlu0 %v42, 106
    %v2746 = vpop.permute.xlu0 %2745
    %vm2747 = vcmask 867328
    %v2748 = vsel %vm2747, %v2744, %v2746
    %v2749 = vsel %vm71, %v2736, 0
    %v2751 = vsel %vm71, %v2738, 0
    %v2753 = vsel %vm71, %v2740, 0
    %v2755 = vsel %vm71, %v2742, 0
    %v2757 = vsel %vm80, %v2748, 0
    %v2759 = vsel %vm80, %v2746, 0
    %2761 = vmatprep.subr.mxu0 0.0
    %2762 = vmatpush1.msra.mxu0 0.0
    %2763 = vmatprep.subr.mxu0 0.0
    %2764 = vmatpush1.msra.mxu0 0.0
    %2765 = vmatprep.subr.mxu0 0.0
    %2766 = vmatpush1.msra.mxu0 0.0
    %2767 = vmatprep.subr.mxu0 0.0
    %2768 = vmatpush1.msra.mxu0 0.0
    %2769 = vmatprep.subr.mxu0 0.0
    %2770 = vmatpush1.msra.mxu0 0.0
    %2771 = vmatprep.subr.mxu0 0.0
    %2772 = vmatpush1.msra.mxu0 0.0
    %2773 = vmatprep.subr.mxu0 0.0
    %2774 = vmatpush1.msra.mxu0 0.0
    %2775 = vmatprep.subr.mxu0 0.0
    %2776 = vmatpush1.msra.mxu0 0.0
    %2777 = vmatprep.subr.mxu0 0.0
    %2778 = vmatpush1.msra.mxu0 0.0
    %2779 = vmatprep.subr.mxu0 0.0
    %2780 = vmatpush1.msra.mxu0 0.0
    %2781 = vmatprep.subr.mxu0 0.0
    %2782 = vmatpush1.msra.mxu0 0.0
    %2783 = vmatprep.subr.mxu0 0.0
    %2784 = vmatpush1.msra.mxu0 0.0
    %2785 = vmatprep.subr.mxu0 0.0
    %2786 = vmatpush1.msra.mxu0 0.0
    %2787 = vmatprep.subr.mxu0 0.0
    %2788 = vmatpush1.msra.mxu0 0.0
    %2789 = vmatprep.subr.mxu0 0.0
    %2790 = vmatpush1.msra.mxu0 0.0
    %2791 = vmatprep.subr.mxu0 %v2759
    %2792 = vmatpush1.msra.mxu0 %v2757
    %2793 = vmatprep.subr.mxu0 0.0
    %2794 = vmatpush2.msra.mxu0 0.0
    %2795 = vmatprep.subr.mxu0 0.0
    %2796 = vmatpush2.msra.mxu0 0.0
    %2797 = vmatprep.subr.mxu0 0.0
    %2798 = vmatpush2.msra.mxu0 0.0
    %2799 = vmatprep.subr.mxu0 0.0
    %2800 = vmatpush2.msra.mxu0 0.0
    %2801 = vmatprep.subr.mxu0 0.0
    %2802 = vmatpush2.msra.mxu0 0.0
    %2803 = vmatprep.subr.mxu0 0.0
    %2804 = vmatpush2.msra.mxu0 0.0
    %2805 = vmatprep.subr.mxu0 0.0
    %2806 = vmatpush2.msra.mxu0 0.0
    %2807 = vmatprep.subr.mxu0 0.0
    %2808 = vmatpush2.msra.mxu0 0.0
    %2809 = vmatprep.subr.mxu0 0.0
    %2810 = vmatpush2.msra.mxu0 0.0
    %2811 = vmatprep.subr.mxu0 0.0
    %2812 = vmatpush2.msra.mxu0 0.0
    %2813 = vmatprep.subr.mxu0 0.0
    %2814 = vmatpush2.msra.mxu0 0.0
    %2815 = vmatprep.subr.mxu0 0.0
    %2816 = vmatpush2.msra.mxu0 0.0
    %2817 = vmatprep.subr.mxu0 0.0
    %2818 = vmatpush2.msra.mxu0 0.0
    %2819 = vmatprep.subr.mxu0 0.0
    %2820 = vmatpush2.msra.mxu0 0.0
    %2821 = vmatprep.subr.mxu0 0.0
    %2822 = vmatpush2.msra.mxu0 0.0
    %2823 = vmatprep.subr.mxu0 0.0
    %2824 = vmatpush2.msra.mxu0 0.0
    %2825 = vmatprep.mubr.f32.mxu0 0.0
    %2826 = vmatmul.mubr.f32.gmra.mxu0 %v2749
    %v2827 = vpop.f32.mrf.mxu0
    %v2828 = vadd.f32 0.0, %v2827
    %v2829 = vpop.f32.mrf.mxu0
    %v2830 = vadd.f32 0.0, %v2829
    %2831 = vmatprep.mubr.f32.mxu0 0.0
    %2832 = vmatmul.mubr.f32.gmra.mxu0 %v2751
    %v2833 = vpop.f32.mrf.mxu0
    %v2834 = vadd.f32 0.0, %v2833
    %v2835 = vpop.f32.mrf.mxu0
    %v2836 = vadd.f32 0.0, %v2835
    %2837 = vmatprep.mubr.f32.mxu0 0.0
    %2838 = vmatmul.mubr.f32.gmra.mxu0 %v2753
    %v2839 = vpop.f32.mrf.mxu0
    %v2840 = vadd.f32 0.0, %v2839
    %v2841 = vpop.f32.mrf.mxu0
    %v2842 = vadd.f32 0.0, %v2841
    %2843 = vmatprep.mubr.f32.mxu0 0.0
    %2844 = vmatmul.mubr.f32.gmra.mxu0 %v2755
    %v2845 = vpop.f32.mrf.mxu0
    %v2846 = vadd.f32 0.0, %v2845
    %v2847 = vpop.f32.mrf.mxu0
    %v2848 = vadd.f32 0.0, %v2847
    %2849 = vdwg.mxu0
    %v2850 = vadd.f32 %v2727, %v2828
    %v2851 = vadd.f32 %v2728, %v2830
    %v2852 = vadd.f32 %v2729, %v2834
    %v2853 = vadd.f32 %v2730, %v2836
    %v2854 = vadd.f32 %v2731, %v2840
    %v2855 = vadd.f32 %v2732, %v2842
    %v2856 = vadd.f32 %v2733, %v2846
    %v2857 = vadd.f32 %v2734, %v2848
    %2858 = vrot.lane.b32.xlu0 %v43, 13
    %v2859 = vpop.permute.xlu0 %2858
    %2860 = vrot.lane.b32.xlu0 %v45, 13
    %v2861 = vpop.permute.xlu0 %2860
    %2862 = vrot.lane.b32.xlu0 %v47, 13
    %v2863 = vpop.permute.xlu0 %2862
    %2864 = vrot.lane.b32.xlu0 %v49, 13
    %v2865 = vpop.permute.xlu0 %2864
    %2866 = vrot.lane.b32.xlu0 %v41, 105
    %v2867 = vpop.permute.xlu0 %2866
    %2868 = vrot.lane.b32.xlu0 %v42, 105
    %v2869 = vpop.permute.xlu0 %2868
    %vm2870 = vcmask 859136
    %v2871 = vsel %vm2870, %v2867, %v2869
    %v2872 = vsel %vm71, %v2859, 0
    %v2874 = vsel %vm71, %v2861, 0
    %v2876 = vsel %vm71, %v2863, 0
    %v2878 = vsel %vm71, %v2865, 0
    %v2880 = vsel %vm80, %v2871, 0
    %v2882 = vsel %vm80, %v2869, 0
    %2884 = vmatprep.subr.mxu0 0.0
    %2885 = vmatpush1.msra.mxu0 0.0
    %2886 = vmatprep.subr.mxu0 0.0
    %2887 = vmatpush1.msra.mxu0 0.0
    %2888 = vmatprep.subr.mxu0 0.0
    %2889 = vmatpush1.msra.mxu0 0.0
    %2890 = vmatprep.subr.mxu0 0.0
    %2891 = vmatpush1.msra.mxu0 0.0
    %2892 = vmatprep.subr.mxu0 0.0
    %2893 = vmatpush1.msra.mxu0 0.0
    %2894 = vmatprep.subr.mxu0 0.0
    %2895 = vmatpush1.msra.mxu0 0.0
    %2896 = vmatprep.subr.mxu0 0.0
    %2897 = vmatpush1.msra.mxu0 0.0
    %2898 = vmatprep.subr.mxu0 0.0
    %2899 = vmatpush1.msra.mxu0 0.0
    %2900 = vmatprep.subr.mxu0 0.0
    %2901 = vmatpush1.msra.mxu0 0.0
    %2902 = vmatprep.subr.mxu0 0.0
    %2903 = vmatpush1.msra.mxu0 0.0
    %2904 = vmatprep.subr.mxu0 0.0
    %2905 = vmatpush1.msra.mxu0 0.0
    %2906 = vmatprep.subr.mxu0 0.0
    %2907 = vmatpush1.msra.mxu0 0.0
    %2908 = vmatprep.subr.mxu0 0.0
    %2909 = vmatpush1.msra.mxu0 0.0
    %2910 = vmatprep.subr.mxu0 0.0
    %2911 = vmatpush1.msra.mxu0 0.0
    %2912 = vmatprep.subr.mxu0 0.0
    %2913 = vmatpush1.msra.mxu0 0.0
    %2914 = vmatprep.subr.mxu0 %v2882
    %2915 = vmatpush1.msra.mxu0 %v2880
    %2916 = vmatprep.subr.mxu0 0.0
    %2917 = vmatpush2.msra.mxu0 0.0
    %2918 = vmatprep.subr.mxu0 0.0
    %2919 = vmatpush2.msra.mxu0 0.0
    %2920 = vmatprep.subr.mxu0 0.0
    %2921 = vmatpush2.msra.mxu0 0.0
    %2922 = vmatprep.subr.mxu0 0.0
    %2923 = vmatpush2.msra.mxu0 0.0
    %2924 = vmatprep.subr.mxu0 0.0
    %2925 = vmatpush2.msra.mxu0 0.0
    %2926 = vmatprep.subr.mxu0 0.0
    %2927 = vmatpush2.msra.mxu0 0.0
    %2928 = vmatprep.subr.mxu0 0.0
    %2929 = vmatpush2.msra.mxu0 0.0
    %2930 = vmatprep.subr.mxu0 0.0
    %2931 = vmatpush2.msra.mxu0 0.0
    %2932 = vmatprep.subr.mxu0 0.0
    %2933 = vmatpush2.msra.mxu0 0.0
    %2934 = vmatprep.subr.mxu0 0.0
    %2935 = vmatpush2.msra.mxu0 0.0
    %2936 = vmatprep.subr.mxu0 0.0
    %2937 = vmatpush2.msra.mxu0 0.0
    %2938 = vmatprep.subr.mxu0 0.0
    %2939 = vmatpush2.msra.mxu0 0.0
    %2940 = vmatprep.subr.mxu0 0.0
    %2941 = vmatpush2.msra.mxu0 0.0
    %2942 = vmatprep.subr.mxu0 0.0
    %2943 = vmatpush2.msra.mxu0 0.0
    %2944 = vmatprep.subr.mxu0 0.0
    %2945 = vmatpush2.msra.mxu0 0.0
    %2946 = vmatprep.subr.mxu0 0.0
    %2947 = vmatpush2.msra.mxu0 0.0
    %2948 = vmatprep.mubr.f32.mxu0 0.0
    %2949 = vmatmul.mubr.f32.gmra.mxu0 %v2872
    %v2950 = vpop.f32.mrf.mxu0
    %v2951 = vadd.f32 0.0, %v2950
    %v2952 = vpop.f32.mrf.mxu0
    %v2953 = vadd.f32 0.0, %v2952
    %2954 = vmatprep.mubr.f32.mxu0 0.0
    %2955 = vmatmul.mubr.f32.gmra.mxu0 %v2874
    %v2956 = vpop.f32.mrf.mxu0
    %v2957 = vadd.f32 0.0, %v2956
    %v2958 = vpop.f32.mrf.mxu0
    %v2959 = vadd.f32 0.0, %v2958
    %2960 = vmatprep.mubr.f32.mxu0 0.0
    %2961 = vmatmul.mubr.f32.gmra.mxu0 %v2876
    %v2962 = vpop.f32.mrf.mxu0
    %v2963 = vadd.f32 0.0, %v2962
    %v2964 = vpop.f32.mrf.mxu0
    %v2965 = vadd.f32 0.0, %v2964
    %2966 = vmatprep.mubr.f32.mxu0 0.0
    %2967 = vmatmul.mubr.f32.gmra.mxu0 %v2878
    %v2968 = vpop.f32.mrf.mxu0
    %v2969 = vadd.f32 0.0, %v2968
    %v2970 = vpop.f32.mrf.mxu0
    %v2971 = vadd.f32 0.0, %v2970
    %2972 = vdwg.mxu0
    %v2973 = vadd.f32 %v2850, %v2951
    %v2974 = vadd.f32 %v2851, %v2953
    %v2975 = vadd.f32 %v2852, %v2957
    %v2976 = vadd.f32 %v2853, %v2959
    %v2977 = vadd.f32 %v2854, %v2963
    %v2978 = vadd.f32 %v2855, %v2965
    %v2979 = vadd.f32 %v2856, %v2969
    %v2980 = vadd.f32 %v2857, %v2971
    %2981 = vrot.lane.b32.xlu0 %v43, 8
    %v2982 = vpop.permute.xlu0 %2981
    %2983 = vrot.lane.b32.xlu0 %v45, 8
    %v2984 = vpop.permute.xlu0 %2983
    %2985 = vrot.lane.b32.xlu0 %v47, 8
    %v2986 = vpop.permute.xlu0 %2985
    %2987 = vrot.lane.b32.xlu0 %v49, 8
    %v2988 = vpop.permute.xlu0 %2987
    %2989 = vrot.lane.b32.xlu0 %v41, 104
    %v2990 = vpop.permute.xlu0 %2989
    %2991 = vrot.lane.b32.xlu0 %v42, 104
    %v2992 = vpop.permute.xlu0 %2991
    %vm2993 = vcmask 850944
    %v2994 = vsel %vm2993, %v2990, %v2992
    %v2995 = vsel %vm71, %v2982, 0
    %v2997 = vsel %vm71, %v2984, 0
    %v2999 = vsel %vm71, %v2986, 0
    %v3001 = vsel %vm71, %v2988, 0
    %v3003 = vsel %vm80, %v2994, 0
    %v3005 = vsel %vm80, %v2992, 0
    %3007 = vmatprep.subr.mxu0 0.0
    %3008 = vmatpush1.msra.mxu0 0.0
    %3009 = vmatprep.subr.mxu0 0.0
    %3010 = vmatpush1.msra.mxu0 0.0
    %3011 = vmatprep.subr.mxu0 0.0
    %3012 = vmatpush1.msra.mxu0 0.0
    %3013 = vmatprep.subr.mxu0 0.0
    %3014 = vmatpush1.msra.mxu0 0.0
    %3015 = vmatprep.subr.mxu0 0.0
    %3016 = vmatpush1.msra.mxu0 0.0
    %3017 = vmatprep.subr.mxu0 0.0
    %3018 = vmatpush1.msra.mxu0 0.0
    %3019 = vmatprep.subr.mxu0 0.0
    %3020 = vmatpush1.msra.mxu0 0.0
    %3021 = vmatprep.subr.mxu0 0.0
    %3022 = vmatpush1.msra.mxu0 0.0
    %3023 = vmatprep.subr.mxu0 0.0
    %3024 = vmatpush1.msra.mxu0 0.0
    %3025 = vmatprep.subr.mxu0 0.0
    %3026 = vmatpush1.msra.mxu0 0.0
    %3027 = vmatprep.subr.mxu0 0.0
    %3028 = vmatpush1.msra.mxu0 0.0
    %3029 = vmatprep.subr.mxu0 0.0
    %3030 = vmatpush1.msra.mxu0 0.0
    %3031 = vmatprep.subr.mxu0 0.0
    %3032 = vmatpush1.msra.mxu0 0.0
    %3033 = vmatprep.subr.mxu0 0.0
    %3034 = vmatpush1.msra.mxu0 0.0
    %3035 = vmatprep.subr.mxu0 0.0
    %3036 = vmatpush1.msra.mxu0 0.0
    %3037 = vmatprep.subr.mxu0 %v3005
    %3038 = vmatpush1.msra.mxu0 %v3003
    %3039 = vmatprep.subr.mxu0 0.0
    %3040 = vmatpush2.msra.mxu0 0.0
    %3041 = vmatprep.subr.mxu0 0.0
    %3042 = vmatpush2.msra.mxu0 0.0
    %3043 = vmatprep.subr.mxu0 0.0
    %3044 = vmatpush2.msra.mxu0 0.0
    %3045 = vmatprep.subr.mxu0 0.0
    %3046 = vmatpush2.msra.mxu0 0.0
    %3047 = vmatprep.subr.mxu0 0.0
    %3048 = vmatpush2.msra.mxu0 0.0
    %3049 = vmatprep.subr.mxu0 0.0
    %3050 = vmatpush2.msra.mxu0 0.0
    %3051 = vmatprep.subr.mxu0 0.0
    %3052 = vmatpush2.msra.mxu0 0.0
    %3053 = vmatprep.subr.mxu0 0.0
    %3054 = vmatpush2.msra.mxu0 0.0
    %3055 = vmatprep.subr.mxu0 0.0
    %3056 = vmatpush2.msra.mxu0 0.0
    %3057 = vmatprep.subr.mxu0 0.0
    %3058 = vmatpush2.msra.mxu0 0.0
    %3059 = vmatprep.subr.mxu0 0.0
    %3060 = vmatpush2.msra.mxu0 0.0
    %3061 = vmatprep.subr.mxu0 0.0
    %3062 = vmatpush2.msra.mxu0 0.0
    %3063 = vmatprep.subr.mxu0 0.0
    %3064 = vmatpush2.msra.mxu0 0.0
    %3065 = vmatprep.subr.mxu0 0.0
    %3066 = vmatpush2.msra.mxu0 0.0
    %3067 = vmatprep.subr.mxu0 0.0
    %3068 = vmatpush2.msra.mxu0 0.0
    %3069 = vmatprep.subr.mxu0 0.0
    %3070 = vmatpush2.msra.mxu0 0.0
    %3071 = vmatprep.mubr.f32.mxu0 0.0
    %3072 = vmatmul.mubr.f32.gmra.mxu0 %v2995
    %v3073 = vpop.f32.mrf.mxu0
    %v3074 = vadd.f32 0.0, %v3073
    %v3075 = vpop.f32.mrf.mxu0
    %v3076 = vadd.f32 0.0, %v3075
    %3077 = vmatprep.mubr.f32.mxu0 0.0
    %3078 = vmatmul.mubr.f32.gmra.mxu0 %v2997
    %v3079 = vpop.f32.mrf.mxu0
    %v3080 = vadd.f32 0.0, %v3079
    %v3081 = vpop.f32.mrf.mxu0
    %v3082 = vadd.f32 0.0, %v3081
    %3083 = vmatprep.mubr.f32.mxu0 0.0
    %3084 = vmatmul.mubr.f32.gmra.mxu0 %v2999
    %v3085 = vpop.f32.mrf.mxu0
    %v3086 = vadd.f32 0.0, %v3085
    %v3087 = vpop.f32.mrf.mxu0
    %v3088 = vadd.f32 0.0, %v3087
    %3089 = vmatprep.mubr.f32.mxu0 0.0
    %3090 = vmatmul.mubr.f32.gmra.mxu0 %v3001
    %v3091 = vpop.f32.mrf.mxu0
    %v3092 = vadd.f32 0.0, %v3091
    %v3093 = vpop.f32.mrf.mxu0
    %v3094 = vadd.f32 0.0, %v3093
    %3095 = vdwg.mxu0
    %v3096 = vadd.f32 %v2973, %v3074
    %v3097 = vadd.f32 %v2974, %v3076
    %v3098 = vadd.f32 %v2975, %v3080
    %v3099 = vadd.f32 %v2976, %v3082
    %v3100 = vadd.f32 %v2977, %v3086
    %v3101 = vadd.f32 %v2978, %v3088
    %v3102 = vadd.f32 %v2979, %v3092
    %v3103 = vadd.f32 %v2980, %v3094
    %3108 = vrot.lane.b32.xlu0 %v43, 3
    %v3109 = vpop.permute.xlu0 %3108
    %3110 = vrot.lane.b32.xlu0 %v44, 3
    %v3111 = vpop.permute.xlu0 %3110
    %3112 = vrot.lane.b32.xlu0 %v45, 3
    %v3113 = vpop.permute.xlu0 %3112
    %3114 = vrot.lane.b32.xlu0 %v46, 3
    %v3115 = vpop.permute.xlu0 %3114
    %3116 = vrot.lane.b32.xlu0 %v47, 3
    %v3117 = vpop.permute.xlu0 %3116
    %3118 = vrot.lane.b32.xlu0 %v48, 3
    %v3119 = vpop.permute.xlu0 %3118
    %3120 = vrot.lane.b32.xlu0 %v49, 3
    %v3121 = vpop.permute.xlu0 %3120
    %3122 = vrot.lane.b32.xlu0 %v50, 3
    %v3123 = vpop.permute.xlu0 %3122
    %vm3124 = vcmask 23552
    %v3125 = vsel %vm3124, %v3109, %v3111
    %v3126 = vsel %vm3124, %v3113, %v3115
    %v3127 = vsel %vm3124, %v3117, %v3119
    %v3128 = vsel %vm3124, %v3121, %v3123
    %3129 = vrot.lane.b32.xlu0 %v41, 103
    %v3130 = vpop.permute.xlu0 %3129
    %3131 = vrot.lane.b32.xlu0 %v42, 103
    %v3132 = vpop.permute.xlu0 %3131
    %vm3133 = vcmask 842752
    %v3134 = vsel %vm3133, %v3130, %v3132
    %v3135 = vsel %vm71, %v3125, 0
    %v3137 = vsel %vm71, %v3126, 0
    %v3139 = vsel %vm71, %v3127, 0
    %v3141 = vsel %vm71, %v3128, 0
    %v3143 = vsel %vm80, %v3134, 0
    %v3145 = vsel %vm80, %v3132, 0
    %3147 = vmatprep.subr.mxu0 0.0
    %3148 = vmatpush1.msra.mxu0 0.0
    %3149 = vmatprep.subr.mxu0 0.0
    %3150 = vmatpush1.msra.mxu0 0.0
    %3151 = vmatprep.subr.mxu0 0.0
    %3152 = vmatpush1.msra.mxu0 0.0
    %3153 = vmatprep.subr.mxu0 0.0
    %3154 = vmatpush1.msra.mxu0 0.0
    %3155 = vmatprep.subr.mxu0 0.0
    %3156 = vmatpush1.msra.mxu0 0.0
    %3157 = vmatprep.subr.mxu0 0.0
    %3158 = vmatpush1.msra.mxu0 0.0
    %3159 = vmatprep.subr.mxu0 0.0
    %3160 = vmatpush1.msra.mxu0 0.0
    %3161 = vmatprep.subr.mxu0 0.0
    %3162 = vmatpush1.msra.mxu0 0.0
    %3163 = vmatprep.subr.mxu0 0.0
    %3164 = vmatpush1.msra.mxu0 0.0
    %3165 = vmatprep.subr.mxu0 0.0
    %3166 = vmatpush1.msra.mxu0 0.0
    %3167 = vmatprep.subr.mxu0 0.0
    %3168 = vmatpush1.msra.mxu0 0.0
    %3169 = vmatprep.subr.mxu0 0.0
    %3170 = vmatpush1.msra.mxu0 0.0
    %3171 = vmatprep.subr.mxu0 0.0
    %3172 = vmatpush1.msra.mxu0 0.0
    %3173 = vmatprep.subr.mxu0 0.0
    %3174 = vmatpush1.msra.mxu0 0.0
    %3175 = vmatprep.subr.mxu0 0.0
    %3176 = vmatpush1.msra.mxu0 0.0
    %3177 = vmatprep.subr.mxu0 %v3145
    %3178 = vmatpush1.msra.mxu0 %v3143
    %3179 = vmatprep.subr.mxu0 0.0
    %3180 = vmatpush2.msra.mxu0 0.0
    %3181 = vmatprep.subr.mxu0 0.0
    %3182 = vmatpush2.msra.mxu0 0.0
    %3183 = vmatprep.subr.mxu0 0.0
    %3184 = vmatpush2.msra.mxu0 0.0
    %3185 = vmatprep.subr.mxu0 0.0
    %3186 = vmatpush2.msra.mxu0 0.0
    %3187 = vmatprep.subr.mxu0 0.0
    %3188 = vmatpush2.msra.mxu0 0.0
    %3189 = vmatprep.subr.mxu0 0.0
    %3190 = vmatpush2.msra.mxu0 0.0
    %3191 = vmatprep.subr.mxu0 0.0
    %3192 = vmatpush2.msra.mxu0 0.0
    %3193 = vmatprep.subr.mxu0 0.0
    %3194 = vmatpush2.msra.mxu0 0.0
    %3195 = vmatprep.subr.mxu0 0.0
    %3196 = vmatpush2.msra.mxu0 0.0
    %3197 = vmatprep.subr.mxu0 0.0
    %3198 = vmatpush2.msra.mxu0 0.0
    %3199 = vmatprep.subr.mxu0 0.0
    %3200 = vmatpush2.msra.mxu0 0.0
    %3201 = vmatprep.subr.mxu0 0.0
    %3202 = vmatpush2.msra.mxu0 0.0
    %3203 = vmatprep.subr.mxu0 0.0
    %3204 = vmatpush2.msra.mxu0 0.0
    %3205 = vmatprep.subr.mxu0 0.0
    %3206 = vmatpush2.msra.mxu0 0.0
    %3207 = vmatprep.subr.mxu0 0.0
    %3208 = vmatpush2.msra.mxu0 0.0
    %3209 = vmatprep.subr.mxu0 0.0
    %3210 = vmatpush2.msra.mxu0 0.0
    %3211 = vmatprep.mubr.f32.mxu0 0.0
    %3212 = vmatmul.mubr.f32.gmra.mxu0 %v3135
    %v3213 = vpop.f32.mrf.mxu0
    %v3214 = vadd.f32 0.0, %v3213
    %v3215 = vpop.f32.mrf.mxu0
    %v3216 = vadd.f32 0.0, %v3215
    %3217 = vmatprep.mubr.f32.mxu0 0.0
    %3218 = vmatmul.mubr.f32.gmra.mxu0 %v3137
    %v3219 = vpop.f32.mrf.mxu0
    %v3220 = vadd.f32 0.0, %v3219
    %v3221 = vpop.f32.mrf.mxu0
    %v3222 = vadd.f32 0.0, %v3221
    %3223 = vmatprep.mubr.f32.mxu0 0.0
    %3224 = vmatmul.mubr.f32.gmra.mxu0 %v3139
    %v3225 = vpop.f32.mrf.mxu0
    %v3226 = vadd.f32 0.0, %v3225
    %v3227 = vpop.f32.mrf.mxu0
    %v3228 = vadd.f32 0.0, %v3227
    %3229 = vmatprep.mubr.f32.mxu0 0.0
    %3230 = vmatmul.mubr.f32.gmra.mxu0 %v3141
    %v3231 = vpop.f32.mrf.mxu0
    %v3232 = vadd.f32 0.0, %v3231
    %v3233 = vpop.f32.mrf.mxu0
    %v3234 = vadd.f32 0.0, %v3233
    %3235 = vdwg.mxu0
    %v3236 = vadd.f32 %v3096, %v3214
    %v3237 = vadd.f32 %v3097, %v3216
    %v3238 = vadd.f32 %v3098, %v3220
    %v3239 = vadd.f32 %v3099, %v3222
    %v3240 = vadd.f32 %v3100, %v3226
    %v3241 = vadd.f32 %v3101, %v3228
    %v3242 = vadd.f32 %v3102, %v3232
    %v3243 = vadd.f32 %v3103, %v3234
    %3244 = vrot.lane.b32.xlu0 %v44, 126
    %v3245 = vpop.permute.xlu0 %3244
    %3246 = vrot.lane.b32.xlu0 %v46, 126
    %v3247 = vpop.permute.xlu0 %3246
    %3248 = vrot.lane.b32.xlu0 %v48, 126
    %v3249 = vpop.permute.xlu0 %3248
    %3250 = vrot.lane.b32.xlu0 %v50, 126
    %v3251 = vpop.permute.xlu0 %3250
    %3252 = vrot.lane.b32.xlu0 %v41, 102
    %v3253 = vpop.permute.xlu0 %3252
    %3254 = vrot.lane.b32.xlu0 %v42, 102
    %v3255 = vpop.permute.xlu0 %3254
    %vm3256 = vcmask 834560
    %v3257 = vsel %vm3256, %v3253, %v3255
    %v3258 = vsel %vm71, %v3245, 0
    %v3260 = vsel %vm71, %v3247, 0
    %v3262 = vsel %vm71, %v3249, 0
    %v3264 = vsel %vm71, %v3251, 0
    %v3266 = vsel %vm80, %v3257, 0
    %v3268 = vsel %vm80, %v3255, 0
    %3270 = vmatprep.subr.mxu0 0.0
    %3271 = vmatpush1.msra.mxu0 0.0
    %3272 = vmatprep.subr.mxu0 0.0
    %3273 = vmatpush1.msra.mxu0 0.0
    %3274 = vmatprep.subr.mxu0 0.0
    %3275 = vmatpush1.msra.mxu0 0.0
    %3276 = vmatprep.subr.mxu0 0.0
    %3277 = vmatpush1.msra.mxu0 0.0
    %3278 = vmatprep.subr.mxu0 0.0
    %3279 = vmatpush1.msra.mxu0 0.0
    %3280 = vmatprep.subr.mxu0 0.0
    %3281 = vmatpush1.msra.mxu0 0.0
    %3282 = vmatprep.subr.mxu0 0.0
    %3283 = vmatpush1.msra.mxu0 0.0
    %3284 = vmatprep.subr.mxu0 0.0
    %3285 = vmatpush1.msra.mxu0 0.0
    %3286 = vmatprep.subr.mxu0 0.0
    %3287 = vmatpush1.msra.mxu0 0.0
    %3288 = vmatprep.subr.mxu0 0.0
    %3289 = vmatpush1.msra.mxu0 0.0
    %3290 = vmatprep.subr.mxu0 0.0
    %3291 = vmatpush1.msra.mxu0 0.0
    %3292 = vmatprep.subr.mxu0 0.0
    %3293 = vmatpush1.msra.mxu0 0.0
    %3294 = vmatprep.subr.mxu0 0.0
    %3295 = vmatpush1.msra.mxu0 0.0
    %3296 = vmatprep.subr.mxu0 0.0
    %3297 = vmatpush1.msra.mxu0 0.0
    %3298 = vmatprep.subr.mxu0 0.0
    %3299 = vmatpush1.msra.mxu0 0.0
    %3300 = vmatprep.subr.mxu0 %v3268
    %3301 = vmatpush1.msra.mxu0 %v3266
    %3302 = vmatprep.subr.mxu0 0.0
    %3303 = vmatpush2.msra.mxu0 0.0
    %3304 = vmatprep.subr.mxu0 0.0
    %3305 = vmatpush2.msra.mxu0 0.0
    %3306 = vmatprep.subr.mxu0 0.0
    %3307 = vmatpush2.msra.mxu0 0.0
    %3308 = vmatprep.subr.mxu0 0.0
    %3309 = vmatpush2.msra.mxu0 0.0
    %3310 = vmatprep.subr.mxu0 0.0
    %3311 = vmatpush2.msra.mxu0 0.0
    %3312 = vmatprep.subr.mxu0 0.0
    %3313 = vmatpush2.msra.mxu0 0.0
    %3314 = vmatprep.subr.mxu0 0.0
    %3315 = vmatpush2.msra.mxu0 0.0
    %3316 = vmatprep.subr.mxu0 0.0
    %3317 = vmatpush2.msra.mxu0 0.0
    %3318 = vmatprep.subr.mxu0 0.0
    %3319 = vmatpush2.msra.mxu0 0.0
    %3320 = vmatprep.subr.mxu0 0.0
    %3321 = vmatpush2.msra.mxu0 0.0
    %3322 = vmatprep.subr.mxu0 0.0
    %3323 = vmatpush2.msra.mxu0 0.0
    %3324 = vmatprep.subr.mxu0 0.0
    %3325 = vmatpush2.msra.mxu0 0.0
    %3326 = vmatprep.subr.mxu0 0.0
    %3327 = vmatpush2.msra.mxu0 0.0
    %3328 = vmatprep.subr.mxu0 0.0
    %3329 = vmatpush2.msra.mxu0 0.0
    %3330 = vmatprep.subr.mxu0 0.0
    %3331 = vmatpush2.msra.mxu0 0.0
    %3332 = vmatprep.subr.mxu0 0.0
    %3333 = vmatpush2.msra.mxu0 0.0
    %3334 = vmatprep.mubr.f32.mxu0 0.0
    %3335 = vmatmul.mubr.f32.gmra.mxu0 %v3258
    %v3336 = vpop.f32.mrf.mxu0
    %v3337 = vadd.f32 0.0, %v3336
    %v3338 = vpop.f32.mrf.mxu0
    %v3339 = vadd.f32 0.0, %v3338
    %3340 = vmatprep.mubr.f32.mxu0 0.0
    %3341 = vmatmul.mubr.f32.gmra.mxu0 %v3260
    %v3342 = vpop.f32.mrf.mxu0
    %v3343 = vadd.f32 0.0, %v3342
    %v3344 = vpop.f32.mrf.mxu0
    %v3345 = vadd.f32 0.0, %v3344
    %3346 = vmatprep.mubr.f32.mxu0 0.0
    %3347 = vmatmul.mubr.f32.gmra.mxu0 %v3262
    %v3348 = vpop.f32.mrf.mxu0
    %v3349 = vadd.f32 0.0, %v3348
    %v3350 = vpop.f32.mrf.mxu0
    %v3351 = vadd.f32 0.0, %v3350
    %3352 = vmatprep.mubr.f32.mxu0 0.0
    %3353 = vmatmul.mubr.f32.gmra.mxu0 %v3264
    %v3354 = vpop.f32.mrf.mxu0
    %v3355 = vadd.f32 0.0, %v3354
    %v3356 = vpop.f32.mrf.mxu0
    %v3357 = vadd.f32 0.0, %v3356
    %3358 = vdwg.mxu0
    %v3359 = vadd.f32 %v3236, %v3337
    %v3360 = vadd.f32 %v3237, %v3339
    %v3361 = vadd.f32 %v3238, %v3343
    %v3362 = vadd.f32 %v3239, %v3345
    %v3363 = vadd.f32 %v3240, %v3349
    %v3364 = vadd.f32 %v3241, %v3351
    %v3365 = vadd.f32 %v3242, %v3355
    %v3366 = vadd.f32 %v3243, %v3357
    %vm3367 = vcmask 621568
    %v3368 = vsel %vm3367, %v3359, 0.0
    %3369 = vadd.xlane.f32.xlu0 %v3368
    %v3370 = vpop.xlane.xlu0 %3369
    %v3371 = vsel %vm3367, %v3361, 0.0
    %3372 = vadd.xlane.f32.xlu0 %v3371
    %v3373 = vpop.xlane.xlu0 %3372
    %v3374 = vsel %vm3367, %v3363, 0.0
    %3375 = vadd.xlane.f32.xlu0 %v3374
    %v3376 = vpop.xlane.xlu0 %3375
    %v3377 = vsel %vm3367, %v3365, 0.0
    %3378 = vadd.xlane.f32.xlu0 %v3377
    %v3379 = vpop.xlane.xlu0 %3378
    %v3380 = vmul.f32 %v3359, %v3359
    %v3381 = vmul.f32 %v3361, %v3361
    %v3382 = vmul.f32 %v3363, %v3363
    %v3383 = vmul.f32 %v3365, %v3365
    %v3384 = vsel %vm3367, %v3380, 0.0
    %3385 = vadd.xlane.f32.xlu0 %v3384
    %v3386 = vpop.xlane.xlu0 %3385
    %v3387 = vsel %vm3367, %v3381, 0.0
    %3388 = vadd.xlane.f32.xlu0 %v3387
    %v3389 = vpop.xlane.xlu0 %3388
    %v3390 = vsel %vm3367, %v3382, 0.0
    %3391 = vadd.xlane.f32.xlu0 %v3390
    %v3392 = vpop.xlane.xlu0 %3391
    %v3393 = vsel %vm3367, %v3383, 0.0
    %3394 = vadd.xlane.f32.xlu0 %v3393
    %v3395 = vpop.xlane.xlu0 %3394
    %v3396 = vsel %vm3367, %v3360, 0.0
    %3397 = vadd.xlane.f32.xlu0 %v3396
    %v3398 = vpop.xlane.xlu0 %3397
    %v3399 = vsel %vm3367, %v3362, 0.0
    %3400 = vadd.xlane.f32.xlu0 %v3399
    %v3401 = vpop.xlane.xlu0 %3400
    %v3402 = vsel %vm3367, %v3364, 0.0
    %3403 = vadd.xlane.f32.xlu0 %v3402
    %v3404 = vpop.xlane.xlu0 %3403
    %v3405 = vsel %vm3367, %v3366, 0.0
    %3406 = vadd.xlane.f32.xlu0 %v3405
    %v3407 = vpop.xlane.xlu0 %3406
    %v3408 = vadd.f32 %v3370, %v3398
    %v3409 = vadd.f32 %v3373, %v3401
    %v3410 = vadd.f32 %v3376, %v3404
    %v3411 = vadd.f32 %v3379, %v3407
    %v3412 = vmul.f32 %v3360, %v3360
    %v3413 = vmul.f32 %v3362, %v3362
    %v3414 = vmul.f32 %v3364, %v3364
    %v3415 = vmul.f32 %v3366, %v3366
    %v3416 = vsel %vm3367, %v3412, 0.0
    %3417 = vadd.xlane.f32.xlu0 %v3416
    %v3418 = vpop.xlane.xlu0 %3417
    %v3419 = vsel %vm3367, %v3413, 0.0
    %3420 = vadd.xlane.f32.xlu0 %v3419
    %v3421 = vpop.xlane.xlu0 %3420
    %v3422 = vsel %vm3367, %v3414, 0.0
    %3423 = vadd.xlane.f32.xlu0 %v3422
    %v3424 = vpop.xlane.xlu0 %3423
    %v3425 = vsel %vm3367, %v3415, 0.0
    %3426 = vadd.xlane.f32.xlu0 %v3425
    %v3427 = vpop.xlane.xlu0 %3426
    %v3428 = vadd.f32 %v3386, %v3418
    %v3429 = vadd.f32 %v3389, %v3421
    %v3430 = vadd.f32 %v3392, %v3424
    %v3431 = vadd.f32 %v3395, %v3427
    %v3432 = vmul.f32 %v3408, 0.0065789474
    %v3433 = vmul.f32 %v3409, 0.0065789474
    %v3434 = vmul.f32 %v3410, 0.0065789474
    %v3435 = vmul.f32 %v3411, 0.0065789474
    %v3436 = vmul.f32 %v3428, 0.0065789474
    %v3437 = vmul.f32 %v3429, 0.0065789474
    %v3438 = vmul.f32 %v3430, 0.0065789474
    %v3439 = vmul.f32 %v3431, 0.0065789474
    %v3440 = vmul.f32 %v3432, %v3432
    %v3441 = vmul.f32 %v3433, %v3433
    %v3442 = vmul.f32 %v3434, %v3434
    %v3443 = vmul.f32 %v3435, %v3435
    %v3444 = vsub.f32 %v3436, %v3440
    %v3445 = vsub.f32 %v3437, %v3441
    %v3446 = vsub.f32 %v3438, %v3442
    %v3447 = vsub.f32 %v3439, %v3443
    %v3448 = vadd.f32 %v3444, 1e-05
    %v3449 = vadd.f32 %v3445, 1e-05
    %v3450 = vadd.f32 %v3446, 1e-05
    %v3451 = vadd.f32 %v3447, 1e-05
    %v3452 = vrsqrt.pop %v3448
    %v3453 = vrsqrt.pop %v3449
    %v3454 = vrsqrt.pop %v3450
    %v3455 = vrsqrt.pop %v3451
    %v3456 = vlaneseq
    %v3457 = vshrl.u32 %v3456, 7
    %v3458 = vadd.s32 %v3457, 8
    %v3459 = vadd.s32 %v3457, 16
    %v3460 = vadd.s32 %v3457, 24
    %v3461 = vadd.s32 %v3457, 32
    %v3462 = vadd.s32 %v3457, 40
    %v3463 = vadd.s32 %v3457, 48
    %v3464 = vadd.s32 %v3457, 56
    %v3465 = vadd.s32 %v3457, 64
    %v3466 = vadd.s32 %v3457, 72
    %v3467 = vlaneseq
    %v3468 = vand.u32 %v3467, 127
    %v3469 = vmul.u32 %v3468, 2
    %vm3470 = vcmp.eq.s32.totalorder %v3457, %v3469
    %vm3471 = vcmp.eq.s32.totalorder %v3458, %v3469
    %vm3472 = vcmp.eq.s32.totalorder %v3459, %v3469
    %vm3473 = vcmp.eq.s32.totalorder %v3460, %v3469
    %vm3474 = vcmp.eq.s32.totalorder %v3461, %v3469
    %vm3475 = vcmp.eq.s32.totalorder %v3462, %v3469
    %vm3476 = vcmp.eq.s32.totalorder %v3463, %v3469
    %vm3477 = vcmp.eq.s32.totalorder %v3464, %v3469
    %vm3478 = vcmp.eq.s32.totalorder %v3465, %v3469
    %vm3479 = vcmp.eq.s32.totalorder %v3466, %v3469
    %v3480 = vsel %vm3470, 1, 0
    %v3481 = vsel %vm3471, 1, 0
    %v3482 = vsel %vm3472, 1, 0
    %v3483 = vsel %vm3473, 1, 0
    %v3484 = vsel %vm3474, 1, 0
    %v3485 = vsel %vm3475, 1, 0
    %v3486 = vsel %vm3476, 1, 0
    %v3487 = vsel %vm3477, 1, 0
    %v3488 = vsel %vm3478, 1, 0
    %v3489 = vsel %vm3479, 1, 0
    %v3490 = vcvt.s32.f32 %v3480
    %v3491 = vcvt.s32.f32 %v3481
    %v3492 = vcvt.s32.f32 %v3482
    %v3493 = vcvt.s32.f32 %v3483
    %v3494 = vcvt.s32.f32 %v3484
    %v3495 = vcvt.s32.f32 %v3485
    %v3496 = vcvt.s32.f32 %v3486
    %v3497 = vcvt.s32.f32 %v3487
    %v3498 = vcvt.s32.f32 %v3488
    %v3499 = vcvt.s32.f32 %v3489
    %v3500 = vadd.s32 %v3469, 1
    %vm3501 = vcmp.eq.s32.totalorder %v3457, %v3500
    %vm3502 = vcmp.eq.s32.totalorder %v3458, %v3500
    %vm3503 = vcmp.eq.s32.totalorder %v3459, %v3500
    %vm3504 = vcmp.eq.s32.totalorder %v3460, %v3500
    %vm3505 = vcmp.eq.s32.totalorder %v3461, %v3500
    %vm3506 = vcmp.eq.s32.totalorder %v3462, %v3500
    %vm3507 = vcmp.eq.s32.totalorder %v3463, %v3500
    %vm3508 = vcmp.eq.s32.totalorder %v3464, %v3500
    %vm3509 = vcmp.eq.s32.totalorder %v3465, %v3500
    %vm3510 = vcmp.eq.s32.totalorder %v3466, %v3500
    %v3511 = vsel %vm3501, 1, 0
    %v3512 = vsel %vm3502, 1, 0
    %v3513 = vsel %vm3503, 1, 0
    %v3514 = vsel %vm3504, 1, 0
    %v3515 = vsel %vm3505, 1, 0
    %v3516 = vsel %vm3506, 1, 0
    %v3517 = vsel %vm3507, 1, 0
    %v3518 = vsel %vm3508, 1, 0
    %v3519 = vsel %vm3509, 1, 0
    %v3520 = vsel %vm3510, 1, 0
    %v3521 = vcvt.s32.f32 %v3511
    %v3522 = vcvt.s32.f32 %v3512
    %v3523 = vcvt.s32.f32 %v3513
    %v3524 = vcvt.s32.f32 %v3514
    %v3525 = vcvt.s32.f32 %v3515
    %v3526 = vcvt.s32.f32 %v3516
    %v3527 = vcvt.s32.f32 %v3517
    %v3528 = vcvt.s32.f32 %v3518
    %v3529 = vcvt.s32.f32 %v3519
    %v3530 = vcvt.s32.f32 %v3520
    %v3531 = vsub.f32 %v3359, %v3432
    %v3532 = vsub.f32 %v3361, %v3433
    %v3533 = vsub.f32 %v3363, %v3434
    %v3534 = vsub.f32 %v3365, %v3435
    %v3535 = vmul.f32 %v3531, %v3452
    %v3536 = vmul.f32 %v3532, %v3453
    %v3537 = vmul.f32 %v3533, %v3454
    %v3538 = vmul.f32 %v3534, %v3455
    %3540 = vset.pattern.permute.xlu0 0
    %3541 = vperm.xlu0 %3540, %v33
    %v3542 = vpop.permute.xlu0 %3541
    %3545 = vset.pattern.permute.xlu0 0
    %3546 = vperm.xlu0 %3545, %v34
    %v3547 = vpop.permute.xlu0 %3546
    %3550 = vset.pattern.permute.xlu0 0
    %3551 = vperm.xlu0 %3550, %v35
    %v3552 = vpop.permute.xlu0 %3551
    %3555 = vset.pattern.permute.xlu0 0
    %3556 = vperm.xlu0 %3555, %v36
    %v3557 = vpop.permute.xlu0 %3556
    %v3559 = vmul.f32 %v3535, %v3542
    %v3560 = vmul.f32 %v3536, %v3547
    %v3561 = vmul.f32 %v3537, %v3552
    %v3562 = vmul.f32 %v3538, %v3557
    %3564 = vset.pattern.permute.xlu0 0
    %3565 = vperm.xlu0 %3564, %v37
    %v3566 = vpop.permute.xlu0 %3565
    %3569 = vset.pattern.permute.xlu0 0
    %3570 = vperm.xlu0 %3569, %v38
    %v3571 = vpop.permute.xlu0 %3570
    %3574 = vset.pattern.permute.xlu0 0
    %3575 = vperm.xlu0 %3574, %v39
    %v3576 = vpop.permute.xlu0 %3575
    %3579 = vset.pattern.permute.xlu0 0
    %3580 = vperm.xlu0 %3579, %v40
    %v3581 = vpop.permute.xlu0 %3580
    %v3583 = vadd.f32 %v3559, %v3566
    %v3584 = vadd.f32 %v3560, %v3571
    %v3585 = vadd.f32 %v3561, %v3576
    %v3586 = vadd.f32 %v3562, %v3581
    %v3588 = vsel %vm3367, %v3583, 0
    %v3591 = vsel %vm3367, %v3584, 0
    %v3594 = vsel %vm3367, %v3585, 0
    %v3597 = vsel %vm3367, %v3586, 0
    %vm3599 = vcmask 1043456
    %v3601 = vsel %vm3599, %v3499, 0
    %3603 = vmatprep.subr.mxu0 0.0
    %3604 = vmatpush1.msra.mxu0 0.0
    %3605 = vmatprep.subr.mxu0 0.0
    %3606 = vmatpush1.msra.mxu0 0.0
    %3607 = vmatprep.subr.mxu0 0.0
    %3608 = vmatpush1.msra.mxu0 0.0
    %3609 = vmatprep.subr.mxu0 0.0
    %3610 = vmatpush1.msra.mxu0 0.0
    %3611 = vmatprep.subr.mxu0 0.0
    %3612 = vmatpush1.msra.mxu0 0.0
    %3613 = vmatprep.subr.mxu0 0.0
    %3614 = vmatpush1.msra.mxu0 0.0
    %3615 = vmatprep.subr.mxu0 0.0
    %3616 = vmatpush1.msra.mxu0 %v3601
    %3617 = vmatprep.subr.mxu0 0.0
    %3618 = vmatpush1.msra.mxu0 %v3498
    %3619 = vmatprep.subr.mxu0 0.0
    %3620 = vmatpush1.msra.mxu0 %v3497
    %3621 = vmatprep.subr.mxu0 0.0
    %3622 = vmatpush1.msra.mxu0 %v3496
    %3623 = vmatprep.subr.mxu0 0.0
    %3624 = vmatpush1.msra.mxu0 %v3495
    %3625 = vmatprep.subr.mxu0 0.0
    %3626 = vmatpush1.msra.mxu0 %v3494
    %3627 = vmatprep.subr.mxu0 0.0
    %3628 = vmatpush1.msra.mxu0 %v3493
    %3629 = vmatprep.subr.mxu0 0.0
    %3630 = vmatpush1.msra.mxu0 %v3492
    %3631 = vmatprep.subr.mxu0 0.0
    %3632 = vmatpush1.msra.mxu0 %v3491
    %3633 = vmatprep.subr.mxu0 0.0
    %3634 = vmatpush1.msra.mxu0 %v3490
    %3635 = vmatprep.subr.mxu0 0.0
    %3636 = vmatpush2.msra.mxu0 0.0
    %3637 = vmatprep.subr.mxu0 0.0
    %3638 = vmatpush2.msra.mxu0 0.0
    %3639 = vmatprep.subr.mxu0 0.0
    %3640 = vmatpush2.msra.mxu0 0.0
    %3641 = vmatprep.subr.mxu0 0.0
    %3642 = vmatpush2.msra.mxu0 0.0
    %3643 = vmatprep.subr.mxu0 0.0
    %3644 = vmatpush2.msra.mxu0 0.0
    %3645 = vmatprep.subr.mxu0 0.0
    %3646 = vmatpush2.msra.mxu0 0.0
    %3647 = vmatprep.subr.mxu0 0.0
    %3648 = vmatpush2.msra.mxu0 0.0
    %3649 = vmatprep.subr.mxu0 0.0
    %3650 = vmatpush2.msra.mxu0 0.0
    %3651 = vmatprep.subr.mxu0 0.0
    %3652 = vmatpush2.msra.mxu0 0.0
    %3653 = vmatprep.subr.mxu0 0.0
    %3654 = vmatpush2.msra.mxu0 0.0
    %3655 = vmatprep.subr.mxu0 0.0
    %3656 = vmatpush2.msra.mxu0 0.0
    %3657 = vmatprep.subr.mxu0 0.0
    %3658 = vmatpush2.msra.mxu0 0.0
    %3659 = vmatprep.subr.mxu0 0.0
    %3660 = vmatpush2.msra.mxu0 0.0
    %3661 = vmatprep.subr.mxu0 0.0
    %3662 = vmatpush2.msra.mxu0 0.0
    %3663 = vmatprep.subr.mxu0 0.0
    %3664 = vmatpush2.msra.mxu0 0.0
    %3665 = vmatprep.subr.mxu0 0.0
    %3666 = vmatpush2.msra.mxu0 0.0
    %3667 = vmatprep.mubr.f32.mxu0 0.0
    %3668 = vmatmul.mubr.f32.gmra.mxu0 %v3588
    %v3669 = vpop.f32.mrf.mxu0
    %v3670 = vadd.f32 0.0, %v3669
    %v3671 = vpop.f32.mrf.mxu0
    %3672 = vmatprep.mubr.f32.mxu0 0.0
    %3673 = vmatmul.mubr.f32.gmra.mxu0 %v3591
    %v3674 = vpop.f32.mrf.mxu0
    %v3675 = vadd.f32 0.0, %v3674
    %v3676 = vpop.f32.mrf.mxu0
    %3677 = vmatprep.mubr.f32.mxu0 0.0
    %3678 = vmatmul.mubr.f32.gmra.mxu0 %v3594
    %v3679 = vpop.f32.mrf.mxu0
    %v3680 = vadd.f32 0.0, %v3679
    %v3681 = vpop.f32.mrf.mxu0
    %3682 = vmatprep.mubr.f32.mxu0 0.0
    %3683 = vmatmul.mubr.f32.gmra.mxu0 %v3597
    %v3684 = vpop.f32.mrf.mxu0
    %v3685 = vadd.f32 0.0, %v3684
    %v3686 = vpop.f32.mrf.mxu0
    %3687 = vdwg.mxu0
    %v3689 = vsel %vm3599, %v3530, 0
    %3691 = vmatprep.subr.mxu0 0.0
    %3692 = vmatpush1.msra.mxu0 0.0
    %3693 = vmatprep.subr.mxu0 0.0
    %3694 = vmatpush1.msra.mxu0 0.0
    %3695 = vmatprep.subr.mxu0 0.0
    %3696 = vmatpush1.msra.mxu0 0.0
    %3697 = vmatprep.subr.mxu0 0.0
    %3698 = vmatpush1.msra.mxu0 0.0
    %3699 = vmatprep.subr.mxu0 0.0
    %3700 = vmatpush1.msra.mxu0 0.0
    %3701 = vmatprep.subr.mxu0 0.0
    %3702 = vmatpush1.msra.mxu0 0.0
    %3703 = vmatprep.subr.mxu0 0.0
    %3704 = vmatpush1.msra.mxu0 %v3689
    %3705 = vmatprep.subr.mxu0 0.0
    %3706 = vmatpush1.msra.mxu0 %v3529
    %3707 = vmatprep.subr.mxu0 0.0
    %3708 = vmatpush1.msra.mxu0 %v3528
    %3709 = vmatprep.subr.mxu0 0.0
    %3710 = vmatpush1.msra.mxu0 %v3527
    %3711 = vmatprep.subr.mxu0 0.0
    %3712 = vmatpush1.msra.mxu0 %v3526
    %3713 = vmatprep.subr.mxu0 0.0
    %3714 = vmatpush1.msra.mxu0 %v3525
    %3715 = vmatprep.subr.mxu0 0.0
    %3716 = vmatpush1.msra.mxu0 %v3524
    %3717 = vmatprep.subr.mxu0 0.0
    %3718 = vmatpush1.msra.mxu0 %v3523
    %3719 = vmatprep.subr.mxu0 0.0
    %3720 = vmatpush1.msra.mxu0 %v3522
    %3721 = vmatprep.subr.mxu0 0.0
    %3722 = vmatpush1.msra.mxu0 %v3521
    %3723 = vmatprep.subr.mxu0 0.0
    %3724 = vmatpush2.msra.mxu0 0.0
    %3725 = vmatprep.subr.mxu0 0.0
    %3726 = vmatpush2.msra.mxu0 0.0
    %3727 = vmatprep.subr.mxu0 0.0
    %3728 = vmatpush2.msra.mxu0 0.0
    %3729 = vmatprep.subr.mxu0 0.0
    %3730 = vmatpush2.msra.mxu0 0.0
    %3731 = vmatprep.subr.mxu0 0.0
    %3732 = vmatpush2.msra.mxu0 0.0
    %3733 = vmatprep.subr.mxu0 0.0
    %3734 = vmatpush2.msra.mxu0 0.0
    %3735 = vmatprep.subr.mxu0 0.0
    %3736 = vmatpush2.msra.mxu0 0.0
    %3737 = vmatprep.subr.mxu0 0.0
    %3738 = vmatpush2.msra.mxu0 0.0
    %3739 = vmatprep.subr.mxu0 0.0
    %3740 = vmatpush2.msra.mxu0 0.0
    %3741 = vmatprep.subr.mxu0 0.0
    %3742 = vmatpush2.msra.mxu0 0.0
    %3743 = vmatprep.subr.mxu0 0.0
    %3744 = vmatpush2.msra.mxu0 0.0
    %3745 = vmatprep.subr.mxu0 0.0
    %3746 = vmatpush2.msra.mxu0 0.0
    %3747 = vmatprep.subr.mxu0 0.0
    %3748 = vmatpush2.msra.mxu0 0.0
    %3749 = vmatprep.subr.mxu0 0.0
    %3750 = vmatpush2.msra.mxu0 0.0
    %3751 = vmatprep.subr.mxu0 0.0
    %3752 = vmatpush2.msra.mxu0 0.0
    %3753 = vmatprep.subr.mxu0 0.0
    %3754 = vmatpush2.msra.mxu0 0.0
    %3755 = vmatprep.mubr.f32.mxu0 0.0
    %3756 = vmatmul.mubr.f32.gmra.mxu0 %v3588
    %v3757 = vpop.f32.mrf.mxu0
    %v3758 = vadd.f32 0.0, %v3757
    %v3759 = vpop.f32.mrf.mxu0
    %3760 = vmatprep.mubr.f32.mxu0 0.0
    %3761 = vmatmul.mubr.f32.gmra.mxu0 %v3591
    %v3762 = vpop.f32.mrf.mxu0
    %v3763 = vadd.f32 0.0, %v3762
    %v3764 = vpop.f32.mrf.mxu0
    %3765 = vmatprep.mubr.f32.mxu0 0.0
    %3766 = vmatmul.mubr.f32.gmra.mxu0 %v3594
    %v3767 = vpop.f32.mrf.mxu0
    %v3768 = vadd.f32 0.0, %v3767
    %v3769 = vpop.f32.mrf.mxu0
    %3770 = vmatprep.mubr.f32.mxu0 0.0
    %3771 = vmatmul.mubr.f32.gmra.mxu0 %v3597
    %v3772 = vpop.f32.mrf.mxu0
    %v3773 = vadd.f32 0.0, %v3772
    %v3774 = vpop.f32.mrf.mxu0
    %3775 = vdwg.mxu0
    %v3776 = vmax.f32 %v3670, %v3758
    %v3777 = vmax.f32 %v3675, %v3763
    %v3778 = vmax.f32 %v3680, %v3768
    %v3779 = vmax.f32 %v3685, %v3773
    %vm3780 = vcmp.gt.f32.partialorder %v3758, %v3670
    %vm3781 = vcmp.gt.f32.partialorder %v3763, %v3675
    %vm3782 = vcmp.gt.f32.partialorder %v3768, %v3680
    %vm3783 = vcmp.gt.f32.partialorder %v3773, %v3685
    %v3784 = vsel %vm3780, 1, 0
    %v3785 = vsel %vm3781, 1, 0
    %v3786 = vsel %vm3782, 1, 0
    %v3787 = vsel %vm3783, 1, 0
    %v3788 = vadd.s32 %v3469, %v3784
    %v3789 = vadd.s32 %v3469, %v3785
    %v3790 = vadd.s32 %v3469, %v3786
    %v3791 = vadd.s32 %v3469, %v3787
    %vm3792 = vcmask 310272
    %3793 = vst.msk [vmem:[#allocation4] sm:$0xff] %vm3792, %v3788
    %3794 = vst.msk [vmem:[#allocation4 + $0x8] sm:$0xff] %vm3792, %v3789
    %3795 = vst.msk [vmem:[#allocation4 + $0x10] sm:$0xff] %vm3792, %v3790
    %3796 = vst.msk [vmem:[#allocation4 + $0x18] sm:$0xff] %vm3792, %v3791
    %v3797 = vmax.f32 %v3776, 0.0
    %v3798 = vmax.f32 %v3777, 0.0
    %v3799 = vmax.f32 %v3778, 0.0
    %v3800 = vmax.f32 %v3779, 0.0
    %v3801 = vsub.f32 %v3360, %v3432
    %v3802 = vsub.f32 %v3362, %v3433
    %v3803 = vsub.f32 %v3364, %v3434
    %v3804 = vsub.f32 %v3366, %v3435
    %v3805 = vmul.f32 %v3801, %v3452
    %v3806 = vmul.f32 %v3802, %v3453
    %v3807 = vmul.f32 %v3803, %v3454
    %v3808 = vmul.f32 %v3804, %v3455
    %v3809 = vmul.f32 %v3805, %v3542
    %v3810 = vmul.f32 %v3806, %v3547
    %v3811 = vmul.f32 %v3807, %v3552
    %v3812 = vmul.f32 %v3808, %v3557
    %v3813 = vadd.f32 %v3809, %v3566
    %v3814 = vadd.f32 %v3810, %v3571
    %v3815 = vadd.f32 %v3811, %v3576
    %v3816 = vadd.f32 %v3812, %v3581
    %v3818 = vsel %vm3367, %v3813, 0
    %v3821 = vsel %vm3367, %v3814, 0
    %v3824 = vsel %vm3367, %v3815, 0
    %v3827 = vsel %vm3367, %v3816, 0
    %3829 = vmatprep.subr.mxu0 0.0
    %3830 = vmatpush1.msra.mxu0 0.0
    %3831 = vmatprep.subr.mxu0 0.0
    %3832 = vmatpush1.msra.mxu0 0.0
    %3833 = vmatprep.subr.mxu0 0.0
    %3834 = vmatpush1.msra.mxu0 0.0
    %3835 = vmatprep.subr.mxu0 0.0
    %3836 = vmatpush1.msra.mxu0 0.0
    %3837 = vmatprep.subr.mxu0 0.0
    %3838 = vmatpush1.msra.mxu0 0.0
    %3839 = vmatprep.subr.mxu0 0.0
    %3840 = vmatpush1.msra.mxu0 0.0
    %3841 = vmatprep.subr.mxu0 0.0
    %3842 = vmatpush1.msra.mxu0 %v3601
    %3843 = vmatprep.subr.mxu0 0.0
    %3844 = vmatpush1.msra.mxu0 %v3498
    %3845 = vmatprep.subr.mxu0 0.0
    %3846 = vmatpush1.msra.mxu0 %v3497
    %3847 = vmatprep.subr.mxu0 0.0
    %3848 = vmatpush1.msra.mxu0 %v3496
    %3849 = vmatprep.subr.mxu0 0.0
    %3850 = vmatpush1.msra.mxu0 %v3495
    %3851 = vmatprep.subr.mxu0 0.0
    %3852 = vmatpush1.msra.mxu0 %v3494
    %3853 = vmatprep.subr.mxu0 0.0
    %3854 = vmatpush1.msra.mxu0 %v3493
    %3855 = vmatprep.subr.mxu0 0.0
    %3856 = vmatpush1.msra.mxu0 %v3492
    %3857 = vmatprep.subr.mxu0 0.0
    %3858 = vmatpush1.msra.mxu0 %v3491
    %3859 = vmatprep.subr.mxu0 0.0
    %3860 = vmatpush1.msra.mxu0 %v3490
    %3861 = vmatprep.subr.mxu0 0.0
    %3862 = vmatpush2.msra.mxu0 0.0
    %3863 = vmatprep.subr.mxu0 0.0
    %3864 = vmatpush2.msra.mxu0 0.0
    %3865 = vmatprep.subr.mxu0 0.0
    %3866 = vmatpush2.msra.mxu0 0.0
    %3867 = vmatprep.subr.mxu0 0.0
    %3868 = vmatpush2.msra.mxu0 0.0
    %3869 = vmatprep.subr.mxu0 0.0
    %3870 = vmatpush2.msra.mxu0 0.0
    %3871 = vmatprep.subr.mxu0 0.0
    %3872 = vmatpush2.msra.mxu0 0.0
    %3873 = vmatprep.subr.mxu0 0.0
    %3874 = vmatpush2.msra.mxu0 0.0
    %3875 = vmatprep.subr.mxu0 0.0
    %3876 = vmatpush2.msra.mxu0 0.0
    %3877 = vmatprep.subr.mxu0 0.0
    %3878 = vmatpush2.msra.mxu0 0.0
    %3879 = vmatprep.subr.mxu0 0.0
    %3880 = vmatpush2.msra.mxu0 0.0
    %3881 = vmatprep.subr.mxu0 0.0
    %3882 = vmatpush2.msra.mxu0 0.0
    %3883 = vmatprep.subr.mxu0 0.0
    %3884 = vmatpush2.msra.mxu0 0.0
    %3885 = vmatprep.subr.mxu0 0.0
    %3886 = vmatpush2.msra.mxu0 0.0
    %3887 = vmatprep.subr.mxu0 0.0
    %3888 = vmatpush2.msra.mxu0 0.0
    %3889 = vmatprep.subr.mxu0 0.0
    %3890 = vmatpush2.msra.mxu0 0.0
    %3891 = vmatprep.subr.mxu0 0.0
    %3892 = vmatpush2.msra.mxu0 0.0
    %3893 = vmatprep.mubr.f32.mxu0 0.0
    %3894 = vmatmul.mubr.f32.gmra.mxu0 %v3818
    %v3895 = vpop.f32.mrf.mxu0
    %v3896 = vadd.f32 0.0, %v3895
    %v3897 = vpop.f32.mrf.mxu0
    %3898 = vmatprep.mubr.f32.mxu0 0.0
    %3899 = vmatmul.mubr.f32.gmra.mxu0 %v3821
    %v3900 = vpop.f32.mrf.mxu0
    %v3901 = vadd.f32 0.0, %v3900
    %v3902 = vpop.f32.mrf.mxu0
    %3903 = vmatprep.mubr.f32.mxu0 0.0
    %3904 = vmatmul.mubr.f32.gmra.mxu0 %v3824
    %v3905 = vpop.f32.mrf.mxu0
    %v3906 = vadd.f32 0.0, %v3905
    %v3907 = vpop.f32.mrf.mxu0
    %3908 = vmatprep.mubr.f32.mxu0 0.0
    %3909 = vmatmul.mubr.f32.gmra.mxu0 %v3827
    %v3910 = vpop.f32.mrf.mxu0
    %v3911 = vadd.f32 0.0, %v3910
    %v3912 = vpop.f32.mrf.mxu0
    %3913 = vdwg.mxu0
    %3914 = vmatprep.subr.mxu0 0.0
    %3915 = vmatpush1.msra.mxu0 0.0
    %3916 = vmatprep.subr.mxu0 0.0
    %3917 = vmatpush1.msra.mxu0 0.0
    %3918 = vmatprep.subr.mxu0 0.0
    %3919 = vmatpush1.msra.mxu0 0.0
    %3920 = vmatprep.subr.mxu0 0.0
    %3921 = vmatpush1.msra.mxu0 0.0
    %3922 = vmatprep.subr.mxu0 0.0
    %3923 = vmatpush1.msra.mxu0 0.0
    %3924 = vmatprep.subr.mxu0 0.0
    %3925 = vmatpush1.msra.mxu0 0.0
    %3926 = vmatprep.subr.mxu0 0.0
    %3927 = vmatpush1.msra.mxu0 %v3689
    %3928 = vmatprep.subr.mxu0 0.0
    %3929 = vmatpush1.msra.mxu0 %v3529
    %3930 = vmatprep.subr.mxu0 0.0
    %3931 = vmatpush1.msra.mxu0 %v3528
    %3932 = vmatprep.subr.mxu0 0.0
    %3933 = vmatpush1.msra.mxu0 %v3527
    %3934 = vmatprep.subr.mxu0 0.0
    %3935 = vmatpush1.msra.mxu0 %v3526
    %3936 = vmatprep.subr.mxu0 0.0
    %3937 = vmatpush1.msra.mxu0 %v3525
    %3938 = vmatprep.subr.mxu0 0.0
    %3939 = vmatpush1.msra.mxu0 %v3524
    %3940 = vmatprep.subr.mxu0 0.0
    %3941 = vmatpush1.msra.mxu0 %v3523
    %3942 = vmatprep.subr.mxu0 0.0
    %3943 = vmatpush1.msra.mxu0 %v3522
    %3944 = vmatprep.subr.mxu0 0.0
    %3945 = vmatpush1.msra.mxu0 %v3521
    %3946 = vmatprep.subr.mxu0 0.0
    %3947 = vmatpush2.msra.mxu0 0.0
    %3948 = vmatprep.subr.mxu0 0.0
    %3949 = vmatpush2.msra.mxu0 0.0
    %3950 = vmatprep.subr.mxu0 0.0
    %3951 = vmatpush2.msra.mxu0 0.0
    %3952 = vmatprep.subr.mxu0 0.0
    %3953 = vmatpush2.msra.mxu0 0.0
    %3954 = vmatprep.subr.mxu0 0.0
    %3955 = vmatpush2.msra.mxu0 0.0
    %3956 = vmatprep.subr.mxu0 0.0
    %3957 = vmatpush2.msra.mxu0 0.0
    %3958 = vmatprep.subr.mxu0 0.0
    %3959 = vmatpush2.msra.mxu0 0.0
    %3960 = vmatprep.subr.mxu0 0.0
    %3961 = vmatpush2.msra.mxu0 0.0
    %3962 = vmatprep.subr.mxu0 0.0
    %3963 = vmatpush2.msra.mxu0 0.0
    %3964 = vmatprep.subr.mxu0 0.0
    %3965 = vmatpush2.msra.mxu0 0.0
    %3966 = vmatprep.subr.mxu0 0.0
    %3967 = vmatpush2.msra.mxu0 0.0
    %3968 = vmatprep.subr.mxu0 0.0
    %3969 = vmatpush2.msra.mxu0 0.0
    %3970 = vmatprep.subr.mxu0 0.0
    %3971 = vmatpush2.msra.mxu0 0.0
    %3972 = vmatprep.subr.mxu0 0.0
    %3973 = vmatpush2.msra.mxu0 0.0
    %3974 = vmatprep.subr.mxu0 0.0
    %3975 = vmatpush2.msra.mxu0 0.0
    %3976 = vmatprep.subr.mxu0 0.0
    %3977 = vmatpush2.msra.mxu0 0.0
    %3978 = vmatprep.mubr.f32.mxu0 0.0
    %3979 = vmatmul.mubr.f32.gmra.mxu0 %v3818
    %v3980 = vpop.f32.mrf.mxu0
    %v3981 = vadd.f32 0.0, %v3980
    %v3982 = vpop.f32.mrf.mxu0
    %3983 = vmatprep.mubr.f32.mxu0 0.0
    %3984 = vmatmul.mubr.f32.gmra.mxu0 %v3821
    %v3985 = vpop.f32.mrf.mxu0
    %v3986 = vadd.f32 0.0, %v3985
    %v3987 = vpop.f32.mrf.mxu0
    %3988 = vmatprep.mubr.f32.mxu0 0.0
    %3989 = vmatmul.mubr.f32.gmra.mxu0 %v3824
    %v3990 = vpop.f32.mrf.mxu0
    %v3991 = vadd.f32 0.0, %v3990
    %v3992 = vpop.f32.mrf.mxu0
    %3993 = vmatprep.mubr.f32.mxu0 0.0
    %3994 = vmatmul.mubr.f32.gmra.mxu0 %v3827
    %v3995 = vpop.f32.mrf.mxu0
    %v3996 = vadd.f32 0.0, %v3995
    %v3997 = vpop.f32.mrf.mxu0
    %3998 = vdwg.mxu0
    %v3999 = vmax.f32 %v3896, %v3981
    %v4000 = vmax.f32 %v3901, %v3986
    %v4001 = vmax.f32 %v3906, %v3991
    %v4002 = vmax.f32 %v3911, %v3996
    %vm4003 = vcmp.gt.f32.partialorder %v3981, %v3896
    %vm4004 = vcmp.gt.f32.partialorder %v3986, %v3901
    %vm4005 = vcmp.gt.f32.partialorder %v3991, %v3906
    %vm4006 = vcmp.gt.f32.partialorder %v3996, %v3911
    %v4007 = vsel %vm4003, 1, 0
    %v4008 = vsel %vm4004, 1, 0
    %v4009 = vsel %vm4005, 1, 0
    %v4010 = vsel %vm4006, 1, 0
    %v4011 = vadd.s32 %v3469, %v4007
    %v4012 = vadd.s32 %v3469, %v4008
    %v4013 = vadd.s32 %v3469, %v4009
    %v4014 = vadd.s32 %v3469, %v4010
    %s4015 = scalar_lea.vmem [#allocation4], 32
    %4016 = vst.msk [vmem:[%s4015] sm:$0xff] %vm3792, %v4011
    %4017 = vst.msk [vmem:[%s4015 + $0x8] sm:$0xff] %vm3792, %v4012
    %4018 = vst.msk [vmem:[%s4015 + $0x10] sm:$0xff] %vm3792, %v4013
    %4019 = vst.msk [vmem:[%s4015 + $0x18] sm:$0xff] %vm3792, %v4014
    %v4020 = vmax.f32 %v3999, 0.0
    %v4021 = vmax.f32 %v4000, 0.0
    %v4022 = vmax.f32 %v4001, 0.0
    %v4023 = vmax.f32 %v4002, 0.0
    %v4024 = vld [vmem:[%s2] sm:$0xff]
    %v4025 = vld [vmem:[%s2 + $0x8] sm:$0xff]
    %v4026 = vld [vmem:[%s2 + $0x10] sm:$0xff]
    %v4027 = vld [vmem:[%s2 + $0x18] sm:$0xff]
    %4032 = vrot.lane.b32.xlu0 %v3797, 1
    %v4033 = vpop.permute.xlu0 %4032
    %4034 = vrot.lane.b32.xlu0 %v3798, 1
    %v4035 = vpop.permute.xlu0 %4034
    %4036 = vrot.lane.b32.xlu0 %v3799, 1
    %v4037 = vpop.permute.xlu0 %4036
    %4038 = vrot.lane.b32.xlu0 %v3800, 1
    %v4039 = vpop.permute.xlu0 %4038
    %vm4044 = vcmask 7168
    %v4045 = vsel %vm4044, 0.0, %v4033
    %v4046 = vsel %vm4044, 0.0, %v4035
    %v4047 = vsel %vm4044, 0.0, %v4037
    %v4048 = vsel %vm4044, 0.0, %v4039
    %4049 = vrot.lane.b32.xlu0 %v3797, 127
    %v4050 = vpop.permute.xlu0 %4049
    %4051 = vrot.lane.b32.xlu0 %v3798, 127
    %v4052 = vpop.permute.xlu0 %4051
    %4053 = vrot.lane.b32.xlu0 %v3799, 127
    %v4054 = vpop.permute.xlu0 %4053
    %4055 = vrot.lane.b32.xlu0 %v3800, 127
    %v4056 = vpop.permute.xlu0 %4055
    %vm4061 = vcmask 302080
    %v4062 = vsel %vm4061, %v4050, 0.0
    %v4063 = vsel %vm4061, %v4052, 0.0
    %v4064 = vsel %vm4061, %v4054, 0.0
    %v4065 = vsel %vm4061, %v4056, 0.0
    %vm4066 = vcmask 785408
    %v4068 = vsel %vm4066, %v4024, 0
    %v4071 = vsel %vm4066, %v4025, 0
    %v4074 = vsel %vm4066, %v4026, 0
    %v4077 = vsel %vm4066, %v4027, 0
    %4079 = vmatprep.subr.mxu0 0.0
    %4080 = vmatpush1.msra.mxu0 0.0
    %4081 = vmatprep.subr.mxu0 0.0
    %4082 = vmatpush1.msra.mxu0 0.0
    %4083 = vmatprep.subr.mxu0 0.0
    %4084 = vmatpush1.msra.mxu0 0.0
    %4085 = vmatprep.subr.mxu0 0.0
    %4086 = vmatpush1.msra.mxu0 0.0
    %4087 = vmatprep.subr.mxu0 0.0
    %4088 = vmatpush1.msra.mxu0 %v4065
    %4089 = vmatprep.subr.mxu0 0.0
    %4090 = vmatpush1.msra.mxu0 %v4064
    %4091 = vmatprep.subr.mxu0 0.0
    %4092 = vmatpush1.msra.mxu0 %v4063
    %4093 = vmatprep.subr.mxu0 0.0
    %4094 = vmatpush1.msra.mxu0 %v4062
    %4095 = vmatprep.subr.mxu0 0.0
    %4096 = vmatpush1.msra.mxu0 %v3800
    %4097 = vmatprep.subr.mxu0 0.0
    %4098 = vmatpush1.msra.mxu0 %v3799
    %4099 = vmatprep.subr.mxu0 0.0
    %4100 = vmatpush1.msra.mxu0 %v3798
    %4101 = vmatprep.subr.mxu0 0.0
    %4102 = vmatpush1.msra.mxu0 %v3797
    %4103 = vmatprep.subr.mxu0 0.0
    %4104 = vmatpush1.msra.mxu0 %v4048
    %4105 = vmatprep.subr.mxu0 0.0
    %4106 = vmatpush1.msra.mxu0 %v4047
    %4107 = vmatprep.subr.mxu0 0.0
    %4108 = vmatpush1.msra.mxu0 %v4046
    %4109 = vmatprep.subr.mxu0 0.0
    %4110 = vmatpush1.msra.mxu0 %v4045
    %4111 = vmatprep.subr.mxu0 0.0
    %4112 = vmatpush2.msra.mxu0 0.0
    %4113 = vmatprep.subr.mxu0 0.0
    %4114 = vmatpush2.msra.mxu0 0.0
    %4115 = vmatprep.subr.mxu0 0.0
    %4116 = vmatpush2.msra.mxu0 0.0
    %4117 = vmatprep.subr.mxu0 0.0
    %4118 = vmatpush2.msra.mxu0 0.0
    %4119 = vmatprep.subr.mxu0 0.0
    %4120 = vmatpush2.msra.mxu0 0.0
    %4121 = vmatprep.subr.mxu0 0.0
    %4122 = vmatpush2.msra.mxu0 0.0
    %4123 = vmatprep.subr.mxu0 0.0
    %4124 = vmatpush2.msra.mxu0 0.0
    %4125 = vmatprep.subr.mxu0 0.0
    %4126 = vmatpush2.msra.mxu0 0.0
    %4127 = vmatprep.subr.mxu0 0.0
    %4128 = vmatpush2.msra.mxu0 0.0
    %4129 = vmatprep.subr.mxu0 0.0
    %4130 = vmatpush2.msra.mxu0 0.0
    %4131 = vmatprep.subr.mxu0 0.0
    %4132 = vmatpush2.msra.mxu0 0.0
    %4133 = vmatprep.subr.mxu0 0.0
    %4134 = vmatpush2.msra.mxu0 0.0
    %4135 = vmatprep.subr.mxu0 0.0
    %4136 = vmatpush2.msra.mxu0 0.0
    %4137 = vmatprep.subr.mxu0 0.0
    %4138 = vmatpush2.msra.mxu0 0.0
    %4139 = vmatprep.subr.mxu0 0.0
    %4140 = vmatpush2.msra.mxu0 0.0
    %4141 = vmatprep.subr.mxu0 0.0
    %4142 = vmatpush2.msra.mxu0 0.0
    %4143 = vmatprep.mubr.f32.mxu0 0.0
    %4144 = vmatmul.mubr.f32.gmra.mxu0 %v4068
    %v4145 = vpop.f32.mrf.mxu0
    %v4146 = vadd.f32 0.0, %v4145
    %v4147 = vpop.f32.mrf.mxu0
    %4148 = vmatprep.mubr.f32.mxu0 0.0
    %4149 = vmatmul.mubr.f32.gmra.mxu0 %v4071
    %v4150 = vpop.f32.mrf.mxu0
    %v4151 = vadd.f32 0.0, %v4150
    %v4152 = vpop.f32.mrf.mxu0
    %4153 = vmatprep.mubr.f32.mxu0 0.0
    %4154 = vmatmul.mubr.f32.gmra.mxu0 %v4074
    %v4155 = vpop.f32.mrf.mxu0
    %v4156 = vadd.f32 0.0, %v4155
    %v4157 = vpop.f32.mrf.mxu0
    %4158 = vmatprep.mubr.f32.mxu0 0.0
    %4159 = vmatmul.mubr.f32.gmra.mxu0 %v4077
    %v4160 = vpop.f32.mrf.mxu0
    %v4161 = vadd.f32 0.0, %v4160
    %v4162 = vpop.f32.mrf.mxu0
    %4163 = vdwg.mxu0
    %4168 = vrot.lane.b32.xlu0 %v4020, 1
    %v4169 = vpop.permute.xlu0 %4168
    %4170 = vrot.lane.b32.xlu0 %v4021, 1
    %v4171 = vpop.permute.xlu0 %4170
    %4172 = vrot.lane.b32.xlu0 %v4022, 1
    %v4173 = vpop.permute.xlu0 %4172
    %4174 = vrot.lane.b32.xlu0 %v4023, 1
    %v4175 = vpop.permute.xlu0 %4174
    %v4180 = vsel %vm4044, 0.0, %v4169
    %v4181 = vsel %vm4044, 0.0, %v4171
    %v4182 = vsel %vm4044, 0.0, %v4173
    %v4183 = vsel %vm4044, 0.0, %v4175
    %4184 = vrot.lane.b32.xlu0 %v4020, 127
    %v4185 = vpop.permute.xlu0 %4184
    %4186 = vrot.lane.b32.xlu0 %v4021, 127
    %v4187 = vpop.permute.xlu0 %4186
    %4188 = vrot.lane.b32.xlu0 %v4022, 127
    %v4189 = vpop.permute.xlu0 %4188
    %4190 = vrot.lane.b32.xlu0 %v4023, 127
    %v4191 = vpop.permute.xlu0 %4190
    %v4196 = vsel %vm4061, %v4185, 0.0
    %v4197 = vsel %vm4061, %v4187, 0.0
    %v4198 = vsel %vm4061, %v4189, 0.0
    %v4199 = vsel %vm4061, %v4191, 0.0
    %4200 = vmatprep.subr.mxu0 0.0
    %4201 = vmatpush1.msra.mxu0 0.0
    %4202 = vmatprep.subr.mxu0 0.0
    %4203 = vmatpush1.msra.mxu0 0.0
    %4204 = vmatprep.subr.mxu0 0.0
    %4205 = vmatpush1.msra.mxu0 0.0
    %4206 = vmatprep.subr.mxu0 0.0
    %4207 = vmatpush1.msra.mxu0 0.0
    %4208 = vmatprep.subr.mxu0 0.0
    %4209 = vmatpush1.msra.mxu0 %v4199
    %4210 = vmatprep.subr.mxu0 0.0
    %4211 = vmatpush1.msra.mxu0 %v4198
    %4212 = vmatprep.subr.mxu0 0.0
    %4213 = vmatpush1.msra.mxu0 %v4197
    %4214 = vmatprep.subr.mxu0 0.0
    %4215 = vmatpush1.msra.mxu0 %v4196
    %4216 = vmatprep.subr.mxu0 0.0
    %4217 = vmatpush1.msra.mxu0 %v4023
    %4218 = vmatprep.subr.mxu0 0.0
    %4219 = vmatpush1.msra.mxu0 %v4022
    %4220 = vmatprep.subr.mxu0 0.0
    %4221 = vmatpush1.msra.mxu0 %v4021
    %4222 = vmatprep.subr.mxu0 0.0
    %4223 = vmatpush1.msra.mxu0 %v4020
    %4224 = vmatprep.subr.mxu0 0.0
    %4225 = vmatpush1.msra.mxu0 %v4183
    %4226 = vmatprep.subr.mxu0 0.0
    %4227 = vmatpush1.msra.mxu0 %v4182
    %4228 = vmatprep.subr.mxu0 0.0
    %4229 = vmatpush1.msra.mxu0 %v4181
    %4230 = vmatprep.subr.mxu0 0.0
    %4231 = vmatpush1.msra.mxu0 %v4180
    %4232 = vmatprep.subr.mxu0 0.0
    %4233 = vmatpush2.msra.mxu0 0.0
    %4234 = vmatprep.subr.mxu0 0.0
    %4235 = vmatpush2.msra.mxu0 0.0
    %4236 = vmatprep.subr.mxu0 0.0
    %4237 = vmatpush2.msra.mxu0 0.0
    %4238 = vmatprep.subr.mxu0 0.0
    %4239 = vmatpush2.msra.mxu0 0.0
    %4240 = vmatprep.subr.mxu0 0.0
    %4241 = vmatpush2.msra.mxu0 0.0
    %4242 = vmatprep.subr.mxu0 0.0
    %4243 = vmatpush2.msra.mxu0 0.0
    %4244 = vmatprep.subr.mxu0 0.0
    %4245 = vmatpush2.msra.mxu0 0.0
    %4246 = vmatprep.subr.mxu0 0.0
    %4247 = vmatpush2.msra.mxu0 0.0
    %4248 = vmatprep.subr.mxu0 0.0
    %4249 = vmatpush2.msra.mxu0 0.0
    %4250 = vmatprep.subr.mxu0 0.0
    %4251 = vmatpush2.msra.mxu0 0.0
    %4252 = vmatprep.subr.mxu0 0.0
    %4253 = vmatpush2.msra.mxu0 0.0
    %4254 = vmatprep.subr.mxu0 0.0
    %4255 = vmatpush2.msra.mxu0 0.0
    %4256 = vmatprep.subr.mxu0 0.0
    %4257 = vmatpush2.msra.mxu0 0.0
    %4258 = vmatprep.subr.mxu0 0.0
    %4259 = vmatpush2.msra.mxu0 0.0
    %4260 = vmatprep.subr.mxu0 0.0
    %4261 = vmatpush2.msra.mxu0 0.0
    %4262 = vmatprep.subr.mxu0 0.0
    %4263 = vmatpush2.msra.mxu0 0.0
    %4264 = vmatprep.mubr.f32.mxu0 0.0
    %4265 = vmatmul.mubr.f32.gmra.mxu0 %v4068
    %v4266 = vpop.f32.mrf.mxu0
    %v4267 = vadd.f32 0.0, %v4266
    %v4268 = vpop.f32.mrf.mxu0
    %4269 = vmatprep.mubr.f32.mxu0 0.0
    %4270 = vmatmul.mubr.f32.gmra.mxu0 %v4071
    %v4271 = vpop.f32.mrf.mxu0
    %v4272 = vadd.f32 0.0, %v4271
    %v4273 = vpop.f32.mrf.mxu0
    %4274 = vmatprep.mubr.f32.mxu0 0.0
    %4275 = vmatmul.mubr.f32.gmra.mxu0 %v4074
    %v4276 = vpop.f32.mrf.mxu0
    %v4277 = vadd.f32 0.0, %v4276
    %v4278 = vpop.f32.mrf.mxu0
    %4279 = vmatprep.mubr.f32.mxu0 0.0
    %4280 = vmatmul.mubr.f32.gmra.mxu0 %v4077
    %v4281 = vpop.f32.mrf.mxu0
    %v4282 = vadd.f32 0.0, %v4281
    %v4283 = vpop.f32.mrf.mxu0
    %4284 = vdwg.mxu0
    %v4285 = vsel %vm3792, %v4146, 0.0
    %4286 = vadd.xlane.f32.xlu0 %v4285
    %v4287 = vpop.xlane.xlu0 %4286
    %v4288 = vsel %vm3792, %v4151, 0.0
    %4289 = vadd.xlane.f32.xlu0 %v4288
    %v4290 = vpop.xlane.xlu0 %4289
    %v4291 = vsel %vm3792, %v4156, 0.0
    %4292 = vadd.xlane.f32.xlu0 %v4291
    %v4293 = vpop.xlane.xlu0 %4292
    %v4294 = vsel %vm3792, %v4161, 0.0
    %4295 = vadd.xlane.f32.xlu0 %v4294
    %v4296 = vpop.xlane.xlu0 %4295
    %v4297 = vmul.f32 %v4146, %v4146
    %v4298 = vmul.f32 %v4151, %v4151
    %v4299 = vmul.f32 %v4156, %v4156
    %v4300 = vmul.f32 %v4161, %v4161
    %v4301 = vsel %vm3792, %v4297, 0.0
    %4302 = vadd.xlane.f32.xlu0 %v4301
    %v4303 = vpop.xlane.xlu0 %4302
    %v4304 = vsel %vm3792, %v4298, 0.0
    %4305 = vadd.xlane.f32.xlu0 %v4304
    %v4306 = vpop.xlane.xlu0 %4305
    %v4307 = vsel %vm3792, %v4299, 0.0
    %4308 = vadd.xlane.f32.xlu0 %v4307
    %v4309 = vpop.xlane.xlu0 %4308
    %v4310 = vsel %vm3792, %v4300, 0.0
    %4311 = vadd.xlane.f32.xlu0 %v4310
    %v4312 = vpop.xlane.xlu0 %4311
    %v4313 = vsel %vm3792, %v4267, 0.0
    %4314 = vadd.xlane.f32.xlu0 %v4313
    %v4315 = vpop.xlane.xlu0 %4314
    %v4316 = vsel %vm3792, %v4272, 0.0
    %4317 = vadd.xlane.f32.xlu0 %v4316
    %v4318 = vpop.xlane.xlu0 %4317
    %v4319 = vsel %vm3792, %v4277, 0.0
    %4320 = vadd.xlane.f32.xlu0 %v4319
    %v4321 = vpop.xlane.xlu0 %4320
    %v4322 = vsel %vm3792, %v4282, 0.0
    %4323 = vadd.xlane.f32.xlu0 %v4322
    %v4324 = vpop.xlane.xlu0 %4323
    %v4325 = vadd.f32 %v4287, %v4315
    %v4326 = vadd.f32 %v4290, %v4318
    %v4327 = vadd.f32 %v4293, %v4321
    %v4328 = vadd.f32 %v4296, %v4324
    %v4329 = vmul.f32 %v4267, %v4267
    %v4330 = vmul.f32 %v4272, %v4272
    %v4331 = vmul.f32 %v4277, %v4277
    %v4332 = vmul.f32 %v4282, %v4282
    %v4333 = vsel %vm3792, %v4329, 0.0
    %4334 = vadd.xlane.f32.xlu0 %v4333
    %v4335 = vpop.xlane.xlu0 %4334
    %v4336 = vsel %vm3792, %v4330, 0.0
    %4337 = vadd.xlane.f32.xlu0 %v4336
    %v4338 = vpop.xlane.xlu0 %4337
    %v4339 = vsel %vm3792, %v4331, 0.0
    %4340 = vadd.xlane.f32.xlu0 %v4339
    %v4341 = vpop.xlane.xlu0 %4340
    %v4342 = vsel %vm3792, %v4332, 0.0
    %4343 = vadd.xlane.f32.xlu0 %v4342
    %v4344 = vpop.xlane.xlu0 %4343
    %v4345 = vadd.f32 %v4303, %v4335
    %v4346 = vadd.f32 %v4306, %v4338
    %v4347 = vadd.f32 %v4309, %v4341
    %v4348 = vadd.f32 %v4312, %v4344
    %v4349 = vmul.f32 %v4325, 0.013157895
    %v4350 = vmul.f32 %v4326, 0.013157895
    %v4351 = vmul.f32 %v4327, 0.013157895
    %v4352 = vmul.f32 %v4328, 0.013157895
    %v4353 = vmul.f32 %v4345, 0.013157895
    %v4354 = vmul.f32 %v4346, 0.013157895
    %v4355 = vmul.f32 %v4347, 0.013157895
    %v4356 = vmul.f32 %v4348, 0.013157895
    %v4357 = vmul.f32 %v4349, %v4349
    %v4358 = vmul.f32 %v4350, %v4350
    %v4359 = vmul.f32 %v4351, %v4351
    %v4360 = vmul.f32 %v4352, %v4352
    %v4361 = vsub.f32 %v4353, %v4357
    %v4362 = vsub.f32 %v4354, %v4358
    %v4363 = vsub.f32 %v4355, %v4359
    %v4364 = vsub.f32 %v4356, %v4360
    %v4365 = vadd.f32 %v4361, 1e-05
    %v4366 = vadd.f32 %v4362, 1e-05
    %v4367 = vadd.f32 %v4363, 1e-05
    %v4368 = vadd.f32 %v4364, 1e-05
    %v4369 = vrsqrt.pop %v4365
    %v4370 = vrsqrt.pop %v4366
    %v4371 = vrsqrt.pop %v4367
    %v4372 = vrsqrt.pop %v4368
    %v4373 = vsub.f32 %v4146, %v4349
    %v4374 = vsub.f32 %v4151, %v4350
    %v4375 = vsub.f32 %v4156, %v4351
    %v4376 = vsub.f32 %v4161, %v4352
    %v4377 = vmul.f32 %v4373, %v4369
    %v4378 = vmul.f32 %v4374, %v4370
    %v4379 = vmul.f32 %v4375, %v4371
    %v4380 = vmul.f32 %v4376, %v4372
    %4381 = vset.pattern.permute.xlu0 1
    %4382 = vperm.xlu0 %4381, %v33
    %v4383 = vpop.permute.xlu0 %4382
    %4385 = vset.pattern.permute.xlu0 1
    %4386 = vperm.xlu0 %4385, %v34
    %v4387 = vpop.permute.xlu0 %4386
    %4389 = vset.pattern.permute.xlu0 1
    %4390 = vperm.xlu0 %4389, %v35
    %v4391 = vpop.permute.xlu0 %4390
    %4393 = vset.pattern.permute.xlu0 1
    %4394 = vperm.xlu0 %4393, %v36
    %v4395 = vpop.permute.xlu0 %4394
    %v4397 = vmul.f32 %v4377, %v4383
    %v4398 = vmul.f32 %v4378, %v4387
    %v4399 = vmul.f32 %v4379, %v4391
    %v4400 = vmul.f32 %v4380, %v4395
    %4401 = vset.pattern.permute.xlu0 1
    %4402 = vperm.xlu0 %4401, %v37
    %v4403 = vpop.permute.xlu0 %4402
    %4405 = vset.pattern.permute.xlu0 1
    %4406 = vperm.xlu0 %4405, %v38
    %v4407 = vpop.permute.xlu0 %4406
    %4409 = vset.pattern.permute.xlu0 1
    %4410 = vperm.xlu0 %4409, %v39
    %v4411 = vpop.permute.xlu0 %4410
    %4413 = vset.pattern.permute.xlu0 1
    %4414 = vperm.xlu0 %4413, %v40
    %v4415 = vpop.permute.xlu0 %4414
    %v4417 = vadd.f32 %v4397, %v4403
    %v4418 = vadd.f32 %v4398, %v4407
    %v4419 = vadd.f32 %v4399, %v4411
    %v4420 = vadd.f32 %v4400, %v4415
    %v4422 = vsel %vm3792, %v4417, 0
    %v4425 = vsel %vm3792, %v4418, 0
    %v4428 = vsel %vm3792, %v4419, 0
    %v4431 = vsel %vm3792, %v4420, 0
    %vm4433 = vcmask 1045504
    %v4435 = vsel %vm4433, %v3494, 0
    %4437 = vmatprep.subr.mxu0 0.0
    %4438 = vmatpush1.msra.mxu0 0.0
    %4439 = vmatprep.subr.mxu0 0.0
    %4440 = vmatpush1.msra.mxu0 0.0
    %4441 = vmatprep.subr.mxu0 0.0
    %4442 = vmatpush1.msra.mxu0 0.0
    %4443 = vmatprep.subr.mxu0 0.0
    %4444 = vmatpush1.msra.mxu0 0.0
    %4445 = vmatprep.subr.mxu0 0.0
    %4446 = vmatpush1.msra.mxu0 0.0
    %4447 = vmatprep.subr.mxu0 0.0
    %4448 = vmatpush1.msra.mxu0 0.0
    %4449 = vmatprep.subr.mxu0 0.0
    %4450 = vmatpush1.msra.mxu0 0.0
    %4451 = vmatprep.subr.mxu0 0.0
    %4452 = vmatpush1.msra.mxu0 0.0
    %4453 = vmatprep.subr.mxu0 0.0
    %4454 = vmatpush1.msra.mxu0 0.0
    %4455 = vmatprep.subr.mxu0 0.0
    %4456 = vmatpush1.msra.mxu0 0.0
    %4457 = vmatprep.subr.mxu0 0.0
    %4458 = vmatpush1.msra.mxu0 0.0
    %4459 = vmatprep.subr.mxu0 0.0
    %4460 = vmatpush1.msra.mxu0 %v4435
    %4461 = vmatprep.subr.mxu0 0.0
    %4462 = vmatpush1.msra.mxu0 %v3493
    %4463 = vmatprep.subr.mxu0 0.0
    %4464 = vmatpush1.msra.mxu0 %v3492
    %4465 = vmatprep.subr.mxu0 0.0
    %4466 = vmatpush1.msra.mxu0 %v3491
    %4467 = vmatprep.subr.mxu0 0.0
    %4468 = vmatpush1.msra.mxu0 %v3490
    %4469 = vmatprep.subr.mxu0 0.0
    %4470 = vmatpush2.msra.mxu0 0.0
    %4471 = vmatprep.subr.mxu0 0.0
    %4472 = vmatpush2.msra.mxu0 0.0
    %4473 = vmatprep.subr.mxu0 0.0
    %4474 = vmatpush2.msra.mxu0 0.0
    %4475 = vmatprep.subr.mxu0 0.0
    %4476 = vmatpush2.msra.mxu0 0.0
    %4477 = vmatprep.subr.mxu0 0.0
    %4478 = vmatpush2.msra.mxu0 0.0
    %4479 = vmatprep.subr.mxu0 0.0
    %4480 = vmatpush2.msra.mxu0 0.0
    %4481 = vmatprep.subr.mxu0 0.0
    %4482 = vmatpush2.msra.mxu0 0.0
    %4483 = vmatprep.subr.mxu0 0.0
    %4484 = vmatpush2.msra.mxu0 0.0
    %4485 = vmatprep.subr.mxu0 0.0
    %4486 = vmatpush2.msra.mxu0 0.0
    %4487 = vmatprep.subr.mxu0 0.0
    %4488 = vmatpush2.msra.mxu0 0.0
    %4489 = vmatprep.subr.mxu0 0.0
    %4490 = vmatpush2.msra.mxu0 0.0
    %4491 = vmatprep.subr.mxu0 0.0
    %4492 = vmatpush2.msra.mxu0 0.0
    %4493 = vmatprep.subr.mxu0 0.0
    %4494 = vmatpush2.msra.mxu0 0.0
    %4495 = vmatprep.subr.mxu0 0.0
    %4496 = vmatpush2.msra.mxu0 0.0
    %4497 = vmatprep.subr.mxu0 0.0
    %4498 = vmatpush2.msra.mxu0 0.0
    %4499 = vmatprep.subr.mxu0 0.0
    %4500 = vmatpush2.msra.mxu0 0.0
    %4501 = vmatprep.mubr.f32.mxu0 0.0
    %4502 = vmatmul.mubr.f32.gmra.mxu0 %v4422
    %v4503 = vpop.f32.mrf.mxu0
    %v4504 = vadd.f32 0.0, %v4503
    %v4505 = vpop.f32.mrf.mxu0
    %4506 = vmatprep.mubr.f32.mxu0 0.0
    %4507 = vmatmul.mubr.f32.gmra.mxu0 %v4425
    %v4508 = vpop.f32.mrf.mxu0
    %v4509 = vadd.f32 0.0, %v4508
    %v4510 = vpop.f32.mrf.mxu0
    %4511 = vmatprep.mubr.f32.mxu0 0.0
    %4512 = vmatmul.mubr.f32.gmra.mxu0 %v4428
    %v4513 = vpop.f32.mrf.mxu0
    %v4514 = vadd.f32 0.0, %v4513
    %v4515 = vpop.f32.mrf.mxu0
    %4516 = vmatprep.mubr.f32.mxu0 0.0
    %4517 = vmatmul.mubr.f32.gmra.mxu0 %v4431
    %v4518 = vpop.f32.mrf.mxu0
    %v4519 = vadd.f32 0.0, %v4518
    %v4520 = vpop.f32.mrf.mxu0
    %4521 = vdwg.mxu0
    %v4523 = vsel %vm4433, %v3525, 0
    %4525 = vmatprep.subr.mxu0 0.0
    %4526 = vmatpush1.msra.mxu0 0.0
    %4527 = vmatprep.subr.mxu0 0.0
    %4528 = vmatpush1.msra.mxu0 0.0
    %4529 = vmatprep.subr.mxu0 0.0
    %4530 = vmatpush1.msra.mxu0 0.0
    %4531 = vmatprep.subr.mxu0 0.0
    %4532 = vmatpush1.msra.mxu0 0.0
    %4533 = vmatprep.subr.mxu0 0.0
    %4534 = vmatpush1.msra.mxu0 0.0
    %4535 = vmatprep.subr.mxu0 0.0
    %4536 = vmatpush1.msra.mxu0 0.0
    %4537 = vmatprep.subr.mxu0 0.0
    %4538 = vmatpush1.msra.mxu0 0.0
    %4539 = vmatprep.subr.mxu0 0.0
    %4540 = vmatpush1.msra.mxu0 0.0
    %4541 = vmatprep.subr.mxu0 0.0
    %4542 = vmatpush1.msra.mxu0 0.0
    %4543 = vmatprep.subr.mxu0 0.0
    %4544 = vmatpush1.msra.mxu0 0.0
    %4545 = vmatprep.subr.mxu0 0.0
    %4546 = vmatpush1.msra.mxu0 0.0
    %4547 = vmatprep.subr.mxu0 0.0
    %4548 = vmatpush1.msra.mxu0 %v4523
    %4549 = vmatprep.subr.mxu0 0.0
    %4550 = vmatpush1.msra.mxu0 %v3524
    %4551 = vmatprep.subr.mxu0 0.0
    %4552 = vmatpush1.msra.mxu0 %v3523
    %4553 = vmatprep.subr.mxu0 0.0
    %4554 = vmatpush1.msra.mxu0 %v3522
    %4555 = vmatprep.subr.mxu0 0.0
    %4556 = vmatpush1.msra.mxu0 %v3521
    %4557 = vmatprep.subr.mxu0 0.0
    %4558 = vmatpush2.msra.mxu0 0.0
    %4559 = vmatprep.subr.mxu0 0.0
    %4560 = vmatpush2.msra.mxu0 0.0
    %4561 = vmatprep.subr.mxu0 0.0
    %4562 = vmatpush2.msra.mxu0 0.0
    %4563 = vmatprep.subr.mxu0 0.0
    %4564 = vmatpush2.msra.mxu0 0.0
    %4565 = vmatprep.subr.mxu0 0.0
    %4566 = vmatpush2.msra.mxu0 0.0
    %4567 = vmatprep.subr.mxu0 0.0
    %4568 = vmatpush2.msra.mxu0 0.0
    %4569 = vmatprep.subr.mxu0 0.0
    %4570 = vmatpush2.msra.mxu0 0.0
    %4571 = vmatprep.subr.mxu0 0.0
    %4572 = vmatpush2.msra.mxu0 0.0
    %4573 = vmatprep.subr.mxu0 0.0
    %4574 = vmatpush2.msra.mxu0 0.0
    %4575 = vmatprep.subr.mxu0 0.0
    %4576 = vmatpush2.msra.mxu0 0.0
    %4577 = vmatprep.subr.mxu0 0.0
    %4578 = vmatpush2.msra.mxu0 0.0
    %4579 = vmatprep.subr.mxu0 0.0
    %4580 = vmatpush2.msra.mxu0 0.0
    %4581 = vmatprep.subr.mxu0 0.0
    %4582 = vmatpush2.msra.mxu0 0.0
    %4583 = vmatprep.subr.mxu0 0.0
    %4584 = vmatpush2.msra.mxu0 0.0
    %4585 = vmatprep.subr.mxu0 0.0
    %4586 = vmatpush2.msra.mxu0 0.0
    %4587 = vmatprep.subr.mxu0 0.0
    %4588 = vmatpush2.msra.mxu0 0.0
    %4589 = vmatprep.mubr.f32.mxu0 0.0
    %4590 = vmatmul.mubr.f32.gmra.mxu0 %v4422
    %v4591 = vpop.f32.mrf.mxu0
    %v4592 = vadd.f32 0.0, %v4591
    %v4593 = vpop.f32.mrf.mxu0
    %4594 = vmatprep.mubr.f32.mxu0 0.0
    %4595 = vmatmul.mubr.f32.gmra.mxu0 %v4425
    %v4596 = vpop.f32.mrf.mxu0
    %v4597 = vadd.f32 0.0, %v4596
    %v4598 = vpop.f32.mrf.mxu0
    %4599 = vmatprep.mubr.f32.mxu0 0.0
    %4600 = vmatmul.mubr.f32.gmra.mxu0 %v4428
    %v4601 = vpop.f32.mrf.mxu0
    %v4602 = vadd.f32 0.0, %v4601
    %v4603 = vpop.f32.mrf.mxu0
    %4604 = vmatprep.mubr.f32.mxu0 0.0
    %4605 = vmatmul.mubr.f32.gmra.mxu0 %v4431
    %v4606 = vpop.f32.mrf.mxu0
    %v4607 = vadd.f32 0.0, %v4606
    %v4608 = vpop.f32.mrf.mxu0
    %4609 = vdwg.mxu0
    %v4610 = vmax.f32 %v4504, %v4592
    %v4611 = vmax.f32 %v4509, %v4597
    %v4612 = vmax.f32 %v4514, %v4602
    %v4613 = vmax.f32 %v4519, %v4607
    %vm4614 = vcmp.gt.f32.partialorder %v4592, %v4504
    %vm4615 = vcmp.gt.f32.partialorder %v4597, %v4509
    %vm4616 = vcmp.gt.f32.partialorder %v4602, %v4514
    %vm4617 = vcmp.gt.f32.partialorder %v4607, %v4519
    %v4618 = vsel %vm4614, 1, 0
    %v4619 = vsel %vm4615, 1, 0
    %v4620 = vsel %vm4616, 1, 0
    %v4621 = vsel %vm4617, 1, 0
    %v4622 = vadd.s32 %v3469, %v4618
    %v4623 = vadd.s32 %v3469, %v4619
    %v4624 = vadd.s32 %v3469, %v4620
    %v4625 = vadd.s32 %v3469, %v4621
    %vm4626 = vcmask 154624
    %4627 = vst.msk [vmem:[%s9] sm:$0xff] %vm4626, %v4622
    %4628 = vst.msk [vmem:[%s9 + $0x8] sm:$0xff] %vm4626, %v4623
    %4629 = vst.msk [vmem:[%s9 + $0x10] sm:$0xff] %vm4626, %v4624
    %4630 = vst.msk [vmem:[%s9 + $0x18] sm:$0xff] %vm4626, %v4625
    %v4631 = vmax.f32 %v4610, 0.0
    %v4632 = vmax.f32 %v4611, 0.0
    %v4633 = vmax.f32 %v4612, 0.0
    %v4634 = vmax.f32 %v4613, 0.0
    %v4635 = vsub.f32 %v4267, %v4349
    %v4636 = vsub.f32 %v4272, %v4350
    %v4637 = vsub.f32 %v4277, %v4351
    %v4638 = vsub.f32 %v4282, %v4352
    %v4639 = vmul.f32 %v4635, %v4369
    %v4640 = vmul.f32 %v4636, %v4370
    %v4641 = vmul.f32 %v4637, %v4371
    %v4642 = vmul.f32 %v4638, %v4372
    %v4643 = vmul.f32 %v4639, %v4383
    %v4644 = vmul.f32 %v4640, %v4387
    %v4645 = vmul.f32 %v4641, %v4391
    %v4646 = vmul.f32 %v4642, %v4395
    %v4647 = vadd.f32 %v4643, %v4403
    %v4648 = vadd.f32 %v4644, %v4407
    %v4649 = vadd.f32 %v4645, %v4411
    %v4650 = vadd.f32 %v4646, %v4415
    %v4652 = vsel %vm3792, %v4647, 0
    %v4655 = vsel %vm3792, %v4648, 0
    %v4658 = vsel %vm3792, %v4649, 0
    %v4661 = vsel %vm3792, %v4650, 0
    %4663 = vmatprep.subr.mxu0 0.0
    %4664 = vmatpush1.msra.mxu0 0.0
    %4665 = vmatprep.subr.mxu0 0.0
    %4666 = vmatpush1.msra.mxu0 0.0
    %4667 = vmatprep.subr.mxu0 0.0
    %4668 = vmatpush1.msra.mxu0 0.0
    %4669 = vmatprep.subr.mxu0 0.0
    %4670 = vmatpush1.msra.mxu0 0.0
    %4671 = vmatprep.subr.mxu0 0.0
    %4672 = vmatpush1.msra.mxu0 0.0
    %4673 = vmatprep.subr.mxu0 0.0
    %4674 = vmatpush1.msra.mxu0 0.0
    %4675 = vmatprep.subr.mxu0 0.0
    %4676 = vmatpush1.msra.mxu0 0.0
    %4677 = vmatprep.subr.mxu0 0.0
    %4678 = vmatpush1.msra.mxu0 0.0
    %4679 = vmatprep.subr.mxu0 0.0
    %4680 = vmatpush1.msra.mxu0 0.0
    %4681 = vmatprep.subr.mxu0 0.0
    %4682 = vmatpush1.msra.mxu0 0.0
    %4683 = vmatprep.subr.mxu0 0.0
    %4684 = vmatpush1.msra.mxu0 0.0
    %4685 = vmatprep.subr.mxu0 0.0
    %4686 = vmatpush1.msra.mxu0 %v4435
    %4687 = vmatprep.subr.mxu0 0.0
    %4688 = vmatpush1.msra.mxu0 %v3493
    %4689 = vmatprep.subr.mxu0 0.0
    %4690 = vmatpush1.msra.mxu0 %v3492
    %4691 = vmatprep.subr.mxu0 0.0
    %4692 = vmatpush1.msra.mxu0 %v3491
    %4693 = vmatprep.subr.mxu0 0.0
    %4694 = vmatpush1.msra.mxu0 %v3490
    %4695 = vmatprep.subr.mxu0 0.0
    %4696 = vmatpush2.msra.mxu0 0.0
    %4697 = vmatprep.subr.mxu0 0.0
    %4698 = vmatpush2.msra.mxu0 0.0
    %4699 = vmatprep.subr.mxu0 0.0
    %4700 = vmatpush2.msra.mxu0 0.0
    %4701 = vmatprep.subr.mxu0 0.0
    %4702 = vmatpush2.msra.mxu0 0.0
    %4703 = vmatprep.subr.mxu0 0.0
    %4704 = vmatpush2.msra.mxu0 0.0
    %4705 = vmatprep.subr.mxu0 0.0
    %4706 = vmatpush2.msra.mxu0 0.0
    %4707 = vmatprep.subr.mxu0 0.0
    %4708 = vmatpush2.msra.mxu0 0.0
    %4709 = vmatprep.subr.mxu0 0.0
    %4710 = vmatpush2.msra.mxu0 0.0
    %4711 = vmatprep.subr.mxu0 0.0
    %4712 = vmatpush2.msra.mxu0 0.0
    %4713 = vmatprep.subr.mxu0 0.0
    %4714 = vmatpush2.msra.mxu0 0.0
    %4715 = vmatprep.subr.mxu0 0.0
    %4716 = vmatpush2.msra.mxu0 0.0
    %4717 = vmatprep.subr.mxu0 0.0
    %4718 = vmatpush2.msra.mxu0 0.0
    %4719 = vmatprep.subr.mxu0 0.0
    %4720 = vmatpush2.msra.mxu0 0.0
    %4721 = vmatprep.subr.mxu0 0.0
    %4722 = vmatpush2.msra.mxu0 0.0
    %4723 = vmatprep.subr.mxu0 0.0
    %4724 = vmatpush2.msra.mxu0 0.0
    %4725 = vmatprep.subr.mxu0 0.0
    %4726 = vmatpush2.msra.mxu0 0.0
    %4727 = vmatprep.mubr.f32.mxu0 0.0
    %4728 = vmatmul.mubr.f32.gmra.mxu0 %v4652
    %v4729 = vpop.f32.mrf.mxu0
    %v4730 = vadd.f32 0.0, %v4729
    %v4731 = vpop.f32.mrf.mxu0
    %4732 = vmatprep.mubr.f32.mxu0 0.0
    %4733 = vmatmul.mubr.f32.gmra.mxu0 %v4655
    %v4734 = vpop.f32.mrf.mxu0
    %v4735 = vadd.f32 0.0, %v4734
    %v4736 = vpop.f32.mrf.mxu0
    %4737 = vmatprep.mubr.f32.mxu0 0.0
    %4738 = vmatmul.mubr.f32.gmra.mxu0 %v4658
    %v4739 = vpop.f32.mrf.mxu0
    %v4740 = vadd.f32 0.0, %v4739
    %v4741 = vpop.f32.mrf.mxu0
    %4742 = vmatprep.mubr.f32.mxu0 0.0
    %4743 = vmatmul.mubr.f32.gmra.mxu0 %v4661
    %v4744 = vpop.f32.mrf.mxu0
    %v4745 = vadd.f32 0.0, %v4744
    %v4746 = vpop.f32.mrf.mxu0
    %4747 = vdwg.mxu0
    %4748 = vmatprep.subr.mxu0 0.0
    %4749 = vmatpush1.msra.mxu0 0.0
    %4750 = vmatprep.subr.mxu0 0.0
    %4751 = vmatpush1.msra.mxu0 0.0
    %4752 = vmatprep.subr.mxu0 0.0
    %4753 = vmatpush1.msra.mxu0 0.0
    %4754 = vmatprep.subr.mxu0 0.0
    %4755 = vmatpush1.msra.mxu0 0.0
    %4756 = vmatprep.subr.mxu0 0.0
    %4757 = vmatpush1.msra.mxu0 0.0
    %4758 = vmatprep.subr.mxu0 0.0
    %4759 = vmatpush1.msra.mxu0 0.0
    %4760 = vmatprep.subr.mxu0 0.0
    %4761 = vmatpush1.msra.mxu0 0.0
    %4762 = vmatprep.subr.mxu0 0.0
    %4763 = vmatpush1.msra.mxu0 0.0
    %4764 = vmatprep.subr.mxu0 0.0
    %4765 = vmatpush1.msra.mxu0 0.0
    %4766 = vmatprep.subr.mxu0 0.0
    %4767 = vmatpush1.msra.mxu0 0.0
    %4768 = vmatprep.subr.mxu0 0.0
    %4769 = vmatpush1.msra.mxu0 0.0
    %4770 = vmatprep.subr.mxu0 0.0
    %4771 = vmatpush1.msra.mxu0 %v4523
    %4772 = vmatprep.subr.mxu0 0.0
    %4773 = vmatpush1.msra.mxu0 %v3524
    %4774 = vmatprep.subr.mxu0 0.0
    %4775 = vmatpush1.msra.mxu0 %v3523
    %4776 = vmatprep.subr.mxu0 0.0
    %4777 = vmatpush1.msra.mxu0 %v3522
    %4778 = vmatprep.subr.mxu0 0.0
    %4779 = vmatpush1.msra.mxu0 %v3521
    %4780 = vmatprep.subr.mxu0 0.0
    %4781 = vmatpush2.msra.mxu0 0.0
    %4782 = vmatprep.subr.mxu0 0.0
    %4783 = vmatpush2.msra.mxu0 0.0
    %4784 = vmatprep.subr.mxu0 0.0
    %4785 = vmatpush2.msra.mxu0 0.0
    %4786 = vmatprep.subr.mxu0 0.0
    %4787 = vmatpush2.msra.mxu0 0.0
    %4788 = vmatprep.subr.mxu0 0.0
    %4789 = vmatpush2.msra.mxu0 0.0
    %4790 = vmatprep.subr.mxu0 0.0
    %4791 = vmatpush2.msra.mxu0 0.0
    %4792 = vmatprep.subr.mxu0 0.0
    %4793 = vmatpush2.msra.mxu0 0.0
    %4794 = vmatprep.subr.mxu0 0.0
    %4795 = vmatpush2.msra.mxu0 0.0
    %4796 = vmatprep.subr.mxu0 0.0
    %4797 = vmatpush2.msra.mxu0 0.0
    %4798 = vmatprep.subr.mxu0 0.0
    %4799 = vmatpush2.msra.mxu0 0.0
    %4800 = vmatprep.subr.mxu0 0.0
    %4801 = vmatpush2.msra.mxu0 0.0
    %4802 = vmatprep.subr.mxu0 0.0
    %4803 = vmatpush2.msra.mxu0 0.0
    %4804 = vmatprep.subr.mxu0 0.0
    %4805 = vmatpush2.msra.mxu0 0.0
    %4806 = vmatprep.subr.mxu0 0.0
    %4807 = vmatpush2.msra.mxu0 0.0
    %4808 = vmatprep.subr.mxu0 0.0
    %4809 = vmatpush2.msra.mxu0 0.0
    %4810 = vmatprep.subr.mxu0 0.0
    %4811 = vmatpush2.msra.mxu0 0.0
    %4812 = vmatprep.mubr.f32.mxu0 0.0
    %4813 = vmatmul.mubr.f32.gmra.mxu0 %v4652
    %v4814 = vpop.f32.mrf.mxu0
    %v4815 = vadd.f32 0.0, %v4814
    %v4816 = vpop.f32.mrf.mxu0
    %4817 = vmatprep.mubr.f32.mxu0 0.0
    %4818 = vmatmul.mubr.f32.gmra.mxu0 %v4655
    %v4819 = vpop.f32.mrf.mxu0
    %v4820 = vadd.f32 0.0, %v4819
    %v4821 = vpop.f32.mrf.mxu0
    %4822 = vmatprep.mubr.f32.mxu0 0.0
    %4823 = vmatmul.mubr.f32.gmra.mxu0 %v4658
    %v4824 = vpop.f32.mrf.mxu0
    %v4825 = vadd.f32 0.0, %v4824
    %v4826 = vpop.f32.mrf.mxu0
    %4827 = vmatprep.mubr.f32.mxu0 0.0
    %4828 = vmatmul.mubr.f32.gmra.mxu0 %v4661
    %v4829 = vpop.f32.mrf.mxu0
    %v4830 = vadd.f32 0.0, %v4829
    %v4831 = vpop.f32.mrf.mxu0
    %4832 = vdwg.mxu0
    %v4833 = vmax.f32 %v4730, %v4815
    %v4834 = vmax.f32 %v4735, %v4820
    %v4835 = vmax.f32 %v4740, %v4825
    %v4836 = vmax.f32 %v4745, %v4830
    %vm4837 = vcmp.gt.f32.partialorder %v4815, %v4730
    %vm4838 = vcmp.gt.f32.partialorder %v4820, %v4735
    %vm4839 = vcmp.gt.f32.partialorder %v4825, %v4740
    %vm4840 = vcmp.gt.f32.partialorder %v4830, %v4745
    %v4841 = vsel %vm4837, 1, 0
    %v4842 = vsel %vm4838, 1, 0
    %v4843 = vsel %vm4839, 1, 0
    %v4844 = vsel %vm4840, 1, 0
    %v4845 = vadd.s32 %v3469, %v4841
    %v4846 = vadd.s32 %v3469, %v4842
    %v4847 = vadd.s32 %v3469, %v4843
    %v4848 = vadd.s32 %v3469, %v4844
    %s4849 = scalar_lea.vmem %s9, 32
    %4850 = vst.msk [vmem:[%s4849] sm:$0xff] %vm4626, %v4845
    %4851 = vst.msk [vmem:[%s4849 + $0x8] sm:$0xff] %vm4626, %v4846
    %4852 = vst.msk [vmem:[%s4849 + $0x10] sm:$0xff] %vm4626, %v4847
    %4853 = vst.msk [vmem:[%s4849 + $0x18] sm:$0xff] %vm4626, %v4848
    %v4854 = vmax.f32 %v4833, 0.0
    %v4855 = vmax.f32 %v4834, 0.0
    %v4856 = vmax.f32 %v4835, 0.0
    %v4857 = vmax.f32 %v4836, 0.0
    %v4858 = vld [vmem:[%s3] sm:$0xff]
    %v4859 = vld [vmem:[%s3 + $0x8] sm:$0xff]
    %v4860 = vld [vmem:[%s3 + $0x10] sm:$0xff]
    %v4861 = vld [vmem:[%s3 + $0x18] sm:$0xff]
    %4866 = vrot.lane.b32.xlu0 %v4631, 1
    %v4867 = vpop.permute.xlu0 %4866
    %4868 = vrot.lane.b32.xlu0 %v4632, 1
    %v4869 = vpop.permute.xlu0 %4868
    %4870 = vrot.lane.b32.xlu0 %v4633, 1
    %v4871 = vpop.permute.xlu0 %4870
    %4872 = vrot.lane.b32.xlu0 %v4634, 1
    %v4873 = vpop.permute.xlu0 %4872
    %v4878 = vsel %vm4044, 0.0, %v4867
    %v4879 = vsel %vm4044, 0.0, %v4869
    %v4880 = vsel %vm4044, 0.0, %v4871
    %v4881 = vsel %vm4044, 0.0, %v4873
    %4882 = vrot.lane.b32.xlu0 %v4631, 127
    %v4883 = vpop.permute.xlu0 %4882
    %4884 = vrot.lane.b32.xlu0 %v4632, 127
    %v4885 = vpop.permute.xlu0 %4884
    %4886 = vrot.lane.b32.xlu0 %v4633, 127
    %v4887 = vpop.permute.xlu0 %4886
    %4888 = vrot.lane.b32.xlu0 %v4634, 127
    %v4889 = vpop.permute.xlu0 %4888
    %vm4894 = vcmask 146432
    %v4895 = vsel %vm4894, %v4883, 0.0
    %v4896 = vsel %vm4894, %v4885, 0.0
    %v4897 = vsel %vm4894, %v4887, 0.0
    %v4898 = vsel %vm4894, %v4889, 0.0
    %v4900 = vsel %vm4066, %v4858, 0
    %v4903 = vsel %vm4066, %v4859, 0
    %v4906 = vsel %vm4066, %v4860, 0
    %v4909 = vsel %vm4066, %v4861, 0
    %4911 = vmatprep.subr.mxu0 0.0
    %4912 = vmatpush1.msra.mxu0 0.0
    %4913 = vmatprep.subr.mxu0 0.0
    %4914 = vmatpush1.msra.mxu0 0.0
    %4915 = vmatprep.subr.mxu0 0.0
    %4916 = vmatpush1.msra.mxu0 0.0
    %4917 = vmatprep.subr.mxu0 0.0
    %4918 = vmatpush1.msra.mxu0 0.0
    %4919 = vmatprep.subr.mxu0 0.0
    %4920 = vmatpush1.msra.mxu0 %v4898
    %4921 = vmatprep.subr.mxu0 0.0
    %4922 = vmatpush1.msra.mxu0 %v4897
    %4923 = vmatprep.subr.mxu0 0.0
    %4924 = vmatpush1.msra.mxu0 %v4896
    %4925 = vmatprep.subr.mxu0 0.0
    %4926 = vmatpush1.msra.mxu0 %v4895
    %4927 = vmatprep.subr.mxu0 0.0
    %4928 = vmatpush1.msra.mxu0 %v4634
    %4929 = vmatprep.subr.mxu0 0.0
    %4930 = vmatpush1.msra.mxu0 %v4633
    %4931 = vmatprep.subr.mxu0 0.0
    %4932 = vmatpush1.msra.mxu0 %v4632
    %4933 = vmatprep.subr.mxu0 0.0
    %4934 = vmatpush1.msra.mxu0 %v4631
    %4935 = vmatprep.subr.mxu0 0.0
    %4936 = vmatpush1.msra.mxu0 %v4881
    %4937 = vmatprep.subr.mxu0 0.0
    %4938 = vmatpush1.msra.mxu0 %v4880
    %4939 = vmatprep.subr.mxu0 0.0
    %4940 = vmatpush1.msra.mxu0 %v4879
    %4941 = vmatprep.subr.mxu0 0.0
    %4942 = vmatpush1.msra.mxu0 %v4878
    %4943 = vmatprep.subr.mxu0 0.0
    %4944 = vmatpush2.msra.mxu0 0.0
    %4945 = vmatprep.subr.mxu0 0.0
    %4946 = vmatpush2.msra.mxu0 0.0
    %4947 = vmatprep.subr.mxu0 0.0
    %4948 = vmatpush2.msra.mxu0 0.0
    %4949 = vmatprep.subr.mxu0 0.0
    %4950 = vmatpush2.msra.mxu0 0.0
    %4951 = vmatprep.subr.mxu0 0.0
    %4952 = vmatpush2.msra.mxu0 0.0
    %4953 = vmatprep.subr.mxu0 0.0
    %4954 = vmatpush2.msra.mxu0 0.0
    %4955 = vmatprep.subr.mxu0 0.0
    %4956 = vmatpush2.msra.mxu0 0.0
    %4957 = vmatprep.subr.mxu0 0.0
    %4958 = vmatpush2.msra.mxu0 0.0
    %4959 = vmatprep.subr.mxu0 0.0
    %4960 = vmatpush2.msra.mxu0 0.0
    %4961 = vmatprep.subr.mxu0 0.0
    %4962 = vmatpush2.msra.mxu0 0.0
    %4963 = vmatprep.subr.mxu0 0.0
    %4964 = vmatpush2.msra.mxu0 0.0
    %4965 = vmatprep.subr.mxu0 0.0
    %4966 = vmatpush2.msra.mxu0 0.0
    %4967 = vmatprep.subr.mxu0 0.0
    %4968 = vmatpush2.msra.mxu0 0.0
    %4969 = vmatprep.subr.mxu0 0.0
    %4970 = vmatpush2.msra.mxu0 0.0
    %4971 = vmatprep.subr.mxu0 0.0
    %4972 = vmatpush2.msra.mxu0 0.0
    %4973 = vmatprep.subr.mxu0 0.0
    %4974 = vmatpush2.msra.mxu0 0.0
    %4975 = vmatprep.mubr.f32.mxu0 0.0
    %4976 = vmatmul.mubr.f32.gmra.mxu0 %v4900
    %v4977 = vpop.f32.mrf.mxu0
    %v4978 = vadd.f32 0.0, %v4977
    %v4979 = vpop.f32.mrf.mxu0
    %4980 = vmatprep.mubr.f32.mxu0 0.0
    %4981 = vmatmul.mubr.f32.gmra.mxu0 %v4903
    %v4982 = vpop.f32.mrf.mxu0
    %v4983 = vadd.f32 0.0, %v4982
    %v4984 = vpop.f32.mrf.mxu0
    %4985 = vmatprep.mubr.f32.mxu0 0.0
    %4986 = vmatmul.mubr.f32.gmra.mxu0 %v4906
    %v4987 = vpop.f32.mrf.mxu0
    %v4988 = vadd.f32 0.0, %v4987
    %v4989 = vpop.f32.mrf.mxu0
    %4990 = vmatprep.mubr.f32.mxu0 0.0
    %4991 = vmatmul.mubr.f32.gmra.mxu0 %v4909
    %v4992 = vpop.f32.mrf.mxu0
    %v4993 = vadd.f32 0.0, %v4992
    %v4994 = vpop.f32.mrf.mxu0
    %4995 = vdwg.mxu0
    %5000 = vrot.lane.b32.xlu0 %v4854, 1
    %v5001 = vpop.permute.xlu0 %5000
    %5002 = vrot.lane.b32.xlu0 %v4855, 1
    %v5003 = vpop.permute.xlu0 %5002
    %5004 = vrot.lane.b32.xlu0 %v4856, 1
    %v5005 = vpop.permute.xlu0 %5004
    %5006 = vrot.lane.b32.xlu0 %v4857, 1
    %v5007 = vpop.permute.xlu0 %5006
    %v5012 = vsel %vm4044, 0.0, %v5001
    %v5013 = vsel %vm4044, 0.0, %v5003
    %v5014 = vsel %vm4044, 0.0, %v5005
    %v5015 = vsel %vm4044, 0.0, %v5007
    %5016 = vrot.lane.b32.xlu0 %v4854, 127
    %v5017 = vpop.permute.xlu0 %5016
    %5018 = vrot.lane.b32.xlu0 %v4855, 127
    %v5019 = vpop.permute.xlu0 %5018
    %5020 = vrot.lane.b32.xlu0 %v4856, 127
    %v5021 = vpop.permute.xlu0 %5020
    %5022 = vrot.lane.b32.xlu0 %v4857, 127
    %v5023 = vpop.permute.xlu0 %5022
    %v5028 = vsel %vm4894, %v5017, 0.0
    %v5029 = vsel %vm4894, %v5019, 0.0
    %v5030 = vsel %vm4894, %v5021, 0.0
    %v5031 = vsel %vm4894, %v5023, 0.0
    %5032 = vmatprep.subr.mxu0 0.0
    %5033 = vmatpush1.msra.mxu0 0.0
    %5034 = vmatprep.subr.mxu0 0.0
    %5035 = vmatpush1.msra.mxu0 0.0
    %5036 = vmatprep.subr.mxu0 0.0
    %5037 = vmatpush1.msra.mxu0 0.0
    %5038 = vmatprep.subr.mxu0 0.0
    %5039 = vmatpush1.msra.mxu0 0.0
    %5040 = vmatprep.subr.mxu0 0.0
    %5041 = vmatpush1.msra.mxu0 %v5031
    %5042 = vmatprep.subr.mxu0 0.0
    %5043 = vmatpush1.msra.mxu0 %v5030
    %5044 = vmatprep.subr.mxu0 0.0
    %5045 = vmatpush1.msra.mxu0 %v5029
    %5046 = vmatprep.subr.mxu0 0.0
    %5047 = vmatpush1.msra.mxu0 %v5028
    %5048 = vmatprep.subr.mxu0 0.0
    %5049 = vmatpush1.msra.mxu0 %v4857
    %5050 = vmatprep.subr.mxu0 0.0
    %5051 = vmatpush1.msra.mxu0 %v4856
    %5052 = vmatprep.subr.mxu0 0.0
    %5053 = vmatpush1.msra.mxu0 %v4855
    %5054 = vmatprep.subr.mxu0 0.0
    %5055 = vmatpush1.msra.mxu0 %v4854
    %5056 = vmatprep.subr.mxu0 0.0
    %5057 = vmatpush1.msra.mxu0 %v5015
    %5058 = vmatprep.subr.mxu0 0.0
    %5059 = vmatpush1.msra.mxu0 %v5014
    %5060 = vmatprep.subr.mxu0 0.0
    %5061 = vmatpush1.msra.mxu0 %v5013
    %5062 = vmatprep.subr.mxu0 0.0
    %5063 = vmatpush1.msra.mxu0 %v5012
    %5064 = vmatprep.subr.mxu0 0.0
    %5065 = vmatpush2.msra.mxu0 0.0
    %5066 = vmatprep.subr.mxu0 0.0
    %5067 = vmatpush2.msra.mxu0 0.0
    %5068 = vmatprep.subr.mxu0 0.0
    %5069 = vmatpush2.msra.mxu0 0.0
    %5070 = vmatprep.subr.mxu0 0.0
    %5071 = vmatpush2.msra.mxu0 0.0
    %5072 = vmatprep.subr.mxu0 0.0
    %5073 = vmatpush2.msra.mxu0 0.0
    %5074 = vmatprep.subr.mxu0 0.0
    %5075 = vmatpush2.msra.mxu0 0.0
    %5076 = vmatprep.subr.mxu0 0.0
    %5077 = vmatpush2.msra.mxu0 0.0
    %5078 = vmatprep.subr.mxu0 0.0
    %5079 = vmatpush2.msra.mxu0 0.0
    %5080 = vmatprep.subr.mxu0 0.0
    %5081 = vmatpush2.msra.mxu0 0.0
    %5082 = vmatprep.subr.mxu0 0.0
    %5083 = vmatpush2.msra.mxu0 0.0
    %5084 = vmatprep.subr.mxu0 0.0
    %5085 = vmatpush2.msra.mxu0 0.0
    %5086 = vmatprep.subr.mxu0 0.0
    %5087 = vmatpush2.msra.mxu0 0.0
    %5088 = vmatprep.subr.mxu0 0.0
    %5089 = vmatpush2.msra.mxu0 0.0
    %5090 = vmatprep.subr.mxu0 0.0
    %5091 = vmatpush2.msra.mxu0 0.0
    %5092 = vmatprep.subr.mxu0 0.0
    %5093 = vmatpush2.msra.mxu0 0.0
    %5094 = vmatprep.subr.mxu0 0.0
    %5095 = vmatpush2.msra.mxu0 0.0
    %5096 = vmatprep.mubr.f32.mxu0 0.0
    %5097 = vmatmul.mubr.f32.gmra.mxu0 %v4900
    %v5098 = vpop.f32.mrf.mxu0
    %v5099 = vadd.f32 0.0, %v5098
    %v5100 = vpop.f32.mrf.mxu0
    %5101 = vmatprep.mubr.f32.mxu0 0.0
    %5102 = vmatmul.mubr.f32.gmra.mxu0 %v4903
    %v5103 = vpop.f32.mrf.mxu0
    %v5104 = vadd.f32 0.0, %v5103
    %v5105 = vpop.f32.mrf.mxu0
    %5106 = vmatprep.mubr.f32.mxu0 0.0
    %5107 = vmatmul.mubr.f32.gmra.mxu0 %v4906
    %v5108 = vpop.f32.mrf.mxu0
    %v5109 = vadd.f32 0.0, %v5108
    %v5110 = vpop.f32.mrf.mxu0
    %5111 = vmatprep.mubr.f32.mxu0 0.0
    %5112 = vmatmul.mubr.f32.gmra.mxu0 %v4909
    %v5113 = vpop.f32.mrf.mxu0
    %v5114 = vadd.f32 0.0, %v5113
    %v5115 = vpop.f32.mrf.mxu0
    %5116 = vdwg.mxu0
    %v5117 = vsel %vm4626, %v4978, 0.0
    %5118 = vadd.xlane.f32.xlu0 %v5117
    %v5119 = vpop.xlane.xlu0 %5118
    %v5120 = vsel %vm4626, %v4983, 0.0
    %5121 = vadd.xlane.f32.xlu0 %v5120
    %v5122 = vpop.xlane.xlu0 %5121
    %v5123 = vsel %vm4626, %v4988, 0.0
    %5124 = vadd.xlane.f32.xlu0 %v5123
    %v5125 = vpop.xlane.xlu0 %5124
    %v5126 = vsel %vm4626, %v4993, 0.0
    %5127 = vadd.xlane.f32.xlu0 %v5126
    %v5128 = vpop.xlane.xlu0 %5127
    %v5129 = vmul.f32 %v4978, %v4978
    %v5130 = vmul.f32 %v4983, %v4983
    %v5131 = vmul.f32 %v4988, %v4988
    %v5132 = vmul.f32 %v4993, %v4993
    %v5133 = vsel %vm4626, %v5129, 0.0
    %5134 = vadd.xlane.f32.xlu0 %v5133
    %v5135 = vpop.xlane.xlu0 %5134
    %v5136 = vsel %vm4626, %v5130, 0.0
    %5137 = vadd.xlane.f32.xlu0 %v5136
    %v5138 = vpop.xlane.xlu0 %5137
    %v5139 = vsel %vm4626, %v5131, 0.0
    %5140 = vadd.xlane.f32.xlu0 %v5139
    %v5141 = vpop.xlane.xlu0 %5140
    %v5142 = vsel %vm4626, %v5132, 0.0
    %5143 = vadd.xlane.f32.xlu0 %v5142
    %v5144 = vpop.xlane.xlu0 %5143
    %v5145 = vsel %vm4626, %v5099, 0.0
    %5146 = vadd.xlane.f32.xlu0 %v5145
    %v5147 = vpop.xlane.xlu0 %5146
    %v5148 = vsel %vm4626, %v5104, 0.0
    %5149 = vadd.xlane.f32.xlu0 %v5148
    %v5150 = vpop.xlane.xlu0 %5149
    %v5151 = vsel %vm4626, %v5109, 0.0
    %5152 = vadd.xlane.f32.xlu0 %v5151
    %v5153 = vpop.xlane.xlu0 %5152
    %v5154 = vsel %vm4626, %v5114, 0.0
    %5155 = vadd.xlane.f32.xlu0 %v5154
    %v5156 = vpop.xlane.xlu0 %5155
    %v5157 = vadd.f32 %v5119, %v5147
    %v5158 = vadd.f32 %v5122, %v5150
    %v5159 = vadd.f32 %v5125, %v5153
    %v5160 = vadd.f32 %v5128, %v5156
    %v5161 = vmul.f32 %v5099, %v5099
    %v5162 = vmul.f32 %v5104, %v5104
    %v5163 = vmul.f32 %v5109, %v5109
    %v5164 = vmul.f32 %v5114, %v5114
    %v5165 = vsel %vm4626, %v5161, 0.0
    %5166 = vadd.xlane.f32.xlu0 %v5165
    %v5167 = vpop.xlane.xlu0 %5166
    %v5168 = vsel %vm4626, %v5162, 0.0
    %5169 = vadd.xlane.f32.xlu0 %v5168
    %v5170 = vpop.xlane.xlu0 %5169
    %v5171 = vsel %vm4626, %v5163, 0.0
    %5172 = vadd.xlane.f32.xlu0 %v5171
    %v5173 = vpop.xlane.xlu0 %5172
    %v5174 = vsel %vm4626, %v5164, 0.0
    %5175 = vadd.xlane.f32.xlu0 %v5174
    %v5176 = vpop.xlane.xlu0 %5175
    %v5177 = vadd.f32 %v5135, %v5167
    %v5178 = vadd.f32 %v5138, %v5170
    %v5179 = vadd.f32 %v5141, %v5173
    %v5180 = vadd.f32 %v5144, %v5176
    %v5181 = vmul.f32 %v5157, 0.02631579
    %v5182 = vmul.f32 %v5158, 0.02631579
    %v5183 = vmul.f32 %v5159, 0.02631579
    %v5184 = vmul.f32 %v5160, 0.02631579
    %v5185 = vmul.f32 %v5177, 0.02631579
    %v5186 = vmul.f32 %v5178, 0.02631579
    %v5187 = vmul.f32 %v5179, 0.02631579
    %v5188 = vmul.f32 %v5180, 0.02631579
    %v5189 = vmul.f32 %v5181, %v5181
    %v5190 = vmul.f32 %v5182, %v5182
    %v5191 = vmul.f32 %v5183, %v5183
    %v5192 = vmul.f32 %v5184, %v5184
    %v5193 = vsub.f32 %v5185, %v5189
    %v5194 = vsub.f32 %v5186, %v5190
    %v5195 = vsub.f32 %v5187, %v5191
    %v5196 = vsub.f32 %v5188, %v5192
    %v5197 = vadd.f32 %v5193, 1e-05
    %v5198 = vadd.f32 %v5194, 1e-05
    %v5199 = vadd.f32 %v5195, 1e-05
    %v5200 = vadd.f32 %v5196, 1e-05
    %v5201 = vrsqrt.pop %v5197
    %v5202 = vrsqrt.pop %v5198
    %v5203 = vrsqrt.pop %v5199
    %v5204 = vrsqrt.pop %v5200
    %v5205 = vsub.f32 %v4978, %v5181
    %v5206 = vsub.f32 %v4983, %v5182
    %v5207 = vsub.f32 %v4988, %v5183
    %v5208 = vsub.f32 %v4993, %v5184
    %v5209 = vmul.f32 %v5205, %v5201
    %v5210 = vmul.f32 %v5206, %v5202
    %v5211 = vmul.f32 %v5207, %v5203
    %v5212 = vmul.f32 %v5208, %v5204
    %5213 = vset.pattern.permute.xlu0 2
    %5214 = vperm.xlu0 %5213, %v33
    %v5215 = vpop.permute.xlu0 %5214
    %5217 = vset.pattern.permute.xlu0 2
    %5218 = vperm.xlu0 %5217, %v34
    %v5219 = vpop.permute.xlu0 %5218
    %5221 = vset.pattern.permute.xlu0 2
    %5222 = vperm.xlu0 %5221, %v35
    %v5223 = vpop.permute.xlu0 %5222
    %5225 = vset.pattern.permute.xlu0 2
    %5226 = vperm.xlu0 %5225, %v36
    %v5227 = vpop.permute.xlu0 %5226
    %v5229 = vmul.f32 %v5209, %v5215
    %v5230 = vmul.f32 %v5210, %v5219
    %v5231 = vmul.f32 %v5211, %v5223
    %v5232 = vmul.f32 %v5212, %v5227
    %5233 = vset.pattern.permute.xlu0 2
    %5234 = vperm.xlu0 %5233, %v37
    %v5235 = vpop.permute.xlu0 %5234
    %5237 = vset.pattern.permute.xlu0 2
    %5238 = vperm.xlu0 %5237, %v38
    %v5239 = vpop.permute.xlu0 %5238
    %5241 = vset.pattern.permute.xlu0 2
    %5242 = vperm.xlu0 %5241, %v39
    %v5243 = vpop.permute.xlu0 %5242
    %5245 = vset.pattern.permute.xlu0 2
    %5246 = vperm.xlu0 %5245, %v40
    %v5247 = vpop.permute.xlu0 %5246
    %v5249 = vadd.f32 %v5229, %v5235
    %v5250 = vadd.f32 %v5230, %v5239
    %v5251 = vadd.f32 %v5231, %v5243
    %v5252 = vadd.f32 %v5232, %v5247
    %v5254 = vsel %vm4626, %v5249, 0
    %v5257 = vsel %vm4626, %v5250, 0
    %v5260 = vsel %vm4626, %v5251, 0
    %v5263 = vsel %vm4626, %v5252, 0
    %vm5265 = vcmask 1042432
    %v5267 = vsel %vm5265, %v3492, 0
    %5269 = vmatprep.subr.mxu0 0.0
    %5270 = vmatpush1.msra.mxu0 0.0
    %5271 = vmatprep.subr.mxu0 0.0
    %5272 = vmatpush1.msra.mxu0 0.0
    %5273 = vmatprep.subr.mxu0 0.0
    %5274 = vmatpush1.msra.mxu0 0.0
    %5275 = vmatprep.subr.mxu0 0.0
    %5276 = vmatpush1.msra.mxu0 0.0
    %5277 = vmatprep.subr.mxu0 0.0
    %5278 = vmatpush1.msra.mxu0 0.0
    %5279 = vmatprep.subr.mxu0 0.0
    %5280 = vmatpush1.msra.mxu0 0.0
    %5281 = vmatprep.subr.mxu0 0.0
    %5282 = vmatpush1.msra.mxu0 0.0
    %5283 = vmatprep.subr.mxu0 0.0
    %5284 = vmatpush1.msra.mxu0 0.0
    %5285 = vmatprep.subr.mxu0 0.0
    %5286 = vmatpush1.msra.mxu0 0.0
    %5287 = vmatprep.subr.mxu0 0.0
    %5288 = vmatpush1.msra.mxu0 0.0
    %5289 = vmatprep.subr.mxu0 0.0
    %5290 = vmatpush1.msra.mxu0 0.0
    %5291 = vmatprep.subr.mxu0 0.0
    %5292 = vmatpush1.msra.mxu0 0.0
    %5293 = vmatprep.subr.mxu0 0.0
    %5294 = vmatpush1.msra.mxu0 0.0
    %5295 = vmatprep.subr.mxu0 0.0
    %5296 = vmatpush1.msra.mxu0 %v5267
    %5297 = vmatprep.subr.mxu0 0.0
    %5298 = vmatpush1.msra.mxu0 %v3491
    %5299 = vmatprep.subr.mxu0 0.0
    %5300 = vmatpush1.msra.mxu0 %v3490
    %5301 = vmatprep.subr.mxu0 0.0
    %5302 = vmatpush2.msra.mxu0 0.0
    %5303 = vmatprep.subr.mxu0 0.0
    %5304 = vmatpush2.msra.mxu0 0.0
    %5305 = vmatprep.subr.mxu0 0.0
    %5306 = vmatpush2.msra.mxu0 0.0
    %5307 = vmatprep.subr.mxu0 0.0
    %5308 = vmatpush2.msra.mxu0 0.0
    %5309 = vmatprep.subr.mxu0 0.0
    %5310 = vmatpush2.msra.mxu0 0.0
    %5311 = vmatprep.subr.mxu0 0.0
    %5312 = vmatpush2.msra.mxu0 0.0
    %5313 = vmatprep.subr.mxu0 0.0
    %5314 = vmatpush2.msra.mxu0 0.0
    %5315 = vmatprep.subr.mxu0 0.0
    %5316 = vmatpush2.msra.mxu0 0.0
    %5317 = vmatprep.subr.mxu0 0.0
    %5318 = vmatpush2.msra.mxu0 0.0
    %5319 = vmatprep.subr.mxu0 0.0
    %5320 = vmatpush2.msra.mxu0 0.0
    %5321 = vmatprep.subr.mxu0 0.0
    %5322 = vmatpush2.msra.mxu0 0.0
    %5323 = vmatprep.subr.mxu0 0.0
    %5324 = vmatpush2.msra.mxu0 0.0
    %5325 = vmatprep.subr.mxu0 0.0
    %5326 = vmatpush2.msra.mxu0 0.0
    %5327 = vmatprep.subr.mxu0 0.0
    %5328 = vmatpush2.msra.mxu0 0.0
    %5329 = vmatprep.subr.mxu0 0.0
    %5330 = vmatpush2.msra.mxu0 0.0
    %5331 = vmatprep.subr.mxu0 0.0
    %5332 = vmatpush2.msra.mxu0 0.0
    %5333 = vmatprep.mubr.f32.mxu0 0.0
    %5334 = vmatmul.mubr.f32.gmra.mxu0 %v5254
    %v5335 = vpop.f32.mrf.mxu0
    %v5336 = vadd.f32 0.0, %v5335
    %v5337 = vpop.f32.mrf.mxu0
    %5338 = vmatprep.mubr.f32.mxu0 0.0
    %5339 = vmatmul.mubr.f32.gmra.mxu0 %v5257
    %v5340 = vpop.f32.mrf.mxu0
    %v5341 = vadd.f32 0.0, %v5340
    %v5342 = vpop.f32.mrf.mxu0
    %5343 = vmatprep.mubr.f32.mxu0 0.0
    %5344 = vmatmul.mubr.f32.gmra.mxu0 %v5260
    %v5345 = vpop.f32.mrf.mxu0
    %v5346 = vadd.f32 0.0, %v5345
    %v5347 = vpop.f32.mrf.mxu0
    %5348 = vmatprep.mubr.f32.mxu0 0.0
    %5349 = vmatmul.mubr.f32.gmra.mxu0 %v5263
    %v5350 = vpop.f32.mrf.mxu0
    %v5351 = vadd.f32 0.0, %v5350
    %v5352 = vpop.f32.mrf.mxu0
    %5353 = vdwg.mxu0
    %v5355 = vsel %vm5265, %v3523, 0
    %5357 = vmatprep.subr.mxu0 0.0
    %5358 = vmatpush1.msra.mxu0 0.0
    %5359 = vmatprep.subr.mxu0 0.0
    %5360 = vmatpush1.msra.mxu0 0.0
    %5361 = vmatprep.subr.mxu0 0.0
    %5362 = vmatpush1.msra.mxu0 0.0
    %5363 = vmatprep.subr.mxu0 0.0
    %5364 = vmatpush1.msra.mxu0 0.0
    %5365 = vmatprep.subr.mxu0 0.0
    %5366 = vmatpush1.msra.mxu0 0.0
    %5367 = vmatprep.subr.mxu0 0.0
    %5368 = vmatpush1.msra.mxu0 0.0
    %5369 = vmatprep.subr.mxu0 0.0
    %5370 = vmatpush1.msra.mxu0 0.0
    %5371 = vmatprep.subr.mxu0 0.0
    %5372 = vmatpush1.msra.mxu0 0.0
    %5373 = vmatprep.subr.mxu0 0.0
    %5374 = vmatpush1.msra.mxu0 0.0
    %5375 = vmatprep.subr.mxu0 0.0
    %5376 = vmatpush1.msra.mxu0 0.0
    %5377 = vmatprep.subr.mxu0 0.0
    %5378 = vmatpush1.msra.mxu0 0.0
    %5379 = vmatprep.subr.mxu0 0.0
    %5380 = vmatpush1.msra.mxu0 0.0
    %5381 = vmatprep.subr.mxu0 0.0
    %5382 = vmatpush1.msra.mxu0 0.0
    %5383 = vmatprep.subr.mxu0 0.0
    %5384 = vmatpush1.msra.mxu0 %v5355
    %5385 = vmatprep.subr.mxu0 0.0
    %5386 = vmatpush1.msra.mxu0 %v3522
    %5387 = vmatprep.subr.mxu0 0.0
    %5388 = vmatpush1.msra.mxu0 %v3521
    %5389 = vmatprep.subr.mxu0 0.0
    %5390 = vmatpush2.msra.mxu0 0.0
    %5391 = vmatprep.subr.mxu0 0.0
    %5392 = vmatpush2.msra.mxu0 0.0
    %5393 = vmatprep.subr.mxu0 0.0
    %5394 = vmatpush2.msra.mxu0 0.0
    %5395 = vmatprep.subr.mxu0 0.0
    %5396 = vmatpush2.msra.mxu0 0.0
    %5397 = vmatprep.subr.mxu0 0.0
    %5398 = vmatpush2.msra.mxu0 0.0
    %5399 = vmatprep.subr.mxu0 0.0
    %5400 = vmatpush2.msra.mxu0 0.0
    %5401 = vmatprep.subr.mxu0 0.0
    %5402 = vmatpush2.msra.mxu0 0.0
    %5403 = vmatprep.subr.mxu0 0.0
    %5404 = vmatpush2.msra.mxu0 0.0
    %5405 = vmatprep.subr.mxu0 0.0
    %5406 = vmatpush2.msra.mxu0 0.0
    %5407 = vmatprep.subr.mxu0 0.0
    %5408 = vmatpush2.msra.mxu0 0.0
    %5409 = vmatprep.subr.mxu0 0.0
    %5410 = vmatpush2.msra.mxu0 0.0
    %5411 = vmatprep.subr.mxu0 0.0
    %5412 = vmatpush2.msra.mxu0 0.0
    %5413 = vmatprep.subr.mxu0 0.0
    %5414 = vmatpush2.msra.mxu0 0.0
    %5415 = vmatprep.subr.mxu0 0.0
    %5416 = vmatpush2.msra.mxu0 0.0
    %5417 = vmatprep.subr.mxu0 0.0
    %5418 = vmatpush2.msra.mxu0 0.0
    %5419 = vmatprep.subr.mxu0 0.0
    %5420 = vmatpush2.msra.mxu0 0.0
    %5421 = vmatprep.mubr.f32.mxu0 0.0
    %5422 = vmatmul.mubr.f32.gmra.mxu0 %v5254
    %v5423 = vpop.f32.mrf.mxu0
    %v5424 = vadd.f32 0.0, %v5423
    %v5425 = vpop.f32.mrf.mxu0
    %5426 = vmatprep.mubr.f32.mxu0 0.0
    %5427 = vmatmul.mubr.f32.gmra.mxu0 %v5257
    %v5428 = vpop.f32.mrf.mxu0
    %v5429 = vadd.f32 0.0, %v5428
    %v5430 = vpop.f32.mrf.mxu0
    %5431 = vmatprep.mubr.f32.mxu0 0.0
    %5432 = vmatmul.mubr.f32.gmra.mxu0 %v5260
    %v5433 = vpop.f32.mrf.mxu0
    %v5434 = vadd.f32 0.0, %v5433
    %v5435 = vpop.f32.mrf.mxu0
    %5436 = vmatprep.mubr.f32.mxu0 0.0
    %5437 = vmatmul.mubr.f32.gmra.mxu0 %v5263
    %v5438 = vpop.f32.mrf.mxu0
    %v5439 = vadd.f32 0.0, %v5438
    %v5440 = vpop.f32.mrf.mxu0
    %5441 = vdwg.mxu0
    %v5442 = vmax.f32 %v5336, %v5424
    %v5443 = vmax.f32 %v5341, %v5429
    %v5444 = vmax.f32 %v5346, %v5434
    %v5445 = vmax.f32 %v5351, %v5439
    %vm5446 = vcmp.gt.f32.partialorder %v5424, %v5336
    %vm5447 = vcmp.gt.f32.partialorder %v5429, %v5341
    %vm5448 = vcmp.gt.f32.partialorder %v5434, %v5346
    %vm5449 = vcmp.gt.f32.partialorder %v5439, %v5351
    %v5450 = vsel %vm5446, 1, 0
    %v5451 = vsel %vm5447, 1, 0
    %v5452 = vsel %vm5448, 1, 0
    %v5453 = vsel %vm5449, 1, 0
    %v5454 = vadd.s32 %v3469, %v5450
    %v5455 = vadd.s32 %v3469, %v5451
    %v5456 = vadd.s32 %v3469, %v5452
    %v5457 = vadd.s32 %v3469, %v5453
    %vm5458 = vcmask 72704
    %5459 = vst.msk [vmem:[%s10] sm:$0xff] %vm5458, %v5454
    %5460 = vst.msk [vmem:[%s10 + $0x8] sm:$0xff] %vm5458, %v5455
    %5461 = vst.msk [vmem:[%s10 + $0x10] sm:$0xff] %vm5458, %v5456
    %5462 = vst.msk [vmem:[%s10 + $0x18] sm:$0xff] %vm5458, %v5457
    %v5463 = vmax.f32 %v5442, 0.0
    %v5464 = vmax.f32 %v5443, 0.0
    %v5465 = vmax.f32 %v5444, 0.0
    %v5466 = vmax.f32 %v5445, 0.0
    %v5467 = vsub.f32 %v5099, %v5181
    %v5468 = vsub.f32 %v5104, %v5182
    %v5469 = vsub.f32 %v5109, %v5183
    %v5470 = vsub.f32 %v5114, %v5184
    %v5471 = vmul.f32 %v5467, %v5201
    %v5472 = vmul.f32 %v5468, %v5202
    %v5473 = vmul.f32 %v5469, %v5203
    %v5474 = vmul.f32 %v5470, %v5204
    %v5475 = vmul.f32 %v5471, %v5215
    %v5476 = vmul.f32 %v5472, %v5219
    %v5477 = vmul.f32 %v5473, %v5223
    %v5478 = vmul.f32 %v5474, %v5227
    %v5479 = vadd.f32 %v5475, %v5235
    %v5480 = vadd.f32 %v5476, %v5239
    %v5481 = vadd.f32 %v5477, %v5243
    %v5482 = vadd.f32 %v5478, %v5247
    %v5484 = vsel %vm4626, %v5479, 0
    %v5487 = vsel %vm4626, %v5480, 0
    %v5490 = vsel %vm4626, %v5481, 0
    %v5493 = vsel %vm4626, %v5482, 0
    %5495 = vmatprep.subr.mxu0 0.0
    %5496 = vmatpush1.msra.mxu0 0.0
    %5497 = vmatprep.subr.mxu0 0.0
    %5498 = vmatpush1.msra.mxu0 0.0
    %5499 = vmatprep.subr.mxu0 0.0
    %5500 = vmatpush1.msra.mxu0 0.0
    %5501 = vmatprep.subr.mxu0 0.0
    %5502 = vmatpush1.msra.mxu0 0.0
    %5503 = vmatprep.subr.mxu0 0.0
    %5504 = vmatpush1.msra.mxu0 0.0
    %5505 = vmatprep.subr.mxu0 0.0
    %5506 = vmatpush1.msra.mxu0 0.0
    %5507 = vmatprep.subr.mxu0 0.0
    %5508 = vmatpush1.msra.mxu0 0.0
    %5509 = vmatprep.subr.mxu0 0.0
    %5510 = vmatpush1.msra.mxu0 0.0
    %5511 = vmatprep.subr.mxu0 0.0
    %5512 = vmatpush1.msra.mxu0 0.0
    %5513 = vmatprep.subr.mxu0 0.0
    %5514 = vmatpush1.msra.mxu0 0.0
    %5515 = vmatprep.subr.mxu0 0.0
    %5516 = vmatpush1.msra.mxu0 0.0
    %5517 = vmatprep.subr.mxu0 0.0
    %5518 = vmatpush1.msra.mxu0 0.0
    %5519 = vmatprep.subr.mxu0 0.0
    %5520 = vmatpush1.msra.mxu0 0.0
    %5521 = vmatprep.subr.mxu0 0.0
    %5522 = vmatpush1.msra.mxu0 %v5267
    %5523 = vmatprep.subr.mxu0 0.0
    %5524 = vmatpush1.msra.mxu0 %v3491
    %5525 = vmatprep.subr.mxu0 0.0
    %5526 = vmatpush1.msra.mxu0 %v3490
    %5527 = vmatprep.subr.mxu0 0.0
    %5528 = vmatpush2.msra.mxu0 0.0
    %5529 = vmatprep.subr.mxu0 0.0
    %5530 = vmatpush2.msra.mxu0 0.0
    %5531 = vmatprep.subr.mxu0 0.0
    %5532 = vmatpush2.msra.mxu0 0.0
    %5533 = vmatprep.subr.mxu0 0.0
    %5534 = vmatpush2.msra.mxu0 0.0
    %5535 = vmatprep.subr.mxu0 0.0
    %5536 = vmatpush2.msra.mxu0 0.0
    %5537 = vmatprep.subr.mxu0 0.0
    %5538 = vmatpush2.msra.mxu0 0.0
    %5539 = vmatprep.subr.mxu0 0.0
    %5540 = vmatpush2.msra.mxu0 0.0
    %5541 = vmatprep.subr.mxu0 0.0
    %5542 = vmatpush2.msra.mxu0 0.0
    %5543 = vmatprep.subr.mxu0 0.0
    %5544 = vmatpush2.msra.mxu0 0.0
    %5545 = vmatprep.subr.mxu0 0.0
    %5546 = vmatpush2.msra.mxu0 0.0
    %5547 = vmatprep.subr.mxu0 0.0
    %5548 = vmatpush2.msra.mxu0 0.0
    %5549 = vmatprep.subr.mxu0 0.0
    %5550 = vmatpush2.msra.mxu0 0.0
    %5551 = vmatprep.subr.mxu0 0.0
    %5552 = vmatpush2.msra.mxu0 0.0
    %5553 = vmatprep.subr.mxu0 0.0
    %5554 = vmatpush2.msra.mxu0 0.0
    %5555 = vmatprep.subr.mxu0 0.0
    %5556 = vmatpush2.msra.mxu0 0.0
    %5557 = vmatprep.subr.mxu0 0.0
    %5558 = vmatpush2.msra.mxu0 0.0
    %5559 = vmatprep.mubr.f32.mxu0 0.0
    %5560 = vmatmul.mubr.f32.gmra.mxu0 %v5484
    %v5561 = vpop.f32.mrf.mxu0
    %v5562 = vadd.f32 0.0, %v5561
    %v5563 = vpop.f32.mrf.mxu0
    %5564 = vmatprep.mubr.f32.mxu0 0.0
    %5565 = vmatmul.mubr.f32.gmra.mxu0 %v5487
    %v5566 = vpop.f32.mrf.mxu0
    %v5567 = vadd.f32 0.0, %v5566
    %v5568 = vpop.f32.mrf.mxu0
    %5569 = vmatprep.mubr.f32.mxu0 0.0
    %5570 = vmatmul.mubr.f32.gmra.mxu0 %v5490
    %v5571 = vpop.f32.mrf.mxu0
    %v5572 = vadd.f32 0.0, %v5571
    %v5573 = vpop.f32.mrf.mxu0
    %5574 = vmatprep.mubr.f32.mxu0 0.0
    %5575 = vmatmul.mubr.f32.gmra.mxu0 %v5493
    %v5576 = vpop.f32.mrf.mxu0
    %v5577 = vadd.f32 0.0, %v5576
    %v5578 = vpop.f32.mrf.mxu0
    %5579 = vdwg.mxu0
    %5580 = vmatprep.subr.mxu0 0.0
    %5581 = vmatpush1.msra.mxu0 0.0
    %5582 = vmatprep.subr.mxu0 0.0
    %5583 = vmatpush1.msra.mxu0 0.0
    %5584 = vmatprep.subr.mxu0 0.0
    %5585 = vmatpush1.msra.mxu0 0.0
    %5586 = vmatprep.subr.mxu0 0.0
    %5587 = vmatpush1.msra.mxu0 0.0
    %5588 = vmatprep.subr.mxu0 0.0
    %5589 = vmatpush1.msra.mxu0 0.0
    %5590 = vmatprep.subr.mxu0 0.0
    %5591 = vmatpush1.msra.mxu0 0.0
    %5592 = vmatprep.subr.mxu0 0.0
    %5593 = vmatpush1.msra.mxu0 0.0
    %5594 = vmatprep.subr.mxu0 0.0
    %5595 = vmatpush1.msra.mxu0 0.0
    %5596 = vmatprep.subr.mxu0 0.0
    %5597 = vmatpush1.msra.mxu0 0.0
    %5598 = vmatprep.subr.mxu0 0.0
    %5599 = vmatpush1.msra.mxu0 0.0
    %5600 = vmatprep.subr.mxu0 0.0
    %5601 = vmatpush1.msra.mxu0 0.0
    %5602 = vmatprep.subr.mxu0 0.0
    %5603 = vmatpush1.msra.mxu0 0.0
    %5604 = vmatprep.subr.mxu0 0.0
    %5605 = vmatpush1.msra.mxu0 0.0
    %5606 = vmatprep.subr.mxu0 0.0
    %5607 = vmatpush1.msra.mxu0 %v5355
    %5608 = vmatprep.subr.mxu0 0.0
    %5609 = vmatpush1.msra.mxu0 %v3522
    %5610 = vmatprep.subr.mxu0 0.0
    %5611 = vmatpush1.msra.mxu0 %v3521
    %5612 = vmatprep.subr.mxu0 0.0
    %5613 = vmatpush2.msra.mxu0 0.0
    %5614 = vmatprep.subr.mxu0 0.0
    %5615 = vmatpush2.msra.mxu0 0.0
    %5616 = vmatprep.subr.mxu0 0.0
    %5617 = vmatpush2.msra.mxu0 0.0
    %5618 = vmatprep.subr.mxu0 0.0
    %5619 = vmatpush2.msra.mxu0 0.0
    %5620 = vmatprep.subr.mxu0 0.0
    %5621 = vmatpush2.msra.mxu0 0.0
    %5622 = vmatprep.subr.mxu0 0.0
    %5623 = vmatpush2.msra.mxu0 0.0
    %5624 = vmatprep.subr.mxu0 0.0
    %5625 = vmatpush2.msra.mxu0 0.0
    %5626 = vmatprep.subr.mxu0 0.0
    %5627 = vmatpush2.msra.mxu0 0.0
    %5628 = vmatprep.subr.mxu0 0.0
    %5629 = vmatpush2.msra.mxu0 0.0
    %5630 = vmatprep.subr.mxu0 0.0
    %5631 = vmatpush2.msra.mxu0 0.0
    %5632 = vmatprep.subr.mxu0 0.0
    %5633 = vmatpush2.msra.mxu0 0.0
    %5634 = vmatprep.subr.mxu0 0.0
    %5635 = vmatpush2.msra.mxu0 0.0
    %5636 = vmatprep.subr.mxu0 0.0
    %5637 = vmatpush2.msra.mxu0 0.0
    %5638 = vmatprep.subr.mxu0 0.0
    %5639 = vmatpush2.msra.mxu0 0.0
    %5640 = vmatprep.subr.mxu0 0.0
    %5641 = vmatpush2.msra.mxu0 0.0
    %5642 = vmatprep.subr.mxu0 0.0
    %5643 = vmatpush2.msra.mxu0 0.0
    %5644 = vmatprep.mubr.f32.mxu0 0.0
    %5645 = vmatmul.mubr.f32.gmra.mxu0 %v5484
    %v5646 = vpop.f32.mrf.mxu0
    %v5647 = vadd.f32 0.0, %v5646
    %v5648 = vpop.f32.mrf.mxu0
    %5649 = vmatprep.mubr.f32.mxu0 0.0
    %5650 = vmatmul.mubr.f32.gmra.mxu0 %v5487
    %v5651 = vpop.f32.mrf.mxu0
    %v5652 = vadd.f32 0.0, %v5651
    %v5653 = vpop.f32.mrf.mxu0
    %5654 = vmatprep.mubr.f32.mxu0 0.0
    %5655 = vmatmul.mubr.f32.gmra.mxu0 %v5490
    %v5656 = vpop.f32.mrf.mxu0
    %v5657 = vadd.f32 0.0, %v5656
    %v5658 = vpop.f32.mrf.mxu0
    %5659 = vmatprep.mubr.f32.mxu0 0.0
    %5660 = vmatmul.mubr.f32.gmra.mxu0 %v5493
    %v5661 = vpop.f32.mrf.mxu0
    %v5662 = vadd.f32 0.0, %v5661
    %v5663 = vpop.f32.mrf.mxu0
    %5664 = vdwg.mxu0
    %v5665 = vmax.f32 %v5562, %v5647
    %v5666 = vmax.f32 %v5567, %v5652
    %v5667 = vmax.f32 %v5572, %v5657
    %v5668 = vmax.f32 %v5577, %v5662
    %vm5669 = vcmp.gt.f32.partialorder %v5647, %v5562
    %vm5670 = vcmp.gt.f32.partialorder %v5652, %v5567
    %vm5671 = vcmp.gt.f32.partialorder %v5657, %v5572
    %vm5672 = vcmp.gt.f32.partialorder %v5662, %v5577
    %v5673 = vsel %vm5669, 1, 0
    %v5674 = vsel %vm5670, 1, 0
    %v5675 = vsel %vm5671, 1, 0
    %v5676 = vsel %vm5672, 1, 0
    %v5677 = vadd.s32 %v3469, %v5673
    %v5678 = vadd.s32 %v3469, %v5674
    %v5679 = vadd.s32 %v3469, %v5675
    %v5680 = vadd.s32 %v3469, %v5676
    %s5681 = scalar_lea.vmem %s10, 32
    %5682 = vst.msk [vmem:[%s5681] sm:$0xff] %vm5458, %v5677
    %5683 = vst.msk [vmem:[%s5681 + $0x8] sm:$0xff] %vm5458, %v5678
    %5684 = vst.msk [vmem:[%s5681 + $0x10] sm:$0xff] %vm5458, %v5679
    %5685 = vst.msk [vmem:[%s5681 + $0x18] sm:$0xff] %vm5458, %v5680
    %v5686 = vmax.f32 %v5665, 0.0
    %v5687 = vmax.f32 %v5666, 0.0
    %v5688 = vmax.f32 %v5667, 0.0
    %v5689 = vmax.f32 %v5668, 0.0
    %v5690 = vld [vmem:[%s4] sm:$0xff]
    %5695 = vrot.lane.b32.xlu0 %v5463, 1
    %v5696 = vpop.permute.xlu0 %5695
    %5697 = vrot.lane.b32.xlu0 %v5464, 1
    %v5698 = vpop.permute.xlu0 %5697
    %5699 = vrot.lane.b32.xlu0 %v5465, 1
    %v5700 = vpop.permute.xlu0 %5699
    %5701 = vrot.lane.b32.xlu0 %v5466, 1
    %v5702 = vpop.permute.xlu0 %5701
    %v5707 = vsel %vm4044, 0.0, %v5696
    %v5708 = vsel %vm4044, 0.0, %v5698
    %v5709 = vsel %vm4044, 0.0, %v5700
    %v5710 = vsel %vm4044, 0.0, %v5702
    %5711 = vrot.lane.b32.xlu0 %v5463, 127
    %v5712 = vpop.permute.xlu0 %5711
    %5713 = vrot.lane.b32.xlu0 %v5464, 127
    %v5714 = vpop.permute.xlu0 %5713
    %5715 = vrot.lane.b32.xlu0 %v5465, 127
    %v5716 = vpop.permute.xlu0 %5715
    %5717 = vrot.lane.b32.xlu0 %v5466, 127
    %v5718 = vpop.permute.xlu0 %5717
    %vm5723 = vcmask 64512
    %v5724 = vsel %vm5723, %v5712, 0.0
    %v5725 = vsel %vm5723, %v5714, 0.0
    %v5726 = vsel %vm5723, %v5716, 0.0
    %v5727 = vsel %vm5723, %v5718, 0.0
    %v5729 = vsel %vm4066, %v5690, 0
    %5731 = vmatprep.subr.mxu0 0.0
    %5732 = vmatpush1.msra.mxu0 0.0
    %5733 = vmatprep.subr.mxu0 0.0
    %5734 = vmatpush1.msra.mxu0 0.0
    %5735 = vmatprep.subr.mxu0 0.0
    %5736 = vmatpush1.msra.mxu0 0.0
    %5737 = vmatprep.subr.mxu0 0.0
    %5738 = vmatpush1.msra.mxu0 0.0
    %5739 = vmatprep.subr.mxu0 0.0
    %5740 = vmatpush1.msra.mxu0 %v5727
    %5741 = vmatprep.subr.mxu0 0.0
    %5742 = vmatpush1.msra.mxu0 %v5726
    %5743 = vmatprep.subr.mxu0 0.0
    %5744 = vmatpush1.msra.mxu0 %v5725
    %5745 = vmatprep.subr.mxu0 0.0
    %5746 = vmatpush1.msra.mxu0 %v5724
    %5747 = vmatprep.subr.mxu0 0.0
    %5748 = vmatpush1.msra.mxu0 %v5466
    %5749 = vmatprep.subr.mxu0 0.0
    %5750 = vmatpush1.msra.mxu0 %v5465
    %5751 = vmatprep.subr.mxu0 0.0
    %5752 = vmatpush1.msra.mxu0 %v5464
    %5753 = vmatprep.subr.mxu0 0.0
    %5754 = vmatpush1.msra.mxu0 %v5463
    %5755 = vmatprep.subr.mxu0 0.0
    %5756 = vmatpush1.msra.mxu0 %v5710
    %5757 = vmatprep.subr.mxu0 0.0
    %5758 = vmatpush1.msra.mxu0 %v5709
    %5759 = vmatprep.subr.mxu0 0.0
    %5760 = vmatpush1.msra.mxu0 %v5708
    %5761 = vmatprep.subr.mxu0 0.0
    %5762 = vmatpush1.msra.mxu0 %v5707
    %5763 = vmatprep.subr.mxu0 0.0
    %5764 = vmatpush2.msra.mxu0 0.0
    %5765 = vmatprep.subr.mxu0 0.0
    %5766 = vmatpush2.msra.mxu0 0.0
    %5767 = vmatprep.subr.mxu0 0.0
    %5768 = vmatpush2.msra.mxu0 0.0
    %5769 = vmatprep.subr.mxu0 0.0
    %5770 = vmatpush2.msra.mxu0 0.0
    %5771 = vmatprep.subr.mxu0 0.0
    %5772 = vmatpush2.msra.mxu0 0.0
    %5773 = vmatprep.subr.mxu0 0.0
    %5774 = vmatpush2.msra.mxu0 0.0
    %5775 = vmatprep.subr.mxu0 0.0
    %5776 = vmatpush2.msra.mxu0 0.0
    %5777 = vmatprep.subr.mxu0 0.0
    %5778 = vmatpush2.msra.mxu0 0.0
    %5779 = vmatprep.subr.mxu0 0.0
    %5780 = vmatpush2.msra.mxu0 0.0
    %5781 = vmatprep.subr.mxu0 0.0
    %5782 = vmatpush2.msra.mxu0 0.0
    %5783 = vmatprep.subr.mxu0 0.0
    %5784 = vmatpush2.msra.mxu0 0.0
    %5785 = vmatprep.subr.mxu0 0.0
    %5786 = vmatpush2.msra.mxu0 0.0
    %5787 = vmatprep.subr.mxu0 0.0
    %5788 = vmatpush2.msra.mxu0 0.0
    %5789 = vmatprep.subr.mxu0 0.0
    %5790 = vmatpush2.msra.mxu0 0.0
    %5791 = vmatprep.subr.mxu0 0.0
    %5792 = vmatpush2.msra.mxu0 0.0
    %5793 = vmatprep.subr.mxu0 0.0
    %5794 = vmatpush2.msra.mxu0 0.0
    %5795 = vmatprep.mubr.f32.mxu0 0.0
    %5796 = vmatmul.mubr.f32.gmra.mxu0 %v5729
    %v5797 = vpop.f32.mrf.mxu0
    %v5798 = vadd.f32 0.0, %v5797
    %v5799 = vpop.f32.mrf.mxu0
    %5800 = vdwg.mxu0
    %5805 = vrot.lane.b32.xlu0 %v5686, 1
    %v5806 = vpop.permute.xlu0 %5805
    %5807 = vrot.lane.b32.xlu0 %v5687, 1
    %v5808 = vpop.permute.xlu0 %5807
    %5809 = vrot.lane.b32.xlu0 %v5688, 1
    %v5810 = vpop.permute.xlu0 %5809
    %5811 = vrot.lane.b32.xlu0 %v5689, 1
    %v5812 = vpop.permute.xlu0 %5811
    %v5817 = vsel %vm4044, 0.0, %v5806
    %v5818 = vsel %vm4044, 0.0, %v5808
    %v5819 = vsel %vm4044, 0.0, %v5810
    %v5820 = vsel %vm4044, 0.0, %v5812
    %5821 = vrot.lane.b32.xlu0 %v5686, 127
    %v5822 = vpop.permute.xlu0 %5821
    %5823 = vrot.lane.b32.xlu0 %v5687, 127
    %v5824 = vpop.permute.xlu0 %5823
    %5825 = vrot.lane.b32.xlu0 %v5688, 127
    %v5826 = vpop.permute.xlu0 %5825
    %5827 = vrot.lane.b32.xlu0 %v5689, 127
    %v5828 = vpop.permute.xlu0 %5827
    %v5833 = vsel %vm5723, %v5822, 0.0
    %v5834 = vsel %vm5723, %v5824, 0.0
    %v5835 = vsel %vm5723, %v5826, 0.0
    %v5836 = vsel %vm5723, %v5828, 0.0
    %5837 = vmatprep.subr.mxu0 0.0
    %5838 = vmatpush1.msra.mxu0 0.0
    %5839 = vmatprep.subr.mxu0 0.0
    %5840 = vmatpush1.msra.mxu0 0.0
    %5841 = vmatprep.subr.mxu0 0.0
    %5842 = vmatpush1.msra.mxu0 0.0
    %5843 = vmatprep.subr.mxu0 0.0
    %5844 = vmatpush1.msra.mxu0 0.0
    %5845 = vmatprep.subr.mxu0 0.0
    %5846 = vmatpush1.msra.mxu0 %v5836
    %5847 = vmatprep.subr.mxu0 0.0
    %5848 = vmatpush1.msra.mxu0 %v5835
    %5849 = vmatprep.subr.mxu0 0.0
    %5850 = vmatpush1.msra.mxu0 %v5834
    %5851 = vmatprep.subr.mxu0 0.0
    %5852 = vmatpush1.msra.mxu0 %v5833
    %5853 = vmatprep.subr.mxu0 0.0
    %5854 = vmatpush1.msra.mxu0 %v5689
    %5855 = vmatprep.subr.mxu0 0.0
    %5856 = vmatpush1.msra.mxu0 %v5688
    %5857 = vmatprep.subr.mxu0 0.0
    %5858 = vmatpush1.msra.mxu0 %v5687
    %5859 = vmatprep.subr.mxu0 0.0
    %5860 = vmatpush1.msra.mxu0 %v5686
    %5861 = vmatprep.subr.mxu0 0.0
    %5862 = vmatpush1.msra.mxu0 %v5820
    %5863 = vmatprep.subr.mxu0 0.0
    %5864 = vmatpush1.msra.mxu0 %v5819
    %5865 = vmatprep.subr.mxu0 0.0
    %5866 = vmatpush1.msra.mxu0 %v5818
    %5867 = vmatprep.subr.mxu0 0.0
    %5868 = vmatpush1.msra.mxu0 %v5817
    %5869 = vmatprep.subr.mxu0 0.0
    %5870 = vmatpush2.msra.mxu0 0.0
    %5871 = vmatprep.subr.mxu0 0.0
    %5872 = vmatpush2.msra.mxu0 0.0
    %5873 = vmatprep.subr.mxu0 0.0
    %5874 = vmatpush2.msra.mxu0 0.0
    %5875 = vmatprep.subr.mxu0 0.0
    %5876 = vmatpush2.msra.mxu0 0.0
    %5877 = vmatprep.subr.mxu0 0.0
    %5878 = vmatpush2.msra.mxu0 0.0
    %5879 = vmatprep.subr.mxu0 0.0
    %5880 = vmatpush2.msra.mxu0 0.0
    %5881 = vmatprep.subr.mxu0 0.0
    %5882 = vmatpush2.msra.mxu0 0.0
    %5883 = vmatprep.subr.mxu0 0.0
    %5884 = vmatpush2.msra.mxu0 0.0
    %5885 = vmatprep.subr.mxu0 0.0
    %5886 = vmatpush2.msra.mxu0 0.0
    %5887 = vmatprep.subr.mxu0 0.0
    %5888 = vmatpush2.msra.mxu0 0.0
    %5889 = vmatprep.subr.mxu0 0.0
    %5890 = vmatpush2.msra.mxu0 0.0
    %5891 = vmatprep.subr.mxu0 0.0
    %5892 = vmatpush2.msra.mxu0 0.0
    %5893 = vmatprep.subr.mxu0 0.0
    %5894 = vmatpush2.msra.mxu0 0.0
    %5895 = vmatprep.subr.mxu0 0.0
    %5896 = vmatpush2.msra.mxu0 0.0
    %5897 = vmatprep.subr.mxu0 0.0
    %5898 = vmatpush2.msra.mxu0 0.0
    %5899 = vmatprep.subr.mxu0 0.0
    %5900 = vmatpush2.msra.mxu0 0.0
    %5901 = vmatprep.mubr.f32.mxu0 0.0
    %5902 = vmatmul.mubr.f32.gmra.mxu0 %v5729
    %v5903 = vpop.f32.mrf.mxu0
    %v5904 = vadd.f32 0.0, %v5903
    %v5905 = vpop.f32.mrf.mxu0
    %5906 = vdwg.mxu0
    %vm5907 = vcmask 65536
    %v5908 = vsel %vm5907, %v5798, 0.0
    %5909 = vadd.xlane.f32.xlu0 %v5908
    %v5910 = vpop.xlane.xlu0 %5909
    %v5911 = vmul.f32 %v5798, %v5798
    %v5912 = vsel %vm5907, %v5911, 0.0
    %5913 = vadd.xlane.f32.xlu0 %v5912
    %v5914 = vpop.xlane.xlu0 %5913
    %v5915 = vsel %vm5907, %v5904, 0.0
    %5916 = vadd.xlane.f32.xlu0 %v5915
    %v5917 = vpop.xlane.xlu0 %5916
    %v5918 = vadd.f32 %v5910, %v5917
    %v5919 = vmul.f32 %v5904, %v5904
    %v5920 = vsel %vm5907, %v5919, 0.0
    %5921 = vadd.xlane.f32.xlu0 %v5920
    %v5922 = vpop.xlane.xlu0 %5921
    %v5923 = vadd.f32 %v5914, %v5922
    %v5924 = vmul.f32 %v5918, 0.055555556
    %v5925 = vmul.f32 %v5923, 0.055555556
    %v5926 = vmul.f32 %v5924, %v5924
    %v5927 = vsub.f32 %v5925, %v5926
    %v5928 = vadd.f32 %v5927, 1e-05
    %v5929 = vrsqrt.pop %v5928
    %v5930 = vsub.f32 %v5798, %v5924
    %v5931 = vmul.f32 %v5930, %v5929
    %5932 = vset.pattern.permute.xlu0 3
    %5933 = vperm.xlu0 %5932, %v33
    %v5934 = vpop.permute.xlu0 %5933
    %v5936 = vmul.f32 %v5931, %v5934
    %5937 = vset.pattern.permute.xlu0 3
    %5938 = vperm.xlu0 %5937, %v37
    %v5939 = vpop.permute.xlu0 %5938
    %v5941 = vadd.f32 %v5936, %v5939
    %v5942 = vlaneseq
    %v5943 = vshrl.u32 %v5942, 7
    %v5944 = vsub.s32 0, %v5943
    %v5945 = vrot.slane %v5941, %v5944
    %v5947 = vsel %vm5458, %v5945, 0
    %vm5949 = vcmask 1040384
    %v5951 = vsel %vm5949, %v3491, 0
    %5953 = vmatprep.subr.mxu0 0.0
    %5954 = vmatpush1.msra.mxu0 0.0
    %5955 = vmatprep.subr.mxu0 0.0
    %5956 = vmatpush1.msra.mxu0 0.0
    %5957 = vmatprep.subr.mxu0 0.0
    %5958 = vmatpush1.msra.mxu0 0.0
    %5959 = vmatprep.subr.mxu0 0.0
    %5960 = vmatpush1.msra.mxu0 0.0
    %5961 = vmatprep.subr.mxu0 0.0
    %5962 = vmatpush1.msra.mxu0 0.0
    %5963 = vmatprep.subr.mxu0 0.0
    %5964 = vmatpush1.msra.mxu0 0.0
    %5965 = vmatprep.subr.mxu0 0.0
    %5966 = vmatpush1.msra.mxu0 0.0
    %5967 = vmatprep.subr.mxu0 0.0
    %5968 = vmatpush1.msra.mxu0 0.0
    %5969 = vmatprep.subr.mxu0 0.0
    %5970 = vmatpush1.msra.mxu0 0.0
    %5971 = vmatprep.subr.mxu0 0.0
    %5972 = vmatpush1.msra.mxu0 0.0
    %5973 = vmatprep.subr.mxu0 0.0
    %5974 = vmatpush1.msra.mxu0 0.0
    %5975 = vmatprep.subr.mxu0 0.0
    %5976 = vmatpush1.msra.mxu0 0.0
    %5977 = vmatprep.subr.mxu0 0.0
    %5978 = vmatpush1.msra.mxu0 0.0
    %5979 = vmatprep.subr.mxu0 0.0
    %5980 = vmatpush1.msra.mxu0 0.0
    %5981 = vmatprep.subr.mxu0 0.0
    %5982 = vmatpush1.msra.mxu0 %v5951
    %5983 = vmatprep.subr.mxu0 0.0
    %5984 = vmatpush1.msra.mxu0 %v3490
    %5985 = vmatprep.subr.mxu0 0.0
    %5986 = vmatpush2.msra.mxu0 0.0
    %5987 = vmatprep.subr.mxu0 0.0
    %5988 = vmatpush2.msra.mxu0 0.0
    %5989 = vmatprep.subr.mxu0 0.0
    %5990 = vmatpush2.msra.mxu0 0.0
    %5991 = vmatprep.subr.mxu0 0.0
    %5992 = vmatpush2.msra.mxu0 0.0
    %5993 = vmatprep.subr.mxu0 0.0
    %5994 = vmatpush2.msra.mxu0 0.0
    %5995 = vmatprep.subr.mxu0 0.0
    %5996 = vmatpush2.msra.mxu0 0.0
    %5997 = vmatprep.subr.mxu0 0.0
    %5998 = vmatpush2.msra.mxu0 0.0
    %5999 = vmatprep.subr.mxu0 0.0
    %6000 = vmatpush2.msra.mxu0 0.0
    %6001 = vmatprep.subr.mxu0 0.0
    %6002 = vmatpush2.msra.mxu0 0.0
    %6003 = vmatprep.subr.mxu0 0.0
    %6004 = vmatpush2.msra.mxu0 0.0
    %6005 = vmatprep.subr.mxu0 0.0
    %6006 = vmatpush2.msra.mxu0 0.0
    %6007 = vmatprep.subr.mxu0 0.0
    %6008 = vmatpush2.msra.mxu0 0.0
    %6009 = vmatprep.subr.mxu0 0.0
    %6010 = vmatpush2.msra.mxu0 0.0
    %6011 = vmatprep.subr.mxu0 0.0
    %6012 = vmatpush2.msra.mxu0 0.0
    %6013 = vmatprep.subr.mxu0 0.0
    %6014 = vmatpush2.msra.mxu0 0.0
    %6015 = vmatprep.subr.mxu0 0.0
    %6016 = vmatpush2.msra.mxu0 0.0
    %6017 = vmatprep.mubr.f32.mxu0 0.0
    %6018 = vmatmul.mubr.f32.gmra.mxu0 %v5947
    %v6019 = vpop.f32.mrf.mxu0
    %v6020 = vadd.f32 0.0, %v6019
    %v6021 = vpop.f32.mrf.mxu0
    %6022 = vdwg.mxu0
    %v6024 = vsel %vm5949, %v3522, 0
    %6026 = vmatprep.subr.mxu0 0.0
    %6027 = vmatpush1.msra.mxu0 0.0
    %6028 = vmatprep.subr.mxu0 0.0
    %6029 = vmatpush1.msra.mxu0 0.0
    %6030 = vmatprep.subr.mxu0 0.0
    %6031 = vmatpush1.msra.mxu0 0.0
    %6032 = vmatprep.subr.mxu0 0.0
    %6033 = vmatpush1.msra.mxu0 0.0
    %6034 = vmatprep.subr.mxu0 0.0
    %6035 = vmatpush1.msra.mxu0 0.0
    %6036 = vmatprep.subr.mxu0 0.0
    %6037 = vmatpush1.msra.mxu0 0.0
    %6038 = vmatprep.subr.mxu0 0.0
    %6039 = vmatpush1.msra.mxu0 0.0
    %6040 = vmatprep.subr.mxu0 0.0
    %6041 = vmatpush1.msra.mxu0 0.0
    %6042 = vmatprep.subr.mxu0 0.0
    %6043 = vmatpush1.msra.mxu0 0.0
    %6044 = vmatprep.subr.mxu0 0.0
    %6045 = vmatpush1.msra.mxu0 0.0
    %6046 = vmatprep.subr.mxu0 0.0
    %6047 = vmatpush1.msra.mxu0 0.0
    %6048 = vmatprep.subr.mxu0 0.0
    %6049 = vmatpush1.msra.mxu0 0.0
    %6050 = vmatprep.subr.mxu0 0.0
    %6051 = vmatpush1.msra.mxu0 0.0
    %6052 = vmatprep.subr.mxu0 0.0
    %6053 = vmatpush1.msra.mxu0 0.0
    %6054 = vmatprep.subr.mxu0 0.0
    %6055 = vmatpush1.msra.mxu0 %v6024
    %6056 = vmatprep.subr.mxu0 0.0
    %6057 = vmatpush1.msra.mxu0 %v3521
    %6058 = vmatprep.subr.mxu0 0.0
    %6059 = vmatpush2.msra.mxu0 0.0
    %6060 = vmatprep.subr.mxu0 0.0
    %6061 = vmatpush2.msra.mxu0 0.0
    %6062 = vmatprep.subr.mxu0 0.0
    %6063 = vmatpush2.msra.mxu0 0.0
    %6064 = vmatprep.subr.mxu0 0.0
    %6065 = vmatpush2.msra.mxu0 0.0
    %6066 = vmatprep.subr.mxu0 0.0
    %6067 = vmatpush2.msra.mxu0 0.0
    %6068 = vmatprep.subr.mxu0 0.0
    %6069 = vmatpush2.msra.mxu0 0.0
    %6070 = vmatprep.subr.mxu0 0.0
    %6071 = vmatpush2.msra.mxu0 0.0
    %6072 = vmatprep.subr.mxu0 0.0
    %6073 = vmatpush2.msra.mxu0 0.0
    %6074 = vmatprep.subr.mxu0 0.0
    %6075 = vmatpush2.msra.mxu0 0.0
    %6076 = vmatprep.subr.mxu0 0.0
    %6077 = vmatpush2.msra.mxu0 0.0
    %6078 = vmatprep.subr.mxu0 0.0
    %6079 = vmatpush2.msra.mxu0 0.0
    %6080 = vmatprep.subr.mxu0 0.0
    %6081 = vmatpush2.msra.mxu0 0.0
    %6082 = vmatprep.subr.mxu0 0.0
    %6083 = vmatpush2.msra.mxu0 0.0
    %6084 = vmatprep.subr.mxu0 0.0
    %6085 = vmatpush2.msra.mxu0 0.0
    %6086 = vmatprep.subr.mxu0 0.0
    %6087 = vmatpush2.msra.mxu0 0.0
    %6088 = vmatprep.subr.mxu0 0.0
    %6089 = vmatpush2.msra.mxu0 0.0
    %6090 = vmatprep.mubr.f32.mxu0 0.0
    %6091 = vmatmul.mubr.f32.gmra.mxu0 %v5947
    %v6092 = vpop.f32.mrf.mxu0
    %v6093 = vadd.f32 0.0, %v6092
    %v6094 = vpop.f32.mrf.mxu0
    %6095 = vdwg.mxu0
    %v6096 = vmax.f32 %v6020, %v6093
    %vm6097 = vcmp.gt.f32.partialorder %v6093, %v6020
    %v6098 = vsel %vm6097, 1, 0
    %v6099 = vadd.s32 %v3469, %v6098
    %vm6100 = vcmask 24576
    %6101 = vst.msk [vmem:[#allocation6] sm:$0x1] %vm6100, %v6099
    %v6102 = vmax.f32 %v6096, 0.0
    %v6103 = vsub.f32 %v5904, %v5924
    %v6104 = vmul.f32 %v6103, %v5929
    %v6105 = vmul.f32 %v6104, %v5934
    %v6106 = vadd.f32 %v6105, %v5939
    %v6107 = vlaneseq
    %v6108 = vshrl.u32 %v6107, 7
    %v6109 = vsub.s32 0, %v6108
    %v6110 = vrot.slane %v6106, %v6109
    %v6112 = vsel %vm5458, %v6110, 0
    %6114 = vmatprep.subr.mxu0 0.0
    %6115 = vmatpush1.msra.mxu0 0.0
    %6116 = vmatprep.subr.mxu0 0.0
    %6117 = vmatpush1.msra.mxu0 0.0
    %6118 = vmatprep.subr.mxu0 0.0
    %6119 = vmatpush1.msra.mxu0 0.0
    %6120 = vmatprep.subr.mxu0 0.0
    %6121 = vmatpush1.msra.mxu0 0.0
    %6122 = vmatprep.subr.mxu0 0.0
    %6123 = vmatpush1.msra.mxu0 0.0
    %6124 = vmatprep.subr.mxu0 0.0
    %6125 = vmatpush1.msra.mxu0 0.0
    %6126 = vmatprep.subr.mxu0 0.0
    %6127 = vmatpush1.msra.mxu0 0.0
    %6128 = vmatprep.subr.mxu0 0.0
    %6129 = vmatpush1.msra.mxu0 0.0
    %6130 = vmatprep.subr.mxu0 0.0
    %6131 = vmatpush1.msra.mxu0 0.0
    %6132 = vmatprep.subr.mxu0 0.0
    %6133 = vmatpush1.msra.mxu0 0.0
    %6134 = vmatprep.subr.mxu0 0.0
    %6135 = vmatpush1.msra.mxu0 0.0
    %6136 = vmatprep.subr.mxu0 0.0
    %6137 = vmatpush1.msra.mxu0 0.0
    %6138 = vmatprep.subr.mxu0 0.0
    %6139 = vmatpush1.msra.mxu0 0.0
    %6140 = vmatprep.subr.mxu0 0.0
    %6141 = vmatpush1.msra.mxu0 0.0
    %6142 = vmatprep.subr.mxu0 0.0
    %6143 = vmatpush1.msra.mxu0 %v5951
    %6144 = vmatprep.subr.mxu0 0.0
    %6145 = vmatpush1.msra.mxu0 %v3490
    %6146 = vmatprep.subr.mxu0 0.0
    %6147 = vmatpush2.msra.mxu0 0.0
    %6148 = vmatprep.subr.mxu0 0.0
    %6149 = vmatpush2.msra.mxu0 0.0
    %6150 = vmatprep.subr.mxu0 0.0
    %6151 = vmatpush2.msra.mxu0 0.0
    %6152 = vmatprep.subr.mxu0 0.0
    %6153 = vmatpush2.msra.mxu0 0.0
    %6154 = vmatprep.subr.mxu0 0.0
    %6155 = vmatpush2.msra.mxu0 0.0
    %6156 = vmatprep.subr.mxu0 0.0
    %6157 = vmatpush2.msra.mxu0 0.0
    %6158 = vmatprep.subr.mxu0 0.0
    %6159 = vmatpush2.msra.mxu0 0.0
    %6160 = vmatprep.subr.mxu0 0.0
    %6161 = vmatpush2.msra.mxu0 0.0
    %6162 = vmatprep.subr.mxu0 0.0
    %6163 = vmatpush2.msra.mxu0 0.0
    %6164 = vmatprep.subr.mxu0 0.0
    %6165 = vmatpush2.msra.mxu0 0.0
    %6166 = vmatprep.subr.mxu0 0.0
    %6167 = vmatpush2.msra.mxu0 0.0
    %6168 = vmatprep.subr.mxu0 0.0
    %6169 = vmatpush2.msra.mxu0 0.0
    %6170 = vmatprep.subr.mxu0 0.0
    %6171 = vmatpush2.msra.mxu0 0.0
    %6172 = vmatprep.subr.mxu0 0.0
    %6173 = vmatpush2.msra.mxu0 0.0
    %6174 = vmatprep.subr.mxu0 0.0
    %6175 = vmatpush2.msra.mxu0 0.0
    %6176 = vmatprep.subr.mxu0 0.0
    %6177 = vmatpush2.msra.mxu0 0.0
    %6178 = vmatprep.mubr.f32.mxu0 0.0
    %6179 = vmatmul.mubr.f32.gmra.mxu0 %v6112
    %v6180 = vpop.f32.mrf.mxu0
    %v6181 = vadd.f32 0.0, %v6180
    %v6182 = vpop.f32.mrf.mxu0
    %6183 = vdwg.mxu0
    %6184 = vmatprep.subr.mxu0 0.0
    %6185 = vmatpush1.msra.mxu0 0.0
    %6186 = vmatprep.subr.mxu0 0.0
    %6187 = vmatpush1.msra.mxu0 0.0
    %6188 = vmatprep.subr.mxu0 0.0
    %6189 = vmatpush1.msra.mxu0 0.0
    %6190 = vmatprep.subr.mxu0 0.0
    %6191 = vmatpush1.msra.mxu0 0.0
    %6192 = vmatprep.subr.mxu0 0.0
    %6193 = vmatpush1.msra.mxu0 0.0
    %6194 = vmatprep.subr.mxu0 0.0
    %6195 = vmatpush1.msra.mxu0 0.0
    %6196 = vmatprep.subr.mxu0 0.0
    %6197 = vmatpush1.msra.mxu0 0.0
    %6198 = vmatprep.subr.mxu0 0.0
    %6199 = vmatpush1.msra.mxu0 0.0
    %6200 = vmatprep.subr.mxu0 0.0
    %6201 = vmatpush1.msra.mxu0 0.0
    %6202 = vmatprep.subr.mxu0 0.0
    %6203 = vmatpush1.msra.mxu0 0.0
    %6204 = vmatprep.subr.mxu0 0.0
    %6205 = vmatpush1.msra.mxu0 0.0
    %6206 = vmatprep.subr.mxu0 0.0
    %6207 = vmatpush1.msra.mxu0 0.0
    %6208 = vmatprep.subr.mxu0 0.0
    %6209 = vmatpush1.msra.mxu0 0.0
    %6210 = vmatprep.subr.mxu0 0.0
    %6211 = vmatpush1.msra.mxu0 0.0
    %6212 = vmatprep.subr.mxu0 0.0
    %6213 = vmatpush1.msra.mxu0 %v6024
    %6214 = vmatprep.subr.mxu0 0.0
    %6215 = vmatpush1.msra.mxu0 %v3521
    %6216 = vmatprep.subr.mxu0 0.0
    %6217 = vmatpush2.msra.mxu0 0.0
    %6218 = vmatprep.subr.mxu0 0.0
    %6219 = vmatpush2.msra.mxu0 0.0
    %6220 = vmatprep.subr.mxu0 0.0
    %6221 = vmatpush2.msra.mxu0 0.0
    %6222 = vmatprep.subr.mxu0 0.0
    %6223 = vmatpush2.msra.mxu0 0.0
    %6224 = vmatprep.subr.mxu0 0.0
    %6225 = vmatpush2.msra.mxu0 0.0
    %6226 = vmatprep.subr.mxu0 0.0
    %6227 = vmatpush2.msra.mxu0 0.0
    %6228 = vmatprep.subr.mxu0 0.0
    %6229 = vmatpush2.msra.mxu0 0.0
    %6230 = vmatprep.subr.mxu0 0.0
    %6231 = vmatpush2.msra.mxu0 0.0
    %6232 = vmatprep.subr.mxu0 0.0
    %6233 = vmatpush2.msra.mxu0 0.0
    %6234 = vmatprep.subr.mxu0 0.0
    %6235 = vmatpush2.msra.mxu0 0.0
    %6236 = vmatprep.subr.mxu0 0.0
    %6237 = vmatpush2.msra.mxu0 0.0
    %6238 = vmatprep.subr.mxu0 0.0
    %6239 = vmatpush2.msra.mxu0 0.0
    %6240 = vmatprep.subr.mxu0 0.0
    %6241 = vmatpush2.msra.mxu0 0.0
    %6242 = vmatprep.subr.mxu0 0.0
    %6243 = vmatpush2.msra.mxu0 0.0
    %6244 = vmatprep.subr.mxu0 0.0
    %6245 = vmatpush2.msra.mxu0 0.0
    %6246 = vmatprep.subr.mxu0 0.0
    %6247 = vmatpush2.msra.mxu0 0.0
    %6248 = vmatprep.mubr.f32.mxu0 0.0
    %6249 = vmatmul.mubr.f32.gmra.mxu0 %v6112
    %v6250 = vpop.f32.mrf.mxu0
    %v6251 = vadd.f32 0.0, %v6250
    %v6252 = vpop.f32.mrf.mxu0
    %6253 = vdwg.mxu0
    %v6254 = vmax.f32 %v6181, %v6251
    %vm6255 = vcmp.gt.f32.partialorder %v6251, %v6181
    %v6256 = vsel %vm6255, 1, 0
    %v6257 = vadd.s32 %v3469, %v6256
    %s6258 = scalar_lea.vmem [#allocation6], 1
    %6259 = vst.msk [vmem:[%s6258] sm:$0x1] %vm6100, %v6257
    %v6260 = vmax.f32 %v6254, 0.0
    %6261 = vst.msk [vmem:[#allocation2] sm:$0x1] %vm6100, %v6102
    %s6262 = scalar_lea.vmem [#allocation2], 1
    %6263 = vst.msk [vmem:[%s6262] sm:$0x1] %vm6100, %v6260
    // Predicated region
    $region30: #{encoder_forward.1} parent=1 // pred_check
      _
    $region31: #{encoder_forward.1} parent=1 // pred_check_branch
      %6265 = sbr.rel (0) target = $region33
    $region32: #{encoder_forward.1} parent=1 // pred_region
      %s6267 = ssub.s32 32, 32
      %6268 = vsyncadd [#allocation3], %s6267
      %s6269 = sshll.u32 [#allocation2], 4
      %s6270 = int_to_ptr.vmem [resolvable:$true] %s6269
      %6275 = dma.vmem_to_hbm [thread:$0]  %s6270, 32, %s7, [#allocation3], 16, 16, 1
    $region33: #{encoder_forward.1} parent=1 // pred_fallthru
      _
    // Predicated region
    $region34: #{encoder_forward.1} parent=1 // pred_check
      _
    $region35: #{encoder_forward.1} parent=1 // pred_check_branch
      %6277 = sbr.rel (0) target = $region37
    $region36: #{encoder_forward.1} parent=1 // pred_region
      %s6279 = ssub.s32 1024, 1024
      %6280 = vsyncadd [#allocation5], %s6279
      %s6281 = sshll.u32 [#allocation4], 4
      %s6282 = int_to_ptr.vmem [resolvable:$true] %s6281
      %6287 = dma.vmem_to_hbm [thread:$0]  %s6282, 1024, %s8, [#allocation5], 128, 128, 8
    $region37: #{encoder_forward.1} parent=1 // pred_fallthru
      _
    // Predicated region
    $region38: #{encoder_forward.1} parent=1 // pred_check
      _
    $region39: #{encoder_forward.1} parent=1 // pred_check_branch
      %6289 = sbr.rel (0) target = $region41
    $region40: #{encoder_forward.1} parent=1 // pred_region
      _
    $region41: #{encoder_forward.1} parent=1 // pred_fallthru
      _
    // Predicated region
    $region42: #{encoder_forward.1} parent=1 // pred_check
      _
    $region43: #{encoder_forward.1} parent=1 // pred_check_branch
      %6291 = sbr.rel (0) target = $region45
    $region44: #{encoder_forward.1} parent=1 // pred_region
      _
    $region45: #{encoder_forward.1} parent=1 // pred_fallthru
      _
    // Predicated region
    $region46: #{encoder_forward.1} parent=1 // pred_check
      _
    $region47: #{encoder_forward.1} parent=1 // pred_check_branch
      %6293 = sbr.rel (0) target = $region49
    $region48: #{encoder_forward.1} parent=1 // pred_region
      %s6295 = ssub.s32 32, 32
      %6296 = vsyncadd [#allocation5], %s6295
      %s6297 = sshll.u32 [#allocation6], 4
      %s6298 = int_to_ptr.vmem [resolvable:$true] %s6297
      %6303 = dma.vmem_to_hbm [thread:$0]  %s6298, 32, %s11, [#allocation5], 16, 16, 1
    $region49: #{encoder_forward.1} parent=1 // pred_fallthru
      _
    // Predicated region
    $region50: #{encoder_forward.1} parent=1 // pred_check
      _
    $region51: #{encoder_forward.1} parent=1 // pred_check_branch
      %6305 = sbr.rel (0) target = $region53
    $region52: #{encoder_forward.1} parent=1 // pred_region
      %6306 = dma.done [#allocation3], 32
    $region53: #{encoder_forward.1} parent=1 // pred_fallthru
      _
    // Predicated region
    $region54: #{encoder_forward.1} parent=1 // pred_check
      _
    $region55: #{encoder_forward.1} parent=1 // pred_check_branch
      %6308 = sbr.rel (0) target = $region57
    $region56: #{encoder_forward.1} parent=1 // pred_region
      %6309 = dma.done [#allocation5], 1024
    $region57: #{encoder_forward.1} parent=1 // pred_fallthru
      _
    // Predicated region
    $region58: #{encoder_forward.1} parent=1 // pred_check
      _
    $region59: #{encoder_forward.1} parent=1 // pred_check_branch
      %6311 = sbr.rel (0) target = $region61
    $region60: #{encoder_forward.1} parent=1 // pred_region
      _
    $region61: #{encoder_forward.1} parent=1 // pred_fallthru
      _
    // Predicated region
    $region62: #{encoder_forward.1} parent=1 // pred_check
      _
    $region63: #{encoder_forward.1} parent=1 // pred_check_branch
      %6313 = sbr.rel (0) target = $region65
    $region64: #{encoder_forward.1} parent=1 // pred_region
      _
    $region65: #{encoder_forward.1} parent=1 // pred_fallthru
      _
    // Predicated region
    $region66: #{encoder_forward.1} parent=1 // pred_check
      _
    $region67: #{encoder_forward.1} parent=1 // pred_check_branch
      %6315 = sbr.rel (0) target = $region69
    $region68: #{encoder_forward.1} parent=1 // pred_region
      %6316 = dma.done [#allocation5], 32
    $region69: #{encoder_forward.1} parent=1 // pred_fallthru
      _
    %6317 = vsyncpa [#allocation3], 1
    %6318 = vsyncpa [#allocation5], 1

</llo_original>
